<compile_context>
chip_gen: v7x
topology: tpu7x:2x2x1
jax: 0.10.0
libtpu: 0.0.40
codegen_flags: <defaults>
</compile_context>

<pallas_src>
import functools

import jax
import jax.numpy as jnp
from jax.experimental import pallas as pl
from jax.experimental.pallas import tpu as pltpu

FEAT = 1024          # feature dim coming out of the spconv backbone
ATTN_CH = 128        # AttentionModule_ReLU(in_channels=128)
HALF_CH = ATTN_CH // 2
HIDDEN = 1024        # mkMLP_ReLU(128*sgm_local, 1024)
HEAD_W = 8           # fused pose head width: 4 (quat) + 3 (trs) + 1 pad
EPS_LN = 1e-5
EPS_NORM = 1e-12


# ----------------------------------------------------------------------------
# in-kernel helper
# ----------------------------------------------------------------------------
def _ln_relu(x, g, b):
    """LayerNorm over last dim (PyTorch semantics, eps=1e-5) followed by ReLU."""
    mu = jnp.mean(x, axis=-1, keepdims=True)
    var = jnp.mean((x - mu) ** 2, axis=-1, keepdims=True)
    y = (x - mu) * jax.lax.rsqrt(var + EPS_LN)
    return jnp.maximum(y * g + b, 0.0)


# ----------------------------------------------------------------------------
# Fused kernel: attention + flatten + MLP + pose heads
# ----------------------------------------------------------------------------
def _fused_kernel(B, Ls, Lv,
                  sgm_ref, velo_ref,
                  wsgm_ref, gq_ref, bq_ref, gv2_ref, bv2_ref,
                  wvelo_ref, gk_ref, bk_ref, gv1_ref, bv1_ref,
                  w1_ref, g1_ref, b1_ref, w2_ref, g2_ref, b2_ref,
                  wrt_ref, brt_ref,
                  out_ref, x_buf):
    # ---- AttentionModule_ReLU projections, batched over all batches --------
    sgm = sgm_ref[...].astype(jnp.bfloat16)      # (B*Ls, 1024)
    velo = velo_ref[...].astype(jnp.bfloat16)    # (B*Lv, 1024)

    # fused [q | v2] and [k | v1] projections, f32 accumulation
    proj_s = jnp.dot(sgm, wsgm_ref[...], preferred_element_type=jnp.float32)    # (B*Ls, 192)
    proj_v = jnp.dot(velo, wvelo_ref[...], preferred_element_type=jnp.float32)  # (B*Lv, 192)

    q = _ln_relu(proj_s[:, :ATTN_CH], gq_ref[...], bq_ref[...])      # (B*Ls, 128)
    v2 = _ln_relu(proj_s[:, ATTN_CH:], gv2_ref[...], bv2_ref[...])   # (B*Ls, 64)
    k = _ln_relu(proj_v[:, :ATTN_CH], gk_ref[...], bk_ref[...])      # (B*Lv, 128)
    v1 = _ln_relu(proj_v[:, ATTN_CH:], gv1_ref[...], bv1_ref[...])   # (B*Lv, 64)

    # ---- per-batch softmax attention + pack outf into x (torch .view(B,-1)) --
    for b in range(B):                       # B is tiny and static
        qb = q[b * Ls:(b + 1) * Ls, :]       # (Ls, 128)
        kb = k[b * Lv:(b + 1) * Lv, :]       # (Lv, 128)
        v1b = v1[b * Lv:(b + 1) * Lv, :]     # (Lv, 64)
        v2b = v2[b * Ls:(b + 1) * Ls, :]     # (Ls, 64)

        # q @ k^T without materializing a transpose of k
        scores = jax.lax.dot_general(
            qb, kb, (((1,), (1,)), ((), ())),
            preferred_element_type=jnp.float32)                      # (Ls, Lv)
        scores = scores - jnp.max(scores, axis=-1, keepdims=True)
        e = jnp.exp(scores)
        probs = e * pl.reciprocal(jnp.sum(e, axis=-1, keepdims=True), approx=True)
        attnb = jnp.dot(probs, v1b, preferred_element_type=jnp.float32)  # (Ls, 64)

        # outf = cat([v2, attn], -1); write flattened rows with lane-aligned
        # 128-wide stores (avoids an in-kernel sublane->lane reshape).
        outb = jnp.concatenate([v2b, attnb], axis=-1)                # (Ls, 128)
        for s in range(Ls):
            x_buf[b:b + 1, s * ATTN_CH:(s + 1) * ATTN_CH] = outb[s:s + 1, :]

    # ---- linear3 = mkMLP_ReLU(128*Ls, 1024, bias=False) ---------------------
    x = x_buf[...].astype(jnp.bfloat16)                              # (B, 128*Ls)
    h1 = _ln_relu(jnp.dot(x, w1_ref[...], preferred_element_type=jnp.float32),
                  g1_ref[...], b1_ref[...])                          # (B, 1024)
    h2 = _ln_relu(jnp.dot(h1.astype(jnp.bfloat16), w2_ref[...],
                          preferred_element_type=jnp.float32),
                  g2_ref[...], b2_ref[...])                          # (B, 1024)

    # ---- fused pose heads: [r | t | pad] in one matmul ----------------------
    rt = jnp.dot(h2.astype(jnp.bfloat16), wrt_ref[...],
                 preferred_element_type=jnp.float32) + brt_ref[...]  # (B, 8)
    quat = rt[:, 0:4]
    nrm = jnp.sqrt(jnp.sum(quat * quat, axis=-1, keepdims=True))
    inv = pl.reciprocal(jnp.maximum(nrm, EPS_NORM), approx=False)    # F.normalize(dim=1)
    out_ref[:, 0:4] = quat * inv
    out_ref[:, 4:8] = rt[:, 4:8]


def fused_forward_pallas(sgm2d, velo2d, p, B, Ls, Lv):
    args = (sgm2d, velo2d,
            p["w_sgm"], p["gq"], p["bq"], p["gv2"], p["bv2"],
            p["w_velo"], p["gk"], p["bk"], p["gv1"], p["bv1"],
            p["w1"], p["g1"], p["b1"],
            p["w2"], p["g2"], p["b2"],
            p["w_rt"], p["b_rt"])

    def fullspec(arr):
        n = arr.ndim
        return pl.BlockSpec(arr.shape, lambda i, _n=n: (0,) * _n)

    kernel = functools.partial(_fused_kernel, B, Ls, Lv)
    return pl.pallas_call(
        kernel,
        out_shape=jax.ShapeDtypeStruct((B, HEAD_W), jnp.float32),
        grid=(1,),
        in_specs=[fullspec(a) for a in args],
        out_specs=pl.BlockSpec((B, HEAD_W), lambda i: (0, 0)),
        scratch_shapes=[pltpu.VMEM((B, Ls * ATTN_CH), jnp.float32)],
        compiler_params=pltpu.CompilerParams(
            dimension_semantics=("arbitrary",),
            vmem_limit_bytes=32 * 1024 * 1024),
    )(*args)


# ----------------------------------------------------------------------------
# FlattenFunc (glue, plain JAX): pack sparse per-batch features into
# (B, local, 1024), taking at most `local` rows per batch in order, zero-padded.
# ----------------------------------------------------------------------------
def flatten_func(feat, idx, batch_size, local):
    batch = idx[:, 0].astype(jnp.int32)                                # (N,)
    onehot = (batch[:, None] == jnp.arange(batch_size)[None, :]).astype(jnp.int32)
    occ = jnp.cumsum(onehot, axis=0) - onehot                          # rows before, per batch
    pos = jnp.sum(occ * onehot, axis=1)                                # occurrence index in own batch
    pos_c = jnp.minimum(pos, local)                                    # overflow -> dummy slot
    out = jnp.zeros((batch_size, local + 1, FEAT), jnp.float32)
    out = out.at[batch, pos_c].set(feat)
    return out[:, :local, :]


# ----------------------------------------------------------------------------
# Parameters (deterministic, synthetic init; shapes from Deepv2_2cm.__init__),
# stored pre-fused and in bfloat16 for the weight matrices.
# ----------------------------------------------------------------------------
def init_params(key, sgm_local):
    ks = jax.random.split(key, 10)
    s = 0.05

    def lin(k, din, dout):
        return s * jax.random.normal(k, (din, dout), jnp.float32)

    def ones(c):
        return jnp.ones((1, c), jnp.float32)

    def zeros(c):
        return jnp.zeros((1, c), jnp.float32)

    p = {}
    # AttentionModule_ReLU(128, bias=False): Linear(1024,C) + LayerNorm(C) + ReLU
    wq, wk = lin(ks[0], FEAT, ATTN_CH), lin(ks[1], FEAT, ATTN_CH)
    wv1, wv2 = lin(ks[2], FEAT, HALF_CH), lin(ks[3], FEAT, HALF_CH)
    p["w_sgm"] = jnp.concatenate([wq, wv2], axis=1).astype(jnp.bfloat16)   # (1024, 192)
    p["w_velo"] = jnp.concatenate([wk, wv1], axis=1).astype(jnp.bfloat16)  # (1024, 192)
    p["gq"], p["bq"] = ones(ATTN_CH), zeros(ATTN_CH)
    p["gk"], p["bk"] = ones(ATTN_CH), zeros(ATTN_CH)
    p["gv1"], p["bv1"] = ones(HALF_CH), zeros(HALF_CH)
    p["gv2"], p["bv2"] = ones(HALF_CH), zeros(HALF_CH)
    # linear3 = mkMLP_ReLU(128*sgm_local, 1024, bias=False)
    p["w1"] = lin(ks[4], ATTN_CH * sgm_local, HIDDEN).astype(jnp.bfloat16)
    p["g1"], p["b1"] = ones(HIDDEN), zeros(HIDDEN)
    p["w2"] = lin(ks[5], HIDDEN, HIDDEN).astype(jnp.bfloat16)
    p["g2"], p["b2"] = ones(HIDDEN), zeros(HIDDEN)
    # r: Linear(1024,4, bias=True), t: Linear(1024,3, bias=True) -> fused (1024, 8)
    wr, wt = lin(ks[6], HIDDEN, 4), lin(ks[8], HIDDEN, 3)
    br = s * jax.random.normal(ks[7], (1, 4), jnp.float32)
    bt = s * jax.random.normal(ks[9], (1, 3), jnp.float32)
    p["w_rt"] = jnp.concatenate(
        [wr, wt, jnp.zeros((HIDDEN, 1), jnp.float32)], axis=1).astype(jnp.bfloat16)
    p["b_rt"] = jnp.concatenate([br, bt, jnp.zeros((1, 1), jnp.float32)], axis=1)
    return p


# ----------------------------------------------------------------------------
# Full forward (post-spconv): FlattenFunc -> fused attention/MLP/heads kernel
# ----------------------------------------------------------------------------
@functools.partial(jax.jit, static_argnums=(5, 6, 7))
def deepv2_forward(sgm_feat, sgm_idx, velo_feat, velo_idx, params,
                   batch_size, sgm_local, velo_local):
    newsgm = flatten_func(sgm_feat, sgm_idx, batch_size, sgm_local)      # (B, Ls, 1024)
    newvelo = flatten_func(velo_feat, velo_idx, batch_size, velo_local)  # (B, Lv, 1024)
    sgm2d = newsgm.reshape(batch_size * sgm_local, FEAT)
    velo2d = newvelo.reshape(batch_size * velo_local, FEAT)
    out = fused_forward_pallas(sgm2d, velo2d, params,
                               batch_size, sgm_local, velo_local)        # (B, 8)
    quaternion = out[:, :4]
    translate = out[:, 4:7]
    return quaternion, translate


if __name__ == "__main__":
    B = 2
    sgm_local = 8
    velo_local = 8

    key = jax.random.PRNGKey(0)
    kp, k1, k2, k3, k4 = jax.random.split(key, 5)
    params = init_params(kp, sgm_local)

    # Synthetic post-backbone sparse tensors (features + (batch,z,y,x) indices).
    # One batch overflows sgm_local / velo_local to exercise truncation,
    # the other underflows to exercise zero padding (as in FlattenFunc).
    n_sgm, n_velo = 13, 11
    sgm_feat = jax.random.normal(k1, (n_sgm, FEAT), jnp.float32)
    velo_feat = jax.random.normal(k2, (n_velo, FEAT), jnp.float32)
    sgm_b = jnp.array([0] * 10 + [1] * 3, jnp.int32)     # batch 0: 10 (>8), batch 1: 3 (<8)
    velo_b = jnp.array([0] * 4 + [1] * 7, jnp.int32)     # batch 0: 4,       batch 1: 7
    sgm_idx = jnp.concatenate(
        [sgm_b[:, None], jax.random.randint(k3, (n_sgm, 3), 0, 8)], axis=1).astype(jnp.int32)
    velo_idx = jnp.concatenate(
        [velo_b[:, None], jax.random.randint(k4, (n_velo, 3), 0, 8)], axis=1).astype(jnp.int32)

    quaternion, translate = deepv2_forward(
        sgm_feat, sgm_idx, velo_feat, velo_idx, params, B, sgm_local, velo_local)
    jax.block_until_ready((quaternion, translate))

    assert quaternion.shape == (B, 4) and translate.shape == (B, 3)
    assert bool(jnp.all(jnp.isfinite(quaternion))) and bool(jnp.all(jnp.isfinite(translate)))
    print("KERNEL_OK")
</pallas_src>

<mosaic_0001>
module attributes {stable_mosaic.version = 11 : i64} {
  func.func @_fused_kernel(%arg0: i32, %arg1: memref<16x1024xf32, #tpu.memory_space<vmem>>, %arg2: memref<16x1024xf32, #tpu.memory_space<vmem>>, %arg3: memref<1024x192xbf16, #tpu.memory_space<vmem>>, %arg4: memref<1x128xf32, #tpu.memory_space<vmem>>, %arg5: memref<1x128xf32, #tpu.memory_space<vmem>>, %arg6: memref<1x64xf32, #tpu.memory_space<vmem>>, %arg7: memref<1x64xf32, #tpu.memory_space<vmem>>, %arg8: memref<1024x192xbf16, #tpu.memory_space<vmem>>, %arg9: memref<1x128xf32, #tpu.memory_space<vmem>>, %arg10: memref<1x128xf32, #tpu.memory_space<vmem>>, %arg11: memref<1x64xf32, #tpu.memory_space<vmem>>, %arg12: memref<1x64xf32, #tpu.memory_space<vmem>>, %arg13: memref<1024x1024xbf16, #tpu.memory_space<vmem>>, %arg14: memref<1x1024xf32, #tpu.memory_space<vmem>>, %arg15: memref<1x1024xf32, #tpu.memory_space<vmem>>, %arg16: memref<1024x1024xbf16, #tpu.memory_space<vmem>>, %arg17: memref<1x1024xf32, #tpu.memory_space<vmem>>, %arg18: memref<1x1024xf32, #tpu.memory_space<vmem>>, %arg19: memref<1024x8xbf16, #tpu.memory_space<vmem>>, %arg20: memref<1x8xf32, #tpu.memory_space<vmem>>, %arg21: memref<2x8xf32, #tpu.memory_space<vmem>>, %arg22: memref<2x1024xf32, #tpu.memory_space<vmem>>) attributes {dimension_semantics = [#tpu.dimension_semantics<arbitrary>], iteration_bounds = array<i64: 1>, scalar_prefetch = 0 : i64, scratch_operands = 1 : i64, tpu.core_type = #tpu.core_type<tc>, window_params = [{pipeline_mode = #tpu.pipeline_mode<synchronous>, transform_indices = @transform_0, window_bounds = array<i64: 16, 1024>}, {pipeline_mode = #tpu.pipeline_mode<synchronous>, transform_indices = @transform_1, window_bounds = array<i64: 16, 1024>}, {pipeline_mode = #tpu.pipeline_mode<synchronous>, transform_indices = @transform_2, window_bounds = array<i64: 1024, 192>}, {pipeline_mode = #tpu.pipeline_mode<synchronous>, transform_indices = @transform_3, window_bounds = array<i64: 1, 128>}, {pipeline_mode = #tpu.pipeline_mode<synchronous>, transform_indices = @transform_4, window_bounds = array<i64: 1, 128>}, {pipeline_mode = #tpu.pipeline_mode<synchronous>, transform_indices = @transform_5, window_bounds = array<i64: 1, 64>}, {pipeline_mode = #tpu.pipeline_mode<synchronous>, transform_indices = @transform_6, window_bounds = array<i64: 1, 64>}, {pipeline_mode = #tpu.pipeline_mode<synchronous>, transform_indices = @transform_7, window_bounds = array<i64: 1024, 192>}, {pipeline_mode = #tpu.pipeline_mode<synchronous>, transform_indices = @transform_8, window_bounds = array<i64: 1, 128>}, {pipeline_mode = #tpu.pipeline_mode<synchronous>, transform_indices = @transform_9, window_bounds = array<i64: 1, 128>}, {pipeline_mode = #tpu.pipeline_mode<synchronous>, transform_indices = @transform_10, window_bounds = array<i64: 1, 64>}, {pipeline_mode = #tpu.pipeline_mode<synchronous>, transform_indices = @transform_11, window_bounds = array<i64: 1, 64>}, {pipeline_mode = #tpu.pipeline_mode<synchronous>, transform_indices = @transform_12, window_bounds = array<i64: 1024, 1024>}, {pipeline_mode = #tpu.pipeline_mode<synchronous>, transform_indices = @transform_13, window_bounds = array<i64: 1, 1024>}, {pipeline_mode = #tpu.pipeline_mode<synchronous>, transform_indices = @transform_14, window_bounds = array<i64: 1, 1024>}, {pipeline_mode = #tpu.pipeline_mode<synchronous>, transform_indices = @transform_15, window_bounds = array<i64: 1024, 1024>}, {pipeline_mode = #tpu.pipeline_mode<synchronous>, transform_indices = @transform_16, window_bounds = array<i64: 1, 1024>}, {pipeline_mode = #tpu.pipeline_mode<synchronous>, transform_indices = @transform_17, window_bounds = array<i64: 1, 1024>}, {pipeline_mode = #tpu.pipeline_mode<synchronous>, transform_indices = @transform_18, window_bounds = array<i64: 1024, 8>}, {pipeline_mode = #tpu.pipeline_mode<synchronous>, transform_indices = @transform_19, window_bounds = array<i64: 1, 8>}, {pipeline_mode = #tpu.pipeline_mode<synchronous>, transform_indices = @transform_20, window_bounds = array<i64: 2, 8>}]} {
    %c0 = arith.constant 0 : index
    %c0_0 = arith.constant 0 : index
    %0 = vector.load %arg1[%c0, %c0_0] : memref<16x1024xf32, #tpu.memory_space<vmem>>, vector<16x1024xf32>
    %1 = arith.truncf %0 : vector<16x1024xf32> to vector<16x1024xbf16>
    %c0_1 = arith.constant 0 : index
    %c0_2 = arith.constant 0 : index
    %2 = vector.load %arg2[%c0_1, %c0_2] : memref<16x1024xf32, #tpu.memory_space<vmem>>, vector<16x1024xf32>
    %3 = arith.truncf %2 : vector<16x1024xf32> to vector<16x1024xbf16>
    %c0_3 = arith.constant 0 : index
    %c0_4 = arith.constant 0 : index
    %4 = vector.load %arg3[%c0_3, %c0_4] : memref<1024x192xbf16, #tpu.memory_space<vmem>>, vector<1024x192xbf16>
    %cst = arith.constant dense<0.000000e+00> : vector<16x192xf32>
    %5 = tpu.matmul %1, %4, %cst {dimension_numbers = #tpu.dot_dimension_numbers<[1], [0], [0], [1], [0, 0, 1, 1], [], []>} : vector<16x1024xbf16>, vector<1024x192xbf16>, vector<16x192xf32> -> vector<16x192xf32>
    %c0_5 = arith.constant 0 : index
    %c0_6 = arith.constant 0 : index
    %6 = vector.load %arg8[%c0_5, %c0_6] : memref<1024x192xbf16, #tpu.memory_space<vmem>>, vector<1024x192xbf16>
    %cst_7 = arith.constant dense<0.000000e+00> : vector<16x192xf32>
    %7 = tpu.matmul %3, %6, %cst_7 {dimension_numbers = #tpu.dot_dimension_numbers<[1], [0], [0], [1], [0, 0, 1, 1], [], []>} : vector<16x1024xbf16>, vector<1024x192xbf16>, vector<16x192xf32> -> vector<16x192xf32>
    %8 = vector.extract_strided_slice %5 {offsets = [0, 0], sizes = [16, 128], strides = [1, 1]} : vector<16x192xf32> to vector<16x128xf32>
    %c0_8 = arith.constant 0 : index
    %c0_9 = arith.constant 0 : index
    %9 = vector.load %arg4[%c0_8, %c0_9] : memref<1x128xf32, #tpu.memory_space<vmem>>, vector<1x128xf32>
    %c0_10 = arith.constant 0 : index
    %c0_11 = arith.constant 0 : index
    %10 = vector.load %arg5[%c0_10, %c0_11] : memref<1x128xf32, #tpu.memory_space<vmem>>, vector<1x128xf32>
    %cst_12 = arith.constant dense<0.000000e+00> : vector<16xf32>
    %11 = vector.multi_reduction <add>, %8, %cst_12 [1] : vector<16x128xf32> to vector<16xf32>
    %12 = vector.shape_cast %11 : vector<16xf32> to vector<16x1xf32>
    %cst_13 = arith.constant 1.280000e+02 : f32
    %13 = vector.broadcast %cst_13 : f32 to vector<16x1xf32>
    %14 = arith.divf %12, %13 : vector<16x1xf32>
    %15 = vector.broadcast %14 : vector<16x1xf32> to vector<16x128xf32>
    %16 = arith.subf %8, %15 : vector<16x128xf32>
    %17 = arith.mulf %16, %16 : vector<16x128xf32>
    %cst_14 = arith.constant dense<0.000000e+00> : vector<16xf32>
    %18 = vector.multi_reduction <add>, %17, %cst_14 [1] : vector<16x128xf32> to vector<16xf32>
    %19 = vector.shape_cast %18 : vector<16xf32> to vector<16x1xf32>
    %cst_15 = arith.constant 1.280000e+02 : f32
    %20 = vector.broadcast %cst_15 : f32 to vector<16x1xf32>
    %21 = arith.divf %19, %20 : vector<16x1xf32>
    %22 = vector.broadcast %14 : vector<16x1xf32> to vector<16x128xf32>
    %23 = arith.subf %8, %22 : vector<16x128xf32>
    %cst_16 = arith.constant 9.99999974E-6 : f32
    %24 = vector.broadcast %cst_16 : f32 to vector<16x1xf32>
    %25 = arith.addf %21, %24 : vector<16x1xf32>
    %26 = math.rsqrt %25 : vector<16x1xf32>
    %27 = vector.broadcast %26 : vector<16x1xf32> to vector<16x128xf32>
    %28 = arith.mulf %23, %27 : vector<16x128xf32>
    %29 = vector.broadcast %9 : vector<1x128xf32> to vector<16x128xf32>
    %30 = arith.mulf %28, %29 : vector<16x128xf32>
    %31 = vector.broadcast %10 : vector<1x128xf32> to vector<16x128xf32>
    %32 = arith.addf %30, %31 : vector<16x128xf32>
    %cst_17 = arith.constant 0.000000e+00 : f32
    %33 = vector.broadcast %cst_17 : f32 to vector<16x128xf32>
    %34 = arith.maximumf %32, %33 : vector<16x128xf32>
    %35 = vector.extract_strided_slice %5 {offsets = [0, 128], sizes = [16, 64], strides = [1, 1]} : vector<16x192xf32> to vector<16x64xf32>
    %c0_18 = arith.constant 0 : index
    %c0_19 = arith.constant 0 : index
    %36 = vector.load %arg6[%c0_18, %c0_19] : memref<1x64xf32, #tpu.memory_space<vmem>>, vector<1x64xf32>
    %c0_20 = arith.constant 0 : index
    %c0_21 = arith.constant 0 : index
    %37 = vector.load %arg7[%c0_20, %c0_21] : memref<1x64xf32, #tpu.memory_space<vmem>>, vector<1x64xf32>
    %cst_22 = arith.constant dense<0.000000e+00> : vector<16xf32>
    %38 = vector.multi_reduction <add>, %35, %cst_22 [1] : vector<16x64xf32> to vector<16xf32>
    %39 = vector.shape_cast %38 : vector<16xf32> to vector<16x1xf32>
    %cst_23 = arith.constant 6.400000e+01 : f32
    %40 = vector.broadcast %cst_23 : f32 to vector<16x1xf32>
    %41 = arith.divf %39, %40 : vector<16x1xf32>
    %42 = vector.broadcast %41 : vector<16x1xf32> to vector<16x64xf32>
    %43 = arith.subf %35, %42 : vector<16x64xf32>
    %44 = arith.mulf %43, %43 : vector<16x64xf32>
    %cst_24 = arith.constant dense<0.000000e+00> : vector<16xf32>
    %45 = vector.multi_reduction <add>, %44, %cst_24 [1] : vector<16x64xf32> to vector<16xf32>
    %46 = vector.shape_cast %45 : vector<16xf32> to vector<16x1xf32>
    %cst_25 = arith.constant 6.400000e+01 : f32
    %47 = vector.broadcast %cst_25 : f32 to vector<16x1xf32>
    %48 = arith.divf %46, %47 : vector<16x1xf32>
    %49 = vector.broadcast %41 : vector<16x1xf32> to vector<16x64xf32>
    %50 = arith.subf %35, %49 : vector<16x64xf32>
    %cst_26 = arith.constant 9.99999974E-6 : f32
    %51 = vector.broadcast %cst_26 : f32 to vector<16x1xf32>
    %52 = arith.addf %48, %51 : vector<16x1xf32>
    %53 = math.rsqrt %52 : vector<16x1xf32>
    %54 = vector.broadcast %53 : vector<16x1xf32> to vector<16x64xf32>
    %55 = arith.mulf %50, %54 : vector<16x64xf32>
    %56 = vector.broadcast %36 : vector<1x64xf32> to vector<16x64xf32>
    %57 = arith.mulf %55, %56 : vector<16x64xf32>
    %58 = vector.broadcast %37 : vector<1x64xf32> to vector<16x64xf32>
    %59 = arith.addf %57, %58 : vector<16x64xf32>
    %cst_27 = arith.constant 0.000000e+00 : f32
    %60 = vector.broadcast %cst_27 : f32 to vector<16x64xf32>
    %61 = arith.maximumf %59, %60 : vector<16x64xf32>
    %62 = vector.extract_strided_slice %7 {offsets = [0, 0], sizes = [16, 128], strides = [1, 1]} : vector<16x192xf32> to vector<16x128xf32>
    %c0_28 = arith.constant 0 : index
    %c0_29 = arith.constant 0 : index
    %63 = vector.load %arg9[%c0_28, %c0_29] : memref<1x128xf32, #tpu.memory_space<vmem>>, vector<1x128xf32>
    %c0_30 = arith.constant 0 : index
    %c0_31 = arith.constant 0 : index
    %64 = vector.load %arg10[%c0_30, %c0_31] : memref<1x128xf32, #tpu.memory_space<vmem>>, vector<1x128xf32>
    %cst_32 = arith.constant dense<0.000000e+00> : vector<16xf32>
    %65 = vector.multi_reduction <add>, %62, %cst_32 [1] : vector<16x128xf32> to vector<16xf32>
    %66 = vector.shape_cast %65 : vector<16xf32> to vector<16x1xf32>
    %cst_33 = arith.constant 1.280000e+02 : f32
    %67 = vector.broadcast %cst_33 : f32 to vector<16x1xf32>
    %68 = arith.divf %66, %67 : vector<16x1xf32>
    %69 = vector.broadcast %68 : vector<16x1xf32> to vector<16x128xf32>
    %70 = arith.subf %62, %69 : vector<16x128xf32>
    %71 = arith.mulf %70, %70 : vector<16x128xf32>
    %cst_34 = arith.constant dense<0.000000e+00> : vector<16xf32>
    %72 = vector.multi_reduction <add>, %71, %cst_34 [1] : vector<16x128xf32> to vector<16xf32>
    %73 = vector.shape_cast %72 : vector<16xf32> to vector<16x1xf32>
    %cst_35 = arith.constant 1.280000e+02 : f32
    %74 = vector.broadcast %cst_35 : f32 to vector<16x1xf32>
    %75 = arith.divf %73, %74 : vector<16x1xf32>
    %76 = vector.broadcast %68 : vector<16x1xf32> to vector<16x128xf32>
    %77 = arith.subf %62, %76 : vector<16x128xf32>
    %cst_36 = arith.constant 9.99999974E-6 : f32
    %78 = vector.broadcast %cst_36 : f32 to vector<16x1xf32>
    %79 = arith.addf %75, %78 : vector<16x1xf32>
    %80 = math.rsqrt %79 : vector<16x1xf32>
    %81 = vector.broadcast %80 : vector<16x1xf32> to vector<16x128xf32>
    %82 = arith.mulf %77, %81 : vector<16x128xf32>
    %83 = vector.broadcast %63 : vector<1x128xf32> to vector<16x128xf32>
    %84 = arith.mulf %82, %83 : vector<16x128xf32>
    %85 = vector.broadcast %64 : vector<1x128xf32> to vector<16x128xf32>
    %86 = arith.addf %84, %85 : vector<16x128xf32>
    %cst_37 = arith.constant 0.000000e+00 : f32
    %87 = vector.broadcast %cst_37 : f32 to vector<16x128xf32>
    %88 = arith.maximumf %86, %87 : vector<16x128xf32>
    %89 = vector.extract_strided_slice %7 {offsets = [0, 128], sizes = [16, 64], strides = [1, 1]} : vector<16x192xf32> to vector<16x64xf32>
    %c0_38 = arith.constant 0 : index
    %c0_39 = arith.constant 0 : index
    %90 = vector.load %arg11[%c0_38, %c0_39] : memref<1x64xf32, #tpu.memory_space<vmem>>, vector<1x64xf32>
    %c0_40 = arith.constant 0 : index
    %c0_41 = arith.constant 0 : index
    %91 = vector.load %arg12[%c0_40, %c0_41] : memref<1x64xf32, #tpu.memory_space<vmem>>, vector<1x64xf32>
    %cst_42 = arith.constant dense<0.000000e+00> : vector<16xf32>
    %92 = vector.multi_reduction <add>, %89, %cst_42 [1] : vector<16x64xf32> to vector<16xf32>
    %93 = vector.shape_cast %92 : vector<16xf32> to vector<16x1xf32>
    %cst_43 = arith.constant 6.400000e+01 : f32
    %94 = vector.broadcast %cst_43 : f32 to vector<16x1xf32>
    %95 = arith.divf %93, %94 : vector<16x1xf32>
    %96 = vector.broadcast %95 : vector<16x1xf32> to vector<16x64xf32>
    %97 = arith.subf %89, %96 : vector<16x64xf32>
    %98 = arith.mulf %97, %97 : vector<16x64xf32>
    %cst_44 = arith.constant dense<0.000000e+00> : vector<16xf32>
    %99 = vector.multi_reduction <add>, %98, %cst_44 [1] : vector<16x64xf32> to vector<16xf32>
    %100 = vector.shape_cast %99 : vector<16xf32> to vector<16x1xf32>
    %cst_45 = arith.constant 6.400000e+01 : f32
    %101 = vector.broadcast %cst_45 : f32 to vector<16x1xf32>
    %102 = arith.divf %100, %101 : vector<16x1xf32>
    %103 = vector.broadcast %95 : vector<16x1xf32> to vector<16x64xf32>
    %104 = arith.subf %89, %103 : vector<16x64xf32>
    %cst_46 = arith.constant 9.99999974E-6 : f32
    %105 = vector.broadcast %cst_46 : f32 to vector<16x1xf32>
    %106 = arith.addf %102, %105 : vector<16x1xf32>
    %107 = math.rsqrt %106 : vector<16x1xf32>
    %108 = vector.broadcast %107 : vector<16x1xf32> to vector<16x64xf32>
    %109 = arith.mulf %104, %108 : vector<16x64xf32>
    %110 = vector.broadcast %90 : vector<1x64xf32> to vector<16x64xf32>
    %111 = arith.mulf %109, %110 : vector<16x64xf32>
    %112 = vector.broadcast %91 : vector<1x64xf32> to vector<16x64xf32>
    %113 = arith.addf %111, %112 : vector<16x64xf32>
    %cst_47 = arith.constant 0.000000e+00 : f32
    %114 = vector.broadcast %cst_47 : f32 to vector<16x64xf32>
    %115 = arith.maximumf %113, %114 : vector<16x64xf32>
    %116 = vector.extract_strided_slice %34 {offsets = [0, 0], sizes = [8, 128], strides = [1, 1]} : vector<16x128xf32> to vector<8x128xf32>
    %117 = vector.extract_strided_slice %88 {offsets = [0, 0], sizes = [8, 128], strides = [1, 1]} : vector<16x128xf32> to vector<8x128xf32>
    %118 = vector.extract_strided_slice %115 {offsets = [0, 0], sizes = [8, 64], strides = [1, 1]} : vector<16x64xf32> to vector<8x64xf32>
    %119 = vector.extract_strided_slice %61 {offsets = [0, 0], sizes = [8, 64], strides = [1, 1]} : vector<16x64xf32> to vector<8x64xf32>
    %cst_48 = arith.constant dense<0.000000e+00> : vector<8x8xf32>
    %120 = tpu.matmul %116, %117, %cst_48 {dimension_numbers = #tpu.dot_dimension_numbers<[1], [1], [0], [0], [0, 0, 1, 0], [], []>} : vector<8x128xf32>, vector<8x128xf32>, vector<8x8xf32> -> vector<8x8xf32>
    %cst_49 = arith.constant dense<0xFF800000> : vector<8xf32>
    %121 = vector.multi_reduction <maximumf>, %120, %cst_49 [1] : vector<8x8xf32> to vector<8xf32>
    %122 = vector.shape_cast %121 : vector<8xf32> to vector<8x1xf32>
    %123 = vector.broadcast %122 : vector<8x1xf32> to vector<8x8xf32>
    %124 = arith.subf %120, %123 : vector<8x8xf32>
    %125 = math.exp %124 : vector<8x8xf32>
    %cst_50 = arith.constant dense<0.000000e+00> : vector<8xf32>
    %126 = vector.multi_reduction <add>, %125, %cst_50 [1] : vector<8x8xf32> to vector<8xf32>
    %127 = vector.shape_cast %126 : vector<8xf32> to vector<8x1xf32>
    %128 = tpu.reciprocal %127 {approx = true} : vector<8x1xf32> -> vector<8x1xf32>
    %129 = vector.broadcast %128 : vector<8x1xf32> to vector<8x8xf32>
    %130 = arith.mulf %125, %129 : vector<8x8xf32>
    %cst_51 = arith.constant dense<0.000000e+00> : vector<8x64xf32>
    %131 = tpu.matmul %130, %118, %cst_51 {dimension_numbers = #tpu.dot_dimension_numbers<[1], [0], [0], [1], [0, 0, 1, 1], [], []>} : vector<8x8xf32>, vector<8x64xf32>, vector<8x64xf32> -> vector<8x64xf32>
    %132 = tpu.concatenate %119, %131 in 1 : vector<8x64xf32>, vector<8x64xf32> -> vector<8x128xf32>
    %133 = vector.extract_strided_slice %132 {offsets = [0, 0], sizes = [1, 128], strides = [1, 1]} : vector<8x128xf32> to vector<1x128xf32>
    %c0_52 = arith.constant 0 : index
    %c0_53 = arith.constant 0 : index
    %134 = vector.load %arg22[%c0_52, %c0_53] : memref<2x1024xf32, #tpu.memory_space<vmem>>, vector<1x128xf32>
    tpu.vector_store %arg22[%c0_52, %c0_53], %133 {strides = array<i32>} : memref<2x1024xf32, #tpu.memory_space<vmem>>, vector<1x128xf32>,
    %135 = vector.extract_strided_slice %132 {offsets = [1, 0], sizes = [1, 128], strides = [1, 1]} : vector<8x128xf32> to vector<1x128xf32>
    %c0_54 = arith.constant 0 : index
    %c128 = arith.constant 128 : index
    %136 = vector.load %arg22[%c0_54, %c128] : memref<2x1024xf32, #tpu.memory_space<vmem>>, vector<1x128xf32>
    tpu.vector_store %arg22[%c0_54, %c128], %135 {strides = array<i32>} : memref<2x1024xf32, #tpu.memory_space<vmem>>, vector<1x128xf32>,
    %137 = vector.extract_strided_slice %132 {offsets = [2, 0], sizes = [1, 128], strides = [1, 1]} : vector<8x128xf32> to vector<1x128xf32>
    %c0_55 = arith.constant 0 : index
    %c256 = arith.constant 256 : index
    %138 = vector.load %arg22[%c0_55, %c256] : memref<2x1024xf32, #tpu.memory_space<vmem>>, vector<1x128xf32>
    tpu.vector_store %arg22[%c0_55, %c256], %137 {strides = array<i32>} : memref<2x1024xf32, #tpu.memory_space<vmem>>, vector<1x128xf32>,
    %139 = vector.extract_strided_slice %132 {offsets = [3, 0], sizes = [1, 128], strides = [1, 1]} : vector<8x128xf32> to vector<1x128xf32>
    %c0_56 = arith.constant 0 : index
    %c384 = arith.constant 384 : index
    %140 = vector.load %arg22[%c0_56, %c384] : memref<2x1024xf32, #tpu.memory_space<vmem>>, vector<1x128xf32>
    tpu.vector_store %arg22[%c0_56, %c384], %139 {strides = array<i32>} : memref<2x1024xf32, #tpu.memory_space<vmem>>, vector<1x128xf32>,
    %141 = vector.extract_strided_slice %132 {offsets = [4, 0], sizes = [1, 128], strides = [1, 1]} : vector<8x128xf32> to vector<1x128xf32>
    %c0_57 = arith.constant 0 : index
    %c512 = arith.constant 512 : index
    %142 = vector.load %arg22[%c0_57, %c512] : memref<2x1024xf32, #tpu.memory_space<vmem>>, vector<1x128xf32>
    tpu.vector_store %arg22[%c0_57, %c512], %141 {strides = array<i32>} : memref<2x1024xf32, #tpu.memory_space<vmem>>, vector<1x128xf32>,
    %143 = vector.extract_strided_slice %132 {offsets = [5, 0], sizes = [1, 128], strides = [1, 1]} : vector<8x128xf32> to vector<1x128xf32>
    %c0_58 = arith.constant 0 : index
    %c640 = arith.constant 640 : index
    %144 = vector.load %arg22[%c0_58, %c640] : memref<2x1024xf32, #tpu.memory_space<vmem>>, vector<1x128xf32>
    tpu.vector_store %arg22[%c0_58, %c640], %143 {strides = array<i32>} : memref<2x1024xf32, #tpu.memory_space<vmem>>, vector<1x128xf32>,
    %145 = vector.extract_strided_slice %132 {offsets = [6, 0], sizes = [1, 128], strides = [1, 1]} : vector<8x128xf32> to vector<1x128xf32>
    %c0_59 = arith.constant 0 : index
    %c768 = arith.constant 768 : index
    %146 = vector.load %arg22[%c0_59, %c768] : memref<2x1024xf32, #tpu.memory_space<vmem>>, vector<1x128xf32>
    tpu.vector_store %arg22[%c0_59, %c768], %145 {strides = array<i32>} : memref<2x1024xf32, #tpu.memory_space<vmem>>, vector<1x128xf32>,
    %147 = vector.extract_strided_slice %132 {offsets = [7, 0], sizes = [1, 128], strides = [1, 1]} : vector<8x128xf32> to vector<1x128xf32>
    %c0_60 = arith.constant 0 : index
    %c896 = arith.constant 896 : index
    %148 = vector.load %arg22[%c0_60, %c896] : memref<2x1024xf32, #tpu.memory_space<vmem>>, vector<1x128xf32>
    tpu.vector_store %arg22[%c0_60, %c896], %147 {strides = array<i32>} : memref<2x1024xf32, #tpu.memory_space<vmem>>, vector<1x128xf32>,
    %149 = vector.extract_strided_slice %34 {offsets = [8, 0], sizes = [8, 128], strides = [1, 1]} : vector<16x128xf32> to vector<8x128xf32>
    %150 = vector.extract_strided_slice %88 {offsets = [8, 0], sizes = [8, 128], strides = [1, 1]} : vector<16x128xf32> to vector<8x128xf32>
    %151 = vector.extract_strided_slice %115 {offsets = [8, 0], sizes = [8, 64], strides = [1, 1]} : vector<16x64xf32> to vector<8x64xf32>
    %152 = vector.extract_strided_slice %61 {offsets = [8, 0], sizes = [8, 64], strides = [1, 1]} : vector<16x64xf32> to vector<8x64xf32>
    %cst_61 = arith.constant dense<0.000000e+00> : vector<8x8xf32>
    %153 = tpu.matmul %149, %150, %cst_61 {dimension_numbers = #tpu.dot_dimension_numbers<[1], [1], [0], [0], [0, 0, 1, 0], [], []>} : vector<8x128xf32>, vector<8x128xf32>, vector<8x8xf32> -> vector<8x8xf32>
    %cst_62 = arith.constant dense<0xFF800000> : vector<8xf32>
    %154 = vector.multi_reduction <maximumf>, %153, %cst_62 [1] : vector<8x8xf32> to vector<8xf32>
    %155 = vector.shape_cast %154 : vector<8xf32> to vector<8x1xf32>
    %156 = vector.broadcast %155 : vector<8x1xf32> to vector<8x8xf32>
    %157 = arith.subf %153, %156 : vector<8x8xf32>
    %158 = math.exp %157 : vector<8x8xf32>
    %cst_63 = arith.constant dense<0.000000e+00> : vector<8xf32>
    %159 = vector.multi_reduction <add>, %158, %cst_63 [1] : vector<8x8xf32> to vector<8xf32>
    %160 = vector.shape_cast %159 : vector<8xf32> to vector<8x1xf32>
    %161 = tpu.reciprocal %160 {approx = true} : vector<8x1xf32> -> vector<8x1xf32>
    %162 = vector.broadcast %161 : vector<8x1xf32> to vector<8x8xf32>
    %163 = arith.mulf %158, %162 : vector<8x8xf32>
    %cst_64 = arith.constant dense<0.000000e+00> : vector<8x64xf32>
    %164 = tpu.matmul %163, %151, %cst_64 {dimension_numbers = #tpu.dot_dimension_numbers<[1], [0], [0], [1], [0, 0, 1, 1], [], []>} : vector<8x8xf32>, vector<8x64xf32>, vector<8x64xf32> -> vector<8x64xf32>
    %165 = tpu.concatenate %152, %164 in 1 : vector<8x64xf32>, vector<8x64xf32> -> vector<8x128xf32>
    %166 = vector.extract_strided_slice %165 {offsets = [0, 0], sizes = [1, 128], strides = [1, 1]} : vector<8x128xf32> to vector<1x128xf32>
    %c1 = arith.constant 1 : index
    %c0_65 = arith.constant 0 : index
    %167 = vector.load %arg22[%c1, %c0_65] : memref<2x1024xf32, #tpu.memory_space<vmem>>, vector<1x128xf32>
    tpu.vector_store %arg22[%c1, %c0_65], %166 {strides = array<i32>} : memref<2x1024xf32, #tpu.memory_space<vmem>>, vector<1x128xf32>,
    %168 = vector.extract_strided_slice %165 {offsets = [1, 0], sizes = [1, 128], strides = [1, 1]} : vector<8x128xf32> to vector<1x128xf32>
    %c1_66 = arith.constant 1 : index
    %c128_67 = arith.constant 128 : index
    %169 = vector.load %arg22[%c1_66, %c128_67] : memref<2x1024xf32, #tpu.memory_space<vmem>>, vector<1x128xf32>
    tpu.vector_store %arg22[%c1_66, %c128_67], %168 {strides = array<i32>} : memref<2x1024xf32, #tpu.memory_space<vmem>>, vector<1x128xf32>,
    %170 = vector.extract_strided_slice %165 {offsets = [2, 0], sizes = [1, 128], strides = [1, 1]} : vector<8x128xf32> to vector<1x128xf32>
    %c1_68 = arith.constant 1 : index
    %c256_69 = arith.constant 256 : index
    %171 = vector.load %arg22[%c1_68, %c256_69] : memref<2x1024xf32, #tpu.memory_space<vmem>>, vector<1x128xf32>
    tpu.vector_store %arg22[%c1_68, %c256_69], %170 {strides = array<i32>} : memref<2x1024xf32, #tpu.memory_space<vmem>>, vector<1x128xf32>,
    %172 = vector.extract_strided_slice %165 {offsets = [3, 0], sizes = [1, 128], strides = [1, 1]} : vector<8x128xf32> to vector<1x128xf32>
    %c1_70 = arith.constant 1 : index
    %c384_71 = arith.constant 384 : index
    %173 = vector.load %arg22[%c1_70, %c384_71] : memref<2x1024xf32, #tpu.memory_space<vmem>>, vector<1x128xf32>
    tpu.vector_store %arg22[%c1_70, %c384_71], %172 {strides = array<i32>} : memref<2x1024xf32, #tpu.memory_space<vmem>>, vector<1x128xf32>,
    %174 = vector.extract_strided_slice %165 {offsets = [4, 0], sizes = [1, 128], strides = [1, 1]} : vector<8x128xf32> to vector<1x128xf32>
    %c1_72 = arith.constant 1 : index
    %c512_73 = arith.constant 512 : index
    %175 = vector.load %arg22[%c1_72, %c512_73] : memref<2x1024xf32, #tpu.memory_space<vmem>>, vector<1x128xf32>
    tpu.vector_store %arg22[%c1_72, %c512_73], %174 {strides = array<i32>} : memref<2x1024xf32, #tpu.memory_space<vmem>>, vector<1x128xf32>,
    %176 = vector.extract_strided_slice %165 {offsets = [5, 0], sizes = [1, 128], strides = [1, 1]} : vector<8x128xf32> to vector<1x128xf32>
    %c1_74 = arith.constant 1 : index
    %c640_75 = arith.constant 640 : index
    %177 = vector.load %arg22[%c1_74, %c640_75] : memref<2x1024xf32, #tpu.memory_space<vmem>>, vector<1x128xf32>
    tpu.vector_store %arg22[%c1_74, %c640_75], %176 {strides = array<i32>} : memref<2x1024xf32, #tpu.memory_space<vmem>>, vector<1x128xf32>,
    %178 = vector.extract_strided_slice %165 {offsets = [6, 0], sizes = [1, 128], strides = [1, 1]} : vector<8x128xf32> to vector<1x128xf32>
    %c1_76 = arith.constant 1 : index
    %c768_77 = arith.constant 768 : index
    %179 = vector.load %arg22[%c1_76, %c768_77] : memref<2x1024xf32, #tpu.memory_space<vmem>>, vector<1x128xf32>
    tpu.vector_store %arg22[%c1_76, %c768_77], %178 {strides = array<i32>} : memref<2x1024xf32, #tpu.memory_space<vmem>>, vector<1x128xf32>,
    %180 = vector.extract_strided_slice %165 {offsets = [7, 0], sizes = [1, 128], strides = [1, 1]} : vector<8x128xf32> to vector<1x128xf32>
    %c1_78 = arith.constant 1 : index
    %c896_79 = arith.constant 896 : index
    %181 = vector.load %arg22[%c1_78, %c896_79] : memref<2x1024xf32, #tpu.memory_space<vmem>>, vector<1x128xf32>
    tpu.vector_store %arg22[%c1_78, %c896_79], %180 {strides = array<i32>} : memref<2x1024xf32, #tpu.memory_space<vmem>>, vector<1x128xf32>,
    %c0_80 = arith.constant 0 : index
    %c0_81 = arith.constant 0 : index
    %182 = vector.load %arg22[%c0_80, %c0_81] : memref<2x1024xf32, #tpu.memory_space<vmem>>, vector<2x1024xf32>
    %183 = arith.truncf %182 : vector<2x1024xf32> to vector<2x1024xbf16>
    %c0_82 = arith.constant 0 : index
    %c0_83 = arith.constant 0 : index
    %184 = vector.load %arg13[%c0_82, %c0_83] : memref<1024x1024xbf16, #tpu.memory_space<vmem>>, vector<1024x1024xbf16>
    %cst_84 = arith.constant dense<0.000000e+00> : vector<2x1024xf32>
    %185 = tpu.matmul %183, %184, %cst_84 {dimension_numbers = #tpu.dot_dimension_numbers<[1], [0], [0], [1], [0, 0, 1, 1], [], []>} : vector<2x1024xbf16>, vector<1024x1024xbf16>, vector<2x1024xf32> -> vector<2x1024xf32>
    %c0_85 = arith.constant 0 : index
    %c0_86 = arith.constant 0 : index
    %186 = vector.load %arg14[%c0_85, %c0_86] : memref<1x1024xf32, #tpu.memory_space<vmem>>, vector<1x1024xf32>
    %c0_87 = arith.constant 0 : index
    %c0_88 = arith.constant 0 : index
    %187 = vector.load %arg15[%c0_87, %c0_88] : memref<1x1024xf32, #tpu.memory_space<vmem>>, vector<1x1024xf32>
    %cst_89 = arith.constant dense<0.000000e+00> : vector<2xf32>
    %188 = vector.multi_reduction <add>, %185, %cst_89 [1] : vector<2x1024xf32> to vector<2xf32>
    %189 = vector.shape_cast %188 : vector<2xf32> to vector<2x1xf32>
    %cst_90 = arith.constant 1.024000e+03 : f32
    %190 = vector.broadcast %cst_90 : f32 to vector<2x1xf32>
    %191 = arith.divf %189, %190 : vector<2x1xf32>
    %192 = vector.broadcast %191 : vector<2x1xf32> to vector<2x1024xf32>
    %193 = arith.subf %185, %192 : vector<2x1024xf32>
    %194 = arith.mulf %193, %193 : vector<2x1024xf32>
    %cst_91 = arith.constant dense<0.000000e+00> : vector<2xf32>
    %195 = vector.multi_reduction <add>, %194, %cst_91 [1] : vector<2x1024xf32> to vector<2xf32>
    %196 = vector.shape_cast %195 : vector<2xf32> to vector<2x1xf32>
    %cst_92 = arith.constant 1.024000e+03 : f32
    %197 = vector.broadcast %cst_92 : f32 to vector<2x1xf32>
    %198 = arith.divf %196, %197 : vector<2x1xf32>
    %199 = vector.broadcast %191 : vector<2x1xf32> to vector<2x1024xf32>
    %200 = arith.subf %185, %199 : vector<2x1024xf32>
    %cst_93 = arith.constant 9.99999974E-6 : f32
    %201 = vector.broadcast %cst_93 : f32 to vector<2x1xf32>
    %202 = arith.addf %198, %201 : vector<2x1xf32>
    %203 = math.rsqrt %202 : vector<2x1xf32>
    %204 = vector.broadcast %203 : vector<2x1xf32> to vector<2x1024xf32>
    %205 = arith.mulf %200, %204 : vector<2x1024xf32>
    %206 = vector.broadcast %186 : vector<1x1024xf32> to vector<2x1024xf32>
    %207 = arith.mulf %205, %206 : vector<2x1024xf32>
    %208 = vector.broadcast %187 : vector<1x1024xf32> to vector<2x1024xf32>
    %209 = arith.addf %207, %208 : vector<2x1024xf32>
    %cst_94 = arith.constant 0.000000e+00 : f32
    %210 = vector.broadcast %cst_94 : f32 to vector<2x1024xf32>
    %211 = arith.maximumf %209, %210 : vector<2x1024xf32>
    %212 = arith.truncf %211 : vector<2x1024xf32> to vector<2x1024xbf16>
    %c0_95 = arith.constant 0 : index
    %c0_96 = arith.constant 0 : index
    %213 = vector.load %arg16[%c0_95, %c0_96] : memref<1024x1024xbf16, #tpu.memory_space<vmem>>, vector<1024x1024xbf16>
    %cst_97 = arith.constant dense<0.000000e+00> : vector<2x1024xf32>
    %214 = tpu.matmul %212, %213, %cst_97 {dimension_numbers = #tpu.dot_dimension_numbers<[1], [0], [0], [1], [0, 0, 1, 1], [], []>} : vector<2x1024xbf16>, vector<1024x1024xbf16>, vector<2x1024xf32> -> vector<2x1024xf32>
    %c0_98 = arith.constant 0 : index
    %c0_99 = arith.constant 0 : index
    %215 = vector.load %arg17[%c0_98, %c0_99] : memref<1x1024xf32, #tpu.memory_space<vmem>>, vector<1x1024xf32>
    %c0_100 = arith.constant 0 : index
    %c0_101 = arith.constant 0 : index
    %216 = vector.load %arg18[%c0_100, %c0_101] : memref<1x1024xf32, #tpu.memory_space<vmem>>, vector<1x1024xf32>
    %cst_102 = arith.constant dense<0.000000e+00> : vector<2xf32>
    %217 = vector.multi_reduction <add>, %214, %cst_102 [1] : vector<2x1024xf32> to vector<2xf32>
    %218 = vector.shape_cast %217 : vector<2xf32> to vector<2x1xf32>
    %cst_103 = arith.constant 1.024000e+03 : f32
    %219 = vector.broadcast %cst_103 : f32 to vector<2x1xf32>
    %220 = arith.divf %218, %219 : vector<2x1xf32>
    %221 = vector.broadcast %220 : vector<2x1xf32> to vector<2x1024xf32>
    %222 = arith.subf %214, %221 : vector<2x1024xf32>
    %223 = arith.mulf %222, %222 : vector<2x1024xf32>
    %cst_104 = arith.constant dense<0.000000e+00> : vector<2xf32>
    %224 = vector.multi_reduction <add>, %223, %cst_104 [1] : vector<2x1024xf32> to vector<2xf32>
    %225 = vector.shape_cast %224 : vector<2xf32> to vector<2x1xf32>
    %cst_105 = arith.constant 1.024000e+03 : f32
    %226 = vector.broadcast %cst_105 : f32 to vector<2x1xf32>
    %227 = arith.divf %225, %226 : vector<2x1xf32>
    %228 = vector.broadcast %220 : vector<2x1xf32> to vector<2x1024xf32>
    %229 = arith.subf %214, %228 : vector<2x1024xf32>
    %cst_106 = arith.constant 9.99999974E-6 : f32
    %230 = vector.broadcast %cst_106 : f32 to vector<2x1xf32>
    %231 = arith.addf %227, %230 : vector<2x1xf32>
    %232 = math.rsqrt %231 : vector<2x1xf32>
    %233 = vector.broadcast %232 : vector<2x1xf32> to vector<2x1024xf32>
    %234 = arith.mulf %229, %233 : vector<2x1024xf32>
    %235 = vector.broadcast %215 : vector<1x1024xf32> to vector<2x1024xf32>
    %236 = arith.mulf %234, %235 : vector<2x1024xf32>
    %237 = vector.broadcast %216 : vector<1x1024xf32> to vector<2x1024xf32>
    %238 = arith.addf %236, %237 : vector<2x1024xf32>
    %cst_107 = arith.constant 0.000000e+00 : f32
    %239 = vector.broadcast %cst_107 : f32 to vector<2x1024xf32>
    %240 = arith.maximumf %238, %239 : vector<2x1024xf32>
    %241 = arith.truncf %240 : vector<2x1024xf32> to vector<2x1024xbf16>
    %c0_108 = arith.constant 0 : index
    %c0_109 = arith.constant 0 : index
    %242 = vector.load %arg19[%c0_108, %c0_109] : memref<1024x8xbf16, #tpu.memory_space<vmem>>, vector<1024x8xbf16>
    %cst_110 = arith.constant dense<0.000000e+00> : vector<2x8xf32>
    %243 = tpu.matmul %241, %242, %cst_110 {dimension_numbers = #tpu.dot_dimension_numbers<[1], [0], [0], [1], [0, 0, 1, 1], [], []>} : vector<2x1024xbf16>, vector<1024x8xbf16>, vector<2x8xf32> -> vector<2x8xf32>
    %c0_111 = arith.constant 0 : index
    %c0_112 = arith.constant 0 : index
    %244 = vector.load %arg20[%c0_111, %c0_112] : memref<1x8xf32, #tpu.memory_space<vmem>>, vector<1x8xf32>
    %245 = vector.broadcast %244 : vector<1x8xf32> to vector<2x8xf32>
    %246 = arith.addf %243, %245 : vector<2x8xf32>
    %247 = vector.extract_strided_slice %246 {offsets = [0, 0], sizes = [2, 4], strides = [1, 1]} : vector<2x8xf32> to vector<2x4xf32>
    %248 = arith.mulf %247, %247 : vector<2x4xf32>
    %cst_113 = arith.constant dense<0.000000e+00> : vector<2xf32>
    %249 = vector.multi_reduction <add>, %248, %cst_113 [1] : vector<2x4xf32> to vector<2xf32>
    %250 = vector.shape_cast %249 : vector<2xf32> to vector<2x1xf32>
    %251 = math.sqrt %250 : vector<2x1xf32>
    %cst_114 = arith.constant 9.99999996E-13 : f32
    %252 = vector.broadcast %cst_114 : f32 to vector<2x1xf32>
    %253 = arith.maximumf %251, %252 : vector<2x1xf32>
    %254 = tpu.reciprocal %253 : vector<2x1xf32> -> vector<2x1xf32>
    %255 = vector.broadcast %254 : vector<2x1xf32> to vector<2x4xf32>
    %256 = arith.mulf %247, %255 : vector<2x4xf32>
    %c0_115 = arith.constant 0 : index
    %c0_116 = arith.constant 0 : index
    %257 = vector.load %arg21[%c0_115, %c0_116] : memref<2x8xf32, #tpu.memory_space<vmem>>, vector<2x4xf32>
    tpu.vector_store %arg21[%c0_115, %c0_116], %256 {strides = array<i32>} : memref<2x8xf32, #tpu.memory_space<vmem>>, vector<2x4xf32>,
    %258 = vector.extract_strided_slice %246 {offsets = [0, 4], sizes = [2, 4], strides = [1, 1]} : vector<2x8xf32> to vector<2x4xf32>
    %c0_117 = arith.constant 0 : index
    %c4 = arith.constant 4 : index
    %259 = vector.load %arg21[%c0_117, %c4] : memref<2x8xf32, #tpu.memory_space<vmem>>, vector<2x4xf32>
    tpu.vector_store %arg21[%c0_117, %c4], %258 {strides = array<i32>} : memref<2x8xf32, #tpu.memory_space<vmem>>, vector<2x4xf32>,
    return
  }
  func.func @transform_0(%arg0: i32) -> (i32, i32) {
    %c0_i32 = arith.constant 0 : i32
    %c0_i32_0 = arith.constant 0 : i32
    %c0_i32_1 = arith.constant 0 : i32
    return %c0_i32, %c0_i32_0 : i32, i32
  }
  func.func @transform_1(%arg0: i32) -> (i32, i32) {
    %c0_i32 = arith.constant 0 : i32
    %c0_i32_0 = arith.constant 0 : i32
    %c0_i32_1 = arith.constant 0 : i32
    return %c0_i32, %c0_i32_0 : i32, i32
  }
  func.func @transform_2(%arg0: i32) -> (i32, i32) {
    %c0_i32 = arith.constant 0 : i32
    %c0_i32_0 = arith.constant 0 : i32
    %c0_i32_1 = arith.constant 0 : i32
    return %c0_i32, %c0_i32_0 : i32, i32
  }
  func.func @transform_3(%arg0: i32) -> (i32, i32) {
    %c0_i32 = arith.constant 0 : i32
    %c0_i32_0 = arith.constant 0 : i32
    %c0_i32_1 = arith.constant 0 : i32
    return %c0_i32, %c0_i32_0 : i32, i32
  }
  func.func @transform_4(%arg0: i32) -> (i32, i32) {
    %c0_i32 = arith.constant 0 : i32
    %c0_i32_0 = arith.constant 0 : i32
    %c0_i32_1 = arith.constant 0 : i32
    return %c0_i32, %c0_i32_0 : i32, i32
  }
  func.func @transform_5(%arg0: i32) -> (i32, i32) {
    %c0_i32 = arith.constant 0 : i32
    %c0_i32_0 = arith.constant 0 : i32
    %c0_i32_1 = arith.constant 0 : i32
    return %c0_i32, %c0_i32_0 : i32, i32
  }
  func.func @transform_6(%arg0: i32) -> (i32, i32) {
    %c0_i32 = arith.constant 0 : i32
    %c0_i32_0 = arith.constant 0 : i32
    %c0_i32_1 = arith.constant 0 : i32
    return %c0_i32, %c0_i32_0 : i32, i32
  }
  func.func @transform_7(%arg0: i32) -> (i32, i32) {
    %c0_i32 = arith.constant 0 : i32
    %c0_i32_0 = arith.constant 0 : i32
    %c0_i32_1 = arith.constant 0 : i32
    return %c0_i32, %c0_i32_0 : i32, i32
  }
  func.func @transform_8(%arg0: i32) -> (i32, i32) {
    %c0_i32 = arith.constant 0 : i32
    %c0_i32_0 = arith.constant 0 : i32
    %c0_i32_1 = arith.constant 0 : i32
    return %c0_i32, %c0_i32_0 : i32, i32
  }
  func.func @transform_9(%arg0: i32) -> (i32, i32) {
    %c0_i32 = arith.constant 0 : i32
    %c0_i32_0 = arith.constant 0 : i32
    %c0_i32_1 = arith.constant 0 : i32
    return %c0_i32, %c0_i32_0 : i32, i32
  }
  func.func @transform_10(%arg0: i32) -> (i32, i32) {
    %c0_i32 = arith.constant 0 : i32
    %c0_i32_0 = arith.constant 0 : i32
    %c0_i32_1 = arith.constant 0 : i32
    return %c0_i32, %c0_i32_0 : i32, i32
  }
  func.func @transform_11(%arg0: i32) -> (i32, i32) {
    %c0_i32 = arith.constant 0 : i32
    %c0_i32_0 = arith.constant 0 : i32
    %c0_i32_1 = arith.constant 0 : i32
    return %c0_i32, %c0_i32_0 : i32, i32
  }
  func.func @transform_12(%arg0: i32) -> (i32, i32) {
    %c0_i32 = arith.constant 0 : i32
    %c0_i32_0 = arith.constant 0 : i32
    %c0_i32_1 = arith.constant 0 : i32
    return %c0_i32, %c0_i32_0 : i32, i32
  }
  func.func @transform_13(%arg0: i32) -> (i32, i32) {
    %c0_i32 = arith.constant 0 : i32
    %c0_i32_0 = arith.constant 0 : i32
    %c0_i32_1 = arith.constant 0 : i32
    return %c0_i32, %c0_i32_0 : i32, i32
  }
  func.func @transform_14(%arg0: i32) -> (i32, i32) {
    %c0_i32 = arith.constant 0 : i32
    %c0_i32_0 = arith.constant 0 : i32
    %c0_i32_1 = arith.constant 0 : i32
    return %c0_i32, %c0_i32_0 : i32, i32
  }
  func.func @transform_15(%arg0: i32) -> (i32, i32) {
    %c0_i32 = arith.constant 0 : i32
    %c0_i32_0 = arith.constant 0 : i32
    %c0_i32_1 = arith.constant 0 : i32
    return %c0_i32, %c0_i32_0 : i32, i32
  }
  func.func @transform_16(%arg0: i32) -> (i32, i32) {
    %c0_i32 = arith.constant 0 : i32
    %c0_i32_0 = arith.constant 0 : i32
    %c0_i32_1 = arith.constant 0 : i32
    return %c0_i32, %c0_i32_0 : i32, i32
  }
  func.func @transform_17(%arg0: i32) -> (i32, i32) {
    %c0_i32 = arith.constant 0 : i32
    %c0_i32_0 = arith.constant 0 : i32
    %c0_i32_1 = arith.constant 0 : i32
    return %c0_i32, %c0_i32_0 : i32, i32
  }
  func.func @transform_18(%arg0: i32) -> (i32, i32) {
    %c0_i32 = arith.constant 0 : i32
    %c0_i32_0 = arith.constant 0 : i32
    %c0_i32_1 = arith.constant 0 : i32
    return %c0_i32, %c0_i32_0 : i32, i32
  }
  func.func @transform_19(%arg0: i32) -> (i32, i32) {
    %c0_i32 = arith.constant 0 : i32
    %c0_i32_0 = arith.constant 0 : i32
    %c0_i32_1 = arith.constant 0 : i32
    return %c0_i32, %c0_i32_0 : i32, i32
  }
  func.func @transform_20(%arg0: i32) -> (i32, i32) {
    %c0_i32 = arith.constant 0 : i32
    %c0_i32_0 = arith.constant 0 : i32
    %c0_i32_1 = arith.constant 0 : i32
    return %c0_i32, %c0_i32_0 : i32, i32
  }
}

</mosaic_0001>

<llo_original>
// kernel: deepv2_forward.1
$region0: #{deepv2_forward.1}
  #allocation0 [shape = 'u32[]', space=smem, size = 0x4, offset = 0x4, fixed_abs, tag = 'smem constant byte address 0x4 - core index']
  #allocation1 [shape = 'u32[144,128]{1,0:T(1,128)}', space=vmem, size = 0x12000, scoped, tag = 'internal scratch']
  #allocation2 [shape = 'f32[2,1024]{1,0:T(2,128)}', space=vmem, size = 0x2000, scoped, tag = 'scratch operand']
  %s0 = inlined_call_operand.vmem [shape: f32[16,1024], index: 0, kind: input, shape index: {}]
  %s1 = inlined_call_operand.vmem [shape: f32[16,1024], index: 1, kind: input, shape index: {}]
  %s2 = inlined_call_operand.vmem [shape: bf16[1024,192], index: 2, kind: input, shape index: {}]
  %s3 = inlined_call_operand.vmem [shape: f32[1,128], index: 3, kind: input, shape index: {}]
  %s4 = inlined_call_operand.vmem [shape: f32[1,128], index: 4, kind: input, shape index: {}]
  %s5 = inlined_call_operand.vmem [shape: f32[1,64], index: 5, kind: input, shape index: {}]
  %s6 = inlined_call_operand.vmem [shape: f32[1,64], index: 6, kind: input, shape index: {}]
  %s7 = inlined_call_operand.vmem [shape: bf16[1024,192], index: 7, kind: input, shape index: {}]
  %s8 = inlined_call_operand.vmem [shape: f32[1,128], index: 8, kind: input, shape index: {}]
  %s9 = inlined_call_operand.vmem [shape: f32[1,128], index: 9, kind: input, shape index: {}]
  %s10 = inlined_call_operand.vmem [shape: f32[1,64], index: 10, kind: input, shape index: {}]
  %s11 = inlined_call_operand.vmem [shape: f32[1,64], index: 11, kind: input, shape index: {}]
  %s12 = inlined_call_operand.vmem [shape: bf16[1024,1024], index: 12, kind: input, shape index: {}]
  %s13 = inlined_call_operand.vmem [shape: f32[1,1024], index: 13, kind: input, shape index: {}]
  %s14 = inlined_call_operand.vmem [shape: f32[1,1024], index: 14, kind: input, shape index: {}]
  %s15 = inlined_call_operand.vmem [shape: bf16[1024,1024], index: 15, kind: input, shape index: {}]
  %s16 = inlined_call_operand.vmem [shape: f32[1,1024], index: 16, kind: input, shape index: {}]
  %s17 = inlined_call_operand.vmem [shape: f32[1,1024], index: 17, kind: input, shape index: {}]
  %s18 = inlined_call_operand.vmem [shape: bf16[1024,8], index: 18, kind: input, shape index: {}]
  %s19 = inlined_call_operand.vmem [shape: f32[1,8], index: 19, kind: input, shape index: {}]
  %s20 = inlined_call_operand.vmem [shape: f32[2,8], index: 20, kind: output, shape index: {}]
  %s21 = sld [smem:[#allocation0]]
  $region90: #{deepv2_forward.1} parent=0
    _
  %s23 = ssub.s32 1, %s21
  %s24 = scalar_select 0, %s23, %s21
  // Predicated region
  $region2: #{deepv2_forward.1} parent=0 // pred_check
    _
  $region3: #{deepv2_forward.1} parent=0 // pred_check_branch
    %26 = sbr.rel (0) target = $region5
  $region4: #{deepv2_forward.1} parent=0 // pred_region
    _
  $region5: #{deepv2_forward.1} parent=0 // pred_fallthru
    _
  // Predicated region
  $region6: #{deepv2_forward.1} parent=0 // pred_check
    _
  $region7: #{deepv2_forward.1} parent=0 // pred_check_branch
    %28 = sbr.rel (0) target = $region9
  $region8: #{deepv2_forward.1} parent=0 // pred_region
    _
  $region9: #{deepv2_forward.1} parent=0 // pred_fallthru
    _
  // Predicated region
  $region10: #{deepv2_forward.1} parent=0 // pred_check
    _
  $region11: #{deepv2_forward.1} parent=0 // pred_check_branch
    %30 = sbr.rel (0) target = $region13
  $region12: #{deepv2_forward.1} parent=0 // pred_region
    _
  $region13: #{deepv2_forward.1} parent=0 // pred_fallthru
    _
  // Predicated region
  $region14: #{deepv2_forward.1} parent=0 // pred_check
    _
  $region15: #{deepv2_forward.1} parent=0 // pred_check_branch
    %32 = sbr.rel (0) target = $region17
  $region16: #{deepv2_forward.1} parent=0 // pred_region
    _
  $region17: #{deepv2_forward.1} parent=0 // pred_fallthru
    _
  // Predicated region
  $region18: #{deepv2_forward.1} parent=0 // pred_check
    _
  $region19: #{deepv2_forward.1} parent=0 // pred_check_branch
    %34 = sbr.rel (0) target = $region21
  $region20: #{deepv2_forward.1} parent=0 // pred_region
    _
  $region21: #{deepv2_forward.1} parent=0 // pred_fallthru
    _
  // Predicated region
  $region22: #{deepv2_forward.1} parent=0 // pred_check
    _
  $region23: #{deepv2_forward.1} parent=0 // pred_check_branch
    %36 = sbr.rel (0) target = $region25
  $region24: #{deepv2_forward.1} parent=0 // pred_region
    _
  $region25: #{deepv2_forward.1} parent=0 // pred_fallthru
    _
  // Predicated region
  $region26: #{deepv2_forward.1} parent=0 // pred_check
    _
  $region27: #{deepv2_forward.1} parent=0 // pred_check_branch
    %38 = sbr.rel (0) target = $region29
  $region28: #{deepv2_forward.1} parent=0 // pred_region
    _
  $region29: #{deepv2_forward.1} parent=0 // pred_fallthru
    _
  // Predicated region
  $region30: #{deepv2_forward.1} parent=0 // pred_check
    _
  $region31: #{deepv2_forward.1} parent=0 // pred_check_branch
    %40 = sbr.rel (0) target = $region33
  $region32: #{deepv2_forward.1} parent=0 // pred_region
    _
  $region33: #{deepv2_forward.1} parent=0 // pred_fallthru
    _
  // Predicated region
  $region34: #{deepv2_forward.1} parent=0 // pred_check
    _
  $region35: #{deepv2_forward.1} parent=0 // pred_check_branch
    %42 = sbr.rel (0) target = $region37
  $region36: #{deepv2_forward.1} parent=0 // pred_region
    _
  $region37: #{deepv2_forward.1} parent=0 // pred_fallthru
    _
  // Predicated region
  $region38: #{deepv2_forward.1} parent=0 // pred_check
    _
  $region39: #{deepv2_forward.1} parent=0 // pred_check_branch
    %44 = sbr.rel (0) target = $region41
  $region40: #{deepv2_forward.1} parent=0 // pred_region
    _
  $region41: #{deepv2_forward.1} parent=0 // pred_fallthru
    _
  // Predicated region
  $region42: #{deepv2_forward.1} parent=0 // pred_check
    _
  $region43: #{deepv2_forward.1} parent=0 // pred_check_branch
    %46 = sbr.rel (0) target = $region45
  $region44: #{deepv2_forward.1} parent=0 // pred_region
    _
  $region45: #{deepv2_forward.1} parent=0 // pred_fallthru
    _
  // Predicated region
  $region46: #{deepv2_forward.1} parent=0 // pred_check
    _
  $region47: #{deepv2_forward.1} parent=0 // pred_check_branch
    %48 = sbr.rel (0) target = $region49
  $region48: #{deepv2_forward.1} parent=0 // pred_region
    _
  $region49: #{deepv2_forward.1} parent=0 // pred_fallthru
    _
  // Predicated region
  $region50: #{deepv2_forward.1} parent=0 // pred_check
    _
  $region51: #{deepv2_forward.1} parent=0 // pred_check_branch
    %50 = sbr.rel (0) target = $region53
  $region52: #{deepv2_forward.1} parent=0 // pred_region
    _
  $region53: #{deepv2_forward.1} parent=0 // pred_fallthru
    _
  // Predicated region
  $region54: #{deepv2_forward.1} parent=0 // pred_check
    _
  $region55: #{deepv2_forward.1} parent=0 // pred_check_branch
    %52 = sbr.rel (0) target = $region57
  $region56: #{deepv2_forward.1} parent=0 // pred_region
    _
  $region57: #{deepv2_forward.1} parent=0 // pred_fallthru
    _
  // Predicated region
  $region58: #{deepv2_forward.1} parent=0 // pred_check
    _
  $region59: #{deepv2_forward.1} parent=0 // pred_check_branch
    %54 = sbr.rel (0) target = $region61
  $region60: #{deepv2_forward.1} parent=0 // pred_region
    _
  $region61: #{deepv2_forward.1} parent=0 // pred_fallthru
    _
  // Predicated region
  $region62: #{deepv2_forward.1} parent=0 // pred_check
    _
  $region63: #{deepv2_forward.1} parent=0 // pred_check_branch
    %56 = sbr.rel (0) target = $region65
  $region64: #{deepv2_forward.1} parent=0 // pred_region
    _
  $region65: #{deepv2_forward.1} parent=0 // pred_fallthru
    _
  // Predicated region
  $region66: #{deepv2_forward.1} parent=0 // pred_check
    _
  $region67: #{deepv2_forward.1} parent=0 // pred_check_branch
    %58 = sbr.rel (0) target = $region69
  $region68: #{deepv2_forward.1} parent=0 // pred_region
    _
  $region69: #{deepv2_forward.1} parent=0 // pred_fallthru
    _
  // Predicated region
  $region70: #{deepv2_forward.1} parent=0 // pred_check
    _
  $region71: #{deepv2_forward.1} parent=0 // pred_check_branch
    %60 = sbr.rel (0) target = $region73
  $region72: #{deepv2_forward.1} parent=0 // pred_region
    _
  $region73: #{deepv2_forward.1} parent=0 // pred_fallthru
    _
  // Predicated region
  $region74: #{deepv2_forward.1} parent=0 // pred_check
    _
  $region75: #{deepv2_forward.1} parent=0 // pred_check_branch
    %62 = sbr.rel (0) target = $region77
  $region76: #{deepv2_forward.1} parent=0 // pred_region
    _
  $region77: #{deepv2_forward.1} parent=0 // pred_fallthru
    _
  // Predicated region
  $region78: #{deepv2_forward.1} parent=0 // pred_check
    _
  $region79: #{deepv2_forward.1} parent=0 // pred_check_branch
    %64 = sbr.rel (0) target = $region81
  $region80: #{deepv2_forward.1} parent=0 // pred_region
    _
  $region81: #{deepv2_forward.1} parent=0 // pred_fallthru
    _
  %v66 = vld [vmem:[%s0] sm:$0xff]
  %v67 = vld [vmem:[%s0 + $0x8] sm:$0xff]
  %v68 = vld [vmem:[%s0 + $0x10] sm:$0xff]
  %v69 = vld [vmem:[%s0 + $0x18] sm:$0xff]
  %v70 = vld [vmem:[%s0 + $0x20] sm:$0xff]
  %v71 = vld [vmem:[%s0 + $0x28] sm:$0xff]
  %v72 = vld [vmem:[%s0 + $0x30] sm:$0xff]
  %v73 = vld [vmem:[%s0 + $0x38] sm:$0xff]
  %v74 = vld [vmem:[%s0 + $0x40] sm:$0xff]
  %v75 = vld [vmem:[%s0 + $0x48] sm:$0xff]
  %v76 = vld [vmem:[%s0 + $0x50] sm:$0xff]
  %v77 = vld [vmem:[%s0 + $0x58] sm:$0xff]
  %v78 = vld [vmem:[%s0 + $0x60] sm:$0xff]
  %v79 = vld [vmem:[%s0 + $0x68] sm:$0xff]
  %v80 = vld [vmem:[%s0 + $0x70] sm:$0xff]
  %v81 = vld [vmem:[%s0 + $0x78] sm:$0xff]
  %v82 = vpack.c.bf16 %v74, %v66
  %v83 = vpack.c.bf16 %v75, %v67
  %v84 = vpack.c.bf16 %v76, %v68
  %v85 = vpack.c.bf16 %v77, %v69
  %v86 = vpack.c.bf16 %v78, %v70
  %v87 = vpack.c.bf16 %v79, %v71
  %v88 = vpack.c.bf16 %v80, %v72
  %v89 = vpack.c.bf16 %v81, %v73
  %v90 = vld [vmem:[%s1] sm:$0xff]
  %v91 = vld [vmem:[%s1 + $0x8] sm:$0xff]
  %v92 = vld [vmem:[%s1 + $0x10] sm:$0xff]
  %v93 = vld [vmem:[%s1 + $0x18] sm:$0xff]
  %v94 = vld [vmem:[%s1 + $0x20] sm:$0xff]
  %v95 = vld [vmem:[%s1 + $0x28] sm:$0xff]
  %v96 = vld [vmem:[%s1 + $0x30] sm:$0xff]
  %v97 = vld [vmem:[%s1 + $0x38] sm:$0xff]
  %v98 = vld [vmem:[%s1 + $0x40] sm:$0xff]
  %v99 = vld [vmem:[%s1 + $0x48] sm:$0xff]
  %v100 = vld [vmem:[%s1 + $0x50] sm:$0xff]
  %v101 = vld [vmem:[%s1 + $0x58] sm:$0xff]
  %v102 = vld [vmem:[%s1 + $0x60] sm:$0xff]
  %v103 = vld [vmem:[%s1 + $0x68] sm:$0xff]
  %v104 = vld [vmem:[%s1 + $0x70] sm:$0xff]
  %v105 = vld [vmem:[%s1 + $0x78] sm:$0xff]
  %v106 = vpack.c.bf16 %v98, %v90
  %v107 = vpack.c.bf16 %v99, %v91
  %v108 = vpack.c.bf16 %v100, %v92
  %v109 = vpack.c.bf16 %v101, %v93
  %v110 = vpack.c.bf16 %v102, %v94
  %v111 = vpack.c.bf16 %v103, %v95
  %v112 = vpack.c.bf16 %v104, %v96
  %v113 = vpack.c.bf16 %v105, %v97
  %v114 = vld [vmem:[%s2] sm:$0xff]
  %v115 = vld [vmem:[%s2 + $0x8] sm:$0xff]
  %v116 = vld [vmem:[%s2 + $0x10] sm:$0xff]
  %v117 = vld [vmem:[%s2 + $0x18] sm:$0xff]
  %v118 = vld [vmem:[%s2 + $0x20] sm:$0xff]
  %v119 = vld [vmem:[%s2 + $0x28] sm:$0xff]
  %v120 = vld [vmem:[%s2 + $0x30] sm:$0xff]
  %v121 = vld [vmem:[%s2 + $0x38] sm:$0xff]
  %v122 = vld [vmem:[%s2 + $0x40] sm:$0xff]
  %v123 = vld [vmem:[%s2 + $0x48] sm:$0xff]
  %v124 = vld [vmem:[%s2 + $0x50] sm:$0xff]
  %v125 = vld [vmem:[%s2 + $0x58] sm:$0xff]
  %v126 = vld [vmem:[%s2 + $0x60] sm:$0xff]
  %v127 = vld [vmem:[%s2 + $0x68] sm:$0xff]
  %v128 = vld [vmem:[%s2 + $0x70] sm:$0xff]
  %v129 = vld [vmem:[%s2 + $0x78] sm:$0xff]
  %v130 = vld [vmem:[%s2 + $0x80] sm:$0xff]
  %v131 = vld [vmem:[%s2 + $0x88] sm:$0xff]
  %v132 = vld [vmem:[%s2 + $0x90] sm:$0xff]
  %v133 = vld [vmem:[%s2 + $0x98] sm:$0xff]
  %v134 = vld [vmem:[%s2 + $0xa0] sm:$0xff]
  %v135 = vld [vmem:[%s2 + $0xa8] sm:$0xff]
  %v136 = vld [vmem:[%s2 + $0xb0] sm:$0xff]
  %v137 = vld [vmem:[%s2 + $0xb8] sm:$0xff]
  %v138 = vld [vmem:[%s2 + $0xc0] sm:$0xff]
  %v139 = vld [vmem:[%s2 + $0xc8] sm:$0xff]
  %v140 = vld [vmem:[%s2 + $0xd0] sm:$0xff]
  %v141 = vld [vmem:[%s2 + $0xd8] sm:$0xff]
  %v142 = vld [vmem:[%s2 + $0xe0] sm:$0xff]
  %v143 = vld [vmem:[%s2 + $0xe8] sm:$0xff]
  %v144 = vld [vmem:[%s2 + $0xf0] sm:$0xff]
  %v145 = vld [vmem:[%s2 + $0xf8] sm:$0xff]
  %v146 = vld [vmem:[%s2 + $0x100] sm:$0xff]
  %v147 = vld [vmem:[%s2 + $0x108] sm:$0xff]
  %v148 = vld [vmem:[%s2 + $0x110] sm:$0xff]
  %v149 = vld [vmem:[%s2 + $0x118] sm:$0xff]
  %v150 = vld [vmem:[%s2 + $0x120] sm:$0xff]
  %v151 = vld [vmem:[%s2 + $0x128] sm:$0xff]
  %v152 = vld [vmem:[%s2 + $0x130] sm:$0xff]
  %v153 = vld [vmem:[%s2 + $0x138] sm:$0xff]
  %v154 = vld [vmem:[%s2 + $0x140] sm:$0xff]
  %v155 = vld [vmem:[%s2 + $0x148] sm:$0xff]
  %v156 = vld [vmem:[%s2 + $0x150] sm:$0xff]
  %v157 = vld [vmem:[%s2 + $0x158] sm:$0xff]
  %v158 = vld [vmem:[%s2 + $0x160] sm:$0xff]
  %v159 = vld [vmem:[%s2 + $0x168] sm:$0xff]
  %v160 = vld [vmem:[%s2 + $0x170] sm:$0xff]
  %v161 = vld [vmem:[%s2 + $0x178] sm:$0xff]
  %v162 = vld [vmem:[%s2 + $0x180] sm:$0xff]
  %v163 = vld [vmem:[%s2 + $0x188] sm:$0xff]
  %v164 = vld [vmem:[%s2 + $0x190] sm:$0xff]
  %v165 = vld [vmem:[%s2 + $0x198] sm:$0xff]
  %v166 = vld [vmem:[%s2 + $0x1a0] sm:$0xff]
  %v167 = vld [vmem:[%s2 + $0x1a8] sm:$0xff]
  %v168 = vld [vmem:[%s2 + $0x1b0] sm:$0xff]
  %v169 = vld [vmem:[%s2 + $0x1b8] sm:$0xff]
  %v170 = vld [vmem:[%s2 + $0x1c0] sm:$0xff]
  %v171 = vld [vmem:[%s2 + $0x1c8] sm:$0xff]
  %v172 = vld [vmem:[%s2 + $0x1d0] sm:$0xff]
  %v173 = vld [vmem:[%s2 + $0x1d8] sm:$0xff]
  %v174 = vld [vmem:[%s2 + $0x1e0] sm:$0xff]
  %v175 = vld [vmem:[%s2 + $0x1e8] sm:$0xff]
  %v176 = vld [vmem:[%s2 + $0x1f0] sm:$0xff]
  %v177 = vld [vmem:[%s2 + $0x1f8] sm:$0xff]
  %v178 = vld [vmem:[%s2 + $0x200] sm:$0xff]
  %v179 = vld [vmem:[%s2 + $0x208] sm:$0xff]
  %v180 = vld [vmem:[%s2 + $0x210] sm:$0xff]
  %v181 = vld [vmem:[%s2 + $0x218] sm:$0xff]
  %v182 = vld [vmem:[%s2 + $0x220] sm:$0xff]
  %v183 = vld [vmem:[%s2 + $0x228] sm:$0xff]
  %v184 = vld [vmem:[%s2 + $0x230] sm:$0xff]
  %v185 = vld [vmem:[%s2 + $0x238] sm:$0xff]
  %v186 = vld [vmem:[%s2 + $0x240] sm:$0xff]
  %v187 = vld [vmem:[%s2 + $0x248] sm:$0xff]
  %v188 = vld [vmem:[%s2 + $0x250] sm:$0xff]
  %v189 = vld [vmem:[%s2 + $0x258] sm:$0xff]
  %v190 = vld [vmem:[%s2 + $0x260] sm:$0xff]
  %v191 = vld [vmem:[%s2 + $0x268] sm:$0xff]
  %v192 = vld [vmem:[%s2 + $0x270] sm:$0xff]
  %v193 = vld [vmem:[%s2 + $0x278] sm:$0xff]
  %v194 = vld [vmem:[%s2 + $0x280] sm:$0xff]
  %v195 = vld [vmem:[%s2 + $0x288] sm:$0xff]
  %v196 = vld [vmem:[%s2 + $0x290] sm:$0xff]
  %v197 = vld [vmem:[%s2 + $0x298] sm:$0xff]
  %v198 = vld [vmem:[%s2 + $0x2a0] sm:$0xff]
  %v199 = vld [vmem:[%s2 + $0x2a8] sm:$0xff]
  %v200 = vld [vmem:[%s2 + $0x2b0] sm:$0xff]
  %v201 = vld [vmem:[%s2 + $0x2b8] sm:$0xff]
  %v202 = vld [vmem:[%s2 + $0x2c0] sm:$0xff]
  %v203 = vld [vmem:[%s2 + $0x2c8] sm:$0xff]
  %v204 = vld [vmem:[%s2 + $0x2d0] sm:$0xff]
  %v205 = vld [vmem:[%s2 + $0x2d8] sm:$0xff]
  %v206 = vld [vmem:[%s2 + $0x2e0] sm:$0xff]
  %v207 = vld [vmem:[%s2 + $0x2e8] sm:$0xff]
  %v208 = vld [vmem:[%s2 + $0x2f0] sm:$0xff]
  %v209 = vld [vmem:[%s2 + $0x2f8] sm:$0xff]
  %v210 = vld [vmem:[%s2 + $0x300] sm:$0xff]
  %v211 = vld [vmem:[%s2 + $0x308] sm:$0xff]
  %v212 = vld [vmem:[%s2 + $0x310] sm:$0xff]
  %v213 = vld [vmem:[%s2 + $0x318] sm:$0xff]
  %v214 = vld [vmem:[%s2 + $0x320] sm:$0xff]
  %v215 = vld [vmem:[%s2 + $0x328] sm:$0xff]
  %v216 = vld [vmem:[%s2 + $0x330] sm:$0xff]
  %v217 = vld [vmem:[%s2 + $0x338] sm:$0xff]
  %v218 = vld [vmem:[%s2 + $0x340] sm:$0xff]
  %v219 = vld [vmem:[%s2 + $0x348] sm:$0xff]
  %v220 = vld [vmem:[%s2 + $0x350] sm:$0xff]
  %v221 = vld [vmem:[%s2 + $0x358] sm:$0xff]
  %v222 = vld [vmem:[%s2 + $0x360] sm:$0xff]
  %v223 = vld [vmem:[%s2 + $0x368] sm:$0xff]
  %v224 = vld [vmem:[%s2 + $0x370] sm:$0xff]
  %v225 = vld [vmem:[%s2 + $0x378] sm:$0xff]
  %v226 = vld [vmem:[%s2 + $0x380] sm:$0xff]
  %v227 = vld [vmem:[%s2 + $0x388] sm:$0xff]
  %v228 = vld [vmem:[%s2 + $0x390] sm:$0xff]
  %v229 = vld [vmem:[%s2 + $0x398] sm:$0xff]
  %v230 = vld [vmem:[%s2 + $0x3a0] sm:$0xff]
  %v231 = vld [vmem:[%s2 + $0x3a8] sm:$0xff]
  %v232 = vld [vmem:[%s2 + $0x3b0] sm:$0xff]
  %v233 = vld [vmem:[%s2 + $0x3b8] sm:$0xff]
  %v234 = vld [vmem:[%s2 + $0x3c0] sm:$0xff]
  %v235 = vld [vmem:[%s2 + $0x3c8] sm:$0xff]
  %v236 = vld [vmem:[%s2 + $0x3d0] sm:$0xff]
  %v237 = vld [vmem:[%s2 + $0x3d8] sm:$0xff]
  %v238 = vld [vmem:[%s2 + $0x3e0] sm:$0xff]
  %v239 = vld [vmem:[%s2 + $0x3e8] sm:$0xff]
  %v240 = vld [vmem:[%s2 + $0x3f0] sm:$0xff]
  %v241 = vld [vmem:[%s2 + $0x3f8] sm:$0xff]
  %v370 = vunpack.c.l.b16 %v114
  %v371 = vunpack.c.h.b16 %v114
  %v372 = vunpack.c.l.b16 %v115
  %v373 = vunpack.c.h.b16 %v115
  %v374 = vunpack.c.l.b16 %v116
  %v375 = vunpack.c.h.b16 %v116
  %v376 = vunpack.c.l.b16 %v117
  %v377 = vunpack.c.h.b16 %v117
  %v378 = vunpack.c.l.b16 %v118
  %v379 = vunpack.c.h.b16 %v118
  %v380 = vunpack.c.l.b16 %v119
  %v381 = vunpack.c.h.b16 %v119
  %v382 = vunpack.c.l.b16 %v120
  %v383 = vunpack.c.h.b16 %v120
  %v384 = vunpack.c.l.b16 %v121
  %v385 = vunpack.c.h.b16 %v121
  %v386 = vunpack.c.l.b16 %v122
  %v387 = vunpack.c.h.b16 %v122
  %v388 = vunpack.c.l.b16 %v123
  %v389 = vunpack.c.h.b16 %v123
  %v390 = vunpack.c.l.b16 %v124
  %v391 = vunpack.c.h.b16 %v124
  %v392 = vunpack.c.l.b16 %v125
  %v393 = vunpack.c.h.b16 %v125
  %v394 = vunpack.c.l.b16 %v126
  %v395 = vunpack.c.h.b16 %v126
  %v396 = vunpack.c.l.b16 %v127
  %v397 = vunpack.c.h.b16 %v127
  %v398 = vunpack.c.l.b16 %v128
  %v399 = vunpack.c.h.b16 %v128
  %v400 = vunpack.c.l.b16 %v129
  %v401 = vunpack.c.h.b16 %v129
  %v402 = vunpack.c.l.b16 %v130
  %v403 = vunpack.c.h.b16 %v130
  %v404 = vunpack.c.l.b16 %v131
  %v405 = vunpack.c.h.b16 %v131
  %v406 = vunpack.c.l.b16 %v132
  %v407 = vunpack.c.h.b16 %v132
  %v408 = vunpack.c.l.b16 %v133
  %v409 = vunpack.c.h.b16 %v133
  %v410 = vunpack.c.l.b16 %v134
  %v411 = vunpack.c.h.b16 %v134
  %v412 = vunpack.c.l.b16 %v135
  %v413 = vunpack.c.h.b16 %v135
  %v414 = vunpack.c.l.b16 %v136
  %v415 = vunpack.c.h.b16 %v136
  %v416 = vunpack.c.l.b16 %v137
  %v417 = vunpack.c.h.b16 %v137
  %v418 = vunpack.c.l.b16 %v138
  %v419 = vunpack.c.h.b16 %v138
  %v420 = vunpack.c.l.b16 %v139
  %v421 = vunpack.c.h.b16 %v139
  %v422 = vunpack.c.l.b16 %v140
  %v423 = vunpack.c.h.b16 %v140
  %v424 = vunpack.c.l.b16 %v141
  %v425 = vunpack.c.h.b16 %v141
  %v426 = vunpack.c.l.b16 %v142
  %v427 = vunpack.c.h.b16 %v142
  %v428 = vunpack.c.l.b16 %v143
  %v429 = vunpack.c.h.b16 %v143
  %v430 = vunpack.c.l.b16 %v144
  %v431 = vunpack.c.h.b16 %v144
  %v432 = vunpack.c.l.b16 %v145
  %v433 = vunpack.c.h.b16 %v145
  %v434 = vunpack.c.l.b16 %v146
  %v435 = vunpack.c.h.b16 %v146
  %v436 = vunpack.c.l.b16 %v147
  %v437 = vunpack.c.h.b16 %v147
  %v438 = vunpack.c.l.b16 %v148
  %v439 = vunpack.c.h.b16 %v148
  %v440 = vunpack.c.l.b16 %v149
  %v441 = vunpack.c.h.b16 %v149
  %v442 = vunpack.c.l.b16 %v150
  %v443 = vunpack.c.h.b16 %v150
  %v444 = vunpack.c.l.b16 %v151
  %v445 = vunpack.c.h.b16 %v151
  %v446 = vunpack.c.l.b16 %v152
  %v447 = vunpack.c.h.b16 %v152
  %v448 = vunpack.c.l.b16 %v153
  %v449 = vunpack.c.h.b16 %v153
  %v450 = vunpack.c.l.b16 %v154
  %v451 = vunpack.c.h.b16 %v154
  %v452 = vunpack.c.l.b16 %v155
  %v453 = vunpack.c.h.b16 %v155
  %v454 = vunpack.c.l.b16 %v156
  %v455 = vunpack.c.h.b16 %v156
  %v456 = vunpack.c.l.b16 %v157
  %v457 = vunpack.c.h.b16 %v157
  %v458 = vunpack.c.l.b16 %v158
  %v459 = vunpack.c.h.b16 %v158
  %v460 = vunpack.c.l.b16 %v159
  %v461 = vunpack.c.h.b16 %v159
  %v462 = vunpack.c.l.b16 %v160
  %v463 = vunpack.c.h.b16 %v160
  %v464 = vunpack.c.l.b16 %v161
  %v465 = vunpack.c.h.b16 %v161
  %v466 = vunpack.c.l.b16 %v162
  %v467 = vunpack.c.h.b16 %v162
  %v468 = vunpack.c.l.b16 %v163
  %v469 = vunpack.c.h.b16 %v163
  %v470 = vunpack.c.l.b16 %v164
  %v471 = vunpack.c.h.b16 %v164
  %v472 = vunpack.c.l.b16 %v165
  %v473 = vunpack.c.h.b16 %v165
  %v474 = vunpack.c.l.b16 %v166
  %v475 = vunpack.c.h.b16 %v166
  %v476 = vunpack.c.l.b16 %v167
  %v477 = vunpack.c.h.b16 %v167
  %v478 = vunpack.c.l.b16 %v168
  %v479 = vunpack.c.h.b16 %v168
  %v480 = vunpack.c.l.b16 %v169
  %v481 = vunpack.c.h.b16 %v169
  %v482 = vunpack.c.l.b16 %v170
  %v483 = vunpack.c.h.b16 %v170
  %v484 = vunpack.c.l.b16 %v171
  %v485 = vunpack.c.h.b16 %v171
  %v486 = vunpack.c.l.b16 %v172
  %v487 = vunpack.c.h.b16 %v172
  %v488 = vunpack.c.l.b16 %v173
  %v489 = vunpack.c.h.b16 %v173
  %v490 = vunpack.c.l.b16 %v174
  %v491 = vunpack.c.h.b16 %v174
  %v492 = vunpack.c.l.b16 %v175
  %v493 = vunpack.c.h.b16 %v175
  %v494 = vunpack.c.l.b16 %v176
  %v495 = vunpack.c.h.b16 %v176
  %v496 = vunpack.c.l.b16 %v177
  %v497 = vunpack.c.h.b16 %v177
  %v498 = vunpack.c.l.b16 %v178
  %v499 = vunpack.c.h.b16 %v178
  %v500 = vunpack.c.l.b16 %v179
  %v501 = vunpack.c.h.b16 %v179
  %v502 = vunpack.c.l.b16 %v180
  %v503 = vunpack.c.h.b16 %v180
  %v504 = vunpack.c.l.b16 %v181
  %v505 = vunpack.c.h.b16 %v181
  %v506 = vunpack.c.l.b16 %v182
  %v507 = vunpack.c.h.b16 %v182
  %v508 = vunpack.c.l.b16 %v183
  %v509 = vunpack.c.h.b16 %v183
  %v510 = vunpack.c.l.b16 %v184
  %v511 = vunpack.c.h.b16 %v184
  %v512 = vunpack.c.l.b16 %v185
  %v513 = vunpack.c.h.b16 %v185
  %v514 = vunpack.c.l.b16 %v186
  %v515 = vunpack.c.h.b16 %v186
  %v516 = vunpack.c.l.b16 %v187
  %v517 = vunpack.c.h.b16 %v187
  %v518 = vunpack.c.l.b16 %v188
  %v519 = vunpack.c.h.b16 %v188
  %v520 = vunpack.c.l.b16 %v189
  %v521 = vunpack.c.h.b16 %v189
  %v522 = vunpack.c.l.b16 %v190
  %v523 = vunpack.c.h.b16 %v190
  %v524 = vunpack.c.l.b16 %v191
  %v525 = vunpack.c.h.b16 %v191
  %v526 = vunpack.c.l.b16 %v192
  %v527 = vunpack.c.h.b16 %v192
  %v528 = vunpack.c.l.b16 %v193
  %v529 = vunpack.c.h.b16 %v193
  %v530 = vunpack.c.l.b16 %v194
  %v531 = vunpack.c.h.b16 %v194
  %v532 = vunpack.c.l.b16 %v195
  %v533 = vunpack.c.h.b16 %v195
  %v534 = vunpack.c.l.b16 %v196
  %v535 = vunpack.c.h.b16 %v196
  %v536 = vunpack.c.l.b16 %v197
  %v537 = vunpack.c.h.b16 %v197
  %v538 = vunpack.c.l.b16 %v198
  %v539 = vunpack.c.h.b16 %v198
  %v540 = vunpack.c.l.b16 %v199
  %v541 = vunpack.c.h.b16 %v199
  %v542 = vunpack.c.l.b16 %v200
  %v543 = vunpack.c.h.b16 %v200
  %v544 = vunpack.c.l.b16 %v201
  %v545 = vunpack.c.h.b16 %v201
  %v546 = vunpack.c.l.b16 %v202
  %v547 = vunpack.c.h.b16 %v202
  %v548 = vunpack.c.l.b16 %v203
  %v549 = vunpack.c.h.b16 %v203
  %v550 = vunpack.c.l.b16 %v204
  %v551 = vunpack.c.h.b16 %v204
  %v552 = vunpack.c.l.b16 %v205
  %v553 = vunpack.c.h.b16 %v205
  %v554 = vunpack.c.l.b16 %v206
  %v555 = vunpack.c.h.b16 %v206
  %v556 = vunpack.c.l.b16 %v207
  %v557 = vunpack.c.h.b16 %v207
  %v558 = vunpack.c.l.b16 %v208
  %v559 = vunpack.c.h.b16 %v208
  %v560 = vunpack.c.l.b16 %v209
  %v561 = vunpack.c.h.b16 %v209
  %v562 = vunpack.c.l.b16 %v210
  %v563 = vunpack.c.h.b16 %v210
  %v564 = vunpack.c.l.b16 %v211
  %v565 = vunpack.c.h.b16 %v211
  %v566 = vunpack.c.l.b16 %v212
  %v567 = vunpack.c.h.b16 %v212
  %v568 = vunpack.c.l.b16 %v213
  %v569 = vunpack.c.h.b16 %v213
  %v570 = vunpack.c.l.b16 %v214
  %v571 = vunpack.c.h.b16 %v214
  %v572 = vunpack.c.l.b16 %v215
  %v573 = vunpack.c.h.b16 %v215
  %v574 = vunpack.c.l.b16 %v216
  %v575 = vunpack.c.h.b16 %v216
  %v576 = vunpack.c.l.b16 %v217
  %v577 = vunpack.c.h.b16 %v217
  %v578 = vunpack.c.l.b16 %v218
  %v579 = vunpack.c.h.b16 %v218
  %v580 = vunpack.c.l.b16 %v219
  %v581 = vunpack.c.h.b16 %v219
  %v582 = vunpack.c.l.b16 %v220
  %v583 = vunpack.c.h.b16 %v220
  %v584 = vunpack.c.l.b16 %v221
  %v585 = vunpack.c.h.b16 %v221
  %v586 = vunpack.c.l.b16 %v222
  %v587 = vunpack.c.h.b16 %v222
  %v588 = vunpack.c.l.b16 %v223
  %v589 = vunpack.c.h.b16 %v223
  %v590 = vunpack.c.l.b16 %v224
  %v591 = vunpack.c.h.b16 %v224
  %v592 = vunpack.c.l.b16 %v225
  %v593 = vunpack.c.h.b16 %v225
  %v594 = vunpack.c.l.b16 %v226
  %v595 = vunpack.c.h.b16 %v226
  %v596 = vunpack.c.l.b16 %v227
  %v597 = vunpack.c.h.b16 %v227
  %v598 = vunpack.c.l.b16 %v228
  %v599 = vunpack.c.h.b16 %v228
  %v600 = vunpack.c.l.b16 %v229
  %v601 = vunpack.c.h.b16 %v229
  %v602 = vunpack.c.l.b16 %v230
  %v603 = vunpack.c.h.b16 %v230
  %v604 = vunpack.c.l.b16 %v231
  %v605 = vunpack.c.h.b16 %v231
  %v606 = vunpack.c.l.b16 %v232
  %v607 = vunpack.c.h.b16 %v232
  %v608 = vunpack.c.l.b16 %v233
  %v609 = vunpack.c.h.b16 %v233
  %v610 = vunpack.c.l.b16 %v234
  %v611 = vunpack.c.h.b16 %v234
  %v612 = vunpack.c.l.b16 %v235
  %v613 = vunpack.c.h.b16 %v235
  %v614 = vunpack.c.l.b16 %v236
  %v615 = vunpack.c.h.b16 %v236
  %v616 = vunpack.c.l.b16 %v237
  %v617 = vunpack.c.h.b16 %v237
  %v618 = vunpack.c.l.b16 %v238
  %v619 = vunpack.c.h.b16 %v238
  %v620 = vunpack.c.l.b16 %v239
  %v621 = vunpack.c.h.b16 %v239
  %v622 = vunpack.c.l.b16 %v240
  %v623 = vunpack.c.h.b16 %v240
  %v624 = vunpack.c.l.b16 %v241
  %v625 = vunpack.c.h.b16 %v241
  %v626 = vpack.c.b16 %v372, %v370
  %v627 = vpack.c.b16 %v373, %v371
  %v628 = vpack.c.b16 %v376, %v374
  %v629 = vpack.c.b16 %v377, %v375
  %v630 = vpack.c.b16 %v380, %v378
  %v631 = vpack.c.b16 %v381, %v379
  %v632 = vpack.c.b16 %v384, %v382
  %v633 = vpack.c.b16 %v385, %v383
  %v634 = vpack.c.b16 %v388, %v386
  %v635 = vpack.c.b16 %v389, %v387
  %v636 = vpack.c.b16 %v392, %v390
  %v637 = vpack.c.b16 %v393, %v391
  %v638 = vpack.c.b16 %v396, %v394
  %v639 = vpack.c.b16 %v397, %v395
  %v640 = vpack.c.b16 %v400, %v398
  %v641 = vpack.c.b16 %v401, %v399
  %v642 = vpack.c.b16 %v404, %v402
  %v643 = vpack.c.b16 %v405, %v403
  %v644 = vpack.c.b16 %v408, %v406
  %v645 = vpack.c.b16 %v409, %v407
  %v646 = vpack.c.b16 %v412, %v410
  %v647 = vpack.c.b16 %v413, %v411
  %v648 = vpack.c.b16 %v416, %v414
  %v649 = vpack.c.b16 %v417, %v415
  %v650 = vpack.c.b16 %v420, %v418
  %v651 = vpack.c.b16 %v421, %v419
  %v652 = vpack.c.b16 %v424, %v422
  %v653 = vpack.c.b16 %v425, %v423
  %v654 = vpack.c.b16 %v428, %v426
  %v655 = vpack.c.b16 %v429, %v427
  %v656 = vpack.c.b16 %v432, %v430
  %v657 = vpack.c.b16 %v433, %v431
  %v658 = vpack.c.b16 %v436, %v434
  %v659 = vpack.c.b16 %v437, %v435
  %v660 = vpack.c.b16 %v440, %v438
  %v661 = vpack.c.b16 %v441, %v439
  %v662 = vpack.c.b16 %v444, %v442
  %v663 = vpack.c.b16 %v445, %v443
  %v664 = vpack.c.b16 %v448, %v446
  %v665 = vpack.c.b16 %v449, %v447
  %v666 = vpack.c.b16 %v452, %v450
  %v667 = vpack.c.b16 %v453, %v451
  %v668 = vpack.c.b16 %v456, %v454
  %v669 = vpack.c.b16 %v457, %v455
  %v670 = vpack.c.b16 %v460, %v458
  %v671 = vpack.c.b16 %v461, %v459
  %v672 = vpack.c.b16 %v464, %v462
  %v673 = vpack.c.b16 %v465, %v463
  %v674 = vpack.c.b16 %v468, %v466
  %v675 = vpack.c.b16 %v469, %v467
  %v676 = vpack.c.b16 %v472, %v470
  %v677 = vpack.c.b16 %v473, %v471
  %v678 = vpack.c.b16 %v476, %v474
  %v679 = vpack.c.b16 %v477, %v475
  %v680 = vpack.c.b16 %v480, %v478
  %v681 = vpack.c.b16 %v481, %v479
  %v682 = vpack.c.b16 %v484, %v482
  %v683 = vpack.c.b16 %v485, %v483
  %v684 = vpack.c.b16 %v488, %v486
  %v685 = vpack.c.b16 %v489, %v487
  %v686 = vpack.c.b16 %v492, %v490
  %v687 = vpack.c.b16 %v493, %v491
  %v688 = vpack.c.b16 %v496, %v494
  %v689 = vpack.c.b16 %v497, %v495
  %v690 = vpack.c.b16 %v500, %v498
  %v691 = vpack.c.b16 %v501, %v499
  %v692 = vpack.c.b16 %v504, %v502
  %v693 = vpack.c.b16 %v505, %v503
  %v694 = vpack.c.b16 %v508, %v506
  %v695 = vpack.c.b16 %v509, %v507
  %v696 = vpack.c.b16 %v512, %v510
  %v697 = vpack.c.b16 %v513, %v511
  %v698 = vpack.c.b16 %v516, %v514
  %v699 = vpack.c.b16 %v517, %v515
  %v700 = vpack.c.b16 %v520, %v518
  %v701 = vpack.c.b16 %v521, %v519
  %v702 = vpack.c.b16 %v524, %v522
  %v703 = vpack.c.b16 %v525, %v523
  %v704 = vpack.c.b16 %v528, %v526
  %v705 = vpack.c.b16 %v529, %v527
  %v706 = vpack.c.b16 %v532, %v530
  %v707 = vpack.c.b16 %v533, %v531
  %v708 = vpack.c.b16 %v536, %v534
  %v709 = vpack.c.b16 %v537, %v535
  %v710 = vpack.c.b16 %v540, %v538
  %v711 = vpack.c.b16 %v541, %v539
  %v712 = vpack.c.b16 %v544, %v542
  %v713 = vpack.c.b16 %v545, %v543
  %v714 = vpack.c.b16 %v548, %v546
  %v715 = vpack.c.b16 %v549, %v547
  %v716 = vpack.c.b16 %v552, %v550
  %v717 = vpack.c.b16 %v553, %v551
  %v718 = vpack.c.b16 %v556, %v554
  %v719 = vpack.c.b16 %v557, %v555
  %v720 = vpack.c.b16 %v560, %v558
  %v721 = vpack.c.b16 %v561, %v559
  %v722 = vpack.c.b16 %v564, %v562
  %v723 = vpack.c.b16 %v565, %v563
  %v724 = vpack.c.b16 %v568, %v566
  %v725 = vpack.c.b16 %v569, %v567
  %v726 = vpack.c.b16 %v572, %v570
  %v727 = vpack.c.b16 %v573, %v571
  %v728 = vpack.c.b16 %v576, %v574
  %v729 = vpack.c.b16 %v577, %v575
  %v730 = vpack.c.b16 %v580, %v578
  %v731 = vpack.c.b16 %v581, %v579
  %v732 = vpack.c.b16 %v584, %v582
  %v733 = vpack.c.b16 %v585, %v583
  %v734 = vpack.c.b16 %v588, %v586
  %v735 = vpack.c.b16 %v589, %v587
  %v736 = vpack.c.b16 %v592, %v590
  %v737 = vpack.c.b16 %v593, %v591
  %v738 = vpack.c.b16 %v596, %v594
  %v739 = vpack.c.b16 %v597, %v595
  %v740 = vpack.c.b16 %v600, %v598
  %v741 = vpack.c.b16 %v601, %v599
  %v742 = vpack.c.b16 %v604, %v602
  %v743 = vpack.c.b16 %v605, %v603
  %v744 = vpack.c.b16 %v608, %v606
  %v745 = vpack.c.b16 %v609, %v607
  %v746 = vpack.c.b16 %v612, %v610
  %v747 = vpack.c.b16 %v613, %v611
  %v748 = vpack.c.b16 %v616, %v614
  %v749 = vpack.c.b16 %v617, %v615
  %v750 = vpack.c.b16 %v620, %v618
  %v751 = vpack.c.b16 %v621, %v619
  %v752 = vpack.c.b16 %v624, %v622
  %v753 = vpack.c.b16 %v625, %v623
  %882 = vmatprep.subr.bf16.mxu0 %v627
  %883 = vmatpush1.bf16.msra.mxu0 %v626
  %884 = vmatprep.subr.bf16.mxu0 %v629
  %885 = vmatpush1.bf16.msra.mxu0 %v628
  %886 = vmatprep.subr.bf16.mxu0 %v631
  %887 = vmatpush1.bf16.msra.mxu0 %v630
  %888 = vmatprep.subr.bf16.mxu0 %v633
  %889 = vmatpush1.bf16.msra.mxu0 %v632
  %890 = vmatprep.subr.bf16.mxu0 %v635
  %891 = vmatpush1.bf16.msra.mxu0 %v634
  %892 = vmatprep.subr.bf16.mxu0 %v637
  %893 = vmatpush1.bf16.msra.mxu0 %v636
  %894 = vmatprep.subr.bf16.mxu0 %v639
  %895 = vmatpush1.bf16.msra.mxu0 %v638
  %896 = vmatprep.subr.bf16.mxu0 %v641
  %897 = vmatpush1.bf16.msra.mxu0 %v640
  %898 = vmatprep.subr.bf16.mxu0 %v643
  %899 = vmatpush1.bf16.msra.mxu0 %v642
  %900 = vmatprep.subr.bf16.mxu0 %v645
  %901 = vmatpush1.bf16.msra.mxu0 %v644
  %902 = vmatprep.subr.bf16.mxu0 %v647
  %903 = vmatpush1.bf16.msra.mxu0 %v646
  %904 = vmatprep.subr.bf16.mxu0 %v649
  %905 = vmatpush1.bf16.msra.mxu0 %v648
  %906 = vmatprep.subr.bf16.mxu0 %v651
  %907 = vmatpush1.bf16.msra.mxu0 %v650
  %908 = vmatprep.subr.bf16.mxu0 %v653
  %909 = vmatpush1.bf16.msra.mxu0 %v652
  %910 = vmatprep.subr.bf16.mxu0 %v655
  %911 = vmatpush1.bf16.msra.mxu0 %v654
  %912 = vmatprep.subr.bf16.mxu0 %v657
  %913 = vmatpush1.bf16.msra.mxu0 %v656
  %914 = vmatprep.mubr.bf16.mxu0 %v83
  %915 = vmatmul.mubr.bf16.gmra.mrb[0].mxu0 %v82
  %v916 = vpop.f32.mrb[0].mxu0
  %v917 = vadd.f32 0.0, %v916
  %v918 = vpop.f32.mrb[0].mxu0
  %v919 = vadd.f32 0.0, %v918
  %v920 = vpop.f32.mrb[0].mxu0
  %v921 = vadd.f32 0.0, %v920
  %v922 = vpop.f32.mrb[0].mxu0
  %v923 = vadd.f32 0.0, %v922
  %924 = vdwg.mxu0
  %925 = vmatprep.subr.bf16.mxu0 %v659
  %926 = vmatpush1.bf16.msra.mxu0 %v658
  %927 = vmatprep.subr.bf16.mxu0 %v661
  %928 = vmatpush1.bf16.msra.mxu0 %v660
  %929 = vmatprep.subr.bf16.mxu0 %v663
  %930 = vmatpush1.bf16.msra.mxu0 %v662
  %931 = vmatprep.subr.bf16.mxu0 %v665
  %932 = vmatpush1.bf16.msra.mxu0 %v664
  %933 = vmatprep.subr.bf16.mxu0 %v667
  %934 = vmatpush1.bf16.msra.mxu0 %v666
  %935 = vmatprep.subr.bf16.mxu0 %v669
  %936 = vmatpush1.bf16.msra.mxu0 %v668
  %937 = vmatprep.subr.bf16.mxu0 %v671
  %938 = vmatpush1.bf16.msra.mxu0 %v670
  %939 = vmatprep.subr.bf16.mxu0 %v673
  %940 = vmatpush1.bf16.msra.mxu0 %v672
  %941 = vmatprep.subr.bf16.mxu0 %v675
  %942 = vmatpush1.bf16.msra.mxu0 %v674
  %943 = vmatprep.subr.bf16.mxu0 %v677
  %944 = vmatpush1.bf16.msra.mxu0 %v676
  %945 = vmatprep.subr.bf16.mxu0 %v679
  %946 = vmatpush1.bf16.msra.mxu0 %v678
  %947 = vmatprep.subr.bf16.mxu0 %v681
  %948 = vmatpush1.bf16.msra.mxu0 %v680
  %949 = vmatprep.subr.bf16.mxu0 %v683
  %950 = vmatpush1.bf16.msra.mxu0 %v682
  %951 = vmatprep.subr.bf16.mxu0 %v685
  %952 = vmatpush1.bf16.msra.mxu0 %v684
  %953 = vmatprep.subr.bf16.mxu0 %v687
  %954 = vmatpush1.bf16.msra.mxu0 %v686
  %955 = vmatprep.subr.bf16.mxu0 %v689
  %956 = vmatpush1.bf16.msra.mxu0 %v688
  %957 = vmatprep.mubr.bf16.mxu0 %v85
  %958 = vmatmul.mubr.bf16.gmra.mrb[0].mxu0 %v84
  %v959 = vpop.f32.mrb[0].mxu0
  %v960 = vadd.f32 %v917, %v959
  %v961 = vpop.f32.mrb[0].mxu0
  %v962 = vadd.f32 %v919, %v961
  %v963 = vpop.f32.mrb[0].mxu0
  %v964 = vadd.f32 %v921, %v963
  %v965 = vpop.f32.mrb[0].mxu0
  %v966 = vadd.f32 %v923, %v965
  %967 = vdwg.mxu0
  %968 = vmatprep.subr.bf16.mxu0 %v691
  %969 = vmatpush1.bf16.msra.mxu0 %v690
  %970 = vmatprep.subr.bf16.mxu0 %v693
  %971 = vmatpush1.bf16.msra.mxu0 %v692
  %972 = vmatprep.subr.bf16.mxu0 %v695
  %973 = vmatpush1.bf16.msra.mxu0 %v694
  %974 = vmatprep.subr.bf16.mxu0 %v697
  %975 = vmatpush1.bf16.msra.mxu0 %v696
  %976 = vmatprep.subr.bf16.mxu0 %v699
  %977 = vmatpush1.bf16.msra.mxu0 %v698
  %978 = vmatprep.subr.bf16.mxu0 %v701
  %979 = vmatpush1.bf16.msra.mxu0 %v700
  %980 = vmatprep.subr.bf16.mxu0 %v703
  %981 = vmatpush1.bf16.msra.mxu0 %v702
  %982 = vmatprep.subr.bf16.mxu0 %v705
  %983 = vmatpush1.bf16.msra.mxu0 %v704
  %984 = vmatprep.subr.bf16.mxu0 %v707
  %985 = vmatpush1.bf16.msra.mxu0 %v706
  %986 = vmatprep.subr.bf16.mxu0 %v709
  %987 = vmatpush1.bf16.msra.mxu0 %v708
  %988 = vmatprep.subr.bf16.mxu0 %v711
  %989 = vmatpush1.bf16.msra.mxu0 %v710
  %990 = vmatprep.subr.bf16.mxu0 %v713
  %991 = vmatpush1.bf16.msra.mxu0 %v712
  %992 = vmatprep.subr.bf16.mxu0 %v715
  %993 = vmatpush1.bf16.msra.mxu0 %v714
  %994 = vmatprep.subr.bf16.mxu0 %v717
  %995 = vmatpush1.bf16.msra.mxu0 %v716
  %996 = vmatprep.subr.bf16.mxu0 %v719
  %997 = vmatpush1.bf16.msra.mxu0 %v718
  %998 = vmatprep.subr.bf16.mxu0 %v721
  %999 = vmatpush1.bf16.msra.mxu0 %v720
  %1000 = vmatprep.mubr.bf16.mxu0 %v87
  %1001 = vmatmul.mubr.bf16.gmra.mrb[0].mxu0 %v86
  %v1002 = vpop.f32.mrb[0].mxu0
  %v1003 = vadd.f32 %v960, %v1002
  %v1004 = vpop.f32.mrb[0].mxu0
  %v1005 = vadd.f32 %v962, %v1004
  %v1006 = vpop.f32.mrb[0].mxu0
  %v1007 = vadd.f32 %v964, %v1006
  %v1008 = vpop.f32.mrb[0].mxu0
  %v1009 = vadd.f32 %v966, %v1008
  %1010 = vdwg.mxu0
  %1011 = vmatprep.subr.bf16.mxu0 %v723
  %1012 = vmatpush1.bf16.msra.mxu0 %v722
  %1013 = vmatprep.subr.bf16.mxu0 %v725
  %1014 = vmatpush1.bf16.msra.mxu0 %v724
  %1015 = vmatprep.subr.bf16.mxu0 %v727
  %1016 = vmatpush1.bf16.msra.mxu0 %v726
  %1017 = vmatprep.subr.bf16.mxu0 %v729
  %1018 = vmatpush1.bf16.msra.mxu0 %v728
  %1019 = vmatprep.subr.bf16.mxu0 %v731
  %1020 = vmatpush1.bf16.msra.mxu0 %v730
  %1021 = vmatprep.subr.bf16.mxu0 %v733
  %1022 = vmatpush1.bf16.msra.mxu0 %v732
  %1023 = vmatprep.subr.bf16.mxu0 %v735
  %1024 = vmatpush1.bf16.msra.mxu0 %v734
  %1025 = vmatprep.subr.bf16.mxu0 %v737
  %1026 = vmatpush1.bf16.msra.mxu0 %v736
  %1027 = vmatprep.subr.bf16.mxu0 %v739
  %1028 = vmatpush1.bf16.msra.mxu0 %v738
  %1029 = vmatprep.subr.bf16.mxu0 %v741
  %1030 = vmatpush1.bf16.msra.mxu0 %v740
  %1031 = vmatprep.subr.bf16.mxu0 %v743
  %1032 = vmatpush1.bf16.msra.mxu0 %v742
  %1033 = vmatprep.subr.bf16.mxu0 %v745
  %1034 = vmatpush1.bf16.msra.mxu0 %v744
  %1035 = vmatprep.subr.bf16.mxu0 %v747
  %1036 = vmatpush1.bf16.msra.mxu0 %v746
  %1037 = vmatprep.subr.bf16.mxu0 %v749
  %1038 = vmatpush1.bf16.msra.mxu0 %v748
  %1039 = vmatprep.subr.bf16.mxu0 %v751
  %1040 = vmatpush1.bf16.msra.mxu0 %v750
  %1041 = vmatprep.subr.bf16.mxu0 %v753
  %1042 = vmatpush1.bf16.msra.mxu0 %v752
  %1043 = vmatprep.mubr.bf16.mxu0 %v89
  %1044 = vmatmul.mubr.bf16.gmra.mrb[0].mxu0 %v88
  %v1045 = vpop.f32.mrb[0].mxu0
  %v1046 = vadd.f32 %v1003, %v1045
  %v1047 = vpop.f32.mrb[0].mxu0
  %v1048 = vadd.f32 %v1005, %v1047
  %v1049 = vpop.f32.mrb[0].mxu0
  %v1050 = vadd.f32 %v1007, %v1049
  %v1051 = vpop.f32.mrb[0].mxu0
  %v1052 = vadd.f32 %v1009, %v1051
  %1053 = vdwg.mxu0
  %v1054 = vld [vmem:[%s7] sm:$0xff]
  %v1055 = vld [vmem:[%s7 + $0x8] sm:$0xff]
  %v1056 = vld [vmem:[%s7 + $0x10] sm:$0xff]
  %v1057 = vld [vmem:[%s7 + $0x18] sm:$0xff]
  %v1058 = vld [vmem:[%s7 + $0x20] sm:$0xff]
  %v1059 = vld [vmem:[%s7 + $0x28] sm:$0xff]
  %v1060 = vld [vmem:[%s7 + $0x30] sm:$0xff]
  %v1061 = vld [vmem:[%s7 + $0x38] sm:$0xff]
  %v1062 = vld [vmem:[%s7 + $0x40] sm:$0xff]
  %v1063 = vld [vmem:[%s7 + $0x48] sm:$0xff]
  %v1064 = vld [vmem:[%s7 + $0x50] sm:$0xff]
  %v1065 = vld [vmem:[%s7 + $0x58] sm:$0xff]
  %v1066 = vld [vmem:[%s7 + $0x60] sm:$0xff]
  %v1067 = vld [vmem:[%s7 + $0x68] sm:$0xff]
  %v1068 = vld [vmem:[%s7 + $0x70] sm:$0xff]
  %v1069 = vld [vmem:[%s7 + $0x78] sm:$0xff]
  %v1070 = vld [vmem:[%s7 + $0x80] sm:$0xff]
  %v1071 = vld [vmem:[%s7 + $0x88] sm:$0xff]
  %v1072 = vld [vmem:[%s7 + $0x90] sm:$0xff]
  %v1073 = vld [vmem:[%s7 + $0x98] sm:$0xff]
  %v1074 = vld [vmem:[%s7 + $0xa0] sm:$0xff]
  %v1075 = vld [vmem:[%s7 + $0xa8] sm:$0xff]
  %v1076 = vld [vmem:[%s7 + $0xb0] sm:$0xff]
  %v1077 = vld [vmem:[%s7 + $0xb8] sm:$0xff]
  %v1078 = vld [vmem:[%s7 + $0xc0] sm:$0xff]
  %v1079 = vld [vmem:[%s7 + $0xc8] sm:$0xff]
  %v1080 = vld [vmem:[%s7 + $0xd0] sm:$0xff]
  %v1081 = vld [vmem:[%s7 + $0xd8] sm:$0xff]
  %v1082 = vld [vmem:[%s7 + $0xe0] sm:$0xff]
  %v1083 = vld [vmem:[%s7 + $0xe8] sm:$0xff]
  %v1084 = vld [vmem:[%s7 + $0xf0] sm:$0xff]
  %v1085 = vld [vmem:[%s7 + $0xf8] sm:$0xff]
  %v1086 = vld [vmem:[%s7 + $0x100] sm:$0xff]
  %v1087 = vld [vmem:[%s7 + $0x108] sm:$0xff]
  %v1088 = vld [vmem:[%s7 + $0x110] sm:$0xff]
  %v1089 = vld [vmem:[%s7 + $0x118] sm:$0xff]
  %v1090 = vld [vmem:[%s7 + $0x120] sm:$0xff]
  %v1091 = vld [vmem:[%s7 + $0x128] sm:$0xff]
  %v1092 = vld [vmem:[%s7 + $0x130] sm:$0xff]
  %v1093 = vld [vmem:[%s7 + $0x138] sm:$0xff]
  %v1094 = vld [vmem:[%s7 + $0x140] sm:$0xff]
  %v1095 = vld [vmem:[%s7 + $0x148] sm:$0xff]
  %v1096 = vld [vmem:[%s7 + $0x150] sm:$0xff]
  %v1097 = vld [vmem:[%s7 + $0x158] sm:$0xff]
  %v1098 = vld [vmem:[%s7 + $0x160] sm:$0xff]
  %v1099 = vld [vmem:[%s7 + $0x168] sm:$0xff]
  %v1100 = vld [vmem:[%s7 + $0x170] sm:$0xff]
  %v1101 = vld [vmem:[%s7 + $0x178] sm:$0xff]
  %v1102 = vld [vmem:[%s7 + $0x180] sm:$0xff]
  %v1103 = vld [vmem:[%s7 + $0x188] sm:$0xff]
  %v1104 = vld [vmem:[%s7 + $0x190] sm:$0xff]
  %v1105 = vld [vmem:[%s7 + $0x198] sm:$0xff]
  %v1106 = vld [vmem:[%s7 + $0x1a0] sm:$0xff]
  %v1107 = vld [vmem:[%s7 + $0x1a8] sm:$0xff]
  %v1108 = vld [vmem:[%s7 + $0x1b0] sm:$0xff]
  %v1109 = vld [vmem:[%s7 + $0x1b8] sm:$0xff]
  %v1110 = vld [vmem:[%s7 + $0x1c0] sm:$0xff]
  %v1111 = vld [vmem:[%s7 + $0x1c8] sm:$0xff]
  %v1112 = vld [vmem:[%s7 + $0x1d0] sm:$0xff]
  %v1113 = vld [vmem:[%s7 + $0x1d8] sm:$0xff]
  %v1114 = vld [vmem:[%s7 + $0x1e0] sm:$0xff]
  %v1115 = vld [vmem:[%s7 + $0x1e8] sm:$0xff]
  %v1116 = vld [vmem:[%s7 + $0x1f0] sm:$0xff]
  %v1117 = vld [vmem:[%s7 + $0x1f8] sm:$0xff]
  %v1118 = vld [vmem:[%s7 + $0x200] sm:$0xff]
  %v1119 = vld [vmem:[%s7 + $0x208] sm:$0xff]
  %v1120 = vld [vmem:[%s7 + $0x210] sm:$0xff]
  %v1121 = vld [vmem:[%s7 + $0x218] sm:$0xff]
  %v1122 = vld [vmem:[%s7 + $0x220] sm:$0xff]
  %v1123 = vld [vmem:[%s7 + $0x228] sm:$0xff]
  %v1124 = vld [vmem:[%s7 + $0x230] sm:$0xff]
  %v1125 = vld [vmem:[%s7 + $0x238] sm:$0xff]
  %v1126 = vld [vmem:[%s7 + $0x240] sm:$0xff]
  %v1127 = vld [vmem:[%s7 + $0x248] sm:$0xff]
  %v1128 = vld [vmem:[%s7 + $0x250] sm:$0xff]
  %v1129 = vld [vmem:[%s7 + $0x258] sm:$0xff]
  %v1130 = vld [vmem:[%s7 + $0x260] sm:$0xff]
  %v1131 = vld [vmem:[%s7 + $0x268] sm:$0xff]
  %v1132 = vld [vmem:[%s7 + $0x270] sm:$0xff]
  %v1133 = vld [vmem:[%s7 + $0x278] sm:$0xff]
  %v1134 = vld [vmem:[%s7 + $0x280] sm:$0xff]
  %v1135 = vld [vmem:[%s7 + $0x288] sm:$0xff]
  %v1136 = vld [vmem:[%s7 + $0x290] sm:$0xff]
  %v1137 = vld [vmem:[%s7 + $0x298] sm:$0xff]
  %v1138 = vld [vmem:[%s7 + $0x2a0] sm:$0xff]
  %v1139 = vld [vmem:[%s7 + $0x2a8] sm:$0xff]
  %v1140 = vld [vmem:[%s7 + $0x2b0] sm:$0xff]
  %v1141 = vld [vmem:[%s7 + $0x2b8] sm:$0xff]
  %v1142 = vld [vmem:[%s7 + $0x2c0] sm:$0xff]
  %v1143 = vld [vmem:[%s7 + $0x2c8] sm:$0xff]
  %v1144 = vld [vmem:[%s7 + $0x2d0] sm:$0xff]
  %v1145 = vld [vmem:[%s7 + $0x2d8] sm:$0xff]
  %v1146 = vld [vmem:[%s7 + $0x2e0] sm:$0xff]
  %v1147 = vld [vmem:[%s7 + $0x2e8] sm:$0xff]
  %v1148 = vld [vmem:[%s7 + $0x2f0] sm:$0xff]
  %v1149 = vld [vmem:[%s7 + $0x2f8] sm:$0xff]
  %v1150 = vld [vmem:[%s7 + $0x300] sm:$0xff]
  %v1151 = vld [vmem:[%s7 + $0x308] sm:$0xff]
  %v1152 = vld [vmem:[%s7 + $0x310] sm:$0xff]
  %v1153 = vld [vmem:[%s7 + $0x318] sm:$0xff]
  %v1154 = vld [vmem:[%s7 + $0x320] sm:$0xff]
  %v1155 = vld [vmem:[%s7 + $0x328] sm:$0xff]
  %v1156 = vld [vmem:[%s7 + $0x330] sm:$0xff]
  %v1157 = vld [vmem:[%s7 + $0x338] sm:$0xff]
  %v1158 = vld [vmem:[%s7 + $0x340] sm:$0xff]
  %v1159 = vld [vmem:[%s7 + $0x348] sm:$0xff]
  %v1160 = vld [vmem:[%s7 + $0x350] sm:$0xff]
  %v1161 = vld [vmem:[%s7 + $0x358] sm:$0xff]
  %v1162 = vld [vmem:[%s7 + $0x360] sm:$0xff]
  %v1163 = vld [vmem:[%s7 + $0x368] sm:$0xff]
  %v1164 = vld [vmem:[%s7 + $0x370] sm:$0xff]
  %v1165 = vld [vmem:[%s7 + $0x378] sm:$0xff]
  %v1166 = vld [vmem:[%s7 + $0x380] sm:$0xff]
  %v1167 = vld [vmem:[%s7 + $0x388] sm:$0xff]
  %v1168 = vld [vmem:[%s7 + $0x390] sm:$0xff]
  %v1169 = vld [vmem:[%s7 + $0x398] sm:$0xff]
  %v1170 = vld [vmem:[%s7 + $0x3a0] sm:$0xff]
  %v1171 = vld [vmem:[%s7 + $0x3a8] sm:$0xff]
  %v1172 = vld [vmem:[%s7 + $0x3b0] sm:$0xff]
  %v1173 = vld [vmem:[%s7 + $0x3b8] sm:$0xff]
  %v1174 = vld [vmem:[%s7 + $0x3c0] sm:$0xff]
  %v1175 = vld [vmem:[%s7 + $0x3c8] sm:$0xff]
  %v1176 = vld [vmem:[%s7 + $0x3d0] sm:$0xff]
  %v1177 = vld [vmem:[%s7 + $0x3d8] sm:$0xff]
  %v1178 = vld [vmem:[%s7 + $0x3e0] sm:$0xff]
  %v1179 = vld [vmem:[%s7 + $0x3e8] sm:$0xff]
  %v1180 = vld [vmem:[%s7 + $0x3f0] sm:$0xff]
  %v1181 = vld [vmem:[%s7 + $0x3f8] sm:$0xff]
  %v1310 = vunpack.c.l.b16 %v1054
  %v1311 = vunpack.c.h.b16 %v1054
  %v1312 = vunpack.c.l.b16 %v1055
  %v1313 = vunpack.c.h.b16 %v1055
  %v1314 = vunpack.c.l.b16 %v1056
  %v1315 = vunpack.c.h.b16 %v1056
  %v1316 = vunpack.c.l.b16 %v1057
  %v1317 = vunpack.c.h.b16 %v1057
  %v1318 = vunpack.c.l.b16 %v1058
  %v1319 = vunpack.c.h.b16 %v1058
  %v1320 = vunpack.c.l.b16 %v1059
  %v1321 = vunpack.c.h.b16 %v1059
  %v1322 = vunpack.c.l.b16 %v1060
  %v1323 = vunpack.c.h.b16 %v1060
  %v1324 = vunpack.c.l.b16 %v1061
  %v1325 = vunpack.c.h.b16 %v1061
  %v1326 = vunpack.c.l.b16 %v1062
  %v1327 = vunpack.c.h.b16 %v1062
  %v1328 = vunpack.c.l.b16 %v1063
  %v1329 = vunpack.c.h.b16 %v1063
  %v1330 = vunpack.c.l.b16 %v1064
  %v1331 = vunpack.c.h.b16 %v1064
  %v1332 = vunpack.c.l.b16 %v1065
  %v1333 = vunpack.c.h.b16 %v1065
  %v1334 = vunpack.c.l.b16 %v1066
  %v1335 = vunpack.c.h.b16 %v1066
  %v1336 = vunpack.c.l.b16 %v1067
  %v1337 = vunpack.c.h.b16 %v1067
  %v1338 = vunpack.c.l.b16 %v1068
  %v1339 = vunpack.c.h.b16 %v1068
  %v1340 = vunpack.c.l.b16 %v1069
  %v1341 = vunpack.c.h.b16 %v1069
  %v1342 = vunpack.c.l.b16 %v1070
  %v1343 = vunpack.c.h.b16 %v1070
  %v1344 = vunpack.c.l.b16 %v1071
  %v1345 = vunpack.c.h.b16 %v1071
  %v1346 = vunpack.c.l.b16 %v1072
  %v1347 = vunpack.c.h.b16 %v1072
  %v1348 = vunpack.c.l.b16 %v1073
  %v1349 = vunpack.c.h.b16 %v1073
  %v1350 = vunpack.c.l.b16 %v1074
  %v1351 = vunpack.c.h.b16 %v1074
  %v1352 = vunpack.c.l.b16 %v1075
  %v1353 = vunpack.c.h.b16 %v1075
  %v1354 = vunpack.c.l.b16 %v1076
  %v1355 = vunpack.c.h.b16 %v1076
  %v1356 = vunpack.c.l.b16 %v1077
  %v1357 = vunpack.c.h.b16 %v1077
  %v1358 = vunpack.c.l.b16 %v1078
  %v1359 = vunpack.c.h.b16 %v1078
  %v1360 = vunpack.c.l.b16 %v1079
  %v1361 = vunpack.c.h.b16 %v1079
  %v1362 = vunpack.c.l.b16 %v1080
  %v1363 = vunpack.c.h.b16 %v1080
  %v1364 = vunpack.c.l.b16 %v1081
  %v1365 = vunpack.c.h.b16 %v1081
  %v1366 = vunpack.c.l.b16 %v1082
  %v1367 = vunpack.c.h.b16 %v1082
  %v1368 = vunpack.c.l.b16 %v1083
  %v1369 = vunpack.c.h.b16 %v1083
  %v1370 = vunpack.c.l.b16 %v1084
  %v1371 = vunpack.c.h.b16 %v1084
  %v1372 = vunpack.c.l.b16 %v1085
  %v1373 = vunpack.c.h.b16 %v1085
  %v1374 = vunpack.c.l.b16 %v1086
  %v1375 = vunpack.c.h.b16 %v1086
  %v1376 = vunpack.c.l.b16 %v1087
  %v1377 = vunpack.c.h.b16 %v1087
  %v1378 = vunpack.c.l.b16 %v1088
  %v1379 = vunpack.c.h.b16 %v1088
  %v1380 = vunpack.c.l.b16 %v1089
  %v1381 = vunpack.c.h.b16 %v1089
  %v1382 = vunpack.c.l.b16 %v1090
  %v1383 = vunpack.c.h.b16 %v1090
  %v1384 = vunpack.c.l.b16 %v1091
  %v1385 = vunpack.c.h.b16 %v1091
  %v1386 = vunpack.c.l.b16 %v1092
  %v1387 = vunpack.c.h.b16 %v1092
  %v1388 = vunpack.c.l.b16 %v1093
  %v1389 = vunpack.c.h.b16 %v1093
  %v1390 = vunpack.c.l.b16 %v1094
  %v1391 = vunpack.c.h.b16 %v1094
  %v1392 = vunpack.c.l.b16 %v1095
  %v1393 = vunpack.c.h.b16 %v1095
  %v1394 = vunpack.c.l.b16 %v1096
  %v1395 = vunpack.c.h.b16 %v1096
  %v1396 = vunpack.c.l.b16 %v1097
  %v1397 = vunpack.c.h.b16 %v1097
  %v1398 = vunpack.c.l.b16 %v1098
  %v1399 = vunpack.c.h.b16 %v1098
  %v1400 = vunpack.c.l.b16 %v1099
  %v1401 = vunpack.c.h.b16 %v1099
  %v1402 = vunpack.c.l.b16 %v1100
  %v1403 = vunpack.c.h.b16 %v1100
  %v1404 = vunpack.c.l.b16 %v1101
  %v1405 = vunpack.c.h.b16 %v1101
  %v1406 = vunpack.c.l.b16 %v1102
  %v1407 = vunpack.c.h.b16 %v1102
  %v1408 = vunpack.c.l.b16 %v1103
  %v1409 = vunpack.c.h.b16 %v1103
  %v1410 = vunpack.c.l.b16 %v1104
  %v1411 = vunpack.c.h.b16 %v1104
  %v1412 = vunpack.c.l.b16 %v1105
  %v1413 = vunpack.c.h.b16 %v1105
  %v1414 = vunpack.c.l.b16 %v1106
  %v1415 = vunpack.c.h.b16 %v1106
  %v1416 = vunpack.c.l.b16 %v1107
  %v1417 = vunpack.c.h.b16 %v1107
  %v1418 = vunpack.c.l.b16 %v1108
  %v1419 = vunpack.c.h.b16 %v1108
  %v1420 = vunpack.c.l.b16 %v1109
  %v1421 = vunpack.c.h.b16 %v1109
  %v1422 = vunpack.c.l.b16 %v1110
  %v1423 = vunpack.c.h.b16 %v1110
  %v1424 = vunpack.c.l.b16 %v1111
  %v1425 = vunpack.c.h.b16 %v1111
  %v1426 = vunpack.c.l.b16 %v1112
  %v1427 = vunpack.c.h.b16 %v1112
  %v1428 = vunpack.c.l.b16 %v1113
  %v1429 = vunpack.c.h.b16 %v1113
  %v1430 = vunpack.c.l.b16 %v1114
  %v1431 = vunpack.c.h.b16 %v1114
  %v1432 = vunpack.c.l.b16 %v1115
  %v1433 = vunpack.c.h.b16 %v1115
  %v1434 = vunpack.c.l.b16 %v1116
  %v1435 = vunpack.c.h.b16 %v1116
  %v1436 = vunpack.c.l.b16 %v1117
  %v1437 = vunpack.c.h.b16 %v1117
  %v1438 = vunpack.c.l.b16 %v1118
  %v1439 = vunpack.c.h.b16 %v1118
  %v1440 = vunpack.c.l.b16 %v1119
  %v1441 = vunpack.c.h.b16 %v1119
  %v1442 = vunpack.c.l.b16 %v1120
  %v1443 = vunpack.c.h.b16 %v1120
  %v1444 = vunpack.c.l.b16 %v1121
  %v1445 = vunpack.c.h.b16 %v1121
  %v1446 = vunpack.c.l.b16 %v1122
  %v1447 = vunpack.c.h.b16 %v1122
  %v1448 = vunpack.c.l.b16 %v1123
  %v1449 = vunpack.c.h.b16 %v1123
  %v1450 = vunpack.c.l.b16 %v1124
  %v1451 = vunpack.c.h.b16 %v1124
  %v1452 = vunpack.c.l.b16 %v1125
  %v1453 = vunpack.c.h.b16 %v1125
  %v1454 = vunpack.c.l.b16 %v1126
  %v1455 = vunpack.c.h.b16 %v1126
  %v1456 = vunpack.c.l.b16 %v1127
  %v1457 = vunpack.c.h.b16 %v1127
  %v1458 = vunpack.c.l.b16 %v1128
  %v1459 = vunpack.c.h.b16 %v1128
  %v1460 = vunpack.c.l.b16 %v1129
  %v1461 = vunpack.c.h.b16 %v1129
  %v1462 = vunpack.c.l.b16 %v1130
  %v1463 = vunpack.c.h.b16 %v1130
  %v1464 = vunpack.c.l.b16 %v1131
  %v1465 = vunpack.c.h.b16 %v1131
  %v1466 = vunpack.c.l.b16 %v1132
  %v1467 = vunpack.c.h.b16 %v1132
  %v1468 = vunpack.c.l.b16 %v1133
  %v1469 = vunpack.c.h.b16 %v1133
  %v1470 = vunpack.c.l.b16 %v1134
  %v1471 = vunpack.c.h.b16 %v1134
  %v1472 = vunpack.c.l.b16 %v1135
  %v1473 = vunpack.c.h.b16 %v1135
  %v1474 = vunpack.c.l.b16 %v1136
  %v1475 = vunpack.c.h.b16 %v1136
  %v1476 = vunpack.c.l.b16 %v1137
  %v1477 = vunpack.c.h.b16 %v1137
  %v1478 = vunpack.c.l.b16 %v1138
  %v1479 = vunpack.c.h.b16 %v1138
  %v1480 = vunpack.c.l.b16 %v1139
  %v1481 = vunpack.c.h.b16 %v1139
  %v1482 = vunpack.c.l.b16 %v1140
  %v1483 = vunpack.c.h.b16 %v1140
  %v1484 = vunpack.c.l.b16 %v1141
  %v1485 = vunpack.c.h.b16 %v1141
  %v1486 = vunpack.c.l.b16 %v1142
  %v1487 = vunpack.c.h.b16 %v1142
  %v1488 = vunpack.c.l.b16 %v1143
  %v1489 = vunpack.c.h.b16 %v1143
  %v1490 = vunpack.c.l.b16 %v1144
  %v1491 = vunpack.c.h.b16 %v1144
  %v1492 = vunpack.c.l.b16 %v1145
  %v1493 = vunpack.c.h.b16 %v1145
  %v1494 = vunpack.c.l.b16 %v1146
  %v1495 = vunpack.c.h.b16 %v1146
  %v1496 = vunpack.c.l.b16 %v1147
  %v1497 = vunpack.c.h.b16 %v1147
  %v1498 = vunpack.c.l.b16 %v1148
  %v1499 = vunpack.c.h.b16 %v1148
  %v1500 = vunpack.c.l.b16 %v1149
  %v1501 = vunpack.c.h.b16 %v1149
  %v1502 = vunpack.c.l.b16 %v1150
  %v1503 = vunpack.c.h.b16 %v1150
  %v1504 = vunpack.c.l.b16 %v1151
  %v1505 = vunpack.c.h.b16 %v1151
  %v1506 = vunpack.c.l.b16 %v1152
  %v1507 = vunpack.c.h.b16 %v1152
  %v1508 = vunpack.c.l.b16 %v1153
  %v1509 = vunpack.c.h.b16 %v1153
  %v1510 = vunpack.c.l.b16 %v1154
  %v1511 = vunpack.c.h.b16 %v1154
  %v1512 = vunpack.c.l.b16 %v1155
  %v1513 = vunpack.c.h.b16 %v1155
  %v1514 = vunpack.c.l.b16 %v1156
  %v1515 = vunpack.c.h.b16 %v1156
  %v1516 = vunpack.c.l.b16 %v1157
  %v1517 = vunpack.c.h.b16 %v1157
  %v1518 = vunpack.c.l.b16 %v1158
  %v1519 = vunpack.c.h.b16 %v1158
  %v1520 = vunpack.c.l.b16 %v1159
  %v1521 = vunpack.c.h.b16 %v1159
  %v1522 = vunpack.c.l.b16 %v1160
  %v1523 = vunpack.c.h.b16 %v1160
  %v1524 = vunpack.c.l.b16 %v1161
  %v1525 = vunpack.c.h.b16 %v1161
  %v1526 = vunpack.c.l.b16 %v1162
  %v1527 = vunpack.c.h.b16 %v1162
  %v1528 = vunpack.c.l.b16 %v1163
  %v1529 = vunpack.c.h.b16 %v1163
  %v1530 = vunpack.c.l.b16 %v1164
  %v1531 = vunpack.c.h.b16 %v1164
  %v1532 = vunpack.c.l.b16 %v1165
  %v1533 = vunpack.c.h.b16 %v1165
  %v1534 = vunpack.c.l.b16 %v1166
  %v1535 = vunpack.c.h.b16 %v1166
  %v1536 = vunpack.c.l.b16 %v1167
  %v1537 = vunpack.c.h.b16 %v1167
  %v1538 = vunpack.c.l.b16 %v1168
  %v1539 = vunpack.c.h.b16 %v1168
  %v1540 = vunpack.c.l.b16 %v1169
  %v1541 = vunpack.c.h.b16 %v1169
  %v1542 = vunpack.c.l.b16 %v1170
  %v1543 = vunpack.c.h.b16 %v1170
  %v1544 = vunpack.c.l.b16 %v1171
  %v1545 = vunpack.c.h.b16 %v1171
  %v1546 = vunpack.c.l.b16 %v1172
  %v1547 = vunpack.c.h.b16 %v1172
  %v1548 = vunpack.c.l.b16 %v1173
  %v1549 = vunpack.c.h.b16 %v1173
  %v1550 = vunpack.c.l.b16 %v1174
  %v1551 = vunpack.c.h.b16 %v1174
  %v1552 = vunpack.c.l.b16 %v1175
  %v1553 = vunpack.c.h.b16 %v1175
  %v1554 = vunpack.c.l.b16 %v1176
  %v1555 = vunpack.c.h.b16 %v1176
  %v1556 = vunpack.c.l.b16 %v1177
  %v1557 = vunpack.c.h.b16 %v1177
  %v1558 = vunpack.c.l.b16 %v1178
  %v1559 = vunpack.c.h.b16 %v1178
  %v1560 = vunpack.c.l.b16 %v1179
  %v1561 = vunpack.c.h.b16 %v1179
  %v1562 = vunpack.c.l.b16 %v1180
  %v1563 = vunpack.c.h.b16 %v1180
  %v1564 = vunpack.c.l.b16 %v1181
  %v1565 = vunpack.c.h.b16 %v1181
  %v1566 = vpack.c.b16 %v1312, %v1310
  %v1567 = vpack.c.b16 %v1313, %v1311
  %v1568 = vpack.c.b16 %v1316, %v1314
  %v1569 = vpack.c.b16 %v1317, %v1315
  %v1570 = vpack.c.b16 %v1320, %v1318
  %v1571 = vpack.c.b16 %v1321, %v1319
  %v1572 = vpack.c.b16 %v1324, %v1322
  %v1573 = vpack.c.b16 %v1325, %v1323
  %v1574 = vpack.c.b16 %v1328, %v1326
  %v1575 = vpack.c.b16 %v1329, %v1327
  %v1576 = vpack.c.b16 %v1332, %v1330
  %v1577 = vpack.c.b16 %v1333, %v1331
  %v1578 = vpack.c.b16 %v1336, %v1334
  %v1579 = vpack.c.b16 %v1337, %v1335
  %v1580 = vpack.c.b16 %v1340, %v1338
  %v1581 = vpack.c.b16 %v1341, %v1339
  %v1582 = vpack.c.b16 %v1344, %v1342
  %v1583 = vpack.c.b16 %v1345, %v1343
  %v1584 = vpack.c.b16 %v1348, %v1346
  %v1585 = vpack.c.b16 %v1349, %v1347
  %v1586 = vpack.c.b16 %v1352, %v1350
  %v1587 = vpack.c.b16 %v1353, %v1351
  %v1588 = vpack.c.b16 %v1356, %v1354
  %v1589 = vpack.c.b16 %v1357, %v1355
  %v1590 = vpack.c.b16 %v1360, %v1358
  %v1591 = vpack.c.b16 %v1361, %v1359
  %v1592 = vpack.c.b16 %v1364, %v1362
  %v1593 = vpack.c.b16 %v1365, %v1363
  %v1594 = vpack.c.b16 %v1368, %v1366
  %v1595 = vpack.c.b16 %v1369, %v1367
  %v1596 = vpack.c.b16 %v1372, %v1370
  %v1597 = vpack.c.b16 %v1373, %v1371
  %v1598 = vpack.c.b16 %v1376, %v1374
  %v1599 = vpack.c.b16 %v1377, %v1375
  %v1600 = vpack.c.b16 %v1380, %v1378
  %v1601 = vpack.c.b16 %v1381, %v1379
  %v1602 = vpack.c.b16 %v1384, %v1382
  %v1603 = vpack.c.b16 %v1385, %v1383
  %v1604 = vpack.c.b16 %v1388, %v1386
  %v1605 = vpack.c.b16 %v1389, %v1387
  %v1606 = vpack.c.b16 %v1392, %v1390
  %v1607 = vpack.c.b16 %v1393, %v1391
  %v1608 = vpack.c.b16 %v1396, %v1394
  %v1609 = vpack.c.b16 %v1397, %v1395
  %v1610 = vpack.c.b16 %v1400, %v1398
  %v1611 = vpack.c.b16 %v1401, %v1399
  %v1612 = vpack.c.b16 %v1404, %v1402
  %v1613 = vpack.c.b16 %v1405, %v1403
  %v1614 = vpack.c.b16 %v1408, %v1406
  %v1615 = vpack.c.b16 %v1409, %v1407
  %v1616 = vpack.c.b16 %v1412, %v1410
  %v1617 = vpack.c.b16 %v1413, %v1411
  %v1618 = vpack.c.b16 %v1416, %v1414
  %v1619 = vpack.c.b16 %v1417, %v1415
  %v1620 = vpack.c.b16 %v1420, %v1418
  %v1621 = vpack.c.b16 %v1421, %v1419
  %v1622 = vpack.c.b16 %v1424, %v1422
  %v1623 = vpack.c.b16 %v1425, %v1423
  %v1624 = vpack.c.b16 %v1428, %v1426
  %v1625 = vpack.c.b16 %v1429, %v1427
  %v1626 = vpack.c.b16 %v1432, %v1430
  %v1627 = vpack.c.b16 %v1433, %v1431
  %v1628 = vpack.c.b16 %v1436, %v1434
  %v1629 = vpack.c.b16 %v1437, %v1435
  %v1630 = vpack.c.b16 %v1440, %v1438
  %v1631 = vpack.c.b16 %v1441, %v1439
  %v1632 = vpack.c.b16 %v1444, %v1442
  %v1633 = vpack.c.b16 %v1445, %v1443
  %v1634 = vpack.c.b16 %v1448, %v1446
  %v1635 = vpack.c.b16 %v1449, %v1447
  %v1636 = vpack.c.b16 %v1452, %v1450
  %v1637 = vpack.c.b16 %v1453, %v1451
  %v1638 = vpack.c.b16 %v1456, %v1454
  %v1639 = vpack.c.b16 %v1457, %v1455
  %v1640 = vpack.c.b16 %v1460, %v1458
  %v1641 = vpack.c.b16 %v1461, %v1459
  %v1642 = vpack.c.b16 %v1464, %v1462
  %v1643 = vpack.c.b16 %v1465, %v1463
  %v1644 = vpack.c.b16 %v1468, %v1466
  %v1645 = vpack.c.b16 %v1469, %v1467
  %v1646 = vpack.c.b16 %v1472, %v1470
  %v1647 = vpack.c.b16 %v1473, %v1471
  %v1648 = vpack.c.b16 %v1476, %v1474
  %v1649 = vpack.c.b16 %v1477, %v1475
  %v1650 = vpack.c.b16 %v1480, %v1478
  %v1651 = vpack.c.b16 %v1481, %v1479
  %v1652 = vpack.c.b16 %v1484, %v1482
  %v1653 = vpack.c.b16 %v1485, %v1483
  %v1654 = vpack.c.b16 %v1488, %v1486
  %v1655 = vpack.c.b16 %v1489, %v1487
  %v1656 = vpack.c.b16 %v1492, %v1490
  %v1657 = vpack.c.b16 %v1493, %v1491
  %v1658 = vpack.c.b16 %v1496, %v1494
  %v1659 = vpack.c.b16 %v1497, %v1495
  %v1660 = vpack.c.b16 %v1500, %v1498
  %v1661 = vpack.c.b16 %v1501, %v1499
  %v1662 = vpack.c.b16 %v1504, %v1502
  %v1663 = vpack.c.b16 %v1505, %v1503
  %v1664 = vpack.c.b16 %v1508, %v1506
  %v1665 = vpack.c.b16 %v1509, %v1507
  %v1666 = vpack.c.b16 %v1512, %v1510
  %v1667 = vpack.c.b16 %v1513, %v1511
  %v1668 = vpack.c.b16 %v1516, %v1514
  %v1669 = vpack.c.b16 %v1517, %v1515
  %v1670 = vpack.c.b16 %v1520, %v1518
  %v1671 = vpack.c.b16 %v1521, %v1519
  %v1672 = vpack.c.b16 %v1524, %v1522
  %v1673 = vpack.c.b16 %v1525, %v1523
  %v1674 = vpack.c.b16 %v1528, %v1526
  %v1675 = vpack.c.b16 %v1529, %v1527
  %v1676 = vpack.c.b16 %v1532, %v1530
  %v1677 = vpack.c.b16 %v1533, %v1531
  %v1678 = vpack.c.b16 %v1536, %v1534
  %v1679 = vpack.c.b16 %v1537, %v1535
  %v1680 = vpack.c.b16 %v1540, %v1538
  %v1681 = vpack.c.b16 %v1541, %v1539
  %v1682 = vpack.c.b16 %v1544, %v1542
  %v1683 = vpack.c.b16 %v1545, %v1543
  %v1684 = vpack.c.b16 %v1548, %v1546
  %v1685 = vpack.c.b16 %v1549, %v1547
  %v1686 = vpack.c.b16 %v1552, %v1550
  %v1687 = vpack.c.b16 %v1553, %v1551
  %v1688 = vpack.c.b16 %v1556, %v1554
  %v1689 = vpack.c.b16 %v1557, %v1555
  %v1690 = vpack.c.b16 %v1560, %v1558
  %v1691 = vpack.c.b16 %v1561, %v1559
  %v1692 = vpack.c.b16 %v1564, %v1562
  %v1693 = vpack.c.b16 %v1565, %v1563
  %1822 = vmatprep.subr.bf16.mxu0 %v1567
  %1823 = vmatpush1.bf16.msra.mxu0 %v1566
  %1824 = vmatprep.subr.bf16.mxu0 %v1569
  %1825 = vmatpush1.bf16.msra.mxu0 %v1568
  %1826 = vmatprep.subr.bf16.mxu0 %v1571
  %1827 = vmatpush1.bf16.msra.mxu0 %v1570
  %1828 = vmatprep.subr.bf16.mxu0 %v1573
  %1829 = vmatpush1.bf16.msra.mxu0 %v1572
  %1830 = vmatprep.subr.bf16.mxu0 %v1575
  %1831 = vmatpush1.bf16.msra.mxu0 %v1574
  %1832 = vmatprep.subr.bf16.mxu0 %v1577
  %1833 = vmatpush1.bf16.msra.mxu0 %v1576
  %1834 = vmatprep.subr.bf16.mxu0 %v1579
  %1835 = vmatpush1.bf16.msra.mxu0 %v1578
  %1836 = vmatprep.subr.bf16.mxu0 %v1581
  %1837 = vmatpush1.bf16.msra.mxu0 %v1580
  %1838 = vmatprep.subr.bf16.mxu0 %v1583
  %1839 = vmatpush1.bf16.msra.mxu0 %v1582
  %1840 = vmatprep.subr.bf16.mxu0 %v1585
  %1841 = vmatpush1.bf16.msra.mxu0 %v1584
  %1842 = vmatprep.subr.bf16.mxu0 %v1587
  %1843 = vmatpush1.bf16.msra.mxu0 %v1586
  %1844 = vmatprep.subr.bf16.mxu0 %v1589
  %1845 = vmatpush1.bf16.msra.mxu0 %v1588
  %1846 = vmatprep.subr.bf16.mxu0 %v1591
  %1847 = vmatpush1.bf16.msra.mxu0 %v1590
  %1848 = vmatprep.subr.bf16.mxu0 %v1593
  %1849 = vmatpush1.bf16.msra.mxu0 %v1592
  %1850 = vmatprep.subr.bf16.mxu0 %v1595
  %1851 = vmatpush1.bf16.msra.mxu0 %v1594
  %1852 = vmatprep.subr.bf16.mxu0 %v1597
  %1853 = vmatpush1.bf16.msra.mxu0 %v1596
  %1854 = vmatprep.mubr.bf16.mxu0 %v107
  %1855 = vmatmul.mubr.bf16.gmra.mrb[0].mxu0 %v106
  %v1856 = vpop.f32.mrb[0].mxu0
  %v1857 = vadd.f32 0.0, %v1856
  %v1858 = vpop.f32.mrb[0].mxu0
  %v1859 = vadd.f32 0.0, %v1858
  %v1860 = vpop.f32.mrb[0].mxu0
  %v1861 = vadd.f32 0.0, %v1860
  %v1862 = vpop.f32.mrb[0].mxu0
  %v1863 = vadd.f32 0.0, %v1862
  %1864 = vdwg.mxu0
  %1865 = vmatprep.subr.bf16.mxu0 %v1599
  %1866 = vmatpush1.bf16.msra.mxu0 %v1598
  %1867 = vmatprep.subr.bf16.mxu0 %v1601
  %1868 = vmatpush1.bf16.msra.mxu0 %v1600
  %1869 = vmatprep.subr.bf16.mxu0 %v1603
  %1870 = vmatpush1.bf16.msra.mxu0 %v1602
  %1871 = vmatprep.subr.bf16.mxu0 %v1605
  %1872 = vmatpush1.bf16.msra.mxu0 %v1604
  %1873 = vmatprep.subr.bf16.mxu0 %v1607
  %1874 = vmatpush1.bf16.msra.mxu0 %v1606
  %1875 = vmatprep.subr.bf16.mxu0 %v1609
  %1876 = vmatpush1.bf16.msra.mxu0 %v1608
  %1877 = vmatprep.subr.bf16.mxu0 %v1611
  %1878 = vmatpush1.bf16.msra.mxu0 %v1610
  %1879 = vmatprep.subr.bf16.mxu0 %v1613
  %1880 = vmatpush1.bf16.msra.mxu0 %v1612
  %1881 = vmatprep.subr.bf16.mxu0 %v1615
  %1882 = vmatpush1.bf16.msra.mxu0 %v1614
  %1883 = vmatprep.subr.bf16.mxu0 %v1617
  %1884 = vmatpush1.bf16.msra.mxu0 %v1616
  %1885 = vmatprep.subr.bf16.mxu0 %v1619
  %1886 = vmatpush1.bf16.msra.mxu0 %v1618
  %1887 = vmatprep.subr.bf16.mxu0 %v1621
  %1888 = vmatpush1.bf16.msra.mxu0 %v1620
  %1889 = vmatprep.subr.bf16.mxu0 %v1623
  %1890 = vmatpush1.bf16.msra.mxu0 %v1622
  %1891 = vmatprep.subr.bf16.mxu0 %v1625
  %1892 = vmatpush1.bf16.msra.mxu0 %v1624
  %1893 = vmatprep.subr.bf16.mxu0 %v1627
  %1894 = vmatpush1.bf16.msra.mxu0 %v1626
  %1895 = vmatprep.subr.bf16.mxu0 %v1629
  %1896 = vmatpush1.bf16.msra.mxu0 %v1628
  %1897 = vmatprep.mubr.bf16.mxu0 %v109
  %1898 = vmatmul.mubr.bf16.gmra.mrb[0].mxu0 %v108
  %v1899 = vpop.f32.mrb[0].mxu0
  %v1900 = vadd.f32 %v1857, %v1899
  %v1901 = vpop.f32.mrb[0].mxu0
  %v1902 = vadd.f32 %v1859, %v1901
  %v1903 = vpop.f32.mrb[0].mxu0
  %v1904 = vadd.f32 %v1861, %v1903
  %v1905 = vpop.f32.mrb[0].mxu0
  %v1906 = vadd.f32 %v1863, %v1905
  %1907 = vdwg.mxu0
  %1908 = vmatprep.subr.bf16.mxu0 %v1631
  %1909 = vmatpush1.bf16.msra.mxu0 %v1630
  %1910 = vmatprep.subr.bf16.mxu0 %v1633
  %1911 = vmatpush1.bf16.msra.mxu0 %v1632
  %1912 = vmatprep.subr.bf16.mxu0 %v1635
  %1913 = vmatpush1.bf16.msra.mxu0 %v1634
  %1914 = vmatprep.subr.bf16.mxu0 %v1637
  %1915 = vmatpush1.bf16.msra.mxu0 %v1636
  %1916 = vmatprep.subr.bf16.mxu0 %v1639
  %1917 = vmatpush1.bf16.msra.mxu0 %v1638
  %1918 = vmatprep.subr.bf16.mxu0 %v1641
  %1919 = vmatpush1.bf16.msra.mxu0 %v1640
  %1920 = vmatprep.subr.bf16.mxu0 %v1643
  %1921 = vmatpush1.bf16.msra.mxu0 %v1642
  %1922 = vmatprep.subr.bf16.mxu0 %v1645
  %1923 = vmatpush1.bf16.msra.mxu0 %v1644
  %1924 = vmatprep.subr.bf16.mxu0 %v1647
  %1925 = vmatpush1.bf16.msra.mxu0 %v1646
  %1926 = vmatprep.subr.bf16.mxu0 %v1649
  %1927 = vmatpush1.bf16.msra.mxu0 %v1648
  %1928 = vmatprep.subr.bf16.mxu0 %v1651
  %1929 = vmatpush1.bf16.msra.mxu0 %v1650
  %1930 = vmatprep.subr.bf16.mxu0 %v1653
  %1931 = vmatpush1.bf16.msra.mxu0 %v1652
  %1932 = vmatprep.subr.bf16.mxu0 %v1655
  %1933 = vmatpush1.bf16.msra.mxu0 %v1654
  %1934 = vmatprep.subr.bf16.mxu0 %v1657
  %1935 = vmatpush1.bf16.msra.mxu0 %v1656
  %1936 = vmatprep.subr.bf16.mxu0 %v1659
  %1937 = vmatpush1.bf16.msra.mxu0 %v1658
  %1938 = vmatprep.subr.bf16.mxu0 %v1661
  %1939 = vmatpush1.bf16.msra.mxu0 %v1660
  %1940 = vmatprep.mubr.bf16.mxu0 %v111
  %1941 = vmatmul.mubr.bf16.gmra.mrb[0].mxu0 %v110
  %v1942 = vpop.f32.mrb[0].mxu0
  %v1943 = vadd.f32 %v1900, %v1942
  %v1944 = vpop.f32.mrb[0].mxu0
  %v1945 = vadd.f32 %v1902, %v1944
  %v1946 = vpop.f32.mrb[0].mxu0
  %v1947 = vadd.f32 %v1904, %v1946
  %v1948 = vpop.f32.mrb[0].mxu0
  %v1949 = vadd.f32 %v1906, %v1948
  %1950 = vdwg.mxu0
  %1951 = vmatprep.subr.bf16.mxu0 %v1663
  %1952 = vmatpush1.bf16.msra.mxu0 %v1662
  %1953 = vmatprep.subr.bf16.mxu0 %v1665
  %1954 = vmatpush1.bf16.msra.mxu0 %v1664
  %1955 = vmatprep.subr.bf16.mxu0 %v1667
  %1956 = vmatpush1.bf16.msra.mxu0 %v1666
  %1957 = vmatprep.subr.bf16.mxu0 %v1669
  %1958 = vmatpush1.bf16.msra.mxu0 %v1668
  %1959 = vmatprep.subr.bf16.mxu0 %v1671
  %1960 = vmatpush1.bf16.msra.mxu0 %v1670
  %1961 = vmatprep.subr.bf16.mxu0 %v1673
  %1962 = vmatpush1.bf16.msra.mxu0 %v1672
  %1963 = vmatprep.subr.bf16.mxu0 %v1675
  %1964 = vmatpush1.bf16.msra.mxu0 %v1674
  %1965 = vmatprep.subr.bf16.mxu0 %v1677
  %1966 = vmatpush1.bf16.msra.mxu0 %v1676
  %1967 = vmatprep.subr.bf16.mxu0 %v1679
  %1968 = vmatpush1.bf16.msra.mxu0 %v1678
  %1969 = vmatprep.subr.bf16.mxu0 %v1681
  %1970 = vmatpush1.bf16.msra.mxu0 %v1680
  %1971 = vmatprep.subr.bf16.mxu0 %v1683
  %1972 = vmatpush1.bf16.msra.mxu0 %v1682
  %1973 = vmatprep.subr.bf16.mxu0 %v1685
  %1974 = vmatpush1.bf16.msra.mxu0 %v1684
  %1975 = vmatprep.subr.bf16.mxu0 %v1687
  %1976 = vmatpush1.bf16.msra.mxu0 %v1686
  %1977 = vmatprep.subr.bf16.mxu0 %v1689
  %1978 = vmatpush1.bf16.msra.mxu0 %v1688
  %1979 = vmatprep.subr.bf16.mxu0 %v1691
  %1980 = vmatpush1.bf16.msra.mxu0 %v1690
  %1981 = vmatprep.subr.bf16.mxu0 %v1693
  %1982 = vmatpush1.bf16.msra.mxu0 %v1692
  %1983 = vmatprep.mubr.bf16.mxu0 %v113
  %1984 = vmatmul.mubr.bf16.gmra.mrb[0].mxu0 %v112
  %v1985 = vpop.f32.mrb[0].mxu0
  %v1986 = vadd.f32 %v1943, %v1985
  %v1987 = vpop.f32.mrb[0].mxu0
  %v1988 = vadd.f32 %v1945, %v1987
  %v1989 = vpop.f32.mrb[0].mxu0
  %v1990 = vadd.f32 %v1947, %v1989
  %v1991 = vpop.f32.mrb[0].mxu0
  %v1992 = vadd.f32 %v1949, %v1991
  %1993 = vdwg.mxu0
  %v1994 = vld [vmem:[%s3] sm:$0x1]
  %v1995 = vld [vmem:[%s4] sm:$0x1]
  %1996 = vadd.xlane.f32.xlu0 %v1046
  %v1997 = vpop.xlane.xlu0 %1996
  %1998 = vadd.xlane.f32.xlu0 %v1050
  %v1999 = vpop.xlane.xlu0 %1998
  %v2000 = vrcp.pop 128.0
  %v2001 = vmul.f32 %v1997, %v2000
  %v2002 = vmul.f32 %v1999, %v2000
  %v2003 = vsub.f32 %v1046, %v2001
  %v2004 = vsub.f32 %v1050, %v2002
  %v2005 = vmul.f32 %v2003, %v2003
  %v2006 = vmul.f32 %v2004, %v2004
  %2007 = vadd.xlane.f32.xlu0 %v2005
  %v2008 = vpop.xlane.xlu0 %2007
  %2009 = vadd.xlane.f32.xlu0 %v2006
  %v2010 = vpop.xlane.xlu0 %2009
  %v2011 = vmul.f32 %v2008, %v2000
  %v2012 = vmul.f32 %v2010, %v2000
  %v2013 = vadd.f32 %v2011, 1e-05
  %v2014 = vadd.f32 %v2012, 1e-05
  %v2015 = vrsqrt.pop %v2013
  %v2016 = vrsqrt.pop %v2014
  %v2017 = vmul.f32 %v2003, %v2015
  %v2018 = vmul.f32 %v2004, %v2016
  %v2020 = vlaneseq
  %v2021 = vshrl.u32 %v2020, 7
  %v2022 = vsub.s32 0, %v2021
  %v2023 = vrot.slane %v1994, %v2022
  %v2025 = vmul.f32 %v2017, %v2023
  %v2026 = vmul.f32 %v2018, %v2023
  %v2028 = vlaneseq
  %v2029 = vshrl.u32 %v2028, 7
  %v2030 = vsub.s32 0, %v2029
  %v2031 = vrot.slane %v1995, %v2030
  %v2033 = vadd.f32 %v2025, %v2031
  %v2034 = vadd.f32 %v2026, %v2031
  %v2035 = vmax.f32 %v2033, 0.0
  %v2036 = vmax.f32 %v2034, 0.0
  %v2037 = vld [vmem:[%s5] sm:$0x1]
  %v2038 = vld [vmem:[%s6] sm:$0x1]
  %vm2039 = vcmask 523264
  %v2040 = vsel %vm2039, %v1048, 0.0
  %2041 = vadd.xlane.f32.xlu0 %v2040
  %v2042 = vpop.xlane.xlu0 %2041
  %v2043 = vsel %vm2039, %v1052, 0.0
  %2044 = vadd.xlane.f32.xlu0 %v2043
  %v2045 = vpop.xlane.xlu0 %2044
  %v2046 = vrcp.pop 64.0
  %v2047 = vmul.f32 %v2042, %v2046
  %v2048 = vmul.f32 %v2045, %v2046
  %v2049 = vsub.f32 %v1048, %v2047
  %v2050 = vsub.f32 %v1052, %v2048
  %v2051 = vmul.f32 %v2049, %v2049
  %v2052 = vmul.f32 %v2050, %v2050
  %v2053 = vsel %vm2039, %v2051, 0.0
  %2054 = vadd.xlane.f32.xlu0 %v2053
  %v2055 = vpop.xlane.xlu0 %2054
  %v2056 = vsel %vm2039, %v2052, 0.0
  %2057 = vadd.xlane.f32.xlu0 %v2056
  %v2058 = vpop.xlane.xlu0 %2057
  %v2059 = vmul.f32 %v2055, %v2046
  %v2060 = vmul.f32 %v2058, %v2046
  %v2061 = vadd.f32 %v2059, 1e-05
  %v2062 = vadd.f32 %v2060, 1e-05
  %v2063 = vrsqrt.pop %v2061
  %v2064 = vrsqrt.pop %v2062
  %v2065 = vmul.f32 %v2049, %v2063
  %v2066 = vmul.f32 %v2050, %v2064
  %v2068 = vlaneseq
  %v2069 = vshrl.u32 %v2068, 7
  %v2070 = vsub.s32 0, %v2069
  %v2071 = vrot.slane %v2037, %v2070
  %v2073 = vmul.f32 %v2065, %v2071
  %v2074 = vmul.f32 %v2066, %v2071
  %v2076 = vlaneseq
  %v2077 = vshrl.u32 %v2076, 7
  %v2078 = vsub.s32 0, %v2077
  %v2079 = vrot.slane %v2038, %v2078
  %v2081 = vadd.f32 %v2073, %v2079
  %v2082 = vadd.f32 %v2074, %v2079
  %v2083 = vmax.f32 %v2081, 0.0
  %v2084 = vmax.f32 %v2082, 0.0
  %v2085 = vld [vmem:[%s8] sm:$0x1]
  %v2086 = vld [vmem:[%s9] sm:$0x1]
  %2087 = vadd.xlane.f32.xlu0 %v1986
  %v2088 = vpop.xlane.xlu0 %2087
  %2089 = vadd.xlane.f32.xlu0 %v1990
  %v2090 = vpop.xlane.xlu0 %2089
  %v2091 = vmul.f32 %v2088, %v2000
  %v2092 = vmul.f32 %v2090, %v2000
  %v2093 = vsub.f32 %v1986, %v2091
  %v2094 = vsub.f32 %v1990, %v2092
  %v2095 = vmul.f32 %v2093, %v2093
  %v2096 = vmul.f32 %v2094, %v2094
  %2097 = vadd.xlane.f32.xlu0 %v2095
  %v2098 = vpop.xlane.xlu0 %2097
  %2099 = vadd.xlane.f32.xlu0 %v2096
  %v2100 = vpop.xlane.xlu0 %2099
  %v2101 = vmul.f32 %v2098, %v2000
  %v2102 = vmul.f32 %v2100, %v2000
  %v2103 = vadd.f32 %v2101, 1e-05
  %v2104 = vadd.f32 %v2102, 1e-05
  %v2105 = vrsqrt.pop %v2103
  %v2106 = vrsqrt.pop %v2104
  %v2107 = vmul.f32 %v2093, %v2105
  %v2108 = vmul.f32 %v2094, %v2106
  %v2110 = vlaneseq
  %v2111 = vshrl.u32 %v2110, 7
  %v2112 = vsub.s32 0, %v2111
  %v2113 = vrot.slane %v2085, %v2112
  %v2115 = vmul.f32 %v2107, %v2113
  %v2116 = vmul.f32 %v2108, %v2113
  %v2118 = vlaneseq
  %v2119 = vshrl.u32 %v2118, 7
  %v2120 = vsub.s32 0, %v2119
  %v2121 = vrot.slane %v2086, %v2120
  %v2123 = vadd.f32 %v2115, %v2121
  %v2124 = vadd.f32 %v2116, %v2121
  %v2125 = vmax.f32 %v2123, 0.0
  %v2126 = vmax.f32 %v2124, 0.0
  %v2127 = vld [vmem:[%s10] sm:$0x1]
  %v2128 = vld [vmem:[%s11] sm:$0x1]
  %v2129 = vsel %vm2039, %v1988, 0.0
  %2130 = vadd.xlane.f32.xlu0 %v2129
  %v2131 = vpop.xlane.xlu0 %2130
  %v2132 = vsel %vm2039, %v1992, 0.0
  %2133 = vadd.xlane.f32.xlu0 %v2132
  %v2134 = vpop.xlane.xlu0 %2133
  %v2135 = vmul.f32 %v2131, %v2046
  %v2136 = vmul.f32 %v2134, %v2046
  %v2137 = vsub.f32 %v1988, %v2135
  %v2138 = vsub.f32 %v1992, %v2136
  %v2139 = vmul.f32 %v2137, %v2137
  %v2140 = vmul.f32 %v2138, %v2138
  %v2141 = vsel %vm2039, %v2139, 0.0
  %2142 = vadd.xlane.f32.xlu0 %v2141
  %v2143 = vpop.xlane.xlu0 %2142
  %v2144 = vsel %vm2039, %v2140, 0.0
  %2145 = vadd.xlane.f32.xlu0 %v2144
  %v2146 = vpop.xlane.xlu0 %2145
  %v2147 = vmul.f32 %v2143, %v2046
  %v2148 = vmul.f32 %v2146, %v2046
  %v2149 = vadd.f32 %v2147, 1e-05
  %v2150 = vadd.f32 %v2148, 1e-05
  %v2151 = vrsqrt.pop %v2149
  %v2152 = vrsqrt.pop %v2150
  %v2153 = vmul.f32 %v2137, %v2151
  %v2154 = vmul.f32 %v2138, %v2152
  %v2156 = vlaneseq
  %v2157 = vshrl.u32 %v2156, 7
  %v2158 = vsub.s32 0, %v2157
  %v2159 = vrot.slane %v2127, %v2158
  %v2161 = vmul.f32 %v2153, %v2159
  %v2162 = vmul.f32 %v2154, %v2159
  %v2164 = vlaneseq
  %v2165 = vshrl.u32 %v2164, 7
  %v2166 = vsub.s32 0, %v2165
  %v2167 = vrot.slane %v2128, %v2166
  %v2169 = vadd.f32 %v2161, %v2167
  %v2170 = vadd.f32 %v2162, %v2167
  %v2171 = vmax.f32 %v2169, 0.0
  %v2172 = vmax.f32 %v2170, 0.0
  %2173 = vmatprep.subr.mxu0 0.0
  %2174 = vmatpush1.xpose.msra.mxu0 %v2125
  %2175 = vmatprep.subr.mxu0 0.0
  %2176 = vmatpush1.xpose.msra.mxu0 0.0
  %2177 = vmatprep.subr.mxu0 0.0
  %2178 = vmatpush1.xpose.msra.mxu0 0.0
  %2179 = vmatprep.subr.mxu0 0.0
  %2180 = vmatpush1.xpose.msra.mxu0 0.0
  %2181 = vmatprep.subr.mxu0 0.0
  %2182 = vmatpush1.xpose.msra.mxu0 0.0
  %2183 = vmatprep.subr.mxu0 0.0
  %2184 = vmatpush1.xpose.msra.mxu0 0.0
  %2185 = vmatprep.subr.mxu0 0.0
  %2186 = vmatpush1.xpose.msra.mxu0 0.0
  %2187 = vmatprep.subr.mxu0 0.0
  %2188 = vmatpush1.xpose.msra.mxu0 0.0
  %2189 = vmatprep.subr.mxu0 0.0
  %2190 = vmatpush1.xpose.msra.mxu0 0.0
  %2191 = vmatprep.subr.mxu0 0.0
  %2192 = vmatpush1.xpose.msra.mxu0 0.0
  %2193 = vmatprep.subr.mxu0 0.0
  %2194 = vmatpush1.xpose.msra.mxu0 0.0
  %2195 = vmatprep.subr.mxu0 0.0
  %2196 = vmatpush1.xpose.msra.mxu0 0.0
  %2197 = vmatprep.subr.mxu0 0.0
  %2198 = vmatpush1.xpose.msra.mxu0 0.0
  %2199 = vmatprep.subr.mxu0 0.0
  %2200 = vmatpush1.xpose.msra.mxu0 0.0
  %2201 = vmatprep.subr.mxu0 0.0
  %2202 = vmatpush1.xpose.msra.mxu0 0.0
  %2203 = vmatprep.subr.mxu0 0.0
  %2204 = vmatpush1.xpose.msra.mxu0 0.0
  %2205 = vmatprep.subr.mxu0 0.0
  %2206 = vmatpush1.xpose.msra.mxu0 0.0
  %2207 = vmatprep.subr.mxu0 0.0
  %2208 = vmatpush1.xpose.msra.mxu0 0.0
  %2209 = vmatprep.subr.mxu0 0.0
  %2210 = vmatpush1.xpose.msra.mxu0 0.0
  %2211 = vmatprep.subr.mxu0 0.0
  %2212 = vmatpush1.xpose.msra.mxu0 0.0
  %2213 = vmatprep.subr.mxu0 0.0
  %2214 = vmatpush1.xpose.msra.mxu0 0.0
  %2215 = vmatprep.subr.mxu0 0.0
  %2216 = vmatpush1.xpose.msra.mxu0 0.0
  %2217 = vmatprep.subr.mxu0 0.0
  %2218 = vmatpush1.xpose.msra.mxu0 0.0
  %2219 = vmatprep.subr.mxu0 0.0
  %2220 = vmatpush1.xpose.msra.mxu0 0.0
  %2221 = vmatprep.subr.mxu0 0.0
  %2222 = vmatpush1.xpose.msra.mxu0 0.0
  %2223 = vmatprep.subr.mxu0 0.0
  %2224 = vmatpush1.xpose.msra.mxu0 0.0
  %2225 = vmatprep.subr.mxu0 0.0
  %2226 = vmatpush1.xpose.msra.mxu0 0.0
  %2227 = vmatprep.subr.mxu0 0.0
  %2228 = vmatpush1.xpose.msra.mxu0 0.0
  %2229 = vmatprep.subr.mxu0 0.0
  %2230 = vmatpush1.xpose.msra.mxu0 0.0
  %2231 = vmatprep.subr.mxu0 0.0
  %2232 = vmatpush1.xpose.msra.mxu0 0.0
  %2233 = vmatprep.subr.mxu0 0.0
  %2234 = vmatpush1.xpose.msra.mxu0 0.0
  %2235 = vmatprep.subr.mxu0 0.0
  %2236 = vmatpush1.xpose.msra.mxu0 0.0
  %2237 = vmatprep.mubr.f32.mxu0 0.0
  %2238 = vmatmul.mubr.f32.gmra.mrb[0].mxu0 %v2035
  %v2239 = vpop.f32.mrb[0].mxu0
  %v2240 = vadd.f32 0.0, %v2239
  %v2241 = vpop.f32.mrb[0].mxu0
  %2242 = vdwg.mxu0
  %vm2243 = vcmask 64512
  %v2244 = vsel %vm2243, %v2240, -inf
  %2245 = vmax.xlane.f32.xlu0 %v2244
  %v2246 = vpop.xlane.xlu0 %2245
  %v2247 = vsub.f32 %v2240, %v2246
  %v2248 = vmul.f32 %v2247, 1.442695
  %v2249 = vpow.pop %v2248
  %v2250 = vsel %vm2243, %v2249, 0.0
  %2251 = vadd.xlane.f32.xlu0 %v2250
  %v2252 = vpop.xlane.xlu0 %2251
  %v2253 = vrcp.pop %v2252
  %v2254 = vmul.f32 %v2249, %v2253
  %v2256 = vsel %vm2243, %v2254, 0
  %2258 = vmatprep.subr.mxu0 0.0
  %2259 = vmatpush1.msra.mxu0 %v2171
  %2260 = vmatprep.subr.mxu0 0.0
  %2261 = vmatpush1.msra.mxu0 0.0
  %2262 = vmatprep.subr.mxu0 0.0
  %2263 = vmatpush1.msra.mxu0 0.0
  %2264 = vmatprep.subr.mxu0 0.0
  %2265 = vmatpush1.msra.mxu0 0.0
  %2266 = vmatprep.subr.mxu0 0.0
  %2267 = vmatpush1.msra.mxu0 0.0
  %2268 = vmatprep.subr.mxu0 0.0
  %2269 = vmatpush1.msra.mxu0 0.0
  %2270 = vmatprep.subr.mxu0 0.0
  %2271 = vmatpush1.msra.mxu0 0.0
  %2272 = vmatprep.subr.mxu0 0.0
  %2273 = vmatpush1.msra.mxu0 0.0
  %2274 = vmatprep.subr.mxu0 0.0
  %2275 = vmatpush1.msra.mxu0 0.0
  %2276 = vmatprep.subr.mxu0 0.0
  %2277 = vmatpush1.msra.mxu0 0.0
  %2278 = vmatprep.subr.mxu0 0.0
  %2279 = vmatpush1.msra.mxu0 0.0
  %2280 = vmatprep.subr.mxu0 0.0
  %2281 = vmatpush1.msra.mxu0 0.0
  %2282 = vmatprep.subr.mxu0 0.0
  %2283 = vmatpush1.msra.mxu0 0.0
  %2284 = vmatprep.subr.mxu0 0.0
  %2285 = vmatpush1.msra.mxu0 0.0
  %2286 = vmatprep.subr.mxu0 0.0
  %2287 = vmatpush1.msra.mxu0 0.0
  %2288 = vmatprep.subr.mxu0 0.0
  %2289 = vmatpush1.msra.mxu0 0.0
  %2290 = vmatprep.subr.mxu0 0.0
  %2291 = vmatpush1.msra.mxu0 0.0
  %2292 = vmatprep.subr.mxu0 0.0
  %2293 = vmatpush1.msra.mxu0 0.0
  %2294 = vmatprep.subr.mxu0 0.0
  %2295 = vmatpush1.msra.mxu0 0.0
  %2296 = vmatprep.subr.mxu0 0.0
  %2297 = vmatpush1.msra.mxu0 0.0
  %2298 = vmatprep.subr.mxu0 0.0
  %2299 = vmatpush1.msra.mxu0 0.0
  %2300 = vmatprep.subr.mxu0 0.0
  %2301 = vmatpush1.msra.mxu0 0.0
  %2302 = vmatprep.subr.mxu0 0.0
  %2303 = vmatpush1.msra.mxu0 0.0
  %2304 = vmatprep.subr.mxu0 0.0
  %2305 = vmatpush1.msra.mxu0 0.0
  %2306 = vmatprep.subr.mxu0 0.0
  %2307 = vmatpush1.msra.mxu0 0.0
  %2308 = vmatprep.subr.mxu0 0.0
  %2309 = vmatpush1.msra.mxu0 0.0
  %2310 = vmatprep.subr.mxu0 0.0
  %2311 = vmatpush1.msra.mxu0 0.0
  %2312 = vmatprep.subr.mxu0 0.0
  %2313 = vmatpush1.msra.mxu0 0.0
  %2314 = vmatprep.subr.mxu0 0.0
  %2315 = vmatpush1.msra.mxu0 0.0
  %2316 = vmatprep.subr.mxu0 0.0
  %2317 = vmatpush1.msra.mxu0 0.0
  %2318 = vmatprep.subr.mxu0 0.0
  %2319 = vmatpush1.msra.mxu0 0.0
  %2320 = vmatprep.subr.mxu0 0.0
  %2321 = vmatpush1.msra.mxu0 0.0
  %2322 = vmatprep.mubr.f32.mxu0 0.0
  %2323 = vmatmul.mubr.f32.gmra.mrb[0].mxu0 %v2256
  %v2324 = vpop.f32.mrb[0].mxu0
  %v2325 = vadd.f32 0.0, %v2324
  %v2326 = vpop.f32.mrb[0].mxu0
  %2327 = vdwg.mxu0
  %2329 = vrot.lane.b32.xlu0 %v2325, 64
  %v2330 = vpop.permute.xlu0 %2329
  %v2332 = vsel %vm2039, %v2083, %v2330
  %2333 = vst [vmem:[#allocation2] sm:$0x1] %v2332
  %v2336 = vunpack.c.l.s4 1983009808
  %v2337 = vunpack.c.0.s8 %v2336
  %v2338 = vlaneseq
  %v2339 = vshrl.u32 %v2338, 7
  %v2340 = vsub.s32 %v2337, %v2339
  %v2341 = vrot.slane %v2332, %v2340
  %v2342 = vrot.slane %v2341, 7
  %v2343 = vrot.slane %v2342, 2
  %2345 = vst [vmem:[#allocation2 + $0x2] sm:$0x1] %v2343
  %v2346 = vcombine.high %v2341, %v2341
  %2348 = vst [vmem:[#allocation2 + $0x4] sm:$0x1] %v2346
  %v2349 = vrot.slane %v2346, 7
  %v2350 = vrot.slane %v2349, 2
  %2352 = vst [vmem:[#allocation2 + $0x6] sm:$0x1] %v2350
  %v2353 = vcombine.high %v2332, %v2332
  %v2355 = vunpack.c.l.s4 1983009808
  %v2356 = vunpack.c.0.s8 %v2355
  %v2357 = vlaneseq
  %v2358 = vshrl.u32 %v2357, 7
  %v2359 = vsub.s32 %v2356, %v2358
  %v2360 = vrot.slane %v2353, %v2359
  %2362 = vst [vmem:[#allocation2 + $0x8] sm:$0x1] %v2360
  %v2363 = vrot.slane %v2360, 7
  %v2364 = vrot.slane %v2363, 2
  %2366 = vst [vmem:[#allocation2 + $0xa] sm:$0x1] %v2364
  %v2367 = vcombine.high %v2360, %v2360
  %2369 = vst [vmem:[#allocation2 + $0xc] sm:$0x1] %v2367
  %v2370 = vrot.slane %v2367, 7
  %v2371 = vrot.slane %v2370, 2
  %2373 = vst [vmem:[#allocation2 + $0xe] sm:$0x1] %v2371
  %2374 = vmatprep.subr.mxu0 0.0
  %2375 = vmatpush1.xpose.msra.mxu0 %v2126
  %2376 = vmatprep.subr.mxu0 0.0
  %2377 = vmatpush1.xpose.msra.mxu0 0.0
  %2378 = vmatprep.subr.mxu0 0.0
  %2379 = vmatpush1.xpose.msra.mxu0 0.0
  %2380 = vmatprep.subr.mxu0 0.0
  %2381 = vmatpush1.xpose.msra.mxu0 0.0
  %2382 = vmatprep.subr.mxu0 0.0
  %2383 = vmatpush1.xpose.msra.mxu0 0.0
  %2384 = vmatprep.subr.mxu0 0.0
  %2385 = vmatpush1.xpose.msra.mxu0 0.0
  %2386 = vmatprep.subr.mxu0 0.0
  %2387 = vmatpush1.xpose.msra.mxu0 0.0
  %2388 = vmatprep.subr.mxu0 0.0
  %2389 = vmatpush1.xpose.msra.mxu0 0.0
  %2390 = vmatprep.subr.mxu0 0.0
  %2391 = vmatpush1.xpose.msra.mxu0 0.0
  %2392 = vmatprep.subr.mxu0 0.0
  %2393 = vmatpush1.xpose.msra.mxu0 0.0
  %2394 = vmatprep.subr.mxu0 0.0
  %2395 = vmatpush1.xpose.msra.mxu0 0.0
  %2396 = vmatprep.subr.mxu0 0.0
  %2397 = vmatpush1.xpose.msra.mxu0 0.0
  %2398 = vmatprep.subr.mxu0 0.0
  %2399 = vmatpush1.xpose.msra.mxu0 0.0
  %2400 = vmatprep.subr.mxu0 0.0
  %2401 = vmatpush1.xpose.msra.mxu0 0.0
  %2402 = vmatprep.subr.mxu0 0.0
  %2403 = vmatpush1.xpose.msra.mxu0 0.0
  %2404 = vmatprep.subr.mxu0 0.0
  %2405 = vmatpush1.xpose.msra.mxu0 0.0
  %2406 = vmatprep.subr.mxu0 0.0
  %2407 = vmatpush1.xpose.msra.mxu0 0.0
  %2408 = vmatprep.subr.mxu0 0.0
  %2409 = vmatpush1.xpose.msra.mxu0 0.0
  %2410 = vmatprep.subr.mxu0 0.0
  %2411 = vmatpush1.xpose.msra.mxu0 0.0
  %2412 = vmatprep.subr.mxu0 0.0
  %2413 = vmatpush1.xpose.msra.mxu0 0.0
  %2414 = vmatprep.subr.mxu0 0.0
  %2415 = vmatpush1.xpose.msra.mxu0 0.0
  %2416 = vmatprep.subr.mxu0 0.0
  %2417 = vmatpush1.xpose.msra.mxu0 0.0
  %2418 = vmatprep.subr.mxu0 0.0
  %2419 = vmatpush1.xpose.msra.mxu0 0.0
  %2420 = vmatprep.subr.mxu0 0.0
  %2421 = vmatpush1.xpose.msra.mxu0 0.0
  %2422 = vmatprep.subr.mxu0 0.0
  %2423 = vmatpush1.xpose.msra.mxu0 0.0
  %2424 = vmatprep.subr.mxu0 0.0
  %2425 = vmatpush1.xpose.msra.mxu0 0.0
  %2426 = vmatprep.subr.mxu0 0.0
  %2427 = vmatpush1.xpose.msra.mxu0 0.0
  %2428 = vmatprep.subr.mxu0 0.0
  %2429 = vmatpush1.xpose.msra.mxu0 0.0
  %2430 = vmatprep.subr.mxu0 0.0
  %2431 = vmatpush1.xpose.msra.mxu0 0.0
  %2432 = vmatprep.subr.mxu0 0.0
  %2433 = vmatpush1.xpose.msra.mxu0 0.0
  %2434 = vmatprep.subr.mxu0 0.0
  %2435 = vmatpush1.xpose.msra.mxu0 0.0
  %2436 = vmatprep.subr.mxu0 0.0
  %2437 = vmatpush1.xpose.msra.mxu0 0.0
  %2438 = vmatprep.mubr.f32.mxu0 0.0
  %2439 = vmatmul.mubr.f32.gmra.mrb[0].mxu0 %v2036
  %v2440 = vpop.f32.mrb[0].mxu0
  %v2441 = vadd.f32 0.0, %v2440
  %v2442 = vpop.f32.mrb[0].mxu0
  %2443 = vdwg.mxu0
  %v2444 = vsel %vm2243, %v2441, -inf
  %2445 = vmax.xlane.f32.xlu0 %v2444
  %v2446 = vpop.xlane.xlu0 %2445
  %v2447 = vsub.f32 %v2441, %v2446
  %v2448 = vmul.f32 %v2447, 1.442695
  %v2449 = vpow.pop %v2448
  %v2450 = vsel %vm2243, %v2449, 0.0
  %2451 = vadd.xlane.f32.xlu0 %v2450
  %v2452 = vpop.xlane.xlu0 %2451
  %v2453 = vrcp.pop %v2452
  %v2454 = vmul.f32 %v2449, %v2453
  %v2456 = vsel %vm2243, %v2454, 0
  %2458 = vmatprep.subr.mxu0 0.0
  %2459 = vmatpush1.msra.mxu0 %v2172
  %2460 = vmatprep.subr.mxu0 0.0
  %2461 = vmatpush1.msra.mxu0 0.0
  %2462 = vmatprep.subr.mxu0 0.0
  %2463 = vmatpush1.msra.mxu0 0.0
  %2464 = vmatprep.subr.mxu0 0.0
  %2465 = vmatpush1.msra.mxu0 0.0
  %2466 = vmatprep.subr.mxu0 0.0
  %2467 = vmatpush1.msra.mxu0 0.0
  %2468 = vmatprep.subr.mxu0 0.0
  %2469 = vmatpush1.msra.mxu0 0.0
  %2470 = vmatprep.subr.mxu0 0.0
  %2471 = vmatpush1.msra.mxu0 0.0
  %2472 = vmatprep.subr.mxu0 0.0
  %2473 = vmatpush1.msra.mxu0 0.0
  %2474 = vmatprep.subr.mxu0 0.0
  %2475 = vmatpush1.msra.mxu0 0.0
  %2476 = vmatprep.subr.mxu0 0.0
  %2477 = vmatpush1.msra.mxu0 0.0
  %2478 = vmatprep.subr.mxu0 0.0
  %2479 = vmatpush1.msra.mxu0 0.0
  %2480 = vmatprep.subr.mxu0 0.0
  %2481 = vmatpush1.msra.mxu0 0.0
  %2482 = vmatprep.subr.mxu0 0.0
  %2483 = vmatpush1.msra.mxu0 0.0
  %2484 = vmatprep.subr.mxu0 0.0
  %2485 = vmatpush1.msra.mxu0 0.0
  %2486 = vmatprep.subr.mxu0 0.0
  %2487 = vmatpush1.msra.mxu0 0.0
  %2488 = vmatprep.subr.mxu0 0.0
  %2489 = vmatpush1.msra.mxu0 0.0
  %2490 = vmatprep.subr.mxu0 0.0
  %2491 = vmatpush1.msra.mxu0 0.0
  %2492 = vmatprep.subr.mxu0 0.0
  %2493 = vmatpush1.msra.mxu0 0.0
  %2494 = vmatprep.subr.mxu0 0.0
  %2495 = vmatpush1.msra.mxu0 0.0
  %2496 = vmatprep.subr.mxu0 0.0
  %2497 = vmatpush1.msra.mxu0 0.0
  %2498 = vmatprep.subr.mxu0 0.0
  %2499 = vmatpush1.msra.mxu0 0.0
  %2500 = vmatprep.subr.mxu0 0.0
  %2501 = vmatpush1.msra.mxu0 0.0
  %2502 = vmatprep.subr.mxu0 0.0
  %2503 = vmatpush1.msra.mxu0 0.0
  %2504 = vmatprep.subr.mxu0 0.0
  %2505 = vmatpush1.msra.mxu0 0.0
  %2506 = vmatprep.subr.mxu0 0.0
  %2507 = vmatpush1.msra.mxu0 0.0
  %2508 = vmatprep.subr.mxu0 0.0
  %2509 = vmatpush1.msra.mxu0 0.0
  %2510 = vmatprep.subr.mxu0 0.0
  %2511 = vmatpush1.msra.mxu0 0.0
  %2512 = vmatprep.subr.mxu0 0.0
  %2513 = vmatpush1.msra.mxu0 0.0
  %2514 = vmatprep.subr.mxu0 0.0
  %2515 = vmatpush1.msra.mxu0 0.0
  %2516 = vmatprep.subr.mxu0 0.0
  %2517 = vmatpush1.msra.mxu0 0.0
  %2518 = vmatprep.subr.mxu0 0.0
  %2519 = vmatpush1.msra.mxu0 0.0
  %2520 = vmatprep.subr.mxu0 0.0
  %2521 = vmatpush1.msra.mxu0 0.0
  %2522 = vmatprep.mubr.f32.mxu0 0.0
  %2523 = vmatmul.mubr.f32.gmra.mrb[0].mxu0 %v2456
  %v2524 = vpop.f32.mrb[0].mxu0
  %v2525 = vadd.f32 0.0, %v2524
  %v2526 = vpop.f32.mrb[0].mxu0
  %2527 = vdwg.mxu0
  %2529 = vrot.lane.b32.xlu0 %v2525, 64
  %v2530 = vpop.permute.xlu0 %2529
  %v2532 = vsel %vm2039, %v2084, %v2530
  %2533 = vst [vmem:[#allocation2 + $0x1] sm:$0x1] %v2532
  %v2536 = vunpack.c.l.s4 1983009808
  %v2537 = vunpack.c.0.s8 %v2536
  %v2538 = vlaneseq
  %v2539 = vshrl.u32 %v2538, 7
  %v2540 = vsub.s32 %v2537, %v2539
  %v2541 = vrot.slane %v2532, %v2540
  %v2542 = vrot.slane %v2541, 7
  %v2543 = vrot.slane %v2542, 2
  %2545 = vst [vmem:[#allocation2 + $0x3] sm:$0x1] %v2543
  %v2546 = vcombine.high %v2541, %v2541
  %2548 = vst [vmem:[#allocation2 + $0x5] sm:$0x1] %v2546
  %v2549 = vrot.slane %v2546, 7
  %v2550 = vrot.slane %v2549, 2
  %2552 = vst [vmem:[#allocation2 + $0x7] sm:$0x1] %v2550
  %v2553 = vcombine.high %v2532, %v2532
  %v2555 = vunpack.c.l.s4 1983009808
  %v2556 = vunpack.c.0.s8 %v2555
  %v2557 = vlaneseq
  %v2558 = vshrl.u32 %v2557, 7
  %v2559 = vsub.s32 %v2556, %v2558
  %v2560 = vrot.slane %v2553, %v2559
  %2562 = vst [vmem:[#allocation2 + $0x9] sm:$0x1] %v2560
  %v2563 = vrot.slane %v2560, 7
  %v2564 = vrot.slane %v2563, 2
  %2566 = vst [vmem:[#allocation2 + $0xb] sm:$0x1] %v2564
  %v2567 = vcombine.high %v2560, %v2560
  %2569 = vst [vmem:[#allocation2 + $0xd] sm:$0x1] %v2567
  %v2570 = vrot.slane %v2567, 7
  %v2571 = vrot.slane %v2570, 2
  %2573 = vst [vmem:[#allocation2 + $0xf] sm:$0x1] %v2571
  %v2574 = vld [vmem:[#allocation2] sm:$0xff]
  %v2575 = vld [vmem:[#allocation2 + $0x8] sm:$0xff]
  %v2578 = vcombine.high %v2574, %v2574
  %v2580 = vunpack.c.l.s4 1983009808
  %v2581 = vunpack.c.0.s8 %v2580
  %v2582 = vlaneseq
  %v2583 = vshrl.u32 %v2582, 7
  %v2584 = vsub.s32 %v2581, %v2583
  %v2585 = vrot.slane %v2574, %v2584
  %v2587 = vunpack.c.l.s4 1983009808
  %v2588 = vunpack.c.0.s8 %v2587
  %v2589 = vlaneseq
  %v2590 = vshrl.u32 %v2589, 7
  %v2591 = vsub.s32 %v2588, %v2590
  %v2592 = vrot.slane %v2578, %v2591
  %v2593 = vcombine.high %v2585, %v2585
  %v2594 = vcombine.high %v2592, %v2592
  %v2595 = vcombine.high %v2575, %v2575
  %v2597 = vunpack.c.l.s4 1983009808
  %v2598 = vunpack.c.0.s8 %v2597
  %v2599 = vlaneseq
  %v2600 = vshrl.u32 %v2599, 7
  %v2601 = vsub.s32 %v2598, %v2600
  %v2602 = vrot.slane %v2575, %v2601
  %v2604 = vunpack.c.l.s4 1983009808
  %v2605 = vunpack.c.0.s8 %v2604
  %v2606 = vlaneseq
  %v2607 = vshrl.u32 %v2606, 7
  %v2608 = vsub.s32 %v2605, %v2607
  %v2609 = vrot.slane %v2595, %v2608
  %v2610 = vcombine.high %v2602, %v2602
  %v2611 = vcombine.high %v2609, %v2609
  %v2620 = vpack.c.bf16 %v2585, %v2585
  %v2621 = vpack.c.bf16 %v2593, %v2593
  %v2622 = vpack.c.bf16 %v2592, %v2592
  %v2623 = vpack.c.bf16 %v2594, %v2594
  %v2624 = vpack.c.bf16 %v2602, %v2602
  %v2625 = vpack.c.bf16 %v2610, %v2610
  %v2626 = vpack.c.bf16 %v2609, %v2609
  %v2627 = vpack.c.bf16 %v2611, %v2611
  %v2628 = vld [vmem:[%s12] sm:$0xff]
  %v2629 = vld [vmem:[%s12 + $0x8] sm:$0xff]
  %v2630 = vld [vmem:[%s12 + $0x10] sm:$0xff]
  %v2631 = vld [vmem:[%s12 + $0x18] sm:$0xff]
  %v2632 = vld [vmem:[%s12 + $0x20] sm:$0xff]
  %v2633 = vld [vmem:[%s12 + $0x28] sm:$0xff]
  %v2634 = vld [vmem:[%s12 + $0x30] sm:$0xff]
  %v2635 = vld [vmem:[%s12 + $0x38] sm:$0xff]
  %v2636 = vld [vmem:[%s12 + $0x40] sm:$0xff]
  %v2637 = vld [vmem:[%s12 + $0x48] sm:$0xff]
  %v2638 = vld [vmem:[%s12 + $0x50] sm:$0xff]
  %v2639 = vld [vmem:[%s12 + $0x58] sm:$0xff]
  %v2640 = vld [vmem:[%s12 + $0x60] sm:$0xff]
  %v2641 = vld [vmem:[%s12 + $0x68] sm:$0xff]
  %v2642 = vld [vmem:[%s12 + $0x70] sm:$0xff]
  %v2643 = vld [vmem:[%s12 + $0x78] sm:$0xff]
  %v2644 = vld [vmem:[%s12 + $0x80] sm:$0xff]
  %v2645 = vld [vmem:[%s12 + $0x88] sm:$0xff]
  %v2646 = vld [vmem:[%s12 + $0x90] sm:$0xff]
  %v2647 = vld [vmem:[%s12 + $0x98] sm:$0xff]
  %v2648 = vld [vmem:[%s12 + $0xa0] sm:$0xff]
  %v2649 = vld [vmem:[%s12 + $0xa8] sm:$0xff]
  %v2650 = vld [vmem:[%s12 + $0xb0] sm:$0xff]
  %v2651 = vld [vmem:[%s12 + $0xb8] sm:$0xff]
  %v2652 = vld [vmem:[%s12 + $0xc0] sm:$0xff]
  %v2653 = vld [vmem:[%s12 + $0xc8] sm:$0xff]
  %v2654 = vld [vmem:[%s12 + $0xd0] sm:$0xff]
  %v2655 = vld [vmem:[%s12 + $0xd8] sm:$0xff]
  %v2656 = vld [vmem:[%s12 + $0xe0] sm:$0xff]
  %v2657 = vld [vmem:[%s12 + $0xe8] sm:$0xff]
  %v2658 = vld [vmem:[%s12 + $0xf0] sm:$0xff]
  %v2659 = vld [vmem:[%s12 + $0xf8] sm:$0xff]
  %v2660 = vld [vmem:[%s12 + $0x100] sm:$0xff]
  %v2661 = vld [vmem:[%s12 + $0x108] sm:$0xff]
  %v2662 = vld [vmem:[%s12 + $0x110] sm:$0xff]
  %v2663 = vld [vmem:[%s12 + $0x118] sm:$0xff]
  %v2664 = vld [vmem:[%s12 + $0x120] sm:$0xff]
  %v2665 = vld [vmem:[%s12 + $0x128] sm:$0xff]
  %v2666 = vld [vmem:[%s12 + $0x130] sm:$0xff]
  %v2667 = vld [vmem:[%s12 + $0x138] sm:$0xff]
  %v2668 = vld [vmem:[%s12 + $0x140] sm:$0xff]
  %v2669 = vld [vmem:[%s12 + $0x148] sm:$0xff]
  %v2670 = vld [vmem:[%s12 + $0x150] sm:$0xff]
  %v2671 = vld [vmem:[%s12 + $0x158] sm:$0xff]
  %v2672 = vld [vmem:[%s12 + $0x160] sm:$0xff]
  %v2673 = vld [vmem:[%s12 + $0x168] sm:$0xff]
  %v2674 = vld [vmem:[%s12 + $0x170] sm:$0xff]
  %v2675 = vld [vmem:[%s12 + $0x178] sm:$0xff]
  %v2676 = vld [vmem:[%s12 + $0x180] sm:$0xff]
  %v2677 = vld [vmem:[%s12 + $0x188] sm:$0xff]
  %v2678 = vld [vmem:[%s12 + $0x190] sm:$0xff]
  %v2679 = vld [vmem:[%s12 + $0x198] sm:$0xff]
  %v2680 = vld [vmem:[%s12 + $0x1a0] sm:$0xff]
  %v2681 = vld [vmem:[%s12 + $0x1a8] sm:$0xff]
  %v2682 = vld [vmem:[%s12 + $0x1b0] sm:$0xff]
  %v2683 = vld [vmem:[%s12 + $0x1b8] sm:$0xff]
  %v2684 = vld [vmem:[%s12 + $0x1c0] sm:$0xff]
  %v2685 = vld [vmem:[%s12 + $0x1c8] sm:$0xff]
  %v2686 = vld [vmem:[%s12 + $0x1d0] sm:$0xff]
  %v2687 = vld [vmem:[%s12 + $0x1d8] sm:$0xff]
  %v2688 = vld [vmem:[%s12 + $0x1e0] sm:$0xff]
  %v2689 = vld [vmem:[%s12 + $0x1e8] sm:$0xff]
  %v2690 = vld [vmem:[%s12 + $0x1f0] sm:$0xff]
  %v2691 = vld [vmem:[%s12 + $0x1f8] sm:$0xff]
  %v2692 = vld [vmem:[%s12 + $0x200] sm:$0xff]
  %v2693 = vld [vmem:[%s12 + $0x208] sm:$0xff]
  %v2694 = vld [vmem:[%s12 + $0x210] sm:$0xff]
  %v2695 = vld [vmem:[%s12 + $0x218] sm:$0xff]
  %v2696 = vld [vmem:[%s12 + $0x220] sm:$0xff]
  %v2697 = vld [vmem:[%s12 + $0x228] sm:$0xff]
  %v2698 = vld [vmem:[%s12 + $0x230] sm:$0xff]
  %v2699 = vld [vmem:[%s12 + $0x238] sm:$0xff]
  %v2700 = vld [vmem:[%s12 + $0x240] sm:$0xff]
  %v2701 = vld [vmem:[%s12 + $0x248] sm:$0xff]
  %v2702 = vld [vmem:[%s12 + $0x250] sm:$0xff]
  %v2703 = vld [vmem:[%s12 + $0x258] sm:$0xff]
  %v2704 = vld [vmem:[%s12 + $0x260] sm:$0xff]
  %v2705 = vld [vmem:[%s12 + $0x268] sm:$0xff]
  %v2706 = vld [vmem:[%s12 + $0x270] sm:$0xff]
  %v2707 = vld [vmem:[%s12 + $0x278] sm:$0xff]
  %v2708 = vld [vmem:[%s12 + $0x280] sm:$0xff]
  %v2709 = vld [vmem:[%s12 + $0x288] sm:$0xff]
  %v2710 = vld [vmem:[%s12 + $0x290] sm:$0xff]
  %v2711 = vld [vmem:[%s12 + $0x298] sm:$0xff]
  %v2712 = vld [vmem:[%s12 + $0x2a0] sm:$0xff]
  %v2713 = vld [vmem:[%s12 + $0x2a8] sm:$0xff]
  %v2714 = vld [vmem:[%s12 + $0x2b0] sm:$0xff]
  %v2715 = vld [vmem:[%s12 + $0x2b8] sm:$0xff]
  %v2716 = vld [vmem:[%s12 + $0x2c0] sm:$0xff]
  %v2717 = vld [vmem:[%s12 + $0x2c8] sm:$0xff]
  %v2718 = vld [vmem:[%s12 + $0x2d0] sm:$0xff]
  %v2719 = vld [vmem:[%s12 + $0x2d8] sm:$0xff]
  %v2720 = vld [vmem:[%s12 + $0x2e0] sm:$0xff]
  %v2721 = vld [vmem:[%s12 + $0x2e8] sm:$0xff]
  %v2722 = vld [vmem:[%s12 + $0x2f0] sm:$0xff]
  %v2723 = vld [vmem:[%s12 + $0x2f8] sm:$0xff]
  %v2724 = vld [vmem:[%s12 + $0x300] sm:$0xff]
  %v2725 = vld [vmem:[%s12 + $0x308] sm:$0xff]
  %v2726 = vld [vmem:[%s12 + $0x310] sm:$0xff]
  %v2727 = vld [vmem:[%s12 + $0x318] sm:$0xff]
  %v2728 = vld [vmem:[%s12 + $0x320] sm:$0xff]
  %v2729 = vld [vmem:[%s12 + $0x328] sm:$0xff]
  %v2730 = vld [vmem:[%s12 + $0x330] sm:$0xff]
  %v2731 = vld [vmem:[%s12 + $0x338] sm:$0xff]
  %v2732 = vld [vmem:[%s12 + $0x340] sm:$0xff]
  %v2733 = vld [vmem:[%s12 + $0x348] sm:$0xff]
  %v2734 = vld [vmem:[%s12 + $0x350] sm:$0xff]
  %v2735 = vld [vmem:[%s12 + $0x358] sm:$0xff]
  %v2736 = vld [vmem:[%s12 + $0x360] sm:$0xff]
  %v2737 = vld [vmem:[%s12 + $0x368] sm:$0xff]
  %v2738 = vld [vmem:[%s12 + $0x370] sm:$0xff]
  %v2739 = vld [vmem:[%s12 + $0x378] sm:$0xff]
  %v2740 = vld [vmem:[%s12 + $0x380] sm:$0xff]
  %v2741 = vld [vmem:[%s12 + $0x388] sm:$0xff]
  %v2742 = vld [vmem:[%s12 + $0x390] sm:$0xff]
  %v2743 = vld [vmem:[%s12 + $0x398] sm:$0xff]
  %v2744 = vld [vmem:[%s12 + $0x3a0] sm:$0xff]
  %v2745 = vld [vmem:[%s12 + $0x3a8] sm:$0xff]
  %v2746 = vld [vmem:[%s12 + $0x3b0] sm:$0xff]
  %v2747 = vld [vmem:[%s12 + $0x3b8] sm:$0xff]
  %v2748 = vld [vmem:[%s12 + $0x3c0] sm:$0xff]
  %v2749 = vld [vmem:[%s12 + $0x3c8] sm:$0xff]
  %v2750 = vld [vmem:[%s12 + $0x3d0] sm:$0xff]
  %v2751 = vld [vmem:[%s12 + $0x3d8] sm:$0xff]
  %v2752 = vld [vmem:[%s12 + $0x3e0] sm:$0xff]
  %v2753 = vld [vmem:[%s12 + $0x3e8] sm:$0xff]
  %v2754 = vld [vmem:[%s12 + $0x3f0] sm:$0xff]
  %v2755 = vld [vmem:[%s12 + $0x3f8] sm:$0xff]
  %v2756 = vld [vmem:[%s12 + $0x400] sm:$0xff]
  %v2757 = vld [vmem:[%s12 + $0x408] sm:$0xff]
  %v2758 = vld [vmem:[%s12 + $0x410] sm:$0xff]
  %v2759 = vld [vmem:[%s12 + $0x418] sm:$0xff]
  %v2760 = vld [vmem:[%s12 + $0x420] sm:$0xff]
  %v2761 = vld [vmem:[%s12 + $0x428] sm:$0xff]
  %v2762 = vld [vmem:[%s12 + $0x430] sm:$0xff]
  %v2763 = vld [vmem:[%s12 + $0x438] sm:$0xff]
  %v2764 = vld [vmem:[%s12 + $0x440] sm:$0xff]
  %v2765 = vld [vmem:[%s12 + $0x448] sm:$0xff]
  %v2766 = vld [vmem:[%s12 + $0x450] sm:$0xff]
  %v2767 = vld [vmem:[%s12 + $0x458] sm:$0xff]
  %v2768 = vld [vmem:[%s12 + $0x460] sm:$0xff]
  %v2769 = vld [vmem:[%s12 + $0x468] sm:$0xff]
  %v2770 = vld [vmem:[%s12 + $0x470] sm:$0xff]
  %v2771 = vld [vmem:[%s12 + $0x478] sm:$0xff]
  %v2772 = vld [vmem:[%s12 + $0x480] sm:$0xff]
  %v2773 = vld [vmem:[%s12 + $0x488] sm:$0xff]
  %v2774 = vld [vmem:[%s12 + $0x490] sm:$0xff]
  %v2775 = vld [vmem:[%s12 + $0x498] sm:$0xff]
  %v2776 = vld [vmem:[%s12 + $0x4a0] sm:$0xff]
  %v2777 = vld [vmem:[%s12 + $0x4a8] sm:$0xff]
  %v2778 = vld [vmem:[%s12 + $0x4b0] sm:$0xff]
  %v2779 = vld [vmem:[%s12 + $0x4b8] sm:$0xff]
  %v2780 = vld [vmem:[%s12 + $0x4c0] sm:$0xff]
  %v2781 = vld [vmem:[%s12 + $0x4c8] sm:$0xff]
  %v2782 = vld [vmem:[%s12 + $0x4d0] sm:$0xff]
  %v2783 = vld [vmem:[%s12 + $0x4d8] sm:$0xff]
  %v2784 = vld [vmem:[%s12 + $0x4e0] sm:$0xff]
  %v2785 = vld [vmem:[%s12 + $0x4e8] sm:$0xff]
  %v2786 = vld [vmem:[%s12 + $0x4f0] sm:$0xff]
  %v2787 = vld [vmem:[%s12 + $0x4f8] sm:$0xff]
  %v2788 = vld [vmem:[%s12 + $0x500] sm:$0xff]
  %v2789 = vld [vmem:[%s12 + $0x508] sm:$0xff]
  %v2790 = vld [vmem:[%s12 + $0x510] sm:$0xff]
  %v2791 = vld [vmem:[%s12 + $0x518] sm:$0xff]
  %v2792 = vld [vmem:[%s12 + $0x520] sm:$0xff]
  %v2793 = vld [vmem:[%s12 + $0x528] sm:$0xff]
  %v2794 = vld [vmem:[%s12 + $0x530] sm:$0xff]
  %v2795 = vld [vmem:[%s12 + $0x538] sm:$0xff]
  %v2796 = vld [vmem:[%s12 + $0x540] sm:$0xff]
  %v2797 = vld [vmem:[%s12 + $0x548] sm:$0xff]
  %v2798 = vld [vmem:[%s12 + $0x550] sm:$0xff]
  %v2799 = vld [vmem:[%s12 + $0x558] sm:$0xff]
  %v2800 = vld [vmem:[%s12 + $0x560] sm:$0xff]
  %v2801 = vld [vmem:[%s12 + $0x568] sm:$0xff]
  %v2802 = vld [vmem:[%s12 + $0x570] sm:$0xff]
  %v2803 = vld [vmem:[%s12 + $0x578] sm:$0xff]
  %v2804 = vld [vmem:[%s12 + $0x580] sm:$0xff]
  %v2805 = vld [vmem:[%s12 + $0x588] sm:$0xff]
  %v2806 = vld [vmem:[%s12 + $0x590] sm:$0xff]
  %v2807 = vld [vmem:[%s12 + $0x598] sm:$0xff]
  %v2808 = vld [vmem:[%s12 + $0x5a0] sm:$0xff]
  %v2809 = vld [vmem:[%s12 + $0x5a8] sm:$0xff]
  %v2810 = vld [vmem:[%s12 + $0x5b0] sm:$0xff]
  %v2811 = vld [vmem:[%s12 + $0x5b8] sm:$0xff]
  %v2812 = vld [vmem:[%s12 + $0x5c0] sm:$0xff]
  %v2813 = vld [vmem:[%s12 + $0x5c8] sm:$0xff]
  %v2814 = vld [vmem:[%s12 + $0x5d0] sm:$0xff]
  %v2815 = vld [vmem:[%s12 + $0x5d8] sm:$0xff]
  %v2816 = vld [vmem:[%s12 + $0x5e0] sm:$0xff]
  %v2817 = vld [vmem:[%s12 + $0x5e8] sm:$0xff]
  %v2818 = vld [vmem:[%s12 + $0x5f0] sm:$0xff]
  %v2819 = vld [vmem:[%s12 + $0x5f8] sm:$0xff]
  %v2820 = vld [vmem:[%s12 + $0x600] sm:$0xff]
  %v2821 = vld [vmem:[%s12 + $0x608] sm:$0xff]
  %v2822 = vld [vmem:[%s12 + $0x610] sm:$0xff]
  %v2823 = vld [vmem:[%s12 + $0x618] sm:$0xff]
  %v2824 = vld [vmem:[%s12 + $0x620] sm:$0xff]
  %v2825 = vld [vmem:[%s12 + $0x628] sm:$0xff]
  %v2826 = vld [vmem:[%s12 + $0x630] sm:$0xff]
  %v2827 = vld [vmem:[%s12 + $0x638] sm:$0xff]
  %v2828 = vld [vmem:[%s12 + $0x640] sm:$0xff]
  %v2829 = vld [vmem:[%s12 + $0x648] sm:$0xff]
  %v2830 = vld [vmem:[%s12 + $0x650] sm:$0xff]
  %v2831 = vld [vmem:[%s12 + $0x658] sm:$0xff]
  %v2832 = vld [vmem:[%s12 + $0x660] sm:$0xff]
  %v2833 = vld [vmem:[%s12 + $0x668] sm:$0xff]
  %v2834 = vld [vmem:[%s12 + $0x670] sm:$0xff]
  %v2835 = vld [vmem:[%s12 + $0x678] sm:$0xff]
  %v2836 = vld [vmem:[%s12 + $0x680] sm:$0xff]
  %v2837 = vld [vmem:[%s12 + $0x688] sm:$0xff]
  %v2838 = vld [vmem:[%s12 + $0x690] sm:$0xff]
  %v2839 = vld [vmem:[%s12 + $0x698] sm:$0xff]
  %v2840 = vld [vmem:[%s12 + $0x6a0] sm:$0xff]
  %v2841 = vld [vmem:[%s12 + $0x6a8] sm:$0xff]
  %v2842 = vld [vmem:[%s12 + $0x6b0] sm:$0xff]
  %v2843 = vld [vmem:[%s12 + $0x6b8] sm:$0xff]
  %v2844 = vld [vmem:[%s12 + $0x6c0] sm:$0xff]
  %v2845 = vld [vmem:[%s12 + $0x6c8] sm:$0xff]
  %v2846 = vld [vmem:[%s12 + $0x6d0] sm:$0xff]
  %v2847 = vld [vmem:[%s12 + $0x6d8] sm:$0xff]
  %v2848 = vld [vmem:[%s12 + $0x6e0] sm:$0xff]
  %v2849 = vld [vmem:[%s12 + $0x6e8] sm:$0xff]
  %v2850 = vld [vmem:[%s12 + $0x6f0] sm:$0xff]
  %v2851 = vld [vmem:[%s12 + $0x6f8] sm:$0xff]
  %v2852 = vld [vmem:[%s12 + $0x700] sm:$0xff]
  %v2853 = vld [vmem:[%s12 + $0x708] sm:$0xff]
  %v2854 = vld [vmem:[%s12 + $0x710] sm:$0xff]
  %v2855 = vld [vmem:[%s12 + $0x718] sm:$0xff]
  %v2856 = vld [vmem:[%s12 + $0x720] sm:$0xff]
  %v2857 = vld [vmem:[%s12 + $0x728] sm:$0xff]
  %v2858 = vld [vmem:[%s12 + $0x730] sm:$0xff]
  %v2859 = vld [vmem:[%s12 + $0x738] sm:$0xff]
  %v2860 = vld [vmem:[%s12 + $0x740] sm:$0xff]
  %v2861 = vld [vmem:[%s12 + $0x748] sm:$0xff]
  %v2862 = vld [vmem:[%s12 + $0x750] sm:$0xff]
  %v2863 = vld [vmem:[%s12 + $0x758] sm:$0xff]
  %v2864 = vld [vmem:[%s12 + $0x760] sm:$0xff]
  %v2865 = vld [vmem:[%s12 + $0x768] sm:$0xff]
  %v2866 = vld [vmem:[%s12 + $0x770] sm:$0xff]
  %v2867 = vld [vmem:[%s12 + $0x778] sm:$0xff]
  %v2868 = vld [vmem:[%s12 + $0x780] sm:$0xff]
  %v2869 = vld [vmem:[%s12 + $0x788] sm:$0xff]
  %v2870 = vld [vmem:[%s12 + $0x790] sm:$0xff]
  %v2871 = vld [vmem:[%s12 + $0x798] sm:$0xff]
  %v2872 = vld [vmem:[%s12 + $0x7a0] sm:$0xff]
  %v2873 = vld [vmem:[%s12 + $0x7a8] sm:$0xff]
  %v2874 = vld [vmem:[%s12 + $0x7b0] sm:$0xff]
  %v2875 = vld [vmem:[%s12 + $0x7b8] sm:$0xff]
  %v2876 = vld [vmem:[%s12 + $0x7c0] sm:$0xff]
  %v2877 = vld [vmem:[%s12 + $0x7c8] sm:$0xff]
  %v2878 = vld [vmem:[%s12 + $0x7d0] sm:$0xff]
  %v2879 = vld [vmem:[%s12 + $0x7d8] sm:$0xff]
  %v2880 = vld [vmem:[%s12 + $0x7e0] sm:$0xff]
  %v2881 = vld [vmem:[%s12 + $0x7e8] sm:$0xff]
  %v2882 = vld [vmem:[%s12 + $0x7f0] sm:$0xff]
  %v2883 = vld [vmem:[%s12 + $0x7f8] sm:$0xff]
  %v2884 = vld [vmem:[%s12 + $0x800] sm:$0xff]
  %v2885 = vld [vmem:[%s12 + $0x808] sm:$0xff]
  %v2886 = vld [vmem:[%s12 + $0x810] sm:$0xff]
  %v2887 = vld [vmem:[%s12 + $0x818] sm:$0xff]
  %v2888 = vld [vmem:[%s12 + $0x820] sm:$0xff]
  %v2889 = vld [vmem:[%s12 + $0x828] sm:$0xff]
  %v2890 = vld [vmem:[%s12 + $0x830] sm:$0xff]
  %v2891 = vld [vmem:[%s12 + $0x838] sm:$0xff]
  %v2892 = vld [vmem:[%s12 + $0x840] sm:$0xff]
  %v2893 = vld [vmem:[%s12 + $0x848] sm:$0xff]
  %v2894 = vld [vmem:[%s12 + $0x850] sm:$0xff]
  %v2895 = vld [vmem:[%s12 + $0x858] sm:$0xff]
  %v2896 = vld [vmem:[%s12 + $0x860] sm:$0xff]
  %v2897 = vld [vmem:[%s12 + $0x868] sm:$0xff]
  %v2898 = vld [vmem:[%s12 + $0x870] sm:$0xff]
  %v2899 = vld [vmem:[%s12 + $0x878] sm:$0xff]
  %v2900 = vld [vmem:[%s12 + $0x880] sm:$0xff]
  %v2901 = vld [vmem:[%s12 + $0x888] sm:$0xff]
  %v2902 = vld [vmem:[%s12 + $0x890] sm:$0xff]
  %v2903 = vld [vmem:[%s12 + $0x898] sm:$0xff]
  %v2904 = vld [vmem:[%s12 + $0x8a0] sm:$0xff]
  %v2905 = vld [vmem:[%s12 + $0x8a8] sm:$0xff]
  %v2906 = vld [vmem:[%s12 + $0x8b0] sm:$0xff]
  %v2907 = vld [vmem:[%s12 + $0x8b8] sm:$0xff]
  %v2908 = vld [vmem:[%s12 + $0x8c0] sm:$0xff]
  %v2909 = vld [vmem:[%s12 + $0x8c8] sm:$0xff]
  %v2910 = vld [vmem:[%s12 + $0x8d0] sm:$0xff]
  %v2911 = vld [vmem:[%s12 + $0x8d8] sm:$0xff]
  %v2912 = vld [vmem:[%s12 + $0x8e0] sm:$0xff]
  %v2913 = vld [vmem:[%s12 + $0x8e8] sm:$0xff]
  %v2914 = vld [vmem:[%s12 + $0x8f0] sm:$0xff]
  %v2915 = vld [vmem:[%s12 + $0x8f8] sm:$0xff]
  %v2916 = vld [vmem:[%s12 + $0x900] sm:$0xff]
  %v2917 = vld [vmem:[%s12 + $0x908] sm:$0xff]
  %v2918 = vld [vmem:[%s12 + $0x910] sm:$0xff]
  %v2919 = vld [vmem:[%s12 + $0x918] sm:$0xff]
  %v2920 = vld [vmem:[%s12 + $0x920] sm:$0xff]
  %v2921 = vld [vmem:[%s12 + $0x928] sm:$0xff]
  %v2922 = vld [vmem:[%s12 + $0x930] sm:$0xff]
  %v2923 = vld [vmem:[%s12 + $0x938] sm:$0xff]
  %v2924 = vld [vmem:[%s12 + $0x940] sm:$0xff]
  %v2925 = vld [vmem:[%s12 + $0x948] sm:$0xff]
  %v2926 = vld [vmem:[%s12 + $0x950] sm:$0xff]
  %v2927 = vld [vmem:[%s12 + $0x958] sm:$0xff]
  %v2928 = vld [vmem:[%s12 + $0x960] sm:$0xff]
  %v2929 = vld [vmem:[%s12 + $0x968] sm:$0xff]
  %v2930 = vld [vmem:[%s12 + $0x970] sm:$0xff]
  %v2931 = vld [vmem:[%s12 + $0x978] sm:$0xff]
  %v2932 = vld [vmem:[%s12 + $0x980] sm:$0xff]
  %v2933 = vld [vmem:[%s12 + $0x988] sm:$0xff]
  %v2934 = vld [vmem:[%s12 + $0x990] sm:$0xff]
  %v2935 = vld [vmem:[%s12 + $0x998] sm:$0xff]
  %v2936 = vld [vmem:[%s12 + $0x9a0] sm:$0xff]
  %v2937 = vld [vmem:[%s12 + $0x9a8] sm:$0xff]
  %v2938 = vld [vmem:[%s12 + $0x9b0] sm:$0xff]
  %v2939 = vld [vmem:[%s12 + $0x9b8] sm:$0xff]
  %v2940 = vld [vmem:[%s12 + $0x9c0] sm:$0xff]
  %v2941 = vld [vmem:[%s12 + $0x9c8] sm:$0xff]
  %v2942 = vld [vmem:[%s12 + $0x9d0] sm:$0xff]
  %v2943 = vld [vmem:[%s12 + $0x9d8] sm:$0xff]
  %v2944 = vld [vmem:[%s12 + $0x9e0] sm:$0xff]
  %v2945 = vld [vmem:[%s12 + $0x9e8] sm:$0xff]
  %v2946 = vld [vmem:[%s12 + $0x9f0] sm:$0xff]
  %v2947 = vld [vmem:[%s12 + $0x9f8] sm:$0xff]
  %v2948 = vld [vmem:[%s12 + $0xa00] sm:$0xff]
  %v2949 = vld [vmem:[%s12 + $0xa08] sm:$0xff]
  %v2950 = vld [vmem:[%s12 + $0xa10] sm:$0xff]
  %v2951 = vld [vmem:[%s12 + $0xa18] sm:$0xff]
  %v2952 = vld [vmem:[%s12 + $0xa20] sm:$0xff]
  %v2953 = vld [vmem:[%s12 + $0xa28] sm:$0xff]
  %v2954 = vld [vmem:[%s12 + $0xa30] sm:$0xff]
  %v2955 = vld [vmem:[%s12 + $0xa38] sm:$0xff]
  %v2956 = vld [vmem:[%s12 + $0xa40] sm:$0xff]
  %v2957 = vld [vmem:[%s12 + $0xa48] sm:$0xff]
  %v2958 = vld [vmem:[%s12 + $0xa50] sm:$0xff]
  %v2959 = vld [vmem:[%s12 + $0xa58] sm:$0xff]
  %v2960 = vld [vmem:[%s12 + $0xa60] sm:$0xff]
  %v2961 = vld [vmem:[%s12 + $0xa68] sm:$0xff]
  %v2962 = vld [vmem:[%s12 + $0xa70] sm:$0xff]
  %v2963 = vld [vmem:[%s12 + $0xa78] sm:$0xff]
  %v2964 = vld [vmem:[%s12 + $0xa80] sm:$0xff]
  %v2965 = vld [vmem:[%s12 + $0xa88] sm:$0xff]
  %v2966 = vld [vmem:[%s12 + $0xa90] sm:$0xff]
  %v2967 = vld [vmem:[%s12 + $0xa98] sm:$0xff]
  %v2968 = vld [vmem:[%s12 + $0xaa0] sm:$0xff]
  %v2969 = vld [vmem:[%s12 + $0xaa8] sm:$0xff]
  %v2970 = vld [vmem:[%s12 + $0xab0] sm:$0xff]
  %v2971 = vld [vmem:[%s12 + $0xab8] sm:$0xff]
  %v2972 = vld [vmem:[%s12 + $0xac0] sm:$0xff]
  %v2973 = vld [vmem:[%s12 + $0xac8] sm:$0xff]
  %v2974 = vld [vmem:[%s12 + $0xad0] sm:$0xff]
  %v2975 = vld [vmem:[%s12 + $0xad8] sm:$0xff]
  %v2976 = vld [vmem:[%s12 + $0xae0] sm:$0xff]
  %v2977 = vld [vmem:[%s12 + $0xae8] sm:$0xff]
  %v2978 = vld [vmem:[%s12 + $0xaf0] sm:$0xff]
  %v2979 = vld [vmem:[%s12 + $0xaf8] sm:$0xff]
  %v2980 = vld [vmem:[%s12 + $0xb00] sm:$0xff]
  %v2981 = vld [vmem:[%s12 + $0xb08] sm:$0xff]
  %v2982 = vld [vmem:[%s12 + $0xb10] sm:$0xff]
  %v2983 = vld [vmem:[%s12 + $0xb18] sm:$0xff]
  %v2984 = vld [vmem:[%s12 + $0xb20] sm:$0xff]
  %v2985 = vld [vmem:[%s12 + $0xb28] sm:$0xff]
  %v2986 = vld [vmem:[%s12 + $0xb30] sm:$0xff]
  %v2987 = vld [vmem:[%s12 + $0xb38] sm:$0xff]
  %v2988 = vld [vmem:[%s12 + $0xb40] sm:$0xff]
  %v2989 = vld [vmem:[%s12 + $0xb48] sm:$0xff]
  %v2990 = vld [vmem:[%s12 + $0xb50] sm:$0xff]
  %v2991 = vld [vmem:[%s12 + $0xb58] sm:$0xff]
  %v2992 = vld [vmem:[%s12 + $0xb60] sm:$0xff]
  %v2993 = vld [vmem:[%s12 + $0xb68] sm:$0xff]
  %v2994 = vld [vmem:[%s12 + $0xb70] sm:$0xff]
  %v2995 = vld [vmem:[%s12 + $0xb78] sm:$0xff]
  %v2996 = vld [vmem:[%s12 + $0xb80] sm:$0xff]
  %v2997 = vld [vmem:[%s12 + $0xb88] sm:$0xff]
  %v2998 = vld [vmem:[%s12 + $0xb90] sm:$0xff]
  %v2999 = vld [vmem:[%s12 + $0xb98] sm:$0xff]
  %v3000 = vld [vmem:[%s12 + $0xba0] sm:$0xff]
  %v3001 = vld [vmem:[%s12 + $0xba8] sm:$0xff]
  %v3002 = vld [vmem:[%s12 + $0xbb0] sm:$0xff]
  %v3003 = vld [vmem:[%s12 + $0xbb8] sm:$0xff]
  %v3004 = vld [vmem:[%s12 + $0xbc0] sm:$0xff]
  %v3005 = vld [vmem:[%s12 + $0xbc8] sm:$0xff]
  %v3006 = vld [vmem:[%s12 + $0xbd0] sm:$0xff]
  %v3007 = vld [vmem:[%s12 + $0xbd8] sm:$0xff]
  %v3008 = vld [vmem:[%s12 + $0xbe0] sm:$0xff]
  %v3009 = vld [vmem:[%s12 + $0xbe8] sm:$0xff]
  %v3010 = vld [vmem:[%s12 + $0xbf0] sm:$0xff]
  %v3011 = vld [vmem:[%s12 + $0xbf8] sm:$0xff]
  %v3012 = vld [vmem:[%s12 + $0xc00] sm:$0xff]
  %v3013 = vld [vmem:[%s12 + $0xc08] sm:$0xff]
  %v3014 = vld [vmem:[%s12 + $0xc10] sm:$0xff]
  %v3015 = vld [vmem:[%s12 + $0xc18] sm:$0xff]
  %v3016 = vld [vmem:[%s12 + $0xc20] sm:$0xff]
  %v3017 = vld [vmem:[%s12 + $0xc28] sm:$0xff]
  %v3018 = vld [vmem:[%s12 + $0xc30] sm:$0xff]
  %v3019 = vld [vmem:[%s12 + $0xc38] sm:$0xff]
  %v3020 = vld [vmem:[%s12 + $0xc40] sm:$0xff]
  %v3021 = vld [vmem:[%s12 + $0xc48] sm:$0xff]
  %v3022 = vld [vmem:[%s12 + $0xc50] sm:$0xff]
  %v3023 = vld [vmem:[%s12 + $0xc58] sm:$0xff]
  %v3024 = vld [vmem:[%s12 + $0xc60] sm:$0xff]
  %v3025 = vld [vmem:[%s12 + $0xc68] sm:$0xff]
  %v3026 = vld [vmem:[%s12 + $0xc70] sm:$0xff]
  %v3027 = vld [vmem:[%s12 + $0xc78] sm:$0xff]
  %v3028 = vld [vmem:[%s12 + $0xc80] sm:$0xff]
  %v3029 = vld [vmem:[%s12 + $0xc88] sm:$0xff]
  %v3030 = vld [vmem:[%s12 + $0xc90] sm:$0xff]
  %v3031 = vld [vmem:[%s12 + $0xc98] sm:$0xff]
  %v3032 = vld [vmem:[%s12 + $0xca0] sm:$0xff]
  %v3033 = vld [vmem:[%s12 + $0xca8] sm:$0xff]
  %v3034 = vld [vmem:[%s12 + $0xcb0] sm:$0xff]
  %v3035 = vld [vmem:[%s12 + $0xcb8] sm:$0xff]
  %v3036 = vld [vmem:[%s12 + $0xcc0] sm:$0xff]
  %v3037 = vld [vmem:[%s12 + $0xcc8] sm:$0xff]
  %v3038 = vld [vmem:[%s12 + $0xcd0] sm:$0xff]
  %v3039 = vld [vmem:[%s12 + $0xcd8] sm:$0xff]
  %v3040 = vld [vmem:[%s12 + $0xce0] sm:$0xff]
  %v3041 = vld [vmem:[%s12 + $0xce8] sm:$0xff]
  %v3042 = vld [vmem:[%s12 + $0xcf0] sm:$0xff]
  %v3043 = vld [vmem:[%s12 + $0xcf8] sm:$0xff]
  %v3044 = vld [vmem:[%s12 + $0xd00] sm:$0xff]
  %v3045 = vld [vmem:[%s12 + $0xd08] sm:$0xff]
  %v3046 = vld [vmem:[%s12 + $0xd10] sm:$0xff]
  %v3047 = vld [vmem:[%s12 + $0xd18] sm:$0xff]
  %v3048 = vld [vmem:[%s12 + $0xd20] sm:$0xff]
  %v3049 = vld [vmem:[%s12 + $0xd28] sm:$0xff]
  %v3050 = vld [vmem:[%s12 + $0xd30] sm:$0xff]
  %v3051 = vld [vmem:[%s12 + $0xd38] sm:$0xff]
  %v3052 = vld [vmem:[%s12 + $0xd40] sm:$0xff]
  %v3053 = vld [vmem:[%s12 + $0xd48] sm:$0xff]
  %v3054 = vld [vmem:[%s12 + $0xd50] sm:$0xff]
  %v3055 = vld [vmem:[%s12 + $0xd58] sm:$0xff]
  %v3056 = vld [vmem:[%s12 + $0xd60] sm:$0xff]
  %v3057 = vld [vmem:[%s12 + $0xd68] sm:$0xff]
  %v3058 = vld [vmem:[%s12 + $0xd70] sm:$0xff]
  %v3059 = vld [vmem:[%s12 + $0xd78] sm:$0xff]
  %v3060 = vld [vmem:[%s12 + $0xd80] sm:$0xff]
  %v3061 = vld [vmem:[%s12 + $0xd88] sm:$0xff]
  %v3062 = vld [vmem:[%s12 + $0xd90] sm:$0xff]
  %v3063 = vld [vmem:[%s12 + $0xd98] sm:$0xff]
  %v3064 = vld [vmem:[%s12 + $0xda0] sm:$0xff]
  %v3065 = vld [vmem:[%s12 + $0xda8] sm:$0xff]
  %v3066 = vld [vmem:[%s12 + $0xdb0] sm:$0xff]
  %v3067 = vld [vmem:[%s12 + $0xdb8] sm:$0xff]
  %v3068 = vld [vmem:[%s12 + $0xdc0] sm:$0xff]
  %v3069 = vld [vmem:[%s12 + $0xdc8] sm:$0xff]
  %v3070 = vld [vmem:[%s12 + $0xdd0] sm:$0xff]
  %v3071 = vld [vmem:[%s12 + $0xdd8] sm:$0xff]
  %v3072 = vld [vmem:[%s12 + $0xde0] sm:$0xff]
  %v3073 = vld [vmem:[%s12 + $0xde8] sm:$0xff]
  %v3074 = vld [vmem:[%s12 + $0xdf0] sm:$0xff]
  %v3075 = vld [vmem:[%s12 + $0xdf8] sm:$0xff]
  %v3076 = vld [vmem:[%s12 + $0xe00] sm:$0xff]
  %v3077 = vld [vmem:[%s12 + $0xe08] sm:$0xff]
  %v3078 = vld [vmem:[%s12 + $0xe10] sm:$0xff]
  %v3079 = vld [vmem:[%s12 + $0xe18] sm:$0xff]
  %v3080 = vld [vmem:[%s12 + $0xe20] sm:$0xff]
  %v3081 = vld [vmem:[%s12 + $0xe28] sm:$0xff]
  %v3082 = vld [vmem:[%s12 + $0xe30] sm:$0xff]
  %v3083 = vld [vmem:[%s12 + $0xe38] sm:$0xff]
  %v3084 = vld [vmem:[%s12 + $0xe40] sm:$0xff]
  %v3085 = vld [vmem:[%s12 + $0xe48] sm:$0xff]
  %v3086 = vld [vmem:[%s12 + $0xe50] sm:$0xff]
  %v3087 = vld [vmem:[%s12 + $0xe58] sm:$0xff]
  %v3088 = vld [vmem:[%s12 + $0xe60] sm:$0xff]
  %v3089 = vld [vmem:[%s12 + $0xe68] sm:$0xff]
  %v3090 = vld [vmem:[%s12 + $0xe70] sm:$0xff]
  %v3091 = vld [vmem:[%s12 + $0xe78] sm:$0xff]
  %v3092 = vld [vmem:[%s12 + $0xe80] sm:$0xff]
  %v3093 = vld [vmem:[%s12 + $0xe88] sm:$0xff]
  %v3094 = vld [vmem:[%s12 + $0xe90] sm:$0xff]
  %v3095 = vld [vmem:[%s12 + $0xe98] sm:$0xff]
  %v3096 = vld [vmem:[%s12 + $0xea0] sm:$0xff]
  %v3097 = vld [vmem:[%s12 + $0xea8] sm:$0xff]
  %v3098 = vld [vmem:[%s12 + $0xeb0] sm:$0xff]
  %v3099 = vld [vmem:[%s12 + $0xeb8] sm:$0xff]
  %v3100 = vld [vmem:[%s12 + $0xec0] sm:$0xff]
  %v3101 = vld [vmem:[%s12 + $0xec8] sm:$0xff]
  %v3102 = vld [vmem:[%s12 + $0xed0] sm:$0xff]
  %v3103 = vld [vmem:[%s12 + $0xed8] sm:$0xff]
  %v3104 = vld [vmem:[%s12 + $0xee0] sm:$0xff]
  %v3105 = vld [vmem:[%s12 + $0xee8] sm:$0xff]
  %v3106 = vld [vmem:[%s12 + $0xef0] sm:$0xff]
  %v3107 = vld [vmem:[%s12 + $0xef8] sm:$0xff]
  %v3108 = vld [vmem:[%s12 + $0xf00] sm:$0xff]
  %v3109 = vld [vmem:[%s12 + $0xf08] sm:$0xff]
  %v3110 = vld [vmem:[%s12 + $0xf10] sm:$0xff]
  %v3111 = vld [vmem:[%s12 + $0xf18] sm:$0xff]
  %v3112 = vld [vmem:[%s12 + $0xf20] sm:$0xff]
  %v3113 = vld [vmem:[%s12 + $0xf28] sm:$0xff]
  %v3114 = vld [vmem:[%s12 + $0xf30] sm:$0xff]
  %v3115 = vld [vmem:[%s12 + $0xf38] sm:$0xff]
  %v3116 = vld [vmem:[%s12 + $0xf40] sm:$0xff]
  %v3117 = vld [vmem:[%s12 + $0xf48] sm:$0xff]
  %v3118 = vld [vmem:[%s12 + $0xf50] sm:$0xff]
  %v3119 = vld [vmem:[%s12 + $0xf58] sm:$0xff]
  %v3120 = vld [vmem:[%s12 + $0xf60] sm:$0xff]
  %v3121 = vld [vmem:[%s12 + $0xf68] sm:$0xff]
  %v3122 = vld [vmem:[%s12 + $0xf70] sm:$0xff]
  %v3123 = vld [vmem:[%s12 + $0xf78] sm:$0xff]
  %v3124 = vld [vmem:[%s12 + $0xf80] sm:$0xff]
  %v3125 = vld [vmem:[%s12 + $0xf88] sm:$0xff]
  %v3126 = vld [vmem:[%s12 + $0xf90] sm:$0xff]
  %v3127 = vld [vmem:[%s12 + $0xf98] sm:$0xff]
  %v3128 = vld [vmem:[%s12 + $0xfa0] sm:$0xff]
  %v3129 = vld [vmem:[%s12 + $0xfa8] sm:$0xff]
  %v3130 = vld [vmem:[%s12 + $0xfb0] sm:$0xff]
  %v3131 = vld [vmem:[%s12 + $0xfb8] sm:$0xff]
  %v3132 = vld [vmem:[%s12 + $0xfc0] sm:$0xff]
  %v3133 = vld [vmem:[%s12 + $0xfc8] sm:$0xff]
  %v3134 = vld [vmem:[%s12 + $0xfd0] sm:$0xff]
  %v3135 = vld [vmem:[%s12 + $0xfd8] sm:$0xff]
  %v3136 = vld [vmem:[%s12 + $0xfe0] sm:$0xff]
  %v3137 = vld [vmem:[%s12 + $0xfe8] sm:$0xff]
  %v3138 = vld [vmem:[%s12 + $0xff0] sm:$0xff]
  %v3139 = vld [vmem:[%s12 + $0xff8] sm:$0xff]
  %v3652 = vunpack.c.l.b16 %v2628
  %v3653 = vunpack.c.h.b16 %v2628
  %v3654 = vunpack.c.l.b16 %v2629
  %v3655 = vunpack.c.h.b16 %v2629
  %v3656 = vunpack.c.l.b16 %v2630
  %v3657 = vunpack.c.h.b16 %v2630
  %v3658 = vunpack.c.l.b16 %v2631
  %v3659 = vunpack.c.h.b16 %v2631
  %v3660 = vunpack.c.l.b16 %v2632
  %v3661 = vunpack.c.h.b16 %v2632
  %v3662 = vunpack.c.l.b16 %v2633
  %v3663 = vunpack.c.h.b16 %v2633
  %v3664 = vunpack.c.l.b16 %v2634
  %v3665 = vunpack.c.h.b16 %v2634
  %v3666 = vunpack.c.l.b16 %v2635
  %v3667 = vunpack.c.h.b16 %v2635
  %v3668 = vunpack.c.l.b16 %v2636
  %v3669 = vunpack.c.h.b16 %v2636
  %v3670 = vunpack.c.l.b16 %v2637
  %v3671 = vunpack.c.h.b16 %v2637
  %v3672 = vunpack.c.l.b16 %v2638
  %v3673 = vunpack.c.h.b16 %v2638
  %v3674 = vunpack.c.l.b16 %v2639
  %v3675 = vunpack.c.h.b16 %v2639
  %v3676 = vunpack.c.l.b16 %v2640
  %v3677 = vunpack.c.h.b16 %v2640
  %v3678 = vunpack.c.l.b16 %v2641
  %v3679 = vunpack.c.h.b16 %v2641
  %v3680 = vunpack.c.l.b16 %v2642
  %v3681 = vunpack.c.h.b16 %v2642
  %v3682 = vunpack.c.l.b16 %v2643
  %v3683 = vunpack.c.h.b16 %v2643
  %v3684 = vunpack.c.l.b16 %v2644
  %v3685 = vunpack.c.h.b16 %v2644
  %v3686 = vunpack.c.l.b16 %v2645
  %v3687 = vunpack.c.h.b16 %v2645
  %v3688 = vunpack.c.l.b16 %v2646
  %v3689 = vunpack.c.h.b16 %v2646
  %v3690 = vunpack.c.l.b16 %v2647
  %v3691 = vunpack.c.h.b16 %v2647
  %v3692 = vunpack.c.l.b16 %v2648
  %v3693 = vunpack.c.h.b16 %v2648
  %v3694 = vunpack.c.l.b16 %v2649
  %v3695 = vunpack.c.h.b16 %v2649
  %v3696 = vunpack.c.l.b16 %v2650
  %v3697 = vunpack.c.h.b16 %v2650
  %v3698 = vunpack.c.l.b16 %v2651
  %v3699 = vunpack.c.h.b16 %v2651
  %v3700 = vunpack.c.l.b16 %v2652
  %v3701 = vunpack.c.h.b16 %v2652
  %v3702 = vunpack.c.l.b16 %v2653
  %v3703 = vunpack.c.h.b16 %v2653
  %v3704 = vunpack.c.l.b16 %v2654
  %v3705 = vunpack.c.h.b16 %v2654
  %v3706 = vunpack.c.l.b16 %v2655
  %v3707 = vunpack.c.h.b16 %v2655
  %v3708 = vunpack.c.l.b16 %v2656
  %v3709 = vunpack.c.h.b16 %v2656
  %v3710 = vunpack.c.l.b16 %v2657
  %v3711 = vunpack.c.h.b16 %v2657
  %v3712 = vunpack.c.l.b16 %v2658
  %v3713 = vunpack.c.h.b16 %v2658
  %v3714 = vunpack.c.l.b16 %v2659
  %v3715 = vunpack.c.h.b16 %v2659
  %v3716 = vunpack.c.l.b16 %v2660
  %v3717 = vunpack.c.h.b16 %v2660
  %v3718 = vunpack.c.l.b16 %v2661
  %v3719 = vunpack.c.h.b16 %v2661
  %v3720 = vunpack.c.l.b16 %v2662
  %v3721 = vunpack.c.h.b16 %v2662
  %v3722 = vunpack.c.l.b16 %v2663
  %v3723 = vunpack.c.h.b16 %v2663
  %v3724 = vunpack.c.l.b16 %v2664
  %v3725 = vunpack.c.h.b16 %v2664
  %v3726 = vunpack.c.l.b16 %v2665
  %v3727 = vunpack.c.h.b16 %v2665
  %v3728 = vunpack.c.l.b16 %v2666
  %v3729 = vunpack.c.h.b16 %v2666
  %v3730 = vunpack.c.l.b16 %v2667
  %v3731 = vunpack.c.h.b16 %v2667
  %v3732 = vunpack.c.l.b16 %v2668
  %v3733 = vunpack.c.h.b16 %v2668
  %v3734 = vunpack.c.l.b16 %v2669
  %v3735 = vunpack.c.h.b16 %v2669
  %v3736 = vunpack.c.l.b16 %v2670
  %v3737 = vunpack.c.h.b16 %v2670
  %v3738 = vunpack.c.l.b16 %v2671
  %v3739 = vunpack.c.h.b16 %v2671
  %v3740 = vunpack.c.l.b16 %v2672
  %v3741 = vunpack.c.h.b16 %v2672
  %v3742 = vunpack.c.l.b16 %v2673
  %v3743 = vunpack.c.h.b16 %v2673
  %v3744 = vunpack.c.l.b16 %v2674
  %v3745 = vunpack.c.h.b16 %v2674
  %v3746 = vunpack.c.l.b16 %v2675
  %v3747 = vunpack.c.h.b16 %v2675
  %v3748 = vunpack.c.l.b16 %v2676
  %v3749 = vunpack.c.h.b16 %v2676
  %v3750 = vunpack.c.l.b16 %v2677
  %v3751 = vunpack.c.h.b16 %v2677
  %v3752 = vunpack.c.l.b16 %v2678
  %v3753 = vunpack.c.h.b16 %v2678
  %v3754 = vunpack.c.l.b16 %v2679
  %v3755 = vunpack.c.h.b16 %v2679
  %v3756 = vunpack.c.l.b16 %v2680
  %v3757 = vunpack.c.h.b16 %v2680
  %v3758 = vunpack.c.l.b16 %v2681
  %v3759 = vunpack.c.h.b16 %v2681
  %v3760 = vunpack.c.l.b16 %v2682
  %v3761 = vunpack.c.h.b16 %v2682
  %v3762 = vunpack.c.l.b16 %v2683
  %v3763 = vunpack.c.h.b16 %v2683
  %v3764 = vunpack.c.l.b16 %v2684
  %v3765 = vunpack.c.h.b16 %v2684
  %v3766 = vunpack.c.l.b16 %v2685
  %v3767 = vunpack.c.h.b16 %v2685
  %v3768 = vunpack.c.l.b16 %v2686
  %v3769 = vunpack.c.h.b16 %v2686
  %v3770 = vunpack.c.l.b16 %v2687
  %v3771 = vunpack.c.h.b16 %v2687
  %v3772 = vunpack.c.l.b16 %v2688
  %v3773 = vunpack.c.h.b16 %v2688
  %v3774 = vunpack.c.l.b16 %v2689
  %v3775 = vunpack.c.h.b16 %v2689
  %v3776 = vunpack.c.l.b16 %v2690
  %v3777 = vunpack.c.h.b16 %v2690
  %v3778 = vunpack.c.l.b16 %v2691
  %v3779 = vunpack.c.h.b16 %v2691
  %v3780 = vunpack.c.l.b16 %v2692
  %v3781 = vunpack.c.h.b16 %v2692
  %v3782 = vunpack.c.l.b16 %v2693
  %v3783 = vunpack.c.h.b16 %v2693
  %v3784 = vunpack.c.l.b16 %v2694
  %v3785 = vunpack.c.h.b16 %v2694
  %v3786 = vunpack.c.l.b16 %v2695
  %v3787 = vunpack.c.h.b16 %v2695
  %v3788 = vunpack.c.l.b16 %v2696
  %v3789 = vunpack.c.h.b16 %v2696
  %v3790 = vunpack.c.l.b16 %v2697
  %v3791 = vunpack.c.h.b16 %v2697
  %v3792 = vunpack.c.l.b16 %v2698
  %v3793 = vunpack.c.h.b16 %v2698
  %v3794 = vunpack.c.l.b16 %v2699
  %v3795 = vunpack.c.h.b16 %v2699
  %v3796 = vunpack.c.l.b16 %v2700
  %v3797 = vunpack.c.h.b16 %v2700
  %v3798 = vunpack.c.l.b16 %v2701
  %v3799 = vunpack.c.h.b16 %v2701
  %v3800 = vunpack.c.l.b16 %v2702
  %v3801 = vunpack.c.h.b16 %v2702
  %v3802 = vunpack.c.l.b16 %v2703
  %v3803 = vunpack.c.h.b16 %v2703
  %v3804 = vunpack.c.l.b16 %v2704
  %v3805 = vunpack.c.h.b16 %v2704
  %v3806 = vunpack.c.l.b16 %v2705
  %v3807 = vunpack.c.h.b16 %v2705
  %v3808 = vunpack.c.l.b16 %v2706
  %v3809 = vunpack.c.h.b16 %v2706
  %v3810 = vunpack.c.l.b16 %v2707
  %v3811 = vunpack.c.h.b16 %v2707
  %v3812 = vunpack.c.l.b16 %v2708
  %v3813 = vunpack.c.h.b16 %v2708
  %v3814 = vunpack.c.l.b16 %v2709
  %v3815 = vunpack.c.h.b16 %v2709
  %v3816 = vunpack.c.l.b16 %v2710
  %v3817 = vunpack.c.h.b16 %v2710
  %v3818 = vunpack.c.l.b16 %v2711
  %v3819 = vunpack.c.h.b16 %v2711
  %v3820 = vunpack.c.l.b16 %v2712
  %v3821 = vunpack.c.h.b16 %v2712
  %v3822 = vunpack.c.l.b16 %v2713
  %v3823 = vunpack.c.h.b16 %v2713
  %v3824 = vunpack.c.l.b16 %v2714
  %v3825 = vunpack.c.h.b16 %v2714
  %v3826 = vunpack.c.l.b16 %v2715
  %v3827 = vunpack.c.h.b16 %v2715
  %v3828 = vunpack.c.l.b16 %v2716
  %v3829 = vunpack.c.h.b16 %v2716
  %v3830 = vunpack.c.l.b16 %v2717
  %v3831 = vunpack.c.h.b16 %v2717
  %v3832 = vunpack.c.l.b16 %v2718
  %v3833 = vunpack.c.h.b16 %v2718
  %v3834 = vunpack.c.l.b16 %v2719
  %v3835 = vunpack.c.h.b16 %v2719
  %v3836 = vunpack.c.l.b16 %v2720
  %v3837 = vunpack.c.h.b16 %v2720
  %v3838 = vunpack.c.l.b16 %v2721
  %v3839 = vunpack.c.h.b16 %v2721
  %v3840 = vunpack.c.l.b16 %v2722
  %v3841 = vunpack.c.h.b16 %v2722
  %v3842 = vunpack.c.l.b16 %v2723
  %v3843 = vunpack.c.h.b16 %v2723
  %v3844 = vunpack.c.l.b16 %v2724
  %v3845 = vunpack.c.h.b16 %v2724
  %v3846 = vunpack.c.l.b16 %v2725
  %v3847 = vunpack.c.h.b16 %v2725
  %v3848 = vunpack.c.l.b16 %v2726
  %v3849 = vunpack.c.h.b16 %v2726
  %v3850 = vunpack.c.l.b16 %v2727
  %v3851 = vunpack.c.h.b16 %v2727
  %v3852 = vunpack.c.l.b16 %v2728
  %v3853 = vunpack.c.h.b16 %v2728
  %v3854 = vunpack.c.l.b16 %v2729
  %v3855 = vunpack.c.h.b16 %v2729
  %v3856 = vunpack.c.l.b16 %v2730
  %v3857 = vunpack.c.h.b16 %v2730
  %v3858 = vunpack.c.l.b16 %v2731
  %v3859 = vunpack.c.h.b16 %v2731
  %v3860 = vunpack.c.l.b16 %v2732
  %v3861 = vunpack.c.h.b16 %v2732
  %v3862 = vunpack.c.l.b16 %v2733
  %v3863 = vunpack.c.h.b16 %v2733
  %v3864 = vunpack.c.l.b16 %v2734
  %v3865 = vunpack.c.h.b16 %v2734
  %v3866 = vunpack.c.l.b16 %v2735
  %v3867 = vunpack.c.h.b16 %v2735
  %v3868 = vunpack.c.l.b16 %v2736
  %v3869 = vunpack.c.h.b16 %v2736
  %v3870 = vunpack.c.l.b16 %v2737
  %v3871 = vunpack.c.h.b16 %v2737
  %v3872 = vunpack.c.l.b16 %v2738
  %v3873 = vunpack.c.h.b16 %v2738
  %v3874 = vunpack.c.l.b16 %v2739
  %v3875 = vunpack.c.h.b16 %v2739
  %v3876 = vunpack.c.l.b16 %v2740
  %v3877 = vunpack.c.h.b16 %v2740
  %v3878 = vunpack.c.l.b16 %v2741
  %v3879 = vunpack.c.h.b16 %v2741
  %v3880 = vunpack.c.l.b16 %v2742
  %v3881 = vunpack.c.h.b16 %v2742
  %v3882 = vunpack.c.l.b16 %v2743
  %v3883 = vunpack.c.h.b16 %v2743
  %v3884 = vunpack.c.l.b16 %v2744
  %v3885 = vunpack.c.h.b16 %v2744
  %v3886 = vunpack.c.l.b16 %v2745
  %v3887 = vunpack.c.h.b16 %v2745
  %v3888 = vunpack.c.l.b16 %v2746
  %v3889 = vunpack.c.h.b16 %v2746
  %v3890 = vunpack.c.l.b16 %v2747
  %v3891 = vunpack.c.h.b16 %v2747
  %v3892 = vunpack.c.l.b16 %v2748
  %v3893 = vunpack.c.h.b16 %v2748
  %v3894 = vunpack.c.l.b16 %v2749
  %v3895 = vunpack.c.h.b16 %v2749
  %v3896 = vunpack.c.l.b16 %v2750
  %v3897 = vunpack.c.h.b16 %v2750
  %v3898 = vunpack.c.l.b16 %v2751
  %v3899 = vunpack.c.h.b16 %v2751
  %v3900 = vunpack.c.l.b16 %v2752
  %v3901 = vunpack.c.h.b16 %v2752
  %v3902 = vunpack.c.l.b16 %v2753
  %v3903 = vunpack.c.h.b16 %v2753
  %v3904 = vunpack.c.l.b16 %v2754
  %v3905 = vunpack.c.h.b16 %v2754
  %v3906 = vunpack.c.l.b16 %v2755
  %v3907 = vunpack.c.h.b16 %v2755
  %v3908 = vunpack.c.l.b16 %v2756
  %v3909 = vunpack.c.h.b16 %v2756
  %v3910 = vunpack.c.l.b16 %v2757
  %v3911 = vunpack.c.h.b16 %v2757
  %v3912 = vunpack.c.l.b16 %v2758
  %v3913 = vunpack.c.h.b16 %v2758
  %v3914 = vunpack.c.l.b16 %v2759
  %v3915 = vunpack.c.h.b16 %v2759
  %v3916 = vunpack.c.l.b16 %v2760
  %v3917 = vunpack.c.h.b16 %v2760
  %v3918 = vunpack.c.l.b16 %v2761
  %v3919 = vunpack.c.h.b16 %v2761
  %v3920 = vunpack.c.l.b16 %v2762
  %v3921 = vunpack.c.h.b16 %v2762
  %v3922 = vunpack.c.l.b16 %v2763
  %v3923 = vunpack.c.h.b16 %v2763
  %v3924 = vunpack.c.l.b16 %v2764
  %v3925 = vunpack.c.h.b16 %v2764
  %v3926 = vunpack.c.l.b16 %v2765
  %v3927 = vunpack.c.h.b16 %v2765
  %v3928 = vunpack.c.l.b16 %v2766
  %v3929 = vunpack.c.h.b16 %v2766
  %v3930 = vunpack.c.l.b16 %v2767
  %v3931 = vunpack.c.h.b16 %v2767
  %v3932 = vunpack.c.l.b16 %v2768
  %v3933 = vunpack.c.h.b16 %v2768
  %v3934 = vunpack.c.l.b16 %v2769
  %v3935 = vunpack.c.h.b16 %v2769
  %v3936 = vunpack.c.l.b16 %v2770
  %v3937 = vunpack.c.h.b16 %v2770
  %v3938 = vunpack.c.l.b16 %v2771
  %v3939 = vunpack.c.h.b16 %v2771
  %v3940 = vunpack.c.l.b16 %v2772
  %v3941 = vunpack.c.h.b16 %v2772
  %v3942 = vunpack.c.l.b16 %v2773
  %v3943 = vunpack.c.h.b16 %v2773
  %v3944 = vunpack.c.l.b16 %v2774
  %v3945 = vunpack.c.h.b16 %v2774
  %v3946 = vunpack.c.l.b16 %v2775
  %v3947 = vunpack.c.h.b16 %v2775
  %v3948 = vunpack.c.l.b16 %v2776
  %v3949 = vunpack.c.h.b16 %v2776
  %v3950 = vunpack.c.l.b16 %v2777
  %v3951 = vunpack.c.h.b16 %v2777
  %v3952 = vunpack.c.l.b16 %v2778
  %v3953 = vunpack.c.h.b16 %v2778
  %v3954 = vunpack.c.l.b16 %v2779
  %v3955 = vunpack.c.h.b16 %v2779
  %v3956 = vunpack.c.l.b16 %v2780
  %v3957 = vunpack.c.h.b16 %v2780
  %v3958 = vunpack.c.l.b16 %v2781
  %v3959 = vunpack.c.h.b16 %v2781
  %v3960 = vunpack.c.l.b16 %v2782
  %v3961 = vunpack.c.h.b16 %v2782
  %v3962 = vunpack.c.l.b16 %v2783
  %v3963 = vunpack.c.h.b16 %v2783
  %v3964 = vunpack.c.l.b16 %v2784
  %v3965 = vunpack.c.h.b16 %v2784
  %v3966 = vunpack.c.l.b16 %v2785
  %v3967 = vunpack.c.h.b16 %v2785
  %v3968 = vunpack.c.l.b16 %v2786
  %v3969 = vunpack.c.h.b16 %v2786
  %v3970 = vunpack.c.l.b16 %v2787
  %v3971 = vunpack.c.h.b16 %v2787
  %v3972 = vunpack.c.l.b16 %v2788
  %v3973 = vunpack.c.h.b16 %v2788
  %v3974 = vunpack.c.l.b16 %v2789
  %v3975 = vunpack.c.h.b16 %v2789
  %v3976 = vunpack.c.l.b16 %v2790
  %v3977 = vunpack.c.h.b16 %v2790
  %v3978 = vunpack.c.l.b16 %v2791
  %v3979 = vunpack.c.h.b16 %v2791
  %v3980 = vunpack.c.l.b16 %v2792
  %v3981 = vunpack.c.h.b16 %v2792
  %v3982 = vunpack.c.l.b16 %v2793
  %v3983 = vunpack.c.h.b16 %v2793
  %v3984 = vunpack.c.l.b16 %v2794
  %v3985 = vunpack.c.h.b16 %v2794
  %v3986 = vunpack.c.l.b16 %v2795
  %v3987 = vunpack.c.h.b16 %v2795
  %v3988 = vunpack.c.l.b16 %v2796
  %v3989 = vunpack.c.h.b16 %v2796
  %v3990 = vunpack.c.l.b16 %v2797
  %v3991 = vunpack.c.h.b16 %v2797
  %v3992 = vunpack.c.l.b16 %v2798
  %v3993 = vunpack.c.h.b16 %v2798
  %v3994 = vunpack.c.l.b16 %v2799
  %v3995 = vunpack.c.h.b16 %v2799
  %v3996 = vunpack.c.l.b16 %v2800
  %v3997 = vunpack.c.h.b16 %v2800
  %v3998 = vunpack.c.l.b16 %v2801
  %v3999 = vunpack.c.h.b16 %v2801
  %v4000 = vunpack.c.l.b16 %v2802
  %v4001 = vunpack.c.h.b16 %v2802
  %v4002 = vunpack.c.l.b16 %v2803
  %v4003 = vunpack.c.h.b16 %v2803
  %v4004 = vunpack.c.l.b16 %v2804
  %v4005 = vunpack.c.h.b16 %v2804
  %v4006 = vunpack.c.l.b16 %v2805
  %v4007 = vunpack.c.h.b16 %v2805
  %v4008 = vunpack.c.l.b16 %v2806
  %v4009 = vunpack.c.h.b16 %v2806
  %v4010 = vunpack.c.l.b16 %v2807
  %v4011 = vunpack.c.h.b16 %v2807
  %v4012 = vunpack.c.l.b16 %v2808
  %v4013 = vunpack.c.h.b16 %v2808
  %v4014 = vunpack.c.l.b16 %v2809
  %v4015 = vunpack.c.h.b16 %v2809
  %v4016 = vunpack.c.l.b16 %v2810
  %v4017 = vunpack.c.h.b16 %v2810
  %v4018 = vunpack.c.l.b16 %v2811
  %v4019 = vunpack.c.h.b16 %v2811
  %v4020 = vunpack.c.l.b16 %v2812
  %v4021 = vunpack.c.h.b16 %v2812
  %v4022 = vunpack.c.l.b16 %v2813
  %v4023 = vunpack.c.h.b16 %v2813
  %v4024 = vunpack.c.l.b16 %v2814
  %v4025 = vunpack.c.h.b16 %v2814
  %v4026 = vunpack.c.l.b16 %v2815
  %v4027 = vunpack.c.h.b16 %v2815
  %v4028 = vunpack.c.l.b16 %v2816
  %v4029 = vunpack.c.h.b16 %v2816
  %v4030 = vunpack.c.l.b16 %v2817
  %v4031 = vunpack.c.h.b16 %v2817
  %v4032 = vunpack.c.l.b16 %v2818
  %v4033 = vunpack.c.h.b16 %v2818
  %v4034 = vunpack.c.l.b16 %v2819
  %v4035 = vunpack.c.h.b16 %v2819
  %v4036 = vunpack.c.l.b16 %v2820
  %v4037 = vunpack.c.h.b16 %v2820
  %v4038 = vunpack.c.l.b16 %v2821
  %v4039 = vunpack.c.h.b16 %v2821
  %v4040 = vunpack.c.l.b16 %v2822
  %v4041 = vunpack.c.h.b16 %v2822
  %v4042 = vunpack.c.l.b16 %v2823
  %v4043 = vunpack.c.h.b16 %v2823
  %v4044 = vunpack.c.l.b16 %v2824
  %v4045 = vunpack.c.h.b16 %v2824
  %v4046 = vunpack.c.l.b16 %v2825
  %v4047 = vunpack.c.h.b16 %v2825
  %v4048 = vunpack.c.l.b16 %v2826
  %v4049 = vunpack.c.h.b16 %v2826
  %v4050 = vunpack.c.l.b16 %v2827
  %v4051 = vunpack.c.h.b16 %v2827
  %v4052 = vunpack.c.l.b16 %v2828
  %v4053 = vunpack.c.h.b16 %v2828
  %v4054 = vunpack.c.l.b16 %v2829
  %v4055 = vunpack.c.h.b16 %v2829
  %v4056 = vunpack.c.l.b16 %v2830
  %v4057 = vunpack.c.h.b16 %v2830
  %v4058 = vunpack.c.l.b16 %v2831
  %v4059 = vunpack.c.h.b16 %v2831
  %v4060 = vunpack.c.l.b16 %v2832
  %v4061 = vunpack.c.h.b16 %v2832
  %v4062 = vunpack.c.l.b16 %v2833
  %v4063 = vunpack.c.h.b16 %v2833
  %v4064 = vunpack.c.l.b16 %v2834
  %v4065 = vunpack.c.h.b16 %v2834
  %v4066 = vunpack.c.l.b16 %v2835
  %v4067 = vunpack.c.h.b16 %v2835
  %v4068 = vunpack.c.l.b16 %v2836
  %v4069 = vunpack.c.h.b16 %v2836
  %v4070 = vunpack.c.l.b16 %v2837
  %v4071 = vunpack.c.h.b16 %v2837
  %v4072 = vunpack.c.l.b16 %v2838
  %v4073 = vunpack.c.h.b16 %v2838
  %v4074 = vunpack.c.l.b16 %v2839
  %v4075 = vunpack.c.h.b16 %v2839
  %v4076 = vunpack.c.l.b16 %v2840
  %v4077 = vunpack.c.h.b16 %v2840
  %v4078 = vunpack.c.l.b16 %v2841
  %v4079 = vunpack.c.h.b16 %v2841
  %v4080 = vunpack.c.l.b16 %v2842
  %v4081 = vunpack.c.h.b16 %v2842
  %v4082 = vunpack.c.l.b16 %v2843
  %v4083 = vunpack.c.h.b16 %v2843
  %v4084 = vunpack.c.l.b16 %v2844
  %v4085 = vunpack.c.h.b16 %v2844
  %v4086 = vunpack.c.l.b16 %v2845
  %v4087 = vunpack.c.h.b16 %v2845
  %v4088 = vunpack.c.l.b16 %v2846
  %v4089 = vunpack.c.h.b16 %v2846
  %v4090 = vunpack.c.l.b16 %v2847
  %v4091 = vunpack.c.h.b16 %v2847
  %v4092 = vunpack.c.l.b16 %v2848
  %v4093 = vunpack.c.h.b16 %v2848
  %v4094 = vunpack.c.l.b16 %v2849
  %v4095 = vunpack.c.h.b16 %v2849
  %v4096 = vunpack.c.l.b16 %v2850
  %v4097 = vunpack.c.h.b16 %v2850
  %v4098 = vunpack.c.l.b16 %v2851
  %v4099 = vunpack.c.h.b16 %v2851
  %v4100 = vunpack.c.l.b16 %v2852
  %v4101 = vunpack.c.h.b16 %v2852
  %v4102 = vunpack.c.l.b16 %v2853
  %v4103 = vunpack.c.h.b16 %v2853
  %v4104 = vunpack.c.l.b16 %v2854
  %v4105 = vunpack.c.h.b16 %v2854
  %v4106 = vunpack.c.l.b16 %v2855
  %v4107 = vunpack.c.h.b16 %v2855
  %v4108 = vunpack.c.l.b16 %v2856
  %v4109 = vunpack.c.h.b16 %v2856
  %v4110 = vunpack.c.l.b16 %v2857
  %v4111 = vunpack.c.h.b16 %v2857
  %v4112 = vunpack.c.l.b16 %v2858
  %v4113 = vunpack.c.h.b16 %v2858
  %v4114 = vunpack.c.l.b16 %v2859
  %v4115 = vunpack.c.h.b16 %v2859
  %v4116 = vunpack.c.l.b16 %v2860
  %v4117 = vunpack.c.h.b16 %v2860
  %v4118 = vunpack.c.l.b16 %v2861
  %v4119 = vunpack.c.h.b16 %v2861
  %v4120 = vunpack.c.l.b16 %v2862
  %v4121 = vunpack.c.h.b16 %v2862
  %v4122 = vunpack.c.l.b16 %v2863
  %v4123 = vunpack.c.h.b16 %v2863
  %v4124 = vunpack.c.l.b16 %v2864
  %v4125 = vunpack.c.h.b16 %v2864
  %v4126 = vunpack.c.l.b16 %v2865
  %v4127 = vunpack.c.h.b16 %v2865
  %v4128 = vunpack.c.l.b16 %v2866
  %v4129 = vunpack.c.h.b16 %v2866
  %v4130 = vunpack.c.l.b16 %v2867
  %v4131 = vunpack.c.h.b16 %v2867
  %v4132 = vunpack.c.l.b16 %v2868
  %v4133 = vunpack.c.h.b16 %v2868
  %v4134 = vunpack.c.l.b16 %v2869
  %v4135 = vunpack.c.h.b16 %v2869
  %v4136 = vunpack.c.l.b16 %v2870
  %v4137 = vunpack.c.h.b16 %v2870
  %v4138 = vunpack.c.l.b16 %v2871
  %v4139 = vunpack.c.h.b16 %v2871
  %v4140 = vunpack.c.l.b16 %v2872
  %v4141 = vunpack.c.h.b16 %v2872
  %v4142 = vunpack.c.l.b16 %v2873
  %v4143 = vunpack.c.h.b16 %v2873
  %v4144 = vunpack.c.l.b16 %v2874
  %v4145 = vunpack.c.h.b16 %v2874
  %v4146 = vunpack.c.l.b16 %v2875
  %v4147 = vunpack.c.h.b16 %v2875
  %v4148 = vunpack.c.l.b16 %v2876
  %v4149 = vunpack.c.h.b16 %v2876
  %v4150 = vunpack.c.l.b16 %v2877
  %v4151 = vunpack.c.h.b16 %v2877
  %v4152 = vunpack.c.l.b16 %v2878
  %v4153 = vunpack.c.h.b16 %v2878
  %v4154 = vunpack.c.l.b16 %v2879
  %v4155 = vunpack.c.h.b16 %v2879
  %v4156 = vunpack.c.l.b16 %v2880
  %v4157 = vunpack.c.h.b16 %v2880
  %v4158 = vunpack.c.l.b16 %v2881
  %v4159 = vunpack.c.h.b16 %v2881
  %v4160 = vunpack.c.l.b16 %v2882
  %v4161 = vunpack.c.h.b16 %v2882
  %v4162 = vunpack.c.l.b16 %v2883
  %v4163 = vunpack.c.h.b16 %v2883
  %v4164 = vunpack.c.l.b16 %v2884
  %v4165 = vunpack.c.h.b16 %v2884
  %v4166 = vunpack.c.l.b16 %v2885
  %v4167 = vunpack.c.h.b16 %v2885
  %v4168 = vunpack.c.l.b16 %v2886
  %v4169 = vunpack.c.h.b16 %v2886
  %v4170 = vunpack.c.l.b16 %v2887
  %v4171 = vunpack.c.h.b16 %v2887
  %v4172 = vunpack.c.l.b16 %v2888
  %v4173 = vunpack.c.h.b16 %v2888
  %v4174 = vunpack.c.l.b16 %v2889
  %v4175 = vunpack.c.h.b16 %v2889
  %v4176 = vunpack.c.l.b16 %v2890
  %v4177 = vunpack.c.h.b16 %v2890
  %v4178 = vunpack.c.l.b16 %v2891
  %v4179 = vunpack.c.h.b16 %v2891
  %v4180 = vunpack.c.l.b16 %v2892
  %v4181 = vunpack.c.h.b16 %v2892
  %v4182 = vunpack.c.l.b16 %v2893
  %v4183 = vunpack.c.h.b16 %v2893
  %v4184 = vunpack.c.l.b16 %v2894
  %v4185 = vunpack.c.h.b16 %v2894
  %v4186 = vunpack.c.l.b16 %v2895
  %v4187 = vunpack.c.h.b16 %v2895
  %v4188 = vunpack.c.l.b16 %v2896
  %v4189 = vunpack.c.h.b16 %v2896
  %v4190 = vunpack.c.l.b16 %v2897
  %v4191 = vunpack.c.h.b16 %v2897
  %v4192 = vunpack.c.l.b16 %v2898
  %v4193 = vunpack.c.h.b16 %v2898
  %v4194 = vunpack.c.l.b16 %v2899
  %v4195 = vunpack.c.h.b16 %v2899
  %v4196 = vunpack.c.l.b16 %v2900
  %v4197 = vunpack.c.h.b16 %v2900
  %v4198 = vunpack.c.l.b16 %v2901
  %v4199 = vunpack.c.h.b16 %v2901
  %v4200 = vunpack.c.l.b16 %v2902
  %v4201 = vunpack.c.h.b16 %v2902
  %v4202 = vunpack.c.l.b16 %v2903
  %v4203 = vunpack.c.h.b16 %v2903
  %v4204 = vunpack.c.l.b16 %v2904
  %v4205 = vunpack.c.h.b16 %v2904
  %v4206 = vunpack.c.l.b16 %v2905
  %v4207 = vunpack.c.h.b16 %v2905
  %v4208 = vunpack.c.l.b16 %v2906
  %v4209 = vunpack.c.h.b16 %v2906
  %v4210 = vunpack.c.l.b16 %v2907
  %v4211 = vunpack.c.h.b16 %v2907
  %v4212 = vunpack.c.l.b16 %v2908
  %v4213 = vunpack.c.h.b16 %v2908
  %v4214 = vunpack.c.l.b16 %v2909
  %v4215 = vunpack.c.h.b16 %v2909
  %v4216 = vunpack.c.l.b16 %v2910
  %v4217 = vunpack.c.h.b16 %v2910
  %v4218 = vunpack.c.l.b16 %v2911
  %v4219 = vunpack.c.h.b16 %v2911
  %v4220 = vunpack.c.l.b16 %v2912
  %v4221 = vunpack.c.h.b16 %v2912
  %v4222 = vunpack.c.l.b16 %v2913
  %v4223 = vunpack.c.h.b16 %v2913
  %v4224 = vunpack.c.l.b16 %v2914
  %v4225 = vunpack.c.h.b16 %v2914
  %v4226 = vunpack.c.l.b16 %v2915
  %v4227 = vunpack.c.h.b16 %v2915
  %v4228 = vunpack.c.l.b16 %v2916
  %v4229 = vunpack.c.h.b16 %v2916
  %v4230 = vunpack.c.l.b16 %v2917
  %v4231 = vunpack.c.h.b16 %v2917
  %v4232 = vunpack.c.l.b16 %v2918
  %v4233 = vunpack.c.h.b16 %v2918
  %v4234 = vunpack.c.l.b16 %v2919
  %v4235 = vunpack.c.h.b16 %v2919
  %v4236 = vunpack.c.l.b16 %v2920
  %v4237 = vunpack.c.h.b16 %v2920
  %v4238 = vunpack.c.l.b16 %v2921
  %v4239 = vunpack.c.h.b16 %v2921
  %v4240 = vunpack.c.l.b16 %v2922
  %v4241 = vunpack.c.h.b16 %v2922
  %v4242 = vunpack.c.l.b16 %v2923
  %v4243 = vunpack.c.h.b16 %v2923
  %v4244 = vunpack.c.l.b16 %v2924
  %v4245 = vunpack.c.h.b16 %v2924
  %v4246 = vunpack.c.l.b16 %v2925
  %v4247 = vunpack.c.h.b16 %v2925
  %v4248 = vunpack.c.l.b16 %v2926
  %v4249 = vunpack.c.h.b16 %v2926
  %v4250 = vunpack.c.l.b16 %v2927
  %v4251 = vunpack.c.h.b16 %v2927
  %v4252 = vunpack.c.l.b16 %v2928
  %v4253 = vunpack.c.h.b16 %v2928
  %v4254 = vunpack.c.l.b16 %v2929
  %v4255 = vunpack.c.h.b16 %v2929
  %v4256 = vunpack.c.l.b16 %v2930
  %v4257 = vunpack.c.h.b16 %v2930
  %v4258 = vunpack.c.l.b16 %v2931
  %v4259 = vunpack.c.h.b16 %v2931
  %v4260 = vunpack.c.l.b16 %v2932
  %v4261 = vunpack.c.h.b16 %v2932
  %v4262 = vunpack.c.l.b16 %v2933
  %v4263 = vunpack.c.h.b16 %v2933
  %v4264 = vunpack.c.l.b16 %v2934
  %v4265 = vunpack.c.h.b16 %v2934
  %v4266 = vunpack.c.l.b16 %v2935
  %v4267 = vunpack.c.h.b16 %v2935
  %v4268 = vunpack.c.l.b16 %v2936
  %v4269 = vunpack.c.h.b16 %v2936
  %v4270 = vunpack.c.l.b16 %v2937
  %v4271 = vunpack.c.h.b16 %v2937
  %v4272 = vunpack.c.l.b16 %v2938
  %v4273 = vunpack.c.h.b16 %v2938
  %v4274 = vunpack.c.l.b16 %v2939
  %v4275 = vunpack.c.h.b16 %v2939
  %v4276 = vunpack.c.l.b16 %v2940
  %v4277 = vunpack.c.h.b16 %v2940
  %v4278 = vunpack.c.l.b16 %v2941
  %v4279 = vunpack.c.h.b16 %v2941
  %v4280 = vunpack.c.l.b16 %v2942
  %v4281 = vunpack.c.h.b16 %v2942
  %v4282 = vunpack.c.l.b16 %v2943
  %v4283 = vunpack.c.h.b16 %v2943
  %v4284 = vunpack.c.l.b16 %v2944
  %v4285 = vunpack.c.h.b16 %v2944
  %v4286 = vunpack.c.l.b16 %v2945
  %v4287 = vunpack.c.h.b16 %v2945
  %v4288 = vunpack.c.l.b16 %v2946
  %v4289 = vunpack.c.h.b16 %v2946
  %v4290 = vunpack.c.l.b16 %v2947
  %v4291 = vunpack.c.h.b16 %v2947
  %v4292 = vunpack.c.l.b16 %v2948
  %v4293 = vunpack.c.h.b16 %v2948
  %v4294 = vunpack.c.l.b16 %v2949
  %v4295 = vunpack.c.h.b16 %v2949
  %v4296 = vunpack.c.l.b16 %v2950
  %v4297 = vunpack.c.h.b16 %v2950
  %v4298 = vunpack.c.l.b16 %v2951
  %v4299 = vunpack.c.h.b16 %v2951
  %v4300 = vunpack.c.l.b16 %v2952
  %v4301 = vunpack.c.h.b16 %v2952
  %v4302 = vunpack.c.l.b16 %v2953
  %v4303 = vunpack.c.h.b16 %v2953
  %v4304 = vunpack.c.l.b16 %v2954
  %v4305 = vunpack.c.h.b16 %v2954
  %v4306 = vunpack.c.l.b16 %v2955
  %v4307 = vunpack.c.h.b16 %v2955
  %v4308 = vunpack.c.l.b16 %v2956
  %v4309 = vunpack.c.h.b16 %v2956
  %v4310 = vunpack.c.l.b16 %v2957
  %v4311 = vunpack.c.h.b16 %v2957
  %v4312 = vunpack.c.l.b16 %v2958
  %v4313 = vunpack.c.h.b16 %v2958
  %v4314 = vunpack.c.l.b16 %v2959
  %v4315 = vunpack.c.h.b16 %v2959
  %v4316 = vunpack.c.l.b16 %v2960
  %v4317 = vunpack.c.h.b16 %v2960
  %v4318 = vunpack.c.l.b16 %v2961
  %v4319 = vunpack.c.h.b16 %v2961
  %v4320 = vunpack.c.l.b16 %v2962
  %v4321 = vunpack.c.h.b16 %v2962
  %v4322 = vunpack.c.l.b16 %v2963
  %v4323 = vunpack.c.h.b16 %v2963
  %v4324 = vunpack.c.l.b16 %v2964
  %v4325 = vunpack.c.h.b16 %v2964
  %v4326 = vunpack.c.l.b16 %v2965
  %v4327 = vunpack.c.h.b16 %v2965
  %v4328 = vunpack.c.l.b16 %v2966
  %v4329 = vunpack.c.h.b16 %v2966
  %v4330 = vunpack.c.l.b16 %v2967
  %v4331 = vunpack.c.h.b16 %v2967
  %v4332 = vunpack.c.l.b16 %v2968
  %v4333 = vunpack.c.h.b16 %v2968
  %v4334 = vunpack.c.l.b16 %v2969
  %v4335 = vunpack.c.h.b16 %v2969
  %v4336 = vunpack.c.l.b16 %v2970
  %v4337 = vunpack.c.h.b16 %v2970
  %v4338 = vunpack.c.l.b16 %v2971
  %v4339 = vunpack.c.h.b16 %v2971
  %v4340 = vunpack.c.l.b16 %v2972
  %v4341 = vunpack.c.h.b16 %v2972
  %v4342 = vunpack.c.l.b16 %v2973
  %v4343 = vunpack.c.h.b16 %v2973
  %v4344 = vunpack.c.l.b16 %v2974
  %v4345 = vunpack.c.h.b16 %v2974
  %v4346 = vunpack.c.l.b16 %v2975
  %v4347 = vunpack.c.h.b16 %v2975
  %v4348 = vunpack.c.l.b16 %v2976
  %v4349 = vunpack.c.h.b16 %v2976
  %v4350 = vunpack.c.l.b16 %v2977
  %v4351 = vunpack.c.h.b16 %v2977
  %v4352 = vunpack.c.l.b16 %v2978
  %v4353 = vunpack.c.h.b16 %v2978
  %v4354 = vunpack.c.l.b16 %v2979
  %v4355 = vunpack.c.h.b16 %v2979
  %v4356 = vunpack.c.l.b16 %v2980
  %v4357 = vunpack.c.h.b16 %v2980
  %v4358 = vunpack.c.l.b16 %v2981
  %v4359 = vunpack.c.h.b16 %v2981
  %v4360 = vunpack.c.l.b16 %v2982
  %v4361 = vunpack.c.h.b16 %v2982
  %v4362 = vunpack.c.l.b16 %v2983
  %v4363 = vunpack.c.h.b16 %v2983
  %v4364 = vunpack.c.l.b16 %v2984
  %v4365 = vunpack.c.h.b16 %v2984
  %v4366 = vunpack.c.l.b16 %v2985
  %v4367 = vunpack.c.h.b16 %v2985
  %v4368 = vunpack.c.l.b16 %v2986
  %v4369 = vunpack.c.h.b16 %v2986
  %v4370 = vunpack.c.l.b16 %v2987
  %v4371 = vunpack.c.h.b16 %v2987
  %v4372 = vunpack.c.l.b16 %v2988
  %v4373 = vunpack.c.h.b16 %v2988
  %v4374 = vunpack.c.l.b16 %v2989
  %v4375 = vunpack.c.h.b16 %v2989
  %v4376 = vunpack.c.l.b16 %v2990
  %v4377 = vunpack.c.h.b16 %v2990
  %v4378 = vunpack.c.l.b16 %v2991
  %v4379 = vunpack.c.h.b16 %v2991
  %v4380 = vunpack.c.l.b16 %v2992
  %v4381 = vunpack.c.h.b16 %v2992
  %v4382 = vunpack.c.l.b16 %v2993
  %v4383 = vunpack.c.h.b16 %v2993
  %v4384 = vunpack.c.l.b16 %v2994
  %v4385 = vunpack.c.h.b16 %v2994
  %v4386 = vunpack.c.l.b16 %v2995
  %v4387 = vunpack.c.h.b16 %v2995
  %v4388 = vunpack.c.l.b16 %v2996
  %v4389 = vunpack.c.h.b16 %v2996
  %v4390 = vunpack.c.l.b16 %v2997
  %v4391 = vunpack.c.h.b16 %v2997
  %v4392 = vunpack.c.l.b16 %v2998
  %v4393 = vunpack.c.h.b16 %v2998
  %v4394 = vunpack.c.l.b16 %v2999
  %v4395 = vunpack.c.h.b16 %v2999
  %v4396 = vunpack.c.l.b16 %v3000
  %v4397 = vunpack.c.h.b16 %v3000
  %v4398 = vunpack.c.l.b16 %v3001
  %v4399 = vunpack.c.h.b16 %v3001
  %v4400 = vunpack.c.l.b16 %v3002
  %v4401 = vunpack.c.h.b16 %v3002
  %v4402 = vunpack.c.l.b16 %v3003
  %v4403 = vunpack.c.h.b16 %v3003
  %v4404 = vunpack.c.l.b16 %v3004
  %v4405 = vunpack.c.h.b16 %v3004
  %v4406 = vunpack.c.l.b16 %v3005
  %v4407 = vunpack.c.h.b16 %v3005
  %v4408 = vunpack.c.l.b16 %v3006
  %v4409 = vunpack.c.h.b16 %v3006
  %v4410 = vunpack.c.l.b16 %v3007
  %v4411 = vunpack.c.h.b16 %v3007
  %v4412 = vunpack.c.l.b16 %v3008
  %v4413 = vunpack.c.h.b16 %v3008
  %v4414 = vunpack.c.l.b16 %v3009
  %v4415 = vunpack.c.h.b16 %v3009
  %v4416 = vunpack.c.l.b16 %v3010
  %v4417 = vunpack.c.h.b16 %v3010
  %v4418 = vunpack.c.l.b16 %v3011
  %v4419 = vunpack.c.h.b16 %v3011
  %v4420 = vunpack.c.l.b16 %v3012
  %v4421 = vunpack.c.h.b16 %v3012
  %v4422 = vunpack.c.l.b16 %v3013
  %v4423 = vunpack.c.h.b16 %v3013
  %v4424 = vunpack.c.l.b16 %v3014
  %v4425 = vunpack.c.h.b16 %v3014
  %v4426 = vunpack.c.l.b16 %v3015
  %v4427 = vunpack.c.h.b16 %v3015
  %v4428 = vunpack.c.l.b16 %v3016
  %v4429 = vunpack.c.h.b16 %v3016
  %v4430 = vunpack.c.l.b16 %v3017
  %v4431 = vunpack.c.h.b16 %v3017
  %v4432 = vunpack.c.l.b16 %v3018
  %v4433 = vunpack.c.h.b16 %v3018
  %v4434 = vunpack.c.l.b16 %v3019
  %v4435 = vunpack.c.h.b16 %v3019
  %v4436 = vunpack.c.l.b16 %v3020
  %v4437 = vunpack.c.h.b16 %v3020
  %v4438 = vunpack.c.l.b16 %v3021
  %v4439 = vunpack.c.h.b16 %v3021
  %v4440 = vunpack.c.l.b16 %v3022
  %v4441 = vunpack.c.h.b16 %v3022
  %v4442 = vunpack.c.l.b16 %v3023
  %v4443 = vunpack.c.h.b16 %v3023
  %v4444 = vunpack.c.l.b16 %v3024
  %v4445 = vunpack.c.h.b16 %v3024
  %v4446 = vunpack.c.l.b16 %v3025
  %v4447 = vunpack.c.h.b16 %v3025
  %v4448 = vunpack.c.l.b16 %v3026
  %v4449 = vunpack.c.h.b16 %v3026
  %v4450 = vunpack.c.l.b16 %v3027
  %v4451 = vunpack.c.h.b16 %v3027
  %v4452 = vunpack.c.l.b16 %v3028
  %v4453 = vunpack.c.h.b16 %v3028
  %v4454 = vunpack.c.l.b16 %v3029
  %v4455 = vunpack.c.h.b16 %v3029
  %v4456 = vunpack.c.l.b16 %v3030
  %v4457 = vunpack.c.h.b16 %v3030
  %v4458 = vunpack.c.l.b16 %v3031
  %v4459 = vunpack.c.h.b16 %v3031
  %v4460 = vunpack.c.l.b16 %v3032
  %v4461 = vunpack.c.h.b16 %v3032
  %v4462 = vunpack.c.l.b16 %v3033
  %v4463 = vunpack.c.h.b16 %v3033
  %v4464 = vunpack.c.l.b16 %v3034
  %v4465 = vunpack.c.h.b16 %v3034
  %v4466 = vunpack.c.l.b16 %v3035
  %v4467 = vunpack.c.h.b16 %v3035
  %v4468 = vunpack.c.l.b16 %v3036
  %v4469 = vunpack.c.h.b16 %v3036
  %v4470 = vunpack.c.l.b16 %v3037
  %v4471 = vunpack.c.h.b16 %v3037
  %v4472 = vunpack.c.l.b16 %v3038
  %v4473 = vunpack.c.h.b16 %v3038
  %v4474 = vunpack.c.l.b16 %v3039
  %v4475 = vunpack.c.h.b16 %v3039
  %v4476 = vunpack.c.l.b16 %v3040
  %v4477 = vunpack.c.h.b16 %v3040
  %v4478 = vunpack.c.l.b16 %v3041
  %v4479 = vunpack.c.h.b16 %v3041
  %v4480 = vunpack.c.l.b16 %v3042
  %v4481 = vunpack.c.h.b16 %v3042
  %v4482 = vunpack.c.l.b16 %v3043
  %v4483 = vunpack.c.h.b16 %v3043
  %v4484 = vunpack.c.l.b16 %v3044
  %v4485 = vunpack.c.h.b16 %v3044
  %v4486 = vunpack.c.l.b16 %v3045
  %v4487 = vunpack.c.h.b16 %v3045
  %v4488 = vunpack.c.l.b16 %v3046
  %v4489 = vunpack.c.h.b16 %v3046
  %v4490 = vunpack.c.l.b16 %v3047
  %v4491 = vunpack.c.h.b16 %v3047
  %v4492 = vunpack.c.l.b16 %v3048
  %v4493 = vunpack.c.h.b16 %v3048
  %v4494 = vunpack.c.l.b16 %v3049
  %v4495 = vunpack.c.h.b16 %v3049
  %v4496 = vunpack.c.l.b16 %v3050
  %v4497 = vunpack.c.h.b16 %v3050
  %v4498 = vunpack.c.l.b16 %v3051
  %v4499 = vunpack.c.h.b16 %v3051
  %v4500 = vunpack.c.l.b16 %v3052
  %v4501 = vunpack.c.h.b16 %v3052
  %v4502 = vunpack.c.l.b16 %v3053
  %v4503 = vunpack.c.h.b16 %v3053
  %v4504 = vunpack.c.l.b16 %v3054
  %v4505 = vunpack.c.h.b16 %v3054
  %v4506 = vunpack.c.l.b16 %v3055
  %v4507 = vunpack.c.h.b16 %v3055
  %v4508 = vunpack.c.l.b16 %v3056
  %v4509 = vunpack.c.h.b16 %v3056
  %v4510 = vunpack.c.l.b16 %v3057
  %v4511 = vunpack.c.h.b16 %v3057
  %v4512 = vunpack.c.l.b16 %v3058
  %v4513 = vunpack.c.h.b16 %v3058
  %v4514 = vunpack.c.l.b16 %v3059
  %v4515 = vunpack.c.h.b16 %v3059
  %v4516 = vunpack.c.l.b16 %v3060
  %v4517 = vunpack.c.h.b16 %v3060
  %v4518 = vunpack.c.l.b16 %v3061
  %v4519 = vunpack.c.h.b16 %v3061
  %v4520 = vunpack.c.l.b16 %v3062
  %v4521 = vunpack.c.h.b16 %v3062
  %v4522 = vunpack.c.l.b16 %v3063
  %v4523 = vunpack.c.h.b16 %v3063
  %v4524 = vunpack.c.l.b16 %v3064
  %v4525 = vunpack.c.h.b16 %v3064
  %v4526 = vunpack.c.l.b16 %v3065
  %v4527 = vunpack.c.h.b16 %v3065
  %v4528 = vunpack.c.l.b16 %v3066
  %v4529 = vunpack.c.h.b16 %v3066
  %v4530 = vunpack.c.l.b16 %v3067
  %v4531 = vunpack.c.h.b16 %v3067
  %v4532 = vunpack.c.l.b16 %v3068
  %v4533 = vunpack.c.h.b16 %v3068
  %v4534 = vunpack.c.l.b16 %v3069
  %v4535 = vunpack.c.h.b16 %v3069
  %v4536 = vunpack.c.l.b16 %v3070
  %v4537 = vunpack.c.h.b16 %v3070
  %v4538 = vunpack.c.l.b16 %v3071
  %v4539 = vunpack.c.h.b16 %v3071
  %v4540 = vunpack.c.l.b16 %v3072
  %v4541 = vunpack.c.h.b16 %v3072
  %v4542 = vunpack.c.l.b16 %v3073
  %v4543 = vunpack.c.h.b16 %v3073
  %v4544 = vunpack.c.l.b16 %v3074
  %v4545 = vunpack.c.h.b16 %v3074
  %v4546 = vunpack.c.l.b16 %v3075
  %v4547 = vunpack.c.h.b16 %v3075
  %v4548 = vunpack.c.l.b16 %v3076
  %v4549 = vunpack.c.h.b16 %v3076
  %v4550 = vunpack.c.l.b16 %v3077
  %v4551 = vunpack.c.h.b16 %v3077
  %v4552 = vunpack.c.l.b16 %v3078
  %v4553 = vunpack.c.h.b16 %v3078
  %v4554 = vunpack.c.l.b16 %v3079
  %v4555 = vunpack.c.h.b16 %v3079
  %v4556 = vunpack.c.l.b16 %v3080
  %v4557 = vunpack.c.h.b16 %v3080
  %v4558 = vunpack.c.l.b16 %v3081
  %v4559 = vunpack.c.h.b16 %v3081
  %v4560 = vunpack.c.l.b16 %v3082
  %v4561 = vunpack.c.h.b16 %v3082
  %v4562 = vunpack.c.l.b16 %v3083
  %v4563 = vunpack.c.h.b16 %v3083
  %v4564 = vunpack.c.l.b16 %v3084
  %v4565 = vunpack.c.h.b16 %v3084
  %v4566 = vunpack.c.l.b16 %v3085
  %v4567 = vunpack.c.h.b16 %v3085
  %v4568 = vunpack.c.l.b16 %v3086
  %v4569 = vunpack.c.h.b16 %v3086
  %v4570 = vunpack.c.l.b16 %v3087
  %v4571 = vunpack.c.h.b16 %v3087
  %v4572 = vunpack.c.l.b16 %v3088
  %v4573 = vunpack.c.h.b16 %v3088
  %v4574 = vunpack.c.l.b16 %v3089
  %v4575 = vunpack.c.h.b16 %v3089
  %v4576 = vunpack.c.l.b16 %v3090
  %v4577 = vunpack.c.h.b16 %v3090
  %v4578 = vunpack.c.l.b16 %v3091
  %v4579 = vunpack.c.h.b16 %v3091
  %v4580 = vunpack.c.l.b16 %v3092
  %v4581 = vunpack.c.h.b16 %v3092
  %v4582 = vunpack.c.l.b16 %v3093
  %v4583 = vunpack.c.h.b16 %v3093
  %v4584 = vunpack.c.l.b16 %v3094
  %v4585 = vunpack.c.h.b16 %v3094
  %v4586 = vunpack.c.l.b16 %v3095
  %v4587 = vunpack.c.h.b16 %v3095
  %v4588 = vunpack.c.l.b16 %v3096
  %v4589 = vunpack.c.h.b16 %v3096
  %v4590 = vunpack.c.l.b16 %v3097
  %v4591 = vunpack.c.h.b16 %v3097
  %v4592 = vunpack.c.l.b16 %v3098
  %v4593 = vunpack.c.h.b16 %v3098
  %v4594 = vunpack.c.l.b16 %v3099
  %v4595 = vunpack.c.h.b16 %v3099
  %v4596 = vunpack.c.l.b16 %v3100
  %v4597 = vunpack.c.h.b16 %v3100
  %v4598 = vunpack.c.l.b16 %v3101
  %v4599 = vunpack.c.h.b16 %v3101
  %v4600 = vunpack.c.l.b16 %v3102
  %v4601 = vunpack.c.h.b16 %v3102
  %v4602 = vunpack.c.l.b16 %v3103
  %v4603 = vunpack.c.h.b16 %v3103
  %v4604 = vunpack.c.l.b16 %v3104
  %v4605 = vunpack.c.h.b16 %v3104
  %v4606 = vunpack.c.l.b16 %v3105
  %v4607 = vunpack.c.h.b16 %v3105
  %v4608 = vunpack.c.l.b16 %v3106
  %v4609 = vunpack.c.h.b16 %v3106
  %v4610 = vunpack.c.l.b16 %v3107
  %v4611 = vunpack.c.h.b16 %v3107
  %v4612 = vunpack.c.l.b16 %v3108
  %v4613 = vunpack.c.h.b16 %v3108
  %v4614 = vunpack.c.l.b16 %v3109
  %v4615 = vunpack.c.h.b16 %v3109
  %v4616 = vunpack.c.l.b16 %v3110
  %v4617 = vunpack.c.h.b16 %v3110
  %v4618 = vunpack.c.l.b16 %v3111
  %v4619 = vunpack.c.h.b16 %v3111
  %v4620 = vunpack.c.l.b16 %v3112
  %v4621 = vunpack.c.h.b16 %v3112
  %v4622 = vunpack.c.l.b16 %v3113
  %v4623 = vunpack.c.h.b16 %v3113
  %v4624 = vunpack.c.l.b16 %v3114
  %v4625 = vunpack.c.h.b16 %v3114
  %v4626 = vunpack.c.l.b16 %v3115
  %v4627 = vunpack.c.h.b16 %v3115
  %v4628 = vunpack.c.l.b16 %v3116
  %v4629 = vunpack.c.h.b16 %v3116
  %v4630 = vunpack.c.l.b16 %v3117
  %v4631 = vunpack.c.h.b16 %v3117
  %v4632 = vunpack.c.l.b16 %v3118
  %v4633 = vunpack.c.h.b16 %v3118
  %v4634 = vunpack.c.l.b16 %v3119
  %v4635 = vunpack.c.h.b16 %v3119
  %v4636 = vunpack.c.l.b16 %v3120
  %v4637 = vunpack.c.h.b16 %v3120
  %v4638 = vunpack.c.l.b16 %v3121
  %v4639 = vunpack.c.h.b16 %v3121
  %v4640 = vunpack.c.l.b16 %v3122
  %v4641 = vunpack.c.h.b16 %v3122
  %v4642 = vunpack.c.l.b16 %v3123
  %v4643 = vunpack.c.h.b16 %v3123
  %v4644 = vunpack.c.l.b16 %v3124
  %v4645 = vunpack.c.h.b16 %v3124
  %v4646 = vunpack.c.l.b16 %v3125
  %v4647 = vunpack.c.h.b16 %v3125
  %v4648 = vunpack.c.l.b16 %v3126
  %v4649 = vunpack.c.h.b16 %v3126
  %v4650 = vunpack.c.l.b16 %v3127
  %v4651 = vunpack.c.h.b16 %v3127
  %v4652 = vunpack.c.l.b16 %v3128
  %v4653 = vunpack.c.h.b16 %v3128
  %v4654 = vunpack.c.l.b16 %v3129
  %v4655 = vunpack.c.h.b16 %v3129
  %v4656 = vunpack.c.l.b16 %v3130
  %v4657 = vunpack.c.h.b16 %v3130
  %v4658 = vunpack.c.l.b16 %v3131
  %v4659 = vunpack.c.h.b16 %v3131
  %v4660 = vunpack.c.l.b16 %v3132
  %v4661 = vunpack.c.h.b16 %v3132
  %v4662 = vunpack.c.l.b16 %v3133
  %v4663 = vunpack.c.h.b16 %v3133
  %v4664 = vunpack.c.l.b16 %v3134
  %v4665 = vunpack.c.h.b16 %v3134
  %v4666 = vunpack.c.l.b16 %v3135
  %v4667 = vunpack.c.h.b16 %v3135
  %v4668 = vunpack.c.l.b16 %v3136
  %v4669 = vunpack.c.h.b16 %v3136
  %v4670 = vunpack.c.l.b16 %v3137
  %v4671 = vunpack.c.h.b16 %v3137
  %v4672 = vunpack.c.l.b16 %v3138
  %v4673 = vunpack.c.h.b16 %v3138
  %v4674 = vunpack.c.l.b16 %v3139
  %v4675 = vunpack.c.h.b16 %v3139
  %v4676 = vpack.c.b16 %v3660, %v3652
  %v4677 = vpack.c.b16 %v3661, %v3653
  %v4678 = vpack.c.b16 %v3662, %v3654
  %v4679 = vpack.c.b16 %v3663, %v3655
  %v4680 = vpack.c.b16 %v3664, %v3656
  %v4681 = vpack.c.b16 %v3665, %v3657
  %v4682 = vpack.c.b16 %v3666, %v3658
  %v4683 = vpack.c.b16 %v3667, %v3659
  %v4684 = vpack.c.b16 %v3676, %v3668
  %v4685 = vpack.c.b16 %v3677, %v3669
  %v4686 = vpack.c.b16 %v3678, %v3670
  %v4687 = vpack.c.b16 %v3679, %v3671
  %v4688 = vpack.c.b16 %v3680, %v3672
  %v4689 = vpack.c.b16 %v3681, %v3673
  %v4690 = vpack.c.b16 %v3682, %v3674
  %v4691 = vpack.c.b16 %v3683, %v3675
  %v4692 = vpack.c.b16 %v3692, %v3684
  %v4693 = vpack.c.b16 %v3693, %v3685
  %v4694 = vpack.c.b16 %v3694, %v3686
  %v4695 = vpack.c.b16 %v3695, %v3687
  %v4696 = vpack.c.b16 %v3696, %v3688
  %v4697 = vpack.c.b16 %v3697, %v3689
  %v4698 = vpack.c.b16 %v3698, %v3690
  %v4699 = vpack.c.b16 %v3699, %v3691
  %v4700 = vpack.c.b16 %v3708, %v3700
  %v4701 = vpack.c.b16 %v3709, %v3701
  %v4702 = vpack.c.b16 %v3710, %v3702
  %v4703 = vpack.c.b16 %v3711, %v3703
  %v4704 = vpack.c.b16 %v3712, %v3704
  %v4705 = vpack.c.b16 %v3713, %v3705
  %v4706 = vpack.c.b16 %v3714, %v3706
  %v4707 = vpack.c.b16 %v3715, %v3707
  %v4708 = vpack.c.b16 %v3724, %v3716
  %v4709 = vpack.c.b16 %v3725, %v3717
  %v4710 = vpack.c.b16 %v3726, %v3718
  %v4711 = vpack.c.b16 %v3727, %v3719
  %v4712 = vpack.c.b16 %v3728, %v3720
  %v4713 = vpack.c.b16 %v3729, %v3721
  %v4714 = vpack.c.b16 %v3730, %v3722
  %v4715 = vpack.c.b16 %v3731, %v3723
  %v4716 = vpack.c.b16 %v3740, %v3732
  %v4717 = vpack.c.b16 %v3741, %v3733
  %v4718 = vpack.c.b16 %v3742, %v3734
  %v4719 = vpack.c.b16 %v3743, %v3735
  %v4720 = vpack.c.b16 %v3744, %v3736
  %v4721 = vpack.c.b16 %v3745, %v3737
  %v4722 = vpack.c.b16 %v3746, %v3738
  %v4723 = vpack.c.b16 %v3747, %v3739
  %v4724 = vpack.c.b16 %v3756, %v3748
  %v4725 = vpack.c.b16 %v3757, %v3749
  %v4726 = vpack.c.b16 %v3758, %v3750
  %v4727 = vpack.c.b16 %v3759, %v3751
  %v4728 = vpack.c.b16 %v3760, %v3752
  %v4729 = vpack.c.b16 %v3761, %v3753
  %v4730 = vpack.c.b16 %v3762, %v3754
  %v4731 = vpack.c.b16 %v3763, %v3755
  %v4732 = vpack.c.b16 %v3772, %v3764
  %v4733 = vpack.c.b16 %v3773, %v3765
  %v4734 = vpack.c.b16 %v3774, %v3766
  %v4735 = vpack.c.b16 %v3775, %v3767
  %v4736 = vpack.c.b16 %v3776, %v3768
  %v4737 = vpack.c.b16 %v3777, %v3769
  %v4738 = vpack.c.b16 %v3778, %v3770
  %v4739 = vpack.c.b16 %v3779, %v3771
  %v4740 = vpack.c.b16 %v3788, %v3780
  %v4741 = vpack.c.b16 %v3789, %v3781
  %v4742 = vpack.c.b16 %v3790, %v3782
  %v4743 = vpack.c.b16 %v3791, %v3783
  %v4744 = vpack.c.b16 %v3792, %v3784
  %v4745 = vpack.c.b16 %v3793, %v3785
  %v4746 = vpack.c.b16 %v3794, %v3786
  %v4747 = vpack.c.b16 %v3795, %v3787
  %v4748 = vpack.c.b16 %v3804, %v3796
  %v4749 = vpack.c.b16 %v3805, %v3797
  %v4750 = vpack.c.b16 %v3806, %v3798
  %v4751 = vpack.c.b16 %v3807, %v3799
  %v4752 = vpack.c.b16 %v3808, %v3800
  %v4753 = vpack.c.b16 %v3809, %v3801
  %v4754 = vpack.c.b16 %v3810, %v3802
  %v4755 = vpack.c.b16 %v3811, %v3803
  %v4756 = vpack.c.b16 %v3820, %v3812
  %v4757 = vpack.c.b16 %v3821, %v3813
  %v4758 = vpack.c.b16 %v3822, %v3814
  %v4759 = vpack.c.b16 %v3823, %v3815
  %v4760 = vpack.c.b16 %v3824, %v3816
  %v4761 = vpack.c.b16 %v3825, %v3817
  %v4762 = vpack.c.b16 %v3826, %v3818
  %v4763 = vpack.c.b16 %v3827, %v3819
  %v4764 = vpack.c.b16 %v3836, %v3828
  %v4765 = vpack.c.b16 %v3837, %v3829
  %v4766 = vpack.c.b16 %v3838, %v3830
  %v4767 = vpack.c.b16 %v3839, %v3831
  %v4768 = vpack.c.b16 %v3840, %v3832
  %v4769 = vpack.c.b16 %v3841, %v3833
  %v4770 = vpack.c.b16 %v3842, %v3834
  %v4771 = vpack.c.b16 %v3843, %v3835
  %v4772 = vpack.c.b16 %v3852, %v3844
  %v4773 = vpack.c.b16 %v3853, %v3845
  %v4774 = vpack.c.b16 %v3854, %v3846
  %v4775 = vpack.c.b16 %v3855, %v3847
  %v4776 = vpack.c.b16 %v3856, %v3848
  %v4777 = vpack.c.b16 %v3857, %v3849
  %v4778 = vpack.c.b16 %v3858, %v3850
  %v4779 = vpack.c.b16 %v3859, %v3851
  %v4780 = vpack.c.b16 %v3868, %v3860
  %v4781 = vpack.c.b16 %v3869, %v3861
  %v4782 = vpack.c.b16 %v3870, %v3862
  %v4783 = vpack.c.b16 %v3871, %v3863
  %v4784 = vpack.c.b16 %v3872, %v3864
  %v4785 = vpack.c.b16 %v3873, %v3865
  %v4786 = vpack.c.b16 %v3874, %v3866
  %v4787 = vpack.c.b16 %v3875, %v3867
  %v4788 = vpack.c.b16 %v3884, %v3876
  %v4789 = vpack.c.b16 %v3885, %v3877
  %v4790 = vpack.c.b16 %v3886, %v3878
  %v4791 = vpack.c.b16 %v3887, %v3879
  %v4792 = vpack.c.b16 %v3888, %v3880
  %v4793 = vpack.c.b16 %v3889, %v3881
  %v4794 = vpack.c.b16 %v3890, %v3882
  %v4795 = vpack.c.b16 %v3891, %v3883
  %v4796 = vpack.c.b16 %v3900, %v3892
  %v4797 = vpack.c.b16 %v3901, %v3893
  %v4798 = vpack.c.b16 %v3902, %v3894
  %v4799 = vpack.c.b16 %v3903, %v3895
  %v4800 = vpack.c.b16 %v3904, %v3896
  %v4801 = vpack.c.b16 %v3905, %v3897
  %v4802 = vpack.c.b16 %v3906, %v3898
  %v4803 = vpack.c.b16 %v3907, %v3899
  %v4804 = vpack.c.b16 %v3916, %v3908
  %v4805 = vpack.c.b16 %v3917, %v3909
  %v4806 = vpack.c.b16 %v3918, %v3910
  %v4807 = vpack.c.b16 %v3919, %v3911
  %v4808 = vpack.c.b16 %v3920, %v3912
  %v4809 = vpack.c.b16 %v3921, %v3913
  %v4810 = vpack.c.b16 %v3922, %v3914
  %v4811 = vpack.c.b16 %v3923, %v3915
  %v4812 = vpack.c.b16 %v3932, %v3924
  %v4813 = vpack.c.b16 %v3933, %v3925
  %v4814 = vpack.c.b16 %v3934, %v3926
  %v4815 = vpack.c.b16 %v3935, %v3927
  %v4816 = vpack.c.b16 %v3936, %v3928
  %v4817 = vpack.c.b16 %v3937, %v3929
  %v4818 = vpack.c.b16 %v3938, %v3930
  %v4819 = vpack.c.b16 %v3939, %v3931
  %v4820 = vpack.c.b16 %v3948, %v3940
  %v4821 = vpack.c.b16 %v3949, %v3941
  %v4822 = vpack.c.b16 %v3950, %v3942
  %v4823 = vpack.c.b16 %v3951, %v3943
  %v4824 = vpack.c.b16 %v3952, %v3944
  %v4825 = vpack.c.b16 %v3953, %v3945
  %v4826 = vpack.c.b16 %v3954, %v3946
  %v4827 = vpack.c.b16 %v3955, %v3947
  %v4828 = vpack.c.b16 %v3964, %v3956
  %v4829 = vpack.c.b16 %v3965, %v3957
  %v4830 = vpack.c.b16 %v3966, %v3958
  %v4831 = vpack.c.b16 %v3967, %v3959
  %v4832 = vpack.c.b16 %v3968, %v3960
  %v4833 = vpack.c.b16 %v3969, %v3961
  %v4834 = vpack.c.b16 %v3970, %v3962
  %v4835 = vpack.c.b16 %v3971, %v3963
  %v4836 = vpack.c.b16 %v3980, %v3972
  %v4837 = vpack.c.b16 %v3981, %v3973
  %v4838 = vpack.c.b16 %v3982, %v3974
  %v4839 = vpack.c.b16 %v3983, %v3975
  %v4840 = vpack.c.b16 %v3984, %v3976
  %v4841 = vpack.c.b16 %v3985, %v3977
  %v4842 = vpack.c.b16 %v3986, %v3978
  %v4843 = vpack.c.b16 %v3987, %v3979
  %v4844 = vpack.c.b16 %v3996, %v3988
  %v4845 = vpack.c.b16 %v3997, %v3989
  %v4846 = vpack.c.b16 %v3998, %v3990
  %v4847 = vpack.c.b16 %v3999, %v3991
  %v4848 = vpack.c.b16 %v4000, %v3992
  %v4849 = vpack.c.b16 %v4001, %v3993
  %v4850 = vpack.c.b16 %v4002, %v3994
  %v4851 = vpack.c.b16 %v4003, %v3995
  %v4852 = vpack.c.b16 %v4012, %v4004
  %v4853 = vpack.c.b16 %v4013, %v4005
  %v4854 = vpack.c.b16 %v4014, %v4006
  %v4855 = vpack.c.b16 %v4015, %v4007
  %v4856 = vpack.c.b16 %v4016, %v4008
  %v4857 = vpack.c.b16 %v4017, %v4009
  %v4858 = vpack.c.b16 %v4018, %v4010
  %v4859 = vpack.c.b16 %v4019, %v4011
  %v4860 = vpack.c.b16 %v4028, %v4020
  %v4861 = vpack.c.b16 %v4029, %v4021
  %v4862 = vpack.c.b16 %v4030, %v4022
  %v4863 = vpack.c.b16 %v4031, %v4023
  %v4864 = vpack.c.b16 %v4032, %v4024
  %v4865 = vpack.c.b16 %v4033, %v4025
  %v4866 = vpack.c.b16 %v4034, %v4026
  %v4867 = vpack.c.b16 %v4035, %v4027
  %v4868 = vpack.c.b16 %v4044, %v4036
  %v4869 = vpack.c.b16 %v4045, %v4037
  %v4870 = vpack.c.b16 %v4046, %v4038
  %v4871 = vpack.c.b16 %v4047, %v4039
  %v4872 = vpack.c.b16 %v4048, %v4040
  %v4873 = vpack.c.b16 %v4049, %v4041
  %v4874 = vpack.c.b16 %v4050, %v4042
  %v4875 = vpack.c.b16 %v4051, %v4043
  %v4876 = vpack.c.b16 %v4060, %v4052
  %v4877 = vpack.c.b16 %v4061, %v4053
  %v4878 = vpack.c.b16 %v4062, %v4054
  %v4879 = vpack.c.b16 %v4063, %v4055
  %v4880 = vpack.c.b16 %v4064, %v4056
  %v4881 = vpack.c.b16 %v4065, %v4057
  %v4882 = vpack.c.b16 %v4066, %v4058
  %v4883 = vpack.c.b16 %v4067, %v4059
  %v4884 = vpack.c.b16 %v4076, %v4068
  %v4885 = vpack.c.b16 %v4077, %v4069
  %v4886 = vpack.c.b16 %v4078, %v4070
  %v4887 = vpack.c.b16 %v4079, %v4071
  %v4888 = vpack.c.b16 %v4080, %v4072
  %v4889 = vpack.c.b16 %v4081, %v4073
  %v4890 = vpack.c.b16 %v4082, %v4074
  %v4891 = vpack.c.b16 %v4083, %v4075
  %v4892 = vpack.c.b16 %v4092, %v4084
  %v4893 = vpack.c.b16 %v4093, %v4085
  %v4894 = vpack.c.b16 %v4094, %v4086
  %v4895 = vpack.c.b16 %v4095, %v4087
  %v4896 = vpack.c.b16 %v4096, %v4088
  %v4897 = vpack.c.b16 %v4097, %v4089
  %v4898 = vpack.c.b16 %v4098, %v4090
  %v4899 = vpack.c.b16 %v4099, %v4091
  %v4900 = vpack.c.b16 %v4108, %v4100
  %v4901 = vpack.c.b16 %v4109, %v4101
  %v4902 = vpack.c.b16 %v4110, %v4102
  %v4903 = vpack.c.b16 %v4111, %v4103
  %v4904 = vpack.c.b16 %v4112, %v4104
  %v4905 = vpack.c.b16 %v4113, %v4105
  %v4906 = vpack.c.b16 %v4114, %v4106
  %v4907 = vpack.c.b16 %v4115, %v4107
  %v4908 = vpack.c.b16 %v4124, %v4116
  %v4909 = vpack.c.b16 %v4125, %v4117
  %v4910 = vpack.c.b16 %v4126, %v4118
  %v4911 = vpack.c.b16 %v4127, %v4119
  %v4912 = vpack.c.b16 %v4128, %v4120
  %v4913 = vpack.c.b16 %v4129, %v4121
  %v4914 = vpack.c.b16 %v4130, %v4122
  %v4915 = vpack.c.b16 %v4131, %v4123
  %v4916 = vpack.c.b16 %v4140, %v4132
  %v4917 = vpack.c.b16 %v4141, %v4133
  %v4918 = vpack.c.b16 %v4142, %v4134
  %v4919 = vpack.c.b16 %v4143, %v4135
  %v4920 = vpack.c.b16 %v4144, %v4136
  %v4921 = vpack.c.b16 %v4145, %v4137
  %v4922 = vpack.c.b16 %v4146, %v4138
  %v4923 = vpack.c.b16 %v4147, %v4139
  %v4924 = vpack.c.b16 %v4156, %v4148
  %v4925 = vpack.c.b16 %v4157, %v4149
  %v4926 = vpack.c.b16 %v4158, %v4150
  %v4927 = vpack.c.b16 %v4159, %v4151
  %v4928 = vpack.c.b16 %v4160, %v4152
  %v4929 = vpack.c.b16 %v4161, %v4153
  %v4930 = vpack.c.b16 %v4162, %v4154
  %v4931 = vpack.c.b16 %v4163, %v4155
  %v4932 = vpack.c.b16 %v4172, %v4164
  %v4933 = vpack.c.b16 %v4173, %v4165
  %v4934 = vpack.c.b16 %v4174, %v4166
  %v4935 = vpack.c.b16 %v4175, %v4167
  %v4936 = vpack.c.b16 %v4176, %v4168
  %v4937 = vpack.c.b16 %v4177, %v4169
  %v4938 = vpack.c.b16 %v4178, %v4170
  %v4939 = vpack.c.b16 %v4179, %v4171
  %v4940 = vpack.c.b16 %v4188, %v4180
  %v4941 = vpack.c.b16 %v4189, %v4181
  %v4942 = vpack.c.b16 %v4190, %v4182
  %v4943 = vpack.c.b16 %v4191, %v4183
  %v4944 = vpack.c.b16 %v4192, %v4184
  %v4945 = vpack.c.b16 %v4193, %v4185
  %v4946 = vpack.c.b16 %v4194, %v4186
  %v4947 = vpack.c.b16 %v4195, %v4187
  %v4948 = vpack.c.b16 %v4204, %v4196
  %v4949 = vpack.c.b16 %v4205, %v4197
  %v4950 = vpack.c.b16 %v4206, %v4198
  %v4951 = vpack.c.b16 %v4207, %v4199
  %v4952 = vpack.c.b16 %v4208, %v4200
  %v4953 = vpack.c.b16 %v4209, %v4201
  %v4954 = vpack.c.b16 %v4210, %v4202
  %v4955 = vpack.c.b16 %v4211, %v4203
  %v4956 = vpack.c.b16 %v4220, %v4212
  %v4957 = vpack.c.b16 %v4221, %v4213
  %v4958 = vpack.c.b16 %v4222, %v4214
  %v4959 = vpack.c.b16 %v4223, %v4215
  %v4960 = vpack.c.b16 %v4224, %v4216
  %v4961 = vpack.c.b16 %v4225, %v4217
  %v4962 = vpack.c.b16 %v4226, %v4218
  %v4963 = vpack.c.b16 %v4227, %v4219
  %v4964 = vpack.c.b16 %v4236, %v4228
  %v4965 = vpack.c.b16 %v4237, %v4229
  %v4966 = vpack.c.b16 %v4238, %v4230
  %v4967 = vpack.c.b16 %v4239, %v4231
  %v4968 = vpack.c.b16 %v4240, %v4232
  %v4969 = vpack.c.b16 %v4241, %v4233
  %v4970 = vpack.c.b16 %v4242, %v4234
  %v4971 = vpack.c.b16 %v4243, %v4235
  %v4972 = vpack.c.b16 %v4252, %v4244
  %v4973 = vpack.c.b16 %v4253, %v4245
  %v4974 = vpack.c.b16 %v4254, %v4246
  %v4975 = vpack.c.b16 %v4255, %v4247
  %v4976 = vpack.c.b16 %v4256, %v4248
  %v4977 = vpack.c.b16 %v4257, %v4249
  %v4978 = vpack.c.b16 %v4258, %v4250
  %v4979 = vpack.c.b16 %v4259, %v4251
  %v4980 = vpack.c.b16 %v4268, %v4260
  %v4981 = vpack.c.b16 %v4269, %v4261
  %v4982 = vpack.c.b16 %v4270, %v4262
  %v4983 = vpack.c.b16 %v4271, %v4263
  %v4984 = vpack.c.b16 %v4272, %v4264
  %v4985 = vpack.c.b16 %v4273, %v4265
  %v4986 = vpack.c.b16 %v4274, %v4266
  %v4987 = vpack.c.b16 %v4275, %v4267
  %v4988 = vpack.c.b16 %v4284, %v4276
  %v4989 = vpack.c.b16 %v4285, %v4277
  %v4990 = vpack.c.b16 %v4286, %v4278
  %v4991 = vpack.c.b16 %v4287, %v4279
  %v4992 = vpack.c.b16 %v4288, %v4280
  %v4993 = vpack.c.b16 %v4289, %v4281
  %v4994 = vpack.c.b16 %v4290, %v4282
  %v4995 = vpack.c.b16 %v4291, %v4283
  %v4996 = vpack.c.b16 %v4300, %v4292
  %v4997 = vpack.c.b16 %v4301, %v4293
  %v4998 = vpack.c.b16 %v4302, %v4294
  %v4999 = vpack.c.b16 %v4303, %v4295
  %v5000 = vpack.c.b16 %v4304, %v4296
  %v5001 = vpack.c.b16 %v4305, %v4297
  %v5002 = vpack.c.b16 %v4306, %v4298
  %v5003 = vpack.c.b16 %v4307, %v4299
  %v5004 = vpack.c.b16 %v4316, %v4308
  %v5005 = vpack.c.b16 %v4317, %v4309
  %v5006 = vpack.c.b16 %v4318, %v4310
  %v5007 = vpack.c.b16 %v4319, %v4311
  %v5008 = vpack.c.b16 %v4320, %v4312
  %v5009 = vpack.c.b16 %v4321, %v4313
  %v5010 = vpack.c.b16 %v4322, %v4314
  %v5011 = vpack.c.b16 %v4323, %v4315
  %v5012 = vpack.c.b16 %v4332, %v4324
  %v5013 = vpack.c.b16 %v4333, %v4325
  %v5014 = vpack.c.b16 %v4334, %v4326
  %v5015 = vpack.c.b16 %v4335, %v4327
  %v5016 = vpack.c.b16 %v4336, %v4328
  %v5017 = vpack.c.b16 %v4337, %v4329
  %v5018 = vpack.c.b16 %v4338, %v4330
  %v5019 = vpack.c.b16 %v4339, %v4331
  %v5020 = vpack.c.b16 %v4348, %v4340
  %v5021 = vpack.c.b16 %v4349, %v4341
  %v5022 = vpack.c.b16 %v4350, %v4342
  %v5023 = vpack.c.b16 %v4351, %v4343
  %v5024 = vpack.c.b16 %v4352, %v4344
  %v5025 = vpack.c.b16 %v4353, %v4345
  %v5026 = vpack.c.b16 %v4354, %v4346
  %v5027 = vpack.c.b16 %v4355, %v4347
  %v5028 = vpack.c.b16 %v4364, %v4356
  %v5029 = vpack.c.b16 %v4365, %v4357
  %v5030 = vpack.c.b16 %v4366, %v4358
  %v5031 = vpack.c.b16 %v4367, %v4359
  %v5032 = vpack.c.b16 %v4368, %v4360
  %v5033 = vpack.c.b16 %v4369, %v4361
  %v5034 = vpack.c.b16 %v4370, %v4362
  %v5035 = vpack.c.b16 %v4371, %v4363
  %v5036 = vpack.c.b16 %v4380, %v4372
  %v5037 = vpack.c.b16 %v4381, %v4373
  %v5038 = vpack.c.b16 %v4382, %v4374
  %v5039 = vpack.c.b16 %v4383, %v4375
  %v5040 = vpack.c.b16 %v4384, %v4376
  %v5041 = vpack.c.b16 %v4385, %v4377
  %v5042 = vpack.c.b16 %v4386, %v4378
  %v5043 = vpack.c.b16 %v4387, %v4379
  %v5044 = vpack.c.b16 %v4396, %v4388
  %v5045 = vpack.c.b16 %v4397, %v4389
  %v5046 = vpack.c.b16 %v4398, %v4390
  %v5047 = vpack.c.b16 %v4399, %v4391
  %v5048 = vpack.c.b16 %v4400, %v4392
  %v5049 = vpack.c.b16 %v4401, %v4393
  %v5050 = vpack.c.b16 %v4402, %v4394
  %v5051 = vpack.c.b16 %v4403, %v4395
  %v5052 = vpack.c.b16 %v4412, %v4404
  %v5053 = vpack.c.b16 %v4413, %v4405
  %v5054 = vpack.c.b16 %v4414, %v4406
  %v5055 = vpack.c.b16 %v4415, %v4407
  %v5056 = vpack.c.b16 %v4416, %v4408
  %v5057 = vpack.c.b16 %v4417, %v4409
  %v5058 = vpack.c.b16 %v4418, %v4410
  %v5059 = vpack.c.b16 %v4419, %v4411
  %v5060 = vpack.c.b16 %v4428, %v4420
  %v5061 = vpack.c.b16 %v4429, %v4421
  %v5062 = vpack.c.b16 %v4430, %v4422
  %v5063 = vpack.c.b16 %v4431, %v4423
  %v5064 = vpack.c.b16 %v4432, %v4424
  %v5065 = vpack.c.b16 %v4433, %v4425
  %v5066 = vpack.c.b16 %v4434, %v4426
  %v5067 = vpack.c.b16 %v4435, %v4427
  %v5068 = vpack.c.b16 %v4444, %v4436
  %v5069 = vpack.c.b16 %v4445, %v4437
  %v5070 = vpack.c.b16 %v4446, %v4438
  %v5071 = vpack.c.b16 %v4447, %v4439
  %v5072 = vpack.c.b16 %v4448, %v4440
  %v5073 = vpack.c.b16 %v4449, %v4441
  %v5074 = vpack.c.b16 %v4450, %v4442
  %v5075 = vpack.c.b16 %v4451, %v4443
  %v5076 = vpack.c.b16 %v4460, %v4452
  %v5077 = vpack.c.b16 %v4461, %v4453
  %v5078 = vpack.c.b16 %v4462, %v4454
  %v5079 = vpack.c.b16 %v4463, %v4455
  %v5080 = vpack.c.b16 %v4464, %v4456
  %v5081 = vpack.c.b16 %v4465, %v4457
  %v5082 = vpack.c.b16 %v4466, %v4458
  %v5083 = vpack.c.b16 %v4467, %v4459
  %v5084 = vpack.c.b16 %v4476, %v4468
  %v5085 = vpack.c.b16 %v4477, %v4469
  %v5086 = vpack.c.b16 %v4478, %v4470
  %v5087 = vpack.c.b16 %v4479, %v4471
  %v5088 = vpack.c.b16 %v4480, %v4472
  %v5089 = vpack.c.b16 %v4481, %v4473
  %v5090 = vpack.c.b16 %v4482, %v4474
  %v5091 = vpack.c.b16 %v4483, %v4475
  %v5092 = vpack.c.b16 %v4492, %v4484
  %v5093 = vpack.c.b16 %v4493, %v4485
  %v5094 = vpack.c.b16 %v4494, %v4486
  %v5095 = vpack.c.b16 %v4495, %v4487
  %v5096 = vpack.c.b16 %v4496, %v4488
  %v5097 = vpack.c.b16 %v4497, %v4489
  %v5098 = vpack.c.b16 %v4498, %v4490
  %v5099 = vpack.c.b16 %v4499, %v4491
  %v5100 = vpack.c.b16 %v4508, %v4500
  %v5101 = vpack.c.b16 %v4509, %v4501
  %v5102 = vpack.c.b16 %v4510, %v4502
  %v5103 = vpack.c.b16 %v4511, %v4503
  %v5104 = vpack.c.b16 %v4512, %v4504
  %v5105 = vpack.c.b16 %v4513, %v4505
  %v5106 = vpack.c.b16 %v4514, %v4506
  %v5107 = vpack.c.b16 %v4515, %v4507
  %v5108 = vpack.c.b16 %v4524, %v4516
  %v5109 = vpack.c.b16 %v4525, %v4517
  %v5110 = vpack.c.b16 %v4526, %v4518
  %v5111 = vpack.c.b16 %v4527, %v4519
  %v5112 = vpack.c.b16 %v4528, %v4520
  %v5113 = vpack.c.b16 %v4529, %v4521
  %v5114 = vpack.c.b16 %v4530, %v4522
  %v5115 = vpack.c.b16 %v4531, %v4523
  %v5116 = vpack.c.b16 %v4540, %v4532
  %v5117 = vpack.c.b16 %v4541, %v4533
  %v5118 = vpack.c.b16 %v4542, %v4534
  %v5119 = vpack.c.b16 %v4543, %v4535
  %v5120 = vpack.c.b16 %v4544, %v4536
  %v5121 = vpack.c.b16 %v4545, %v4537
  %v5122 = vpack.c.b16 %v4546, %v4538
  %v5123 = vpack.c.b16 %v4547, %v4539
  %v5124 = vpack.c.b16 %v4556, %v4548
  %v5125 = vpack.c.b16 %v4557, %v4549
  %v5126 = vpack.c.b16 %v4558, %v4550
  %v5127 = vpack.c.b16 %v4559, %v4551
  %v5128 = vpack.c.b16 %v4560, %v4552
  %v5129 = vpack.c.b16 %v4561, %v4553
  %v5130 = vpack.c.b16 %v4562, %v4554
  %v5131 = vpack.c.b16 %v4563, %v4555
  %v5132 = vpack.c.b16 %v4572, %v4564
  %v5133 = vpack.c.b16 %v4573, %v4565
  %v5134 = vpack.c.b16 %v4574, %v4566
  %v5135 = vpack.c.b16 %v4575, %v4567
  %v5136 = vpack.c.b16 %v4576, %v4568
  %v5137 = vpack.c.b16 %v4577, %v4569
  %v5138 = vpack.c.b16 %v4578, %v4570
  %v5139 = vpack.c.b16 %v4579, %v4571
  %v5140 = vpack.c.b16 %v4588, %v4580
  %v5141 = vpack.c.b16 %v4589, %v4581
  %v5142 = vpack.c.b16 %v4590, %v4582
  %v5143 = vpack.c.b16 %v4591, %v4583
  %v5144 = vpack.c.b16 %v4592, %v4584
  %v5145 = vpack.c.b16 %v4593, %v4585
  %v5146 = vpack.c.b16 %v4594, %v4586
  %v5147 = vpack.c.b16 %v4595, %v4587
  %v5148 = vpack.c.b16 %v4604, %v4596
  %v5149 = vpack.c.b16 %v4605, %v4597
  %v5150 = vpack.c.b16 %v4606, %v4598
  %v5151 = vpack.c.b16 %v4607, %v4599
  %v5152 = vpack.c.b16 %v4608, %v4600
  %v5153 = vpack.c.b16 %v4609, %v4601
  %v5154 = vpack.c.b16 %v4610, %v4602
  %v5155 = vpack.c.b16 %v4611, %v4603
  %v5156 = vpack.c.b16 %v4620, %v4612
  %v5157 = vpack.c.b16 %v4621, %v4613
  %v5158 = vpack.c.b16 %v4622, %v4614
  %v5159 = vpack.c.b16 %v4623, %v4615
  %v5160 = vpack.c.b16 %v4624, %v4616
  %v5161 = vpack.c.b16 %v4625, %v4617
  %v5162 = vpack.c.b16 %v4626, %v4618
  %v5163 = vpack.c.b16 %v4627, %v4619
  %v5164 = vpack.c.b16 %v4636, %v4628
  %v5165 = vpack.c.b16 %v4637, %v4629
  %v5166 = vpack.c.b16 %v4638, %v4630
  %v5167 = vpack.c.b16 %v4639, %v4631
  %v5168 = vpack.c.b16 %v4640, %v4632
  %v5169 = vpack.c.b16 %v4641, %v4633
  %v5170 = vpack.c.b16 %v4642, %v4634
  %v5171 = vpack.c.b16 %v4643, %v4635
  %v5172 = vpack.c.b16 %v4652, %v4644
  %v5173 = vpack.c.b16 %v4653, %v4645
  %v5174 = vpack.c.b16 %v4654, %v4646
  %v5175 = vpack.c.b16 %v4655, %v4647
  %v5176 = vpack.c.b16 %v4656, %v4648
  %v5177 = vpack.c.b16 %v4657, %v4649
  %v5178 = vpack.c.b16 %v4658, %v4650
  %v5179 = vpack.c.b16 %v4659, %v4651
  %v5180 = vpack.c.b16 %v4668, %v4660
  %v5181 = vpack.c.b16 %v4669, %v4661
  %v5182 = vpack.c.b16 %v4670, %v4662
  %v5183 = vpack.c.b16 %v4671, %v4663
  %v5184 = vpack.c.b16 %v4672, %v4664
  %v5185 = vpack.c.b16 %v4673, %v4665
  %v5186 = vpack.c.b16 %v4674, %v4666
  %v5187 = vpack.c.b16 %v4675, %v4667
  %5700 = vmatprep.subr.bf16.mxu0 %v4677
  %5701 = vmatpush1.bf16.msra.mxu0 %v4676
  %5702 = vmatprep.subr.bf16.mxu0 %v4685
  %5703 = vmatpush1.bf16.msra.mxu0 %v4684
  %5704 = vmatprep.subr.bf16.mxu0 %v4693
  %5705 = vmatpush1.bf16.msra.mxu0 %v4692
  %5706 = vmatprep.subr.bf16.mxu0 %v4701
  %5707 = vmatpush1.bf16.msra.mxu0 %v4700
  %5708 = vmatprep.subr.bf16.mxu0 %v4709
  %5709 = vmatpush1.bf16.msra.mxu0 %v4708
  %5710 = vmatprep.subr.bf16.mxu0 %v4717
  %5711 = vmatpush1.bf16.msra.mxu0 %v4716
  %5712 = vmatprep.subr.bf16.mxu0 %v4725
  %5713 = vmatpush1.bf16.msra.mxu0 %v4724
  %5714 = vmatprep.subr.bf16.mxu0 %v4733
  %5715 = vmatpush1.bf16.msra.mxu0 %v4732
  %5716 = vmatprep.subr.bf16.mxu0 %v4741
  %5717 = vmatpush1.bf16.msra.mxu0 %v4740
  %5718 = vmatprep.subr.bf16.mxu0 %v4749
  %5719 = vmatpush1.bf16.msra.mxu0 %v4748
  %5720 = vmatprep.subr.bf16.mxu0 %v4757
  %5721 = vmatpush1.bf16.msra.mxu0 %v4756
  %5722 = vmatprep.subr.bf16.mxu0 %v4765
  %5723 = vmatpush1.bf16.msra.mxu0 %v4764
  %5724 = vmatprep.subr.bf16.mxu0 %v4773
  %5725 = vmatpush1.bf16.msra.mxu0 %v4772
  %5726 = vmatprep.subr.bf16.mxu0 %v4781
  %5727 = vmatpush1.bf16.msra.mxu0 %v4780
  %5728 = vmatprep.subr.bf16.mxu0 %v4789
  %5729 = vmatpush1.bf16.msra.mxu0 %v4788
  %5730 = vmatprep.subr.bf16.mxu0 %v4797
  %5731 = vmatpush1.bf16.msra.mxu0 %v4796
  %5732 = vmatprep.mubr.bf16.mxu0 %v2621
  %5733 = vmatmul.mubr.bf16.gmra.mrb[0].mxu0 %v2620
  %v5734 = vpop.f32.mrb[0].mxu0
  %v5735 = vadd.f32 0.0, %v5734
  %v5736 = vpop.f32.mrb[0].mxu0
  %v5737 = vadd.f32 0.0, %v5736
  %v5738 = vpop.f32.mrb[0].mxu0
  %v5739 = vpop.f32.mrb[0].mxu0
  %5740 = vdwg.mxu0
  %5741 = vmatprep.subr.bf16.mxu0 %v4805
  %5742 = vmatpush1.bf16.msra.mxu0 %v4804
  %5743 = vmatprep.subr.bf16.mxu0 %v4813
  %5744 = vmatpush1.bf16.msra.mxu0 %v4812
  %5745 = vmatprep.subr.bf16.mxu0 %v4821
  %5746 = vmatpush1.bf16.msra.mxu0 %v4820
  %5747 = vmatprep.subr.bf16.mxu0 %v4829
  %5748 = vmatpush1.bf16.msra.mxu0 %v4828
  %5749 = vmatprep.subr.bf16.mxu0 %v4837
  %5750 = vmatpush1.bf16.msra.mxu0 %v4836
  %5751 = vmatprep.subr.bf16.mxu0 %v4845
  %5752 = vmatpush1.bf16.msra.mxu0 %v4844
  %5753 = vmatprep.subr.bf16.mxu0 %v4853
  %5754 = vmatpush1.bf16.msra.mxu0 %v4852
  %5755 = vmatprep.subr.bf16.mxu0 %v4861
  %5756 = vmatpush1.bf16.msra.mxu0 %v4860
  %5757 = vmatprep.subr.bf16.mxu0 %v4869
  %5758 = vmatpush1.bf16.msra.mxu0 %v4868
  %5759 = vmatprep.subr.bf16.mxu0 %v4877
  %5760 = vmatpush1.bf16.msra.mxu0 %v4876
  %5761 = vmatprep.subr.bf16.mxu0 %v4885
  %5762 = vmatpush1.bf16.msra.mxu0 %v4884
  %5763 = vmatprep.subr.bf16.mxu0 %v4893
  %5764 = vmatpush1.bf16.msra.mxu0 %v4892
  %5765 = vmatprep.subr.bf16.mxu0 %v4901
  %5766 = vmatpush1.bf16.msra.mxu0 %v4900
  %5767 = vmatprep.subr.bf16.mxu0 %v4909
  %5768 = vmatpush1.bf16.msra.mxu0 %v4908
  %5769 = vmatprep.subr.bf16.mxu0 %v4917
  %5770 = vmatpush1.bf16.msra.mxu0 %v4916
  %5771 = vmatprep.subr.bf16.mxu0 %v4925
  %5772 = vmatpush1.bf16.msra.mxu0 %v4924
  %5773 = vmatprep.mubr.bf16.mxu0 %v2623
  %5774 = vmatmul.mubr.bf16.gmra.mrb[0].mxu0 %v2622
  %v5775 = vpop.f32.mrb[0].mxu0
  %v5776 = vadd.f32 %v5735, %v5775
  %v5777 = vpop.f32.mrb[0].mxu0
  %v5778 = vadd.f32 %v5737, %v5777
  %v5779 = vpop.f32.mrb[0].mxu0
  %v5780 = vpop.f32.mrb[0].mxu0
  %5781 = vdwg.mxu0
  %5782 = vmatprep.subr.bf16.mxu0 %v4933
  %5783 = vmatpush1.bf16.msra.mxu0 %v4932
  %5784 = vmatprep.subr.bf16.mxu0 %v4941
  %5785 = vmatpush1.bf16.msra.mxu0 %v4940
  %5786 = vmatprep.subr.bf16.mxu0 %v4949
  %5787 = vmatpush1.bf16.msra.mxu0 %v4948
  %5788 = vmatprep.subr.bf16.mxu0 %v4957
  %5789 = vmatpush1.bf16.msra.mxu0 %v4956
  %5790 = vmatprep.subr.bf16.mxu0 %v4965
  %5791 = vmatpush1.bf16.msra.mxu0 %v4964
  %5792 = vmatprep.subr.bf16.mxu0 %v4973
  %5793 = vmatpush1.bf16.msra.mxu0 %v4972
  %5794 = vmatprep.subr.bf16.mxu0 %v4981
  %5795 = vmatpush1.bf16.msra.mxu0 %v4980
  %5796 = vmatprep.subr.bf16.mxu0 %v4989
  %5797 = vmatpush1.bf16.msra.mxu0 %v4988
  %5798 = vmatprep.subr.bf16.mxu0 %v4997
  %5799 = vmatpush1.bf16.msra.mxu0 %v4996
  %5800 = vmatprep.subr.bf16.mxu0 %v5005
  %5801 = vmatpush1.bf16.msra.mxu0 %v5004
  %5802 = vmatprep.subr.bf16.mxu0 %v5013
  %5803 = vmatpush1.bf16.msra.mxu0 %v5012
  %5804 = vmatprep.subr.bf16.mxu0 %v5021
  %5805 = vmatpush1.bf16.msra.mxu0 %v5020
  %5806 = vmatprep.subr.bf16.mxu0 %v5029
  %5807 = vmatpush1.bf16.msra.mxu0 %v5028
  %5808 = vmatprep.subr.bf16.mxu0 %v5037
  %5809 = vmatpush1.bf16.msra.mxu0 %v5036
  %5810 = vmatprep.subr.bf16.mxu0 %v5045
  %5811 = vmatpush1.bf16.msra.mxu0 %v5044
  %5812 = vmatprep.subr.bf16.mxu0 %v5053
  %5813 = vmatpush1.bf16.msra.mxu0 %v5052
  %5814 = vmatprep.mubr.bf16.mxu0 %v2625
  %5815 = vmatmul.mubr.bf16.gmra.mrb[0].mxu0 %v2624
  %v5816 = vpop.f32.mrb[0].mxu0
  %v5817 = vadd.f32 %v5776, %v5816
  %v5818 = vpop.f32.mrb[0].mxu0
  %v5819 = vadd.f32 %v5778, %v5818
  %v5820 = vpop.f32.mrb[0].mxu0
  %v5821 = vpop.f32.mrb[0].mxu0
  %5822 = vdwg.mxu0
  %5823 = vmatprep.subr.bf16.mxu0 %v5061
  %5824 = vmatpush1.bf16.msra.mxu0 %v5060
  %5825 = vmatprep.subr.bf16.mxu0 %v5069
  %5826 = vmatpush1.bf16.msra.mxu0 %v5068
  %5827 = vmatprep.subr.bf16.mxu0 %v5077
  %5828 = vmatpush1.bf16.msra.mxu0 %v5076
  %5829 = vmatprep.subr.bf16.mxu0 %v5085
  %5830 = vmatpush1.bf16.msra.mxu0 %v5084
  %5831 = vmatprep.subr.bf16.mxu0 %v5093
  %5832 = vmatpush1.bf16.msra.mxu0 %v5092
  %5833 = vmatprep.subr.bf16.mxu0 %v5101
  %5834 = vmatpush1.bf16.msra.mxu0 %v5100
  %5835 = vmatprep.subr.bf16.mxu0 %v5109
  %5836 = vmatpush1.bf16.msra.mxu0 %v5108
  %5837 = vmatprep.subr.bf16.mxu0 %v5117
  %5838 = vmatpush1.bf16.msra.mxu0 %v5116
  %5839 = vmatprep.subr.bf16.mxu0 %v5125
  %5840 = vmatpush1.bf16.msra.mxu0 %v5124
  %5841 = vmatprep.subr.bf16.mxu0 %v5133
  %5842 = vmatpush1.bf16.msra.mxu0 %v5132
  %5843 = vmatprep.subr.bf16.mxu0 %v5141
  %5844 = vmatpush1.bf16.msra.mxu0 %v5140
  %5845 = vmatprep.subr.bf16.mxu0 %v5149
  %5846 = vmatpush1.bf16.msra.mxu0 %v5148
  %5847 = vmatprep.subr.bf16.mxu0 %v5157
  %5848 = vmatpush1.bf16.msra.mxu0 %v5156
  %5849 = vmatprep.subr.bf16.mxu0 %v5165
  %5850 = vmatpush1.bf16.msra.mxu0 %v5164
  %5851 = vmatprep.subr.bf16.mxu0 %v5173
  %5852 = vmatpush1.bf16.msra.mxu0 %v5172
  %5853 = vmatprep.subr.bf16.mxu0 %v5181
  %5854 = vmatpush1.bf16.msra.mxu0 %v5180
  %5855 = vmatprep.mubr.bf16.mxu0 %v2627
  %5856 = vmatmul.mubr.bf16.gmra.mrb[0].mxu0 %v2626
  %v5857 = vpop.f32.mrb[0].mxu0
  %v5858 = vadd.f32 %v5817, %v5857
  %v5859 = vpop.f32.mrb[0].mxu0
  %v5860 = vadd.f32 %v5819, %v5859
  %v5861 = vpop.f32.mrb[0].mxu0
  %v5862 = vpop.f32.mrb[0].mxu0
  %5863 = vdwg.mxu0
  %5864 = vmatprep.subr.bf16.mxu0 %v4679
  %5865 = vmatpush1.bf16.msra.mxu0 %v4678
  %5866 = vmatprep.subr.bf16.mxu0 %v4687
  %5867 = vmatpush1.bf16.msra.mxu0 %v4686
  %5868 = vmatprep.subr.bf16.mxu0 %v4695
  %5869 = vmatpush1.bf16.msra.mxu0 %v4694
  %5870 = vmatprep.subr.bf16.mxu0 %v4703
  %5871 = vmatpush1.bf16.msra.mxu0 %v4702
  %5872 = vmatprep.subr.bf16.mxu0 %v4711
  %5873 = vmatpush1.bf16.msra.mxu0 %v4710
  %5874 = vmatprep.subr.bf16.mxu0 %v4719
  %5875 = vmatpush1.bf16.msra.mxu0 %v4718
  %5876 = vmatprep.subr.bf16.mxu0 %v4727
  %5877 = vmatpush1.bf16.msra.mxu0 %v4726
  %5878 = vmatprep.subr.bf16.mxu0 %v4735
  %5879 = vmatpush1.bf16.msra.mxu0 %v4734
  %5880 = vmatprep.subr.bf16.mxu0 %v4743
  %5881 = vmatpush1.bf16.msra.mxu0 %v4742
  %5882 = vmatprep.subr.bf16.mxu0 %v4751
  %5883 = vmatpush1.bf16.msra.mxu0 %v4750
  %5884 = vmatprep.subr.bf16.mxu0 %v4759
  %5885 = vmatpush1.bf16.msra.mxu0 %v4758
  %5886 = vmatprep.subr.bf16.mxu0 %v4767
  %5887 = vmatpush1.bf16.msra.mxu0 %v4766
  %5888 = vmatprep.subr.bf16.mxu0 %v4775
  %5889 = vmatpush1.bf16.msra.mxu0 %v4774
  %5890 = vmatprep.subr.bf16.mxu0 %v4783
  %5891 = vmatpush1.bf16.msra.mxu0 %v4782
  %5892 = vmatprep.subr.bf16.mxu0 %v4791
  %5893 = vmatpush1.bf16.msra.mxu0 %v4790
  %5894 = vmatprep.subr.bf16.mxu0 %v4799
  %5895 = vmatpush1.bf16.msra.mxu0 %v4798
  %5896 = vmatprep.mubr.bf16.mxu0 %v2621
  %5897 = vmatmul.mubr.bf16.gmra.mrb[0].mxu0 %v2620
  %v5898 = vpop.f32.mrb[0].mxu0
  %v5899 = vadd.f32 0.0, %v5898
  %v5900 = vpop.f32.mrb[0].mxu0
  %v5901 = vadd.f32 0.0, %v5900
  %v5902 = vpop.f32.mrb[0].mxu0
  %v5903 = vpop.f32.mrb[0].mxu0
  %5904 = vdwg.mxu0
  %5905 = vmatprep.subr.bf16.mxu0 %v4807
  %5906 = vmatpush1.bf16.msra.mxu0 %v4806
  %5907 = vmatprep.subr.bf16.mxu0 %v4815
  %5908 = vmatpush1.bf16.msra.mxu0 %v4814
  %5909 = vmatprep.subr.bf16.mxu0 %v4823
  %5910 = vmatpush1.bf16.msra.mxu0 %v4822
  %5911 = vmatprep.subr.bf16.mxu0 %v4831
  %5912 = vmatpush1.bf16.msra.mxu0 %v4830
  %5913 = vmatprep.subr.bf16.mxu0 %v4839
  %5914 = vmatpush1.bf16.msra.mxu0 %v4838
  %5915 = vmatprep.subr.bf16.mxu0 %v4847
  %5916 = vmatpush1.bf16.msra.mxu0 %v4846
  %5917 = vmatprep.subr.bf16.mxu0 %v4855
  %5918 = vmatpush1.bf16.msra.mxu0 %v4854
  %5919 = vmatprep.subr.bf16.mxu0 %v4863
  %5920 = vmatpush1.bf16.msra.mxu0 %v4862
  %5921 = vmatprep.subr.bf16.mxu0 %v4871
  %5922 = vmatpush1.bf16.msra.mxu0 %v4870
  %5923 = vmatprep.subr.bf16.mxu0 %v4879
  %5924 = vmatpush1.bf16.msra.mxu0 %v4878
  %5925 = vmatprep.subr.bf16.mxu0 %v4887
  %5926 = vmatpush1.bf16.msra.mxu0 %v4886
  %5927 = vmatprep.subr.bf16.mxu0 %v4895
  %5928 = vmatpush1.bf16.msra.mxu0 %v4894
  %5929 = vmatprep.subr.bf16.mxu0 %v4903
  %5930 = vmatpush1.bf16.msra.mxu0 %v4902
  %5931 = vmatprep.subr.bf16.mxu0 %v4911
  %5932 = vmatpush1.bf16.msra.mxu0 %v4910
  %5933 = vmatprep.subr.bf16.mxu0 %v4919
  %5934 = vmatpush1.bf16.msra.mxu0 %v4918
  %5935 = vmatprep.subr.bf16.mxu0 %v4927
  %5936 = vmatpush1.bf16.msra.mxu0 %v4926
  %5937 = vmatprep.mubr.bf16.mxu0 %v2623
  %5938 = vmatmul.mubr.bf16.gmra.mrb[0].mxu0 %v2622
  %v5939 = vpop.f32.mrb[0].mxu0
  %v5940 = vadd.f32 %v5899, %v5939
  %v5941 = vpop.f32.mrb[0].mxu0
  %v5942 = vadd.f32 %v5901, %v5941
  %v5943 = vpop.f32.mrb[0].mxu0
  %v5944 = vpop.f32.mrb[0].mxu0
  %5945 = vdwg.mxu0
  %5946 = vmatprep.subr.bf16.mxu0 %v4935
  %5947 = vmatpush1.bf16.msra.mxu0 %v4934
  %5948 = vmatprep.subr.bf16.mxu0 %v4943
  %5949 = vmatpush1.bf16.msra.mxu0 %v4942
  %5950 = vmatprep.subr.bf16.mxu0 %v4951
  %5951 = vmatpush1.bf16.msra.mxu0 %v4950
  %5952 = vmatprep.subr.bf16.mxu0 %v4959
  %5953 = vmatpush1.bf16.msra.mxu0 %v4958
  %5954 = vmatprep.subr.bf16.mxu0 %v4967
  %5955 = vmatpush1.bf16.msra.mxu0 %v4966
  %5956 = vmatprep.subr.bf16.mxu0 %v4975
  %5957 = vmatpush1.bf16.msra.mxu0 %v4974
  %5958 = vmatprep.subr.bf16.mxu0 %v4983
  %5959 = vmatpush1.bf16.msra.mxu0 %v4982
  %5960 = vmatprep.subr.bf16.mxu0 %v4991
  %5961 = vmatpush1.bf16.msra.mxu0 %v4990
  %5962 = vmatprep.subr.bf16.mxu0 %v4999
  %5963 = vmatpush1.bf16.msra.mxu0 %v4998
  %5964 = vmatprep.subr.bf16.mxu0 %v5007
  %5965 = vmatpush1.bf16.msra.mxu0 %v5006
  %5966 = vmatprep.subr.bf16.mxu0 %v5015
  %5967 = vmatpush1.bf16.msra.mxu0 %v5014
  %5968 = vmatprep.subr.bf16.mxu0 %v5023
  %5969 = vmatpush1.bf16.msra.mxu0 %v5022
  %5970 = vmatprep.subr.bf16.mxu0 %v5031
  %5971 = vmatpush1.bf16.msra.mxu0 %v5030
  %5972 = vmatprep.subr.bf16.mxu0 %v5039
  %5973 = vmatpush1.bf16.msra.mxu0 %v5038
  %5974 = vmatprep.subr.bf16.mxu0 %v5047
  %5975 = vmatpush1.bf16.msra.mxu0 %v5046
  %5976 = vmatprep.subr.bf16.mxu0 %v5055
  %5977 = vmatpush1.bf16.msra.mxu0 %v5054
  %5978 = vmatprep.mubr.bf16.mxu0 %v2625
  %5979 = vmatmul.mubr.bf16.gmra.mrb[0].mxu0 %v2624
  %v5980 = vpop.f32.mrb[0].mxu0
  %v5981 = vadd.f32 %v5940, %v5980
  %v5982 = vpop.f32.mrb[0].mxu0
  %v5983 = vadd.f32 %v5942, %v5982
  %v5984 = vpop.f32.mrb[0].mxu0
  %v5985 = vpop.f32.mrb[0].mxu0
  %5986 = vdwg.mxu0
  %5987 = vmatprep.subr.bf16.mxu0 %v5063
  %5988 = vmatpush1.bf16.msra.mxu0 %v5062
  %5989 = vmatprep.subr.bf16.mxu0 %v5071
  %5990 = vmatpush1.bf16.msra.mxu0 %v5070
  %5991 = vmatprep.subr.bf16.mxu0 %v5079
  %5992 = vmatpush1.bf16.msra.mxu0 %v5078
  %5993 = vmatprep.subr.bf16.mxu0 %v5087
  %5994 = vmatpush1.bf16.msra.mxu0 %v5086
  %5995 = vmatprep.subr.bf16.mxu0 %v5095
  %5996 = vmatpush1.bf16.msra.mxu0 %v5094
  %5997 = vmatprep.subr.bf16.mxu0 %v5103
  %5998 = vmatpush1.bf16.msra.mxu0 %v5102
  %5999 = vmatprep.subr.bf16.mxu0 %v5111
  %6000 = vmatpush1.bf16.msra.mxu0 %v5110
  %6001 = vmatprep.subr.bf16.mxu0 %v5119
  %6002 = vmatpush1.bf16.msra.mxu0 %v5118
  %6003 = vmatprep.subr.bf16.mxu0 %v5127
  %6004 = vmatpush1.bf16.msra.mxu0 %v5126
  %6005 = vmatprep.subr.bf16.mxu0 %v5135
  %6006 = vmatpush1.bf16.msra.mxu0 %v5134
  %6007 = vmatprep.subr.bf16.mxu0 %v5143
  %6008 = vmatpush1.bf16.msra.mxu0 %v5142
  %6009 = vmatprep.subr.bf16.mxu0 %v5151
  %6010 = vmatpush1.bf16.msra.mxu0 %v5150
  %6011 = vmatprep.subr.bf16.mxu0 %v5159
  %6012 = vmatpush1.bf16.msra.mxu0 %v5158
  %6013 = vmatprep.subr.bf16.mxu0 %v5167
  %6014 = vmatpush1.bf16.msra.mxu0 %v5166
  %6015 = vmatprep.subr.bf16.mxu0 %v5175
  %6016 = vmatpush1.bf16.msra.mxu0 %v5174
  %6017 = vmatprep.subr.bf16.mxu0 %v5183
  %6018 = vmatpush1.bf16.msra.mxu0 %v5182
  %6019 = vmatprep.mubr.bf16.mxu0 %v2627
  %6020 = vmatmul.mubr.bf16.gmra.mrb[0].mxu0 %v2626
  %v6021 = vpop.f32.mrb[0].mxu0
  %v6022 = vadd.f32 %v5981, %v6021
  %v6023 = vpop.f32.mrb[0].mxu0
  %v6024 = vadd.f32 %v5983, %v6023
  %v6025 = vpop.f32.mrb[0].mxu0
  %v6026 = vpop.f32.mrb[0].mxu0
  %6027 = vdwg.mxu0
  %6028 = vmatprep.subr.bf16.mxu0 %v4681
  %6029 = vmatpush1.bf16.msra.mxu0 %v4680
  %6030 = vmatprep.subr.bf16.mxu0 %v4689
  %6031 = vmatpush1.bf16.msra.mxu0 %v4688
  %6032 = vmatprep.subr.bf16.mxu0 %v4697
  %6033 = vmatpush1.bf16.msra.mxu0 %v4696
  %6034 = vmatprep.subr.bf16.mxu0 %v4705
  %6035 = vmatpush1.bf16.msra.mxu0 %v4704
  %6036 = vmatprep.subr.bf16.mxu0 %v4713
  %6037 = vmatpush1.bf16.msra.mxu0 %v4712
  %6038 = vmatprep.subr.bf16.mxu0 %v4721
  %6039 = vmatpush1.bf16.msra.mxu0 %v4720
  %6040 = vmatprep.subr.bf16.mxu0 %v4729
  %6041 = vmatpush1.bf16.msra.mxu0 %v4728
  %6042 = vmatprep.subr.bf16.mxu0 %v4737
  %6043 = vmatpush1.bf16.msra.mxu0 %v4736
  %6044 = vmatprep.subr.bf16.mxu0 %v4745
  %6045 = vmatpush1.bf16.msra.mxu0 %v4744
  %6046 = vmatprep.subr.bf16.mxu0 %v4753
  %6047 = vmatpush1.bf16.msra.mxu0 %v4752
  %6048 = vmatprep.subr.bf16.mxu0 %v4761
  %6049 = vmatpush1.bf16.msra.mxu0 %v4760
  %6050 = vmatprep.subr.bf16.mxu0 %v4769
  %6051 = vmatpush1.bf16.msra.mxu0 %v4768
  %6052 = vmatprep.subr.bf16.mxu0 %v4777
  %6053 = vmatpush1.bf16.msra.mxu0 %v4776
  %6054 = vmatprep.subr.bf16.mxu0 %v4785
  %6055 = vmatpush1.bf16.msra.mxu0 %v4784
  %6056 = vmatprep.subr.bf16.mxu0 %v4793
  %6057 = vmatpush1.bf16.msra.mxu0 %v4792
  %6058 = vmatprep.subr.bf16.mxu0 %v4801
  %6059 = vmatpush1.bf16.msra.mxu0 %v4800
  %6060 = vmatprep.mubr.bf16.mxu0 %v2621
  %6061 = vmatmul.mubr.bf16.gmra.mrb[0].mxu0 %v2620
  %v6062 = vpop.f32.mrb[0].mxu0
  %v6063 = vadd.f32 0.0, %v6062
  %v6064 = vpop.f32.mrb[0].mxu0
  %v6065 = vadd.f32 0.0, %v6064
  %v6066 = vpop.f32.mrb[0].mxu0
  %v6067 = vpop.f32.mrb[0].mxu0
  %6068 = vdwg.mxu0
  %6069 = vmatprep.subr.bf16.mxu0 %v4809
  %6070 = vmatpush1.bf16.msra.mxu0 %v4808
  %6071 = vmatprep.subr.bf16.mxu0 %v4817
  %6072 = vmatpush1.bf16.msra.mxu0 %v4816
  %6073 = vmatprep.subr.bf16.mxu0 %v4825
  %6074 = vmatpush1.bf16.msra.mxu0 %v4824
  %6075 = vmatprep.subr.bf16.mxu0 %v4833
  %6076 = vmatpush1.bf16.msra.mxu0 %v4832
  %6077 = vmatprep.subr.bf16.mxu0 %v4841
  %6078 = vmatpush1.bf16.msra.mxu0 %v4840
  %6079 = vmatprep.subr.bf16.mxu0 %v4849
  %6080 = vmatpush1.bf16.msra.mxu0 %v4848
  %6081 = vmatprep.subr.bf16.mxu0 %v4857
  %6082 = vmatpush1.bf16.msra.mxu0 %v4856
  %6083 = vmatprep.subr.bf16.mxu0 %v4865
  %6084 = vmatpush1.bf16.msra.mxu0 %v4864
  %6085 = vmatprep.subr.bf16.mxu0 %v4873
  %6086 = vmatpush1.bf16.msra.mxu0 %v4872
  %6087 = vmatprep.subr.bf16.mxu0 %v4881
  %6088 = vmatpush1.bf16.msra.mxu0 %v4880
  %6089 = vmatprep.subr.bf16.mxu0 %v4889
  %6090 = vmatpush1.bf16.msra.mxu0 %v4888
  %6091 = vmatprep.subr.bf16.mxu0 %v4897
  %6092 = vmatpush1.bf16.msra.mxu0 %v4896
  %6093 = vmatprep.subr.bf16.mxu0 %v4905
  %6094 = vmatpush1.bf16.msra.mxu0 %v4904
  %6095 = vmatprep.subr.bf16.mxu0 %v4913
  %6096 = vmatpush1.bf16.msra.mxu0 %v4912
  %6097 = vmatprep.subr.bf16.mxu0 %v4921
  %6098 = vmatpush1.bf16.msra.mxu0 %v4920
  %6099 = vmatprep.subr.bf16.mxu0 %v4929
  %6100 = vmatpush1.bf16.msra.mxu0 %v4928
  %6101 = vmatprep.mubr.bf16.mxu0 %v2623
  %6102 = vmatmul.mubr.bf16.gmra.mrb[0].mxu0 %v2622
  %v6103 = vpop.f32.mrb[0].mxu0
  %v6104 = vadd.f32 %v6063, %v6103
  %v6105 = vpop.f32.mrb[0].mxu0
  %v6106 = vadd.f32 %v6065, %v6105
  %v6107 = vpop.f32.mrb[0].mxu0
  %v6108 = vpop.f32.mrb[0].mxu0
  %6109 = vdwg.mxu0
  %6110 = vmatprep.subr.bf16.mxu0 %v4937
  %6111 = vmatpush1.bf16.msra.mxu0 %v4936
  %6112 = vmatprep.subr.bf16.mxu0 %v4945
  %6113 = vmatpush1.bf16.msra.mxu0 %v4944
  %6114 = vmatprep.subr.bf16.mxu0 %v4953
  %6115 = vmatpush1.bf16.msra.mxu0 %v4952
  %6116 = vmatprep.subr.bf16.mxu0 %v4961
  %6117 = vmatpush1.bf16.msra.mxu0 %v4960
  %6118 = vmatprep.subr.bf16.mxu0 %v4969
  %6119 = vmatpush1.bf16.msra.mxu0 %v4968
  %6120 = vmatprep.subr.bf16.mxu0 %v4977
  %6121 = vmatpush1.bf16.msra.mxu0 %v4976
  %6122 = vmatprep.subr.bf16.mxu0 %v4985
  %6123 = vmatpush1.bf16.msra.mxu0 %v4984
  %6124 = vmatprep.subr.bf16.mxu0 %v4993
  %6125 = vmatpush1.bf16.msra.mxu0 %v4992
  %6126 = vmatprep.subr.bf16.mxu0 %v5001
  %6127 = vmatpush1.bf16.msra.mxu0 %v5000
  %6128 = vmatprep.subr.bf16.mxu0 %v5009
  %6129 = vmatpush1.bf16.msra.mxu0 %v5008
  %6130 = vmatprep.subr.bf16.mxu0 %v5017
  %6131 = vmatpush1.bf16.msra.mxu0 %v5016
  %6132 = vmatprep.subr.bf16.mxu0 %v5025
  %6133 = vmatpush1.bf16.msra.mxu0 %v5024
  %6134 = vmatprep.subr.bf16.mxu0 %v5033
  %6135 = vmatpush1.bf16.msra.mxu0 %v5032
  %6136 = vmatprep.subr.bf16.mxu0 %v5041
  %6137 = vmatpush1.bf16.msra.mxu0 %v5040
  %6138 = vmatprep.subr.bf16.mxu0 %v5049
  %6139 = vmatpush1.bf16.msra.mxu0 %v5048
  %6140 = vmatprep.subr.bf16.mxu0 %v5057
  %6141 = vmatpush1.bf16.msra.mxu0 %v5056
  %6142 = vmatprep.mubr.bf16.mxu0 %v2625
  %6143 = vmatmul.mubr.bf16.gmra.mrb[0].mxu0 %v2624
  %v6144 = vpop.f32.mrb[0].mxu0
  %v6145 = vadd.f32 %v6104, %v6144
  %v6146 = vpop.f32.mrb[0].mxu0
  %v6147 = vadd.f32 %v6106, %v6146
  %v6148 = vpop.f32.mrb[0].mxu0
  %v6149 = vpop.f32.mrb[0].mxu0
  %6150 = vdwg.mxu0
  %6151 = vmatprep.subr.bf16.mxu0 %v5065
  %6152 = vmatpush1.bf16.msra.mxu0 %v5064
  %6153 = vmatprep.subr.bf16.mxu0 %v5073
  %6154 = vmatpush1.bf16.msra.mxu0 %v5072
  %6155 = vmatprep.subr.bf16.mxu0 %v5081
  %6156 = vmatpush1.bf16.msra.mxu0 %v5080
  %6157 = vmatprep.subr.bf16.mxu0 %v5089
  %6158 = vmatpush1.bf16.msra.mxu0 %v5088
  %6159 = vmatprep.subr.bf16.mxu0 %v5097
  %6160 = vmatpush1.bf16.msra.mxu0 %v5096
  %6161 = vmatprep.subr.bf16.mxu0 %v5105
  %6162 = vmatpush1.bf16.msra.mxu0 %v5104
  %6163 = vmatprep.subr.bf16.mxu0 %v5113
  %6164 = vmatpush1.bf16.msra.mxu0 %v5112
  %6165 = vmatprep.subr.bf16.mxu0 %v5121
  %6166 = vmatpush1.bf16.msra.mxu0 %v5120
  %6167 = vmatprep.subr.bf16.mxu0 %v5129
  %6168 = vmatpush1.bf16.msra.mxu0 %v5128
  %6169 = vmatprep.subr.bf16.mxu0 %v5137
  %6170 = vmatpush1.bf16.msra.mxu0 %v5136
  %6171 = vmatprep.subr.bf16.mxu0 %v5145
  %6172 = vmatpush1.bf16.msra.mxu0 %v5144
  %6173 = vmatprep.subr.bf16.mxu0 %v5153
  %6174 = vmatpush1.bf16.msra.mxu0 %v5152
  %6175 = vmatprep.subr.bf16.mxu0 %v5161
  %6176 = vmatpush1.bf16.msra.mxu0 %v5160
  %6177 = vmatprep.subr.bf16.mxu0 %v5169
  %6178 = vmatpush1.bf16.msra.mxu0 %v5168
  %6179 = vmatprep.subr.bf16.mxu0 %v5177
  %6180 = vmatpush1.bf16.msra.mxu0 %v5176
  %6181 = vmatprep.subr.bf16.mxu0 %v5185
  %6182 = vmatpush1.bf16.msra.mxu0 %v5184
  %6183 = vmatprep.mubr.bf16.mxu0 %v2627
  %6184 = vmatmul.mubr.bf16.gmra.mrb[0].mxu0 %v2626
  %v6185 = vpop.f32.mrb[0].mxu0
  %v6186 = vadd.f32 %v6145, %v6185
  %v6187 = vpop.f32.mrb[0].mxu0
  %v6188 = vadd.f32 %v6147, %v6187
  %v6189 = vpop.f32.mrb[0].mxu0
  %v6190 = vpop.f32.mrb[0].mxu0
  %6191 = vdwg.mxu0
  %6192 = vmatprep.subr.bf16.mxu0 %v4683
  %6193 = vmatpush1.bf16.msra.mxu0 %v4682
  %6194 = vmatprep.subr.bf16.mxu0 %v4691
  %6195 = vmatpush1.bf16.msra.mxu0 %v4690
  %6196 = vmatprep.subr.bf16.mxu0 %v4699
  %6197 = vmatpush1.bf16.msra.mxu0 %v4698
  %6198 = vmatprep.subr.bf16.mxu0 %v4707
  %6199 = vmatpush1.bf16.msra.mxu0 %v4706
  %6200 = vmatprep.subr.bf16.mxu0 %v4715
  %6201 = vmatpush1.bf16.msra.mxu0 %v4714
  %6202 = vmatprep.subr.bf16.mxu0 %v4723
  %6203 = vmatpush1.bf16.msra.mxu0 %v4722
  %6204 = vmatprep.subr.bf16.mxu0 %v4731
  %6205 = vmatpush1.bf16.msra.mxu0 %v4730
  %6206 = vmatprep.subr.bf16.mxu0 %v4739
  %6207 = vmatpush1.bf16.msra.mxu0 %v4738
  %6208 = vmatprep.subr.bf16.mxu0 %v4747
  %6209 = vmatpush1.bf16.msra.mxu0 %v4746
  %6210 = vmatprep.subr.bf16.mxu0 %v4755
  %6211 = vmatpush1.bf16.msra.mxu0 %v4754
  %6212 = vmatprep.subr.bf16.mxu0 %v4763
  %6213 = vmatpush1.bf16.msra.mxu0 %v4762
  %6214 = vmatprep.subr.bf16.mxu0 %v4771
  %6215 = vmatpush1.bf16.msra.mxu0 %v4770
  %6216 = vmatprep.subr.bf16.mxu0 %v4779
  %6217 = vmatpush1.bf16.msra.mxu0 %v4778
  %6218 = vmatprep.subr.bf16.mxu0 %v4787
  %6219 = vmatpush1.bf16.msra.mxu0 %v4786
  %6220 = vmatprep.subr.bf16.mxu0 %v4795
  %6221 = vmatpush1.bf16.msra.mxu0 %v4794
  %6222 = vmatprep.subr.bf16.mxu0 %v4803
  %6223 = vmatpush1.bf16.msra.mxu0 %v4802
  %6224 = vmatprep.mubr.bf16.mxu0 %v2621
  %6225 = vmatmul.mubr.bf16.gmra.mrb[0].mxu0 %v2620
  %v6226 = vpop.f32.mrb[0].mxu0
  %v6227 = vadd.f32 0.0, %v6226
  %v6228 = vpop.f32.mrb[0].mxu0
  %v6229 = vadd.f32 0.0, %v6228
  %v6230 = vpop.f32.mrb[0].mxu0
  %v6231 = vpop.f32.mrb[0].mxu0
  %6232 = vdwg.mxu0
  %6233 = vmatprep.subr.bf16.mxu0 %v4811
  %6234 = vmatpush1.bf16.msra.mxu0 %v4810
  %6235 = vmatprep.subr.bf16.mxu0 %v4819
  %6236 = vmatpush1.bf16.msra.mxu0 %v4818
  %6237 = vmatprep.subr.bf16.mxu0 %v4827
  %6238 = vmatpush1.bf16.msra.mxu0 %v4826
  %6239 = vmatprep.subr.bf16.mxu0 %v4835
  %6240 = vmatpush1.bf16.msra.mxu0 %v4834
  %6241 = vmatprep.subr.bf16.mxu0 %v4843
  %6242 = vmatpush1.bf16.msra.mxu0 %v4842
  %6243 = vmatprep.subr.bf16.mxu0 %v4851
  %6244 = vmatpush1.bf16.msra.mxu0 %v4850
  %6245 = vmatprep.subr.bf16.mxu0 %v4859
  %6246 = vmatpush1.bf16.msra.mxu0 %v4858
  %6247 = vmatprep.subr.bf16.mxu0 %v4867
  %6248 = vmatpush1.bf16.msra.mxu0 %v4866
  %6249 = vmatprep.subr.bf16.mxu0 %v4875
  %6250 = vmatpush1.bf16.msra.mxu0 %v4874
  %6251 = vmatprep.subr.bf16.mxu0 %v4883
  %6252 = vmatpush1.bf16.msra.mxu0 %v4882
  %6253 = vmatprep.subr.bf16.mxu0 %v4891
  %6254 = vmatpush1.bf16.msra.mxu0 %v4890
  %6255 = vmatprep.subr.bf16.mxu0 %v4899
  %6256 = vmatpush1.bf16.msra.mxu0 %v4898
  %6257 = vmatprep.subr.bf16.mxu0 %v4907
  %6258 = vmatpush1.bf16.msra.mxu0 %v4906
  %6259 = vmatprep.subr.bf16.mxu0 %v4915
  %6260 = vmatpush1.bf16.msra.mxu0 %v4914
  %6261 = vmatprep.subr.bf16.mxu0 %v4923
  %6262 = vmatpush1.bf16.msra.mxu0 %v4922
  %6263 = vmatprep.subr.bf16.mxu0 %v4931
  %6264 = vmatpush1.bf16.msra.mxu0 %v4930
  %6265 = vmatprep.mubr.bf16.mxu0 %v2623
  %6266 = vmatmul.mubr.bf16.gmra.mrb[0].mxu0 %v2622
  %v6267 = vpop.f32.mrb[0].mxu0
  %v6268 = vadd.f32 %v6227, %v6267
  %v6269 = vpop.f32.mrb[0].mxu0
  %v6270 = vadd.f32 %v6229, %v6269
  %v6271 = vpop.f32.mrb[0].mxu0
  %v6272 = vpop.f32.mrb[0].mxu0
  %6273 = vdwg.mxu0
  %6274 = vmatprep.subr.bf16.mxu0 %v4939
  %6275 = vmatpush1.bf16.msra.mxu0 %v4938
  %6276 = vmatprep.subr.bf16.mxu0 %v4947
  %6277 = vmatpush1.bf16.msra.mxu0 %v4946
  %6278 = vmatprep.subr.bf16.mxu0 %v4955
  %6279 = vmatpush1.bf16.msra.mxu0 %v4954
  %6280 = vmatprep.subr.bf16.mxu0 %v4963
  %6281 = vmatpush1.bf16.msra.mxu0 %v4962
  %6282 = vmatprep.subr.bf16.mxu0 %v4971
  %6283 = vmatpush1.bf16.msra.mxu0 %v4970
  %6284 = vmatprep.subr.bf16.mxu0 %v4979
  %6285 = vmatpush1.bf16.msra.mxu0 %v4978
  %6286 = vmatprep.subr.bf16.mxu0 %v4987
  %6287 = vmatpush1.bf16.msra.mxu0 %v4986
  %6288 = vmatprep.subr.bf16.mxu0 %v4995
  %6289 = vmatpush1.bf16.msra.mxu0 %v4994
  %6290 = vmatprep.subr.bf16.mxu0 %v5003
  %6291 = vmatpush1.bf16.msra.mxu0 %v5002
  %6292 = vmatprep.subr.bf16.mxu0 %v5011
  %6293 = vmatpush1.bf16.msra.mxu0 %v5010
  %6294 = vmatprep.subr.bf16.mxu0 %v5019
  %6295 = vmatpush1.bf16.msra.mxu0 %v5018
  %6296 = vmatprep.subr.bf16.mxu0 %v5027
  %6297 = vmatpush1.bf16.msra.mxu0 %v5026
  %6298 = vmatprep.subr.bf16.mxu0 %v5035
  %6299 = vmatpush1.bf16.msra.mxu0 %v5034
  %6300 = vmatprep.subr.bf16.mxu0 %v5043
  %6301 = vmatpush1.bf16.msra.mxu0 %v5042
  %6302 = vmatprep.subr.bf16.mxu0 %v5051
  %6303 = vmatpush1.bf16.msra.mxu0 %v5050
  %6304 = vmatprep.subr.bf16.mxu0 %v5059
  %6305 = vmatpush1.bf16.msra.mxu0 %v5058
  %6306 = vmatprep.mubr.bf16.mxu0 %v2625
  %6307 = vmatmul.mubr.bf16.gmra.mrb[0].mxu0 %v2624
  %v6308 = vpop.f32.mrb[0].mxu0
  %v6309 = vadd.f32 %v6268, %v6308
  %v6310 = vpop.f32.mrb[0].mxu0
  %v6311 = vadd.f32 %v6270, %v6310
  %v6312 = vpop.f32.mrb[0].mxu0
  %v6313 = vpop.f32.mrb[0].mxu0
  %6314 = vdwg.mxu0
  %6315 = vmatprep.subr.bf16.mxu0 %v5067
  %6316 = vmatpush1.bf16.msra.mxu0 %v5066
  %6317 = vmatprep.subr.bf16.mxu0 %v5075
  %6318 = vmatpush1.bf16.msra.mxu0 %v5074
  %6319 = vmatprep.subr.bf16.mxu0 %v5083
  %6320 = vmatpush1.bf16.msra.mxu0 %v5082
  %6321 = vmatprep.subr.bf16.mxu0 %v5091
  %6322 = vmatpush1.bf16.msra.mxu0 %v5090
  %6323 = vmatprep.subr.bf16.mxu0 %v5099
  %6324 = vmatpush1.bf16.msra.mxu0 %v5098
  %6325 = vmatprep.subr.bf16.mxu0 %v5107
  %6326 = vmatpush1.bf16.msra.mxu0 %v5106
  %6327 = vmatprep.subr.bf16.mxu0 %v5115
  %6328 = vmatpush1.bf16.msra.mxu0 %v5114
  %6329 = vmatprep.subr.bf16.mxu0 %v5123
  %6330 = vmatpush1.bf16.msra.mxu0 %v5122
  %6331 = vmatprep.subr.bf16.mxu0 %v5131
  %6332 = vmatpush1.bf16.msra.mxu0 %v5130
  %6333 = vmatprep.subr.bf16.mxu0 %v5139
  %6334 = vmatpush1.bf16.msra.mxu0 %v5138
  %6335 = vmatprep.subr.bf16.mxu0 %v5147
  %6336 = vmatpush1.bf16.msra.mxu0 %v5146
  %6337 = vmatprep.subr.bf16.mxu0 %v5155
  %6338 = vmatpush1.bf16.msra.mxu0 %v5154
  %6339 = vmatprep.subr.bf16.mxu0 %v5163
  %6340 = vmatpush1.bf16.msra.mxu0 %v5162
  %6341 = vmatprep.subr.bf16.mxu0 %v5171
  %6342 = vmatpush1.bf16.msra.mxu0 %v5170
  %6343 = vmatprep.subr.bf16.mxu0 %v5179
  %6344 = vmatpush1.bf16.msra.mxu0 %v5178
  %6345 = vmatprep.subr.bf16.mxu0 %v5187
  %6346 = vmatpush1.bf16.msra.mxu0 %v5186
  %6347 = vmatprep.mubr.bf16.mxu0 %v2627
  %6348 = vmatmul.mubr.bf16.gmra.mrb[0].mxu0 %v2626
  %v6349 = vpop.f32.mrb[0].mxu0
  %v6350 = vadd.f32 %v6309, %v6349
  %v6351 = vpop.f32.mrb[0].mxu0
  %v6352 = vadd.f32 %v6311, %v6351
  %v6353 = vpop.f32.mrb[0].mxu0
  %v6354 = vpop.f32.mrb[0].mxu0
  %6355 = vdwg.mxu0
  %v6356 = vld [vmem:[%s13] sm:$0xff]
  %v6357 = vld [vmem:[%s14] sm:$0xff]
  %vm6358 = vcmask 1041408
  %v6359 = vsel %vm6358, %v5858, 0.0
  %v6360 = vsel %vm6358, %v5860, 0.0
  %v6361 = vadd.f32 %v6359, %v6360
  %v6362 = vsel %vm6358, %v6022, 0.0
  %v6363 = vadd.f32 %v6361, %v6362
  %v6364 = vsel %vm6358, %v6024, 0.0
  %v6365 = vadd.f32 %v6363, %v6364
  %v6366 = vsel %vm6358, %v6186, 0.0
  %v6367 = vadd.f32 %v6365, %v6366
  %v6368 = vsel %vm6358, %v6188, 0.0
  %v6369 = vadd.f32 %v6367, %v6368
  %v6370 = vsel %vm6358, %v6350, 0.0
  %v6371 = vadd.f32 %v6369, %v6370
  %v6372 = vsel %vm6358, %v6352, 0.0
  %v6373 = vadd.f32 %v6371, %v6372
  %6374 = vadd.xlane.f32.xlu0 %v6373
  %v6375 = vpop.xlane.xlu0 %6374
  %v6376 = vrcp.pop 1024.0
  %v6377 = vmul.f32 %v6375, %v6376
  %v6378 = vsub.f32 %v5858, %v6377
  %v6379 = vsub.f32 %v5860, %v6377
  %v6380 = vsub.f32 %v6022, %v6377
  %v6381 = vsub.f32 %v6024, %v6377
  %v6382 = vsub.f32 %v6186, %v6377
  %v6383 = vsub.f32 %v6188, %v6377
  %v6384 = vsub.f32 %v6350, %v6377
  %v6385 = vsub.f32 %v6352, %v6377
  %v6386 = vmul.f32 %v6378, %v6378
  %v6387 = vmul.f32 %v6379, %v6379
  %v6388 = vmul.f32 %v6380, %v6380
  %v6389 = vmul.f32 %v6381, %v6381
  %v6390 = vmul.f32 %v6382, %v6382
  %v6391 = vmul.f32 %v6383, %v6383
  %v6392 = vmul.f32 %v6384, %v6384
  %v6393 = vmul.f32 %v6385, %v6385
  %v6394 = vsel %vm6358, %v6386, 0.0
  %v6395 = vsel %vm6358, %v6387, 0.0
  %v6396 = vadd.f32 %v6394, %v6395
  %v6397 = vsel %vm6358, %v6388, 0.0
  %v6398 = vadd.f32 %v6396, %v6397
  %v6399 = vsel %vm6358, %v6389, 0.0
  %v6400 = vadd.f32 %v6398, %v6399
  %v6401 = vsel %vm6358, %v6390, 0.0
  %v6402 = vadd.f32 %v6400, %v6401
  %v6403 = vsel %vm6358, %v6391, 0.0
  %v6404 = vadd.f32 %v6402, %v6403
  %v6405 = vsel %vm6358, %v6392, 0.0
  %v6406 = vadd.f32 %v6404, %v6405
  %v6407 = vsel %vm6358, %v6393, 0.0
  %v6408 = vadd.f32 %v6406, %v6407
  %6409 = vadd.xlane.f32.xlu0 %v6408
  %v6410 = vpop.xlane.xlu0 %6409
  %v6411 = vmul.f32 %v6410, %v6376
  %v6412 = vadd.f32 %v6411, 1e-05
  %v6413 = vrsqrt.pop %v6412
  %v6414 = vmul.f32 %v6378, %v6413
  %v6415 = vmul.f32 %v6379, %v6413
  %v6416 = vmul.f32 %v6380, %v6413
  %v6417 = vmul.f32 %v6381, %v6413
  %v6418 = vmul.f32 %v6382, %v6413
  %v6419 = vmul.f32 %v6383, %v6413
  %v6420 = vmul.f32 %v6384, %v6413
  %v6421 = vmul.f32 %v6385, %v6413
  %v6423 = vlaneseq
  %v6424 = vshrl.u32 %v6423, 7
  %v6425 = vsub.s32 0, %v6424
  %v6426 = vrot.slane %v6356, %v6425
  %v6427 = vlaneseq
  %v6428 = vshrl.u32 %v6427, 7
  %v6429 = vsub.s32 1, %v6428
  %v6430 = vrot.slane %v6356, %v6429
  %v6431 = vlaneseq
  %v6432 = vshrl.u32 %v6431, 7
  %v6433 = vsub.s32 2, %v6432
  %v6434 = vrot.slane %v6356, %v6433
  %v6435 = vlaneseq
  %v6436 = vshrl.u32 %v6435, 7
  %v6437 = vsub.s32 3, %v6436
  %v6438 = vrot.slane %v6356, %v6437
  %v6439 = vlaneseq
  %v6440 = vshrl.u32 %v6439, 7
  %v6441 = vsub.s32 4, %v6440
  %v6442 = vrot.slane %v6356, %v6441
  %v6443 = vlaneseq
  %v6444 = vshrl.u32 %v6443, 7
  %v6445 = vsub.s32 5, %v6444
  %v6446 = vrot.slane %v6356, %v6445
  %v6447 = vlaneseq
  %v6448 = vshrl.u32 %v6447, 7
  %v6449 = vsub.s32 6, %v6448
  %v6450 = vrot.slane %v6356, %v6449
  %v6451 = vlaneseq
  %v6452 = vshrl.u32 %v6451, 7
  %v6453 = vsub.s32 7, %v6452
  %v6454 = vrot.slane %v6356, %v6453
  %v6463 = vmul.f32 %v6414, %v6426
  %v6464 = vmul.f32 %v6415, %v6430
  %v6465 = vmul.f32 %v6416, %v6434
  %v6466 = vmul.f32 %v6417, %v6438
  %v6467 = vmul.f32 %v6418, %v6442
  %v6468 = vmul.f32 %v6419, %v6446
  %v6469 = vmul.f32 %v6420, %v6450
  %v6470 = vmul.f32 %v6421, %v6454
  %v6472 = vlaneseq
  %v6473 = vshrl.u32 %v6472, 7
  %v6474 = vsub.s32 0, %v6473
  %v6475 = vrot.slane %v6357, %v6474
  %v6476 = vlaneseq
  %v6477 = vshrl.u32 %v6476, 7
  %v6478 = vsub.s32 1, %v6477
  %v6479 = vrot.slane %v6357, %v6478
  %v6480 = vlaneseq
  %v6481 = vshrl.u32 %v6480, 7
  %v6482 = vsub.s32 2, %v6481
  %v6483 = vrot.slane %v6357, %v6482
  %v6484 = vlaneseq
  %v6485 = vshrl.u32 %v6484, 7
  %v6486 = vsub.s32 3, %v6485
  %v6487 = vrot.slane %v6357, %v6486
  %v6488 = vlaneseq
  %v6489 = vshrl.u32 %v6488, 7
  %v6490 = vsub.s32 4, %v6489
  %v6491 = vrot.slane %v6357, %v6490
  %v6492 = vlaneseq
  %v6493 = vshrl.u32 %v6492, 7
  %v6494 = vsub.s32 5, %v6493
  %v6495 = vrot.slane %v6357, %v6494
  %v6496 = vlaneseq
  %v6497 = vshrl.u32 %v6496, 7
  %v6498 = vsub.s32 6, %v6497
  %v6499 = vrot.slane %v6357, %v6498
  %v6500 = vlaneseq
  %v6501 = vshrl.u32 %v6500, 7
  %v6502 = vsub.s32 7, %v6501
  %v6503 = vrot.slane %v6357, %v6502
  %v6512 = vadd.f32 %v6463, %v6475
  %v6513 = vadd.f32 %v6464, %v6479
  %v6514 = vadd.f32 %v6465, %v6483
  %v6515 = vadd.f32 %v6466, %v6487
  %v6516 = vadd.f32 %v6467, %v6491
  %v6517 = vadd.f32 %v6468, %v6495
  %v6518 = vadd.f32 %v6469, %v6499
  %v6519 = vadd.f32 %v6470, %v6503
  %v6520 = vmax.f32 %v6512, 0.0
  %v6521 = vmax.f32 %v6513, 0.0
  %v6522 = vmax.f32 %v6514, 0.0
  %v6523 = vmax.f32 %v6515, 0.0
  %v6524 = vmax.f32 %v6516, 0.0
  %v6525 = vmax.f32 %v6517, 0.0
  %v6526 = vmax.f32 %v6518, 0.0
  %v6527 = vmax.f32 %v6519, 0.0
  %v6528 = vpack.c.bf16 %v6520, %v6520
  %v6529 = vpack.c.bf16 %v6521, %v6521
  %v6530 = vpack.c.bf16 %v6522, %v6522
  %v6531 = vpack.c.bf16 %v6523, %v6523
  %v6532 = vpack.c.bf16 %v6524, %v6524
  %v6533 = vpack.c.bf16 %v6525, %v6525
  %v6534 = vpack.c.bf16 %v6526, %v6526
  %v6535 = vpack.c.bf16 %v6527, %v6527
  %v6536 = vld [vmem:[%s15] sm:$0xff]
  %v6537 = vld [vmem:[%s15 + $0x8] sm:$0xff]
  %v6538 = vld [vmem:[%s15 + $0x10] sm:$0xff]
  %v6539 = vld [vmem:[%s15 + $0x18] sm:$0xff]
  %v6540 = vld [vmem:[%s15 + $0x20] sm:$0xff]
  %v6541 = vld [vmem:[%s15 + $0x28] sm:$0xff]
  %v6542 = vld [vmem:[%s15 + $0x30] sm:$0xff]
  %v6543 = vld [vmem:[%s15 + $0x38] sm:$0xff]
  %v6544 = vld [vmem:[%s15 + $0x40] sm:$0xff]
  %v6545 = vld [vmem:[%s15 + $0x48] sm:$0xff]
  %v6546 = vld [vmem:[%s15 + $0x50] sm:$0xff]
  %v6547 = vld [vmem:[%s15 + $0x58] sm:$0xff]
  %v6548 = vld [vmem:[%s15 + $0x60] sm:$0xff]
  %v6549 = vld [vmem:[%s15 + $0x68] sm:$0xff]
  %v6550 = vld [vmem:[%s15 + $0x70] sm:$0xff]
  %v6551 = vld [vmem:[%s15 + $0x78] sm:$0xff]
  %v6552 = vld [vmem:[%s15 + $0x80] sm:$0xff]
  %v6553 = vld [vmem:[%s15 + $0x88] sm:$0xff]
  %v6554 = vld [vmem:[%s15 + $0x90] sm:$0xff]
  %v6555 = vld [vmem:[%s15 + $0x98] sm:$0xff]
  %v6556 = vld [vmem:[%s15 + $0xa0] sm:$0xff]
  %v6557 = vld [vmem:[%s15 + $0xa8] sm:$0xff]
  %v6558 = vld [vmem:[%s15 + $0xb0] sm:$0xff]
  %v6559 = vld [vmem:[%s15 + $0xb8] sm:$0xff]
  %v6560 = vld [vmem:[%s15 + $0xc0] sm:$0xff]
  %v6561 = vld [vmem:[%s15 + $0xc8] sm:$0xff]
  %v6562 = vld [vmem:[%s15 + $0xd0] sm:$0xff]
  %v6563 = vld [vmem:[%s15 + $0xd8] sm:$0xff]
  %v6564 = vld [vmem:[%s15 + $0xe0] sm:$0xff]
  %v6565 = vld [vmem:[%s15 + $0xe8] sm:$0xff]
  %v6566 = vld [vmem:[%s15 + $0xf0] sm:$0xff]
  %v6567 = vld [vmem:[%s15 + $0xf8] sm:$0xff]
  %v6568 = vld [vmem:[%s15 + $0x100] sm:$0xff]
  %v6569 = vld [vmem:[%s15 + $0x108] sm:$0xff]
  %v6570 = vld [vmem:[%s15 + $0x110] sm:$0xff]
  %v6571 = vld [vmem:[%s15 + $0x118] sm:$0xff]
  %v6572 = vld [vmem:[%s15 + $0x120] sm:$0xff]
  %v6573 = vld [vmem:[%s15 + $0x128] sm:$0xff]
  %v6574 = vld [vmem:[%s15 + $0x130] sm:$0xff]
  %v6575 = vld [vmem:[%s15 + $0x138] sm:$0xff]
  %v6576 = vld [vmem:[%s15 + $0x140] sm:$0xff]
  %v6577 = vld [vmem:[%s15 + $0x148] sm:$0xff]
  %v6578 = vld [vmem:[%s15 + $0x150] sm:$0xff]
  %v6579 = vld [vmem:[%s15 + $0x158] sm:$0xff]
  %v6580 = vld [vmem:[%s15 + $0x160] sm:$0xff]
  %v6581 = vld [vmem:[%s15 + $0x168] sm:$0xff]
  %v6582 = vld [vmem:[%s15 + $0x170] sm:$0xff]
  %v6583 = vld [vmem:[%s15 + $0x178] sm:$0xff]
  %v6584 = vld [vmem:[%s15 + $0x180] sm:$0xff]
  %v6585 = vld [vmem:[%s15 + $0x188] sm:$0xff]
  %v6586 = vld [vmem:[%s15 + $0x190] sm:$0xff]
  %v6587 = vld [vmem:[%s15 + $0x198] sm:$0xff]
  %v6588 = vld [vmem:[%s15 + $0x1a0] sm:$0xff]
  %v6589 = vld [vmem:[%s15 + $0x1a8] sm:$0xff]
  %v6590 = vld [vmem:[%s15 + $0x1b0] sm:$0xff]
  %v6591 = vld [vmem:[%s15 + $0x1b8] sm:$0xff]
  %v6592 = vld [vmem:[%s15 + $0x1c0] sm:$0xff]
  %v6593 = vld [vmem:[%s15 + $0x1c8] sm:$0xff]
  %v6594 = vld [vmem:[%s15 + $0x1d0] sm:$0xff]
  %v6595 = vld [vmem:[%s15 + $0x1d8] sm:$0xff]
  %v6596 = vld [vmem:[%s15 + $0x1e0] sm:$0xff]
  %v6597 = vld [vmem:[%s15 + $0x1e8] sm:$0xff]
  %v6598 = vld [vmem:[%s15 + $0x1f0] sm:$0xff]
  %v6599 = vld [vmem:[%s15 + $0x1f8] sm:$0xff]
  %v6600 = vld [vmem:[%s15 + $0x200] sm:$0xff]
  %v6601 = vld [vmem:[%s15 + $0x208] sm:$0xff]
  %v6602 = vld [vmem:[%s15 + $0x210] sm:$0xff]
  %v6603 = vld [vmem:[%s15 + $0x218] sm:$0xff]
  %v6604 = vld [vmem:[%s15 + $0x220] sm:$0xff]
  %v6605 = vld [vmem:[%s15 + $0x228] sm:$0xff]
  %v6606 = vld [vmem:[%s15 + $0x230] sm:$0xff]
  %v6607 = vld [vmem:[%s15 + $0x238] sm:$0xff]
  %v6608 = vld [vmem:[%s15 + $0x240] sm:$0xff]
  %v6609 = vld [vmem:[%s15 + $0x248] sm:$0xff]
  %v6610 = vld [vmem:[%s15 + $0x250] sm:$0xff]
  %v6611 = vld [vmem:[%s15 + $0x258] sm:$0xff]
  %v6612 = vld [vmem:[%s15 + $0x260] sm:$0xff]
  %v6613 = vld [vmem:[%s15 + $0x268] sm:$0xff]
  %v6614 = vld [vmem:[%s15 + $0x270] sm:$0xff]
  %v6615 = vld [vmem:[%s15 + $0x278] sm:$0xff]
  %v6616 = vld [vmem:[%s15 + $0x280] sm:$0xff]
  %v6617 = vld [vmem:[%s15 + $0x288] sm:$0xff]
  %v6618 = vld [vmem:[%s15 + $0x290] sm:$0xff]
  %v6619 = vld [vmem:[%s15 + $0x298] sm:$0xff]
  %v6620 = vld [vmem:[%s15 + $0x2a0] sm:$0xff]
  %v6621 = vld [vmem:[%s15 + $0x2a8] sm:$0xff]
  %v6622 = vld [vmem:[%s15 + $0x2b0] sm:$0xff]
  %v6623 = vld [vmem:[%s15 + $0x2b8] sm:$0xff]
  %v6624 = vld [vmem:[%s15 + $0x2c0] sm:$0xff]
  %v6625 = vld [vmem:[%s15 + $0x2c8] sm:$0xff]
  %v6626 = vld [vmem:[%s15 + $0x2d0] sm:$0xff]
  %v6627 = vld [vmem:[%s15 + $0x2d8] sm:$0xff]
  %v6628 = vld [vmem:[%s15 + $0x2e0] sm:$0xff]
  %v6629 = vld [vmem:[%s15 + $0x2e8] sm:$0xff]
  %v6630 = vld [vmem:[%s15 + $0x2f0] sm:$0xff]
  %v6631 = vld [vmem:[%s15 + $0x2f8] sm:$0xff]
  %v6632 = vld [vmem:[%s15 + $0x300] sm:$0xff]
  %v6633 = vld [vmem:[%s15 + $0x308] sm:$0xff]
  %v6634 = vld [vmem:[%s15 + $0x310] sm:$0xff]
  %v6635 = vld [vmem:[%s15 + $0x318] sm:$0xff]
  %v6636 = vld [vmem:[%s15 + $0x320] sm:$0xff]
  %v6637 = vld [vmem:[%s15 + $0x328] sm:$0xff]
  %v6638 = vld [vmem:[%s15 + $0x330] sm:$0xff]
  %v6639 = vld [vmem:[%s15 + $0x338] sm:$0xff]
  %v6640 = vld [vmem:[%s15 + $0x340] sm:$0xff]
  %v6641 = vld [vmem:[%s15 + $0x348] sm:$0xff]
  %v6642 = vld [vmem:[%s15 + $0x350] sm:$0xff]
  %v6643 = vld [vmem:[%s15 + $0x358] sm:$0xff]
  %v6644 = vld [vmem:[%s15 + $0x360] sm:$0xff]
  %v6645 = vld [vmem:[%s15 + $0x368] sm:$0xff]
  %v6646 = vld [vmem:[%s15 + $0x370] sm:$0xff]
  %v6647 = vld [vmem:[%s15 + $0x378] sm:$0xff]
  %v6648 = vld [vmem:[%s15 + $0x380] sm:$0xff]
  %v6649 = vld [vmem:[%s15 + $0x388] sm:$0xff]
  %v6650 = vld [vmem:[%s15 + $0x390] sm:$0xff]
  %v6651 = vld [vmem:[%s15 + $0x398] sm:$0xff]
  %v6652 = vld [vmem:[%s15 + $0x3a0] sm:$0xff]
  %v6653 = vld [vmem:[%s15 + $0x3a8] sm:$0xff]
  %v6654 = vld [vmem:[%s15 + $0x3b0] sm:$0xff]
  %v6655 = vld [vmem:[%s15 + $0x3b8] sm:$0xff]
  %v6656 = vld [vmem:[%s15 + $0x3c0] sm:$0xff]
  %v6657 = vld [vmem:[%s15 + $0x3c8] sm:$0xff]
  %v6658 = vld [vmem:[%s15 + $0x3d0] sm:$0xff]
  %v6659 = vld [vmem:[%s15 + $0x3d8] sm:$0xff]
  %v6660 = vld [vmem:[%s15 + $0x3e0] sm:$0xff]
  %v6661 = vld [vmem:[%s15 + $0x3e8] sm:$0xff]
  %v6662 = vld [vmem:[%s15 + $0x3f0] sm:$0xff]
  %v6663 = vld [vmem:[%s15 + $0x3f8] sm:$0xff]
  %v6664 = vld [vmem:[%s15 + $0x400] sm:$0xff]
  %v6665 = vld [vmem:[%s15 + $0x408] sm:$0xff]
  %v6666 = vld [vmem:[%s15 + $0x410] sm:$0xff]
  %v6667 = vld [vmem:[%s15 + $0x418] sm:$0xff]
  %v6668 = vld [vmem:[%s15 + $0x420] sm:$0xff]
  %v6669 = vld [vmem:[%s15 + $0x428] sm:$0xff]
  %v6670 = vld [vmem:[%s15 + $0x430] sm:$0xff]
  %v6671 = vld [vmem:[%s15 + $0x438] sm:$0xff]
  %v6672 = vld [vmem:[%s15 + $0x440] sm:$0xff]
  %v6673 = vld [vmem:[%s15 + $0x448] sm:$0xff]
  %v6674 = vld [vmem:[%s15 + $0x450] sm:$0xff]
  %v6675 = vld [vmem:[%s15 + $0x458] sm:$0xff]
  %v6676 = vld [vmem:[%s15 + $0x460] sm:$0xff]
  %v6677 = vld [vmem:[%s15 + $0x468] sm:$0xff]
  %v6678 = vld [vmem:[%s15 + $0x470] sm:$0xff]
  %v6679 = vld [vmem:[%s15 + $0x478] sm:$0xff]
  %v6680 = vld [vmem:[%s15 + $0x480] sm:$0xff]
  %v6681 = vld [vmem:[%s15 + $0x488] sm:$0xff]
  %v6682 = vld [vmem:[%s15 + $0x490] sm:$0xff]
  %v6683 = vld [vmem:[%s15 + $0x498] sm:$0xff]
  %v6684 = vld [vmem:[%s15 + $0x4a0] sm:$0xff]
  %v6685 = vld [vmem:[%s15 + $0x4a8] sm:$0xff]
  %v6686 = vld [vmem:[%s15 + $0x4b0] sm:$0xff]
  %v6687 = vld [vmem:[%s15 + $0x4b8] sm:$0xff]
  %v6688 = vld [vmem:[%s15 + $0x4c0] sm:$0xff]
  %v6689 = vld [vmem:[%s15 + $0x4c8] sm:$0xff]
  %v6690 = vld [vmem:[%s15 + $0x4d0] sm:$0xff]
  %v6691 = vld [vmem:[%s15 + $0x4d8] sm:$0xff]
  %v6692 = vld [vmem:[%s15 + $0x4e0] sm:$0xff]
  %v6693 = vld [vmem:[%s15 + $0x4e8] sm:$0xff]
  %v6694 = vld [vmem:[%s15 + $0x4f0] sm:$0xff]
  %v6695 = vld [vmem:[%s15 + $0x4f8] sm:$0xff]
  %v6696 = vld [vmem:[%s15 + $0x500] sm:$0xff]
  %v6697 = vld [vmem:[%s15 + $0x508] sm:$0xff]
  %v6698 = vld [vmem:[%s15 + $0x510] sm:$0xff]
  %v6699 = vld [vmem:[%s15 + $0x518] sm:$0xff]
  %v6700 = vld [vmem:[%s15 + $0x520] sm:$0xff]
  %v6701 = vld [vmem:[%s15 + $0x528] sm:$0xff]
  %v6702 = vld [vmem:[%s15 + $0x530] sm:$0xff]
  %v6703 = vld [vmem:[%s15 + $0x538] sm:$0xff]
  %v6704 = vld [vmem:[%s15 + $0x540] sm:$0xff]
  %v6705 = vld [vmem:[%s15 + $0x548] sm:$0xff]
  %v6706 = vld [vmem:[%s15 + $0x550] sm:$0xff]
  %v6707 = vld [vmem:[%s15 + $0x558] sm:$0xff]
  %v6708 = vld [vmem:[%s15 + $0x560] sm:$0xff]
  %v6709 = vld [vmem:[%s15 + $0x568] sm:$0xff]
  %v6710 = vld [vmem:[%s15 + $0x570] sm:$0xff]
  %v6711 = vld [vmem:[%s15 + $0x578] sm:$0xff]
  %v6712 = vld [vmem:[%s15 + $0x580] sm:$0xff]
  %v6713 = vld [vmem:[%s15 + $0x588] sm:$0xff]
  %v6714 = vld [vmem:[%s15 + $0x590] sm:$0xff]
  %v6715 = vld [vmem:[%s15 + $0x598] sm:$0xff]
  %v6716 = vld [vmem:[%s15 + $0x5a0] sm:$0xff]
  %v6717 = vld [vmem:[%s15 + $0x5a8] sm:$0xff]
  %v6718 = vld [vmem:[%s15 + $0x5b0] sm:$0xff]
  %v6719 = vld [vmem:[%s15 + $0x5b8] sm:$0xff]
  %v6720 = vld [vmem:[%s15 + $0x5c0] sm:$0xff]
  %v6721 = vld [vmem:[%s15 + $0x5c8] sm:$0xff]
  %v6722 = vld [vmem:[%s15 + $0x5d0] sm:$0xff]
  %v6723 = vld [vmem:[%s15 + $0x5d8] sm:$0xff]
  %v6724 = vld [vmem:[%s15 + $0x5e0] sm:$0xff]
  %v6725 = vld [vmem:[%s15 + $0x5e8] sm:$0xff]
  %v6726 = vld [vmem:[%s15 + $0x5f0] sm:$0xff]
  %v6727 = vld [vmem:[%s15 + $0x5f8] sm:$0xff]
  %v6728 = vld [vmem:[%s15 + $0x600] sm:$0xff]
  %v6729 = vld [vmem:[%s15 + $0x608] sm:$0xff]
  %v6730 = vld [vmem:[%s15 + $0x610] sm:$0xff]
  %v6731 = vld [vmem:[%s15 + $0x618] sm:$0xff]
  %v6732 = vld [vmem:[%s15 + $0x620] sm:$0xff]
  %v6733 = vld [vmem:[%s15 + $0x628] sm:$0xff]
  %v6734 = vld [vmem:[%s15 + $0x630] sm:$0xff]
  %v6735 = vld [vmem:[%s15 + $0x638] sm:$0xff]
  %v6736 = vld [vmem:[%s15 + $0x640] sm:$0xff]
  %v6737 = vld [vmem:[%s15 + $0x648] sm:$0xff]
  %v6738 = vld [vmem:[%s15 + $0x650] sm:$0xff]
  %v6739 = vld [vmem:[%s15 + $0x658] sm:$0xff]
  %v6740 = vld [vmem:[%s15 + $0x660] sm:$0xff]
  %v6741 = vld [vmem:[%s15 + $0x668] sm:$0xff]
  %v6742 = vld [vmem:[%s15 + $0x670] sm:$0xff]
  %v6743 = vld [vmem:[%s15 + $0x678] sm:$0xff]
  %v6744 = vld [vmem:[%s15 + $0x680] sm:$0xff]
  %v6745 = vld [vmem:[%s15 + $0x688] sm:$0xff]
  %v6746 = vld [vmem:[%s15 + $0x690] sm:$0xff]
  %v6747 = vld [vmem:[%s15 + $0x698] sm:$0xff]
  %v6748 = vld [vmem:[%s15 + $0x6a0] sm:$0xff]
  %v6749 = vld [vmem:[%s15 + $0x6a8] sm:$0xff]
  %v6750 = vld [vmem:[%s15 + $0x6b0] sm:$0xff]
  %v6751 = vld [vmem:[%s15 + $0x6b8] sm:$0xff]
  %v6752 = vld [vmem:[%s15 + $0x6c0] sm:$0xff]
  %v6753 = vld [vmem:[%s15 + $0x6c8] sm:$0xff]
  %v6754 = vld [vmem:[%s15 + $0x6d0] sm:$0xff]
  %v6755 = vld [vmem:[%s15 + $0x6d8] sm:$0xff]
  %v6756 = vld [vmem:[%s15 + $0x6e0] sm:$0xff]
  %v6757 = vld [vmem:[%s15 + $0x6e8] sm:$0xff]
  %v6758 = vld [vmem:[%s15 + $0x6f0] sm:$0xff]
  %v6759 = vld [vmem:[%s15 + $0x6f8] sm:$0xff]
  %v6760 = vld [vmem:[%s15 + $0x700] sm:$0xff]
  %v6761 = vld [vmem:[%s15 + $0x708] sm:$0xff]
  %v6762 = vld [vmem:[%s15 + $0x710] sm:$0xff]
  %v6763 = vld [vmem:[%s15 + $0x718] sm:$0xff]
  %v6764 = vld [vmem:[%s15 + $0x720] sm:$0xff]
  %v6765 = vld [vmem:[%s15 + $0x728] sm:$0xff]
  %v6766 = vld [vmem:[%s15 + $0x730] sm:$0xff]
  %v6767 = vld [vmem:[%s15 + $0x738] sm:$0xff]
  %v6768 = vld [vmem:[%s15 + $0x740] sm:$0xff]
  %v6769 = vld [vmem:[%s15 + $0x748] sm:$0xff]
  %v6770 = vld [vmem:[%s15 + $0x750] sm:$0xff]
  %v6771 = vld [vmem:[%s15 + $0x758] sm:$0xff]
  %v6772 = vld [vmem:[%s15 + $0x760] sm:$0xff]
  %v6773 = vld [vmem:[%s15 + $0x768] sm:$0xff]
  %v6774 = vld [vmem:[%s15 + $0x770] sm:$0xff]
  %v6775 = vld [vmem:[%s15 + $0x778] sm:$0xff]
  %v6776 = vld [vmem:[%s15 + $0x780] sm:$0xff]
  %v6777 = vld [vmem:[%s15 + $0x788] sm:$0xff]
  %v6778 = vld [vmem:[%s15 + $0x790] sm:$0xff]
  %v6779 = vld [vmem:[%s15 + $0x798] sm:$0xff]
  %v6780 = vld [vmem:[%s15 + $0x7a0] sm:$0xff]
  %v6781 = vld [vmem:[%s15 + $0x7a8] sm:$0xff]
  %v6782 = vld [vmem:[%s15 + $0x7b0] sm:$0xff]
  %v6783 = vld [vmem:[%s15 + $0x7b8] sm:$0xff]
  %v6784 = vld [vmem:[%s15 + $0x7c0] sm:$0xff]
  %v6785 = vld [vmem:[%s15 + $0x7c8] sm:$0xff]
  %v6786 = vld [vmem:[%s15 + $0x7d0] sm:$0xff]
  %v6787 = vld [vmem:[%s15 + $0x7d8] sm:$0xff]
  %v6788 = vld [vmem:[%s15 + $0x7e0] sm:$0xff]
  %v6789 = vld [vmem:[%s15 + $0x7e8] sm:$0xff]
  %v6790 = vld [vmem:[%s15 + $0x7f0] sm:$0xff]
  %v6791 = vld [vmem:[%s15 + $0x7f8] sm:$0xff]
  %v6792 = vld [vmem:[%s15 + $0x800] sm:$0xff]
  %v6793 = vld [vmem:[%s15 + $0x808] sm:$0xff]
  %v6794 = vld [vmem:[%s15 + $0x810] sm:$0xff]
  %v6795 = vld [vmem:[%s15 + $0x818] sm:$0xff]
  %v6796 = vld [vmem:[%s15 + $0x820] sm:$0xff]
  %v6797 = vld [vmem:[%s15 + $0x828] sm:$0xff]
  %v6798 = vld [vmem:[%s15 + $0x830] sm:$0xff]
  %v6799 = vld [vmem:[%s15 + $0x838] sm:$0xff]
  %v6800 = vld [vmem:[%s15 + $0x840] sm:$0xff]
  %v6801 = vld [vmem:[%s15 + $0x848] sm:$0xff]
  %v6802 = vld [vmem:[%s15 + $0x850] sm:$0xff]
  %v6803 = vld [vmem:[%s15 + $0x858] sm:$0xff]
  %v6804 = vld [vmem:[%s15 + $0x860] sm:$0xff]
  %v6805 = vld [vmem:[%s15 + $0x868] sm:$0xff]
  %v6806 = vld [vmem:[%s15 + $0x870] sm:$0xff]
  %v6807 = vld [vmem:[%s15 + $0x878] sm:$0xff]
  %v6808 = vld [vmem:[%s15 + $0x880] sm:$0xff]
  %v6809 = vld [vmem:[%s15 + $0x888] sm:$0xff]
  %v6810 = vld [vmem:[%s15 + $0x890] sm:$0xff]
  %v6811 = vld [vmem:[%s15 + $0x898] sm:$0xff]
  %v6812 = vld [vmem:[%s15 + $0x8a0] sm:$0xff]
  %v6813 = vld [vmem:[%s15 + $0x8a8] sm:$0xff]
  %v6814 = vld [vmem:[%s15 + $0x8b0] sm:$0xff]
  %v6815 = vld [vmem:[%s15 + $0x8b8] sm:$0xff]
  %v6816 = vld [vmem:[%s15 + $0x8c0] sm:$0xff]
  %v6817 = vld [vmem:[%s15 + $0x8c8] sm:$0xff]
  %v6818 = vld [vmem:[%s15 + $0x8d0] sm:$0xff]
  %v6819 = vld [vmem:[%s15 + $0x8d8] sm:$0xff]
  %v6820 = vld [vmem:[%s15 + $0x8e0] sm:$0xff]
  %v6821 = vld [vmem:[%s15 + $0x8e8] sm:$0xff]
  %v6822 = vld [vmem:[%s15 + $0x8f0] sm:$0xff]
  %v6823 = vld [vmem:[%s15 + $0x8f8] sm:$0xff]
  %v6824 = vld [vmem:[%s15 + $0x900] sm:$0xff]
  %v6825 = vld [vmem:[%s15 + $0x908] sm:$0xff]
  %v6826 = vld [vmem:[%s15 + $0x910] sm:$0xff]
  %v6827 = vld [vmem:[%s15 + $0x918] sm:$0xff]
  %v6828 = vld [vmem:[%s15 + $0x920] sm:$0xff]
  %v6829 = vld [vmem:[%s15 + $0x928] sm:$0xff]
  %v6830 = vld [vmem:[%s15 + $0x930] sm:$0xff]
  %v6831 = vld [vmem:[%s15 + $0x938] sm:$0xff]
  %v6832 = vld [vmem:[%s15 + $0x940] sm:$0xff]
  %v6833 = vld [vmem:[%s15 + $0x948] sm:$0xff]
  %v6834 = vld [vmem:[%s15 + $0x950] sm:$0xff]
  %v6835 = vld [vmem:[%s15 + $0x958] sm:$0xff]
  %v6836 = vld [vmem:[%s15 + $0x960] sm:$0xff]
  %v6837 = vld [vmem:[%s15 + $0x968] sm:$0xff]
  %v6838 = vld [vmem:[%s15 + $0x970] sm:$0xff]
  %v6839 = vld [vmem:[%s15 + $0x978] sm:$0xff]
  %v6840 = vld [vmem:[%s15 + $0x980] sm:$0xff]
  %v6841 = vld [vmem:[%s15 + $0x988] sm:$0xff]
  %v6842 = vld [vmem:[%s15 + $0x990] sm:$0xff]
  %v6843 = vld [vmem:[%s15 + $0x998] sm:$0xff]
  %v6844 = vld [vmem:[%s15 + $0x9a0] sm:$0xff]
  %v6845 = vld [vmem:[%s15 + $0x9a8] sm:$0xff]
  %v6846 = vld [vmem:[%s15 + $0x9b0] sm:$0xff]
  %v6847 = vld [vmem:[%s15 + $0x9b8] sm:$0xff]
  %v6848 = vld [vmem:[%s15 + $0x9c0] sm:$0xff]
  %v6849 = vld [vmem:[%s15 + $0x9c8] sm:$0xff]
  %v6850 = vld [vmem:[%s15 + $0x9d0] sm:$0xff]
  %v6851 = vld [vmem:[%s15 + $0x9d8] sm:$0xff]
  %v6852 = vld [vmem:[%s15 + $0x9e0] sm:$0xff]
  %v6853 = vld [vmem:[%s15 + $0x9e8] sm:$0xff]
  %v6854 = vld [vmem:[%s15 + $0x9f0] sm:$0xff]
  %v6855 = vld [vmem:[%s15 + $0x9f8] sm:$0xff]
  %v6856 = vld [vmem:[%s15 + $0xa00] sm:$0xff]
  %v6857 = vld [vmem:[%s15 + $0xa08] sm:$0xff]
  %v6858 = vld [vmem:[%s15 + $0xa10] sm:$0xff]
  %v6859 = vld [vmem:[%s15 + $0xa18] sm:$0xff]
  %v6860 = vld [vmem:[%s15 + $0xa20] sm:$0xff]
  %v6861 = vld [vmem:[%s15 + $0xa28] sm:$0xff]
  %v6862 = vld [vmem:[%s15 + $0xa30] sm:$0xff]
  %v6863 = vld [vmem:[%s15 + $0xa38] sm:$0xff]
  %v6864 = vld [vmem:[%s15 + $0xa40] sm:$0xff]
  %v6865 = vld [vmem:[%s15 + $0xa48] sm:$0xff]
  %v6866 = vld [vmem:[%s15 + $0xa50] sm:$0xff]
  %v6867 = vld [vmem:[%s15 + $0xa58] sm:$0xff]
  %v6868 = vld [vmem:[%s15 + $0xa60] sm:$0xff]
  %v6869 = vld [vmem:[%s15 + $0xa68] sm:$0xff]
  %v6870 = vld [vmem:[%s15 + $0xa70] sm:$0xff]
  %v6871 = vld [vmem:[%s15 + $0xa78] sm:$0xff]
  %v6872 = vld [vmem:[%s15 + $0xa80] sm:$0xff]
  %v6873 = vld [vmem:[%s15 + $0xa88] sm:$0xff]
  %v6874 = vld [vmem:[%s15 + $0xa90] sm:$0xff]
  %v6875 = vld [vmem:[%s15 + $0xa98] sm:$0xff]
  %v6876 = vld [vmem:[%s15 + $0xaa0] sm:$0xff]
  %v6877 = vld [vmem:[%s15 + $0xaa8] sm:$0xff]
  %v6878 = vld [vmem:[%s15 + $0xab0] sm:$0xff]
  %v6879 = vld [vmem:[%s15 + $0xab8] sm:$0xff]
  %v6880 = vld [vmem:[%s15 + $0xac0] sm:$0xff]
  %v6881 = vld [vmem:[%s15 + $0xac8] sm:$0xff]
  %v6882 = vld [vmem:[%s15 + $0xad0] sm:$0xff]
  %v6883 = vld [vmem:[%s15 + $0xad8] sm:$0xff]
  %v6884 = vld [vmem:[%s15 + $0xae0] sm:$0xff]
  %v6885 = vld [vmem:[%s15 + $0xae8] sm:$0xff]
  %v6886 = vld [vmem:[%s15 + $0xaf0] sm:$0xff]
  %v6887 = vld [vmem:[%s15 + $0xaf8] sm:$0xff]
  %v6888 = vld [vmem:[%s15 + $0xb00] sm:$0xff]
  %v6889 = vld [vmem:[%s15 + $0xb08] sm:$0xff]
  %v6890 = vld [vmem:[%s15 + $0xb10] sm:$0xff]
  %v6891 = vld [vmem:[%s15 + $0xb18] sm:$0xff]
  %v6892 = vld [vmem:[%s15 + $0xb20] sm:$0xff]
  %v6893 = vld [vmem:[%s15 + $0xb28] sm:$0xff]
  %v6894 = vld [vmem:[%s15 + $0xb30] sm:$0xff]
  %v6895 = vld [vmem:[%s15 + $0xb38] sm:$0xff]
  %v6896 = vld [vmem:[%s15 + $0xb40] sm:$0xff]
  %v6897 = vld [vmem:[%s15 + $0xb48] sm:$0xff]
  %v6898 = vld [vmem:[%s15 + $0xb50] sm:$0xff]
  %v6899 = vld [vmem:[%s15 + $0xb58] sm:$0xff]
  %v6900 = vld [vmem:[%s15 + $0xb60] sm:$0xff]
  %v6901 = vld [vmem:[%s15 + $0xb68] sm:$0xff]
  %v6902 = vld [vmem:[%s15 + $0xb70] sm:$0xff]
  %v6903 = vld [vmem:[%s15 + $0xb78] sm:$0xff]
  %v6904 = vld [vmem:[%s15 + $0xb80] sm:$0xff]
  %v6905 = vld [vmem:[%s15 + $0xb88] sm:$0xff]
  %v6906 = vld [vmem:[%s15 + $0xb90] sm:$0xff]
  %v6907 = vld [vmem:[%s15 + $0xb98] sm:$0xff]
  %v6908 = vld [vmem:[%s15 + $0xba0] sm:$0xff]
  %v6909 = vld [vmem:[%s15 + $0xba8] sm:$0xff]
  %v6910 = vld [vmem:[%s15 + $0xbb0] sm:$0xff]
  %v6911 = vld [vmem:[%s15 + $0xbb8] sm:$0xff]
  %v6912 = vld [vmem:[%s15 + $0xbc0] sm:$0xff]
  %v6913 = vld [vmem:[%s15 + $0xbc8] sm:$0xff]
  %v6914 = vld [vmem:[%s15 + $0xbd0] sm:$0xff]
  %v6915 = vld [vmem:[%s15 + $0xbd8] sm:$0xff]
  %v6916 = vld [vmem:[%s15 + $0xbe0] sm:$0xff]
  %v6917 = vld [vmem:[%s15 + $0xbe8] sm:$0xff]
  %v6918 = vld [vmem:[%s15 + $0xbf0] sm:$0xff]
  %v6919 = vld [vmem:[%s15 + $0xbf8] sm:$0xff]
  %v6920 = vld [vmem:[%s15 + $0xc00] sm:$0xff]
  %v6921 = vld [vmem:[%s15 + $0xc08] sm:$0xff]
  %v6922 = vld [vmem:[%s15 + $0xc10] sm:$0xff]
  %v6923 = vld [vmem:[%s15 + $0xc18] sm:$0xff]
  %v6924 = vld [vmem:[%s15 + $0xc20] sm:$0xff]
  %v6925 = vld [vmem:[%s15 + $0xc28] sm:$0xff]
  %v6926 = vld [vmem:[%s15 + $0xc30] sm:$0xff]
  %v6927 = vld [vmem:[%s15 + $0xc38] sm:$0xff]
  %v6928 = vld [vmem:[%s15 + $0xc40] sm:$0xff]
  %v6929 = vld [vmem:[%s15 + $0xc48] sm:$0xff]
  %v6930 = vld [vmem:[%s15 + $0xc50] sm:$0xff]
  %v6931 = vld [vmem:[%s15 + $0xc58] sm:$0xff]
  %v6932 = vld [vmem:[%s15 + $0xc60] sm:$0xff]
  %v6933 = vld [vmem:[%s15 + $0xc68] sm:$0xff]
  %v6934 = vld [vmem:[%s15 + $0xc70] sm:$0xff]
  %v6935 = vld [vmem:[%s15 + $0xc78] sm:$0xff]
  %v6936 = vld [vmem:[%s15 + $0xc80] sm:$0xff]
  %v6937 = vld [vmem:[%s15 + $0xc88] sm:$0xff]
  %v6938 = vld [vmem:[%s15 + $0xc90] sm:$0xff]
  %v6939 = vld [vmem:[%s15 + $0xc98] sm:$0xff]
  %v6940 = vld [vmem:[%s15 + $0xca0] sm:$0xff]
  %v6941 = vld [vmem:[%s15 + $0xca8] sm:$0xff]
  %v6942 = vld [vmem:[%s15 + $0xcb0] sm:$0xff]
  %v6943 = vld [vmem:[%s15 + $0xcb8] sm:$0xff]
  %v6944 = vld [vmem:[%s15 + $0xcc0] sm:$0xff]
  %v6945 = vld [vmem:[%s15 + $0xcc8] sm:$0xff]
  %v6946 = vld [vmem:[%s15 + $0xcd0] sm:$0xff]
  %v6947 = vld [vmem:[%s15 + $0xcd8] sm:$0xff]
  %v6948 = vld [vmem:[%s15 + $0xce0] sm:$0xff]
  %v6949 = vld [vmem:[%s15 + $0xce8] sm:$0xff]
  %v6950 = vld [vmem:[%s15 + $0xcf0] sm:$0xff]
  %v6951 = vld [vmem:[%s15 + $0xcf8] sm:$0xff]
  %v6952 = vld [vmem:[%s15 + $0xd00] sm:$0xff]
  %v6953 = vld [vmem:[%s15 + $0xd08] sm:$0xff]
  %v6954 = vld [vmem:[%s15 + $0xd10] sm:$0xff]
  %v6955 = vld [vmem:[%s15 + $0xd18] sm:$0xff]
  %v6956 = vld [vmem:[%s15 + $0xd20] sm:$0xff]
  %v6957 = vld [vmem:[%s15 + $0xd28] sm:$0xff]
  %v6958 = vld [vmem:[%s15 + $0xd30] sm:$0xff]
  %v6959 = vld [vmem:[%s15 + $0xd38] sm:$0xff]
  %v6960 = vld [vmem:[%s15 + $0xd40] sm:$0xff]
  %v6961 = vld [vmem:[%s15 + $0xd48] sm:$0xff]
  %v6962 = vld [vmem:[%s15 + $0xd50] sm:$0xff]
  %v6963 = vld [vmem:[%s15 + $0xd58] sm:$0xff]
  %v6964 = vld [vmem:[%s15 + $0xd60] sm:$0xff]
  %v6965 = vld [vmem:[%s15 + $0xd68] sm:$0xff]
  %v6966 = vld [vmem:[%s15 + $0xd70] sm:$0xff]
  %v6967 = vld [vmem:[%s15 + $0xd78] sm:$0xff]
  %v6968 = vld [vmem:[%s15 + $0xd80] sm:$0xff]
  %v6969 = vld [vmem:[%s15 + $0xd88] sm:$0xff]
  %v6970 = vld [vmem:[%s15 + $0xd90] sm:$0xff]
  %v6971 = vld [vmem:[%s15 + $0xd98] sm:$0xff]
  %v6972 = vld [vmem:[%s15 + $0xda0] sm:$0xff]
  %v6973 = vld [vmem:[%s15 + $0xda8] sm:$0xff]
  %v6974 = vld [vmem:[%s15 + $0xdb0] sm:$0xff]
  %v6975 = vld [vmem:[%s15 + $0xdb8] sm:$0xff]
  %v6976 = vld [vmem:[%s15 + $0xdc0] sm:$0xff]
  %v6977 = vld [vmem:[%s15 + $0xdc8] sm:$0xff]
  %v6978 = vld [vmem:[%s15 + $0xdd0] sm:$0xff]
  %v6979 = vld [vmem:[%s15 + $0xdd8] sm:$0xff]
  %v6980 = vld [vmem:[%s15 + $0xde0] sm:$0xff]
  %v6981 = vld [vmem:[%s15 + $0xde8] sm:$0xff]
  %v6982 = vld [vmem:[%s15 + $0xdf0] sm:$0xff]
  %v6983 = vld [vmem:[%s15 + $0xdf8] sm:$0xff]
  %v6984 = vld [vmem:[%s15 + $0xe00] sm:$0xff]
  %v6985 = vld [vmem:[%s15 + $0xe08] sm:$0xff]
  %v6986 = vld [vmem:[%s15 + $0xe10] sm:$0xff]
  %v6987 = vld [vmem:[%s15 + $0xe18] sm:$0xff]
  %v6988 = vld [vmem:[%s15 + $0xe20] sm:$0xff]
  %v6989 = vld [vmem:[%s15 + $0xe28] sm:$0xff]
  %v6990 = vld [vmem:[%s15 + $0xe30] sm:$0xff]
  %v6991 = vld [vmem:[%s15 + $0xe38] sm:$0xff]
  %v6992 = vld [vmem:[%s15 + $0xe40] sm:$0xff]
  %v6993 = vld [vmem:[%s15 + $0xe48] sm:$0xff]
  %v6994 = vld [vmem:[%s15 + $0xe50] sm:$0xff]
  %v6995 = vld [vmem:[%s15 + $0xe58] sm:$0xff]
  %v6996 = vld [vmem:[%s15 + $0xe60] sm:$0xff]
  %v6997 = vld [vmem:[%s15 + $0xe68] sm:$0xff]
  %v6998 = vld [vmem:[%s15 + $0xe70] sm:$0xff]
  %v6999 = vld [vmem:[%s15 + $0xe78] sm:$0xff]
  %v7000 = vld [vmem:[%s15 + $0xe80] sm:$0xff]
  %v7001 = vld [vmem:[%s15 + $0xe88] sm:$0xff]
  %v7002 = vld [vmem:[%s15 + $0xe90] sm:$0xff]
  %v7003 = vld [vmem:[%s15 + $0xe98] sm:$0xff]
  %v7004 = vld [vmem:[%s15 + $0xea0] sm:$0xff]
  %v7005 = vld [vmem:[%s15 + $0xea8] sm:$0xff]
  %v7006 = vld [vmem:[%s15 + $0xeb0] sm:$0xff]
  %v7007 = vld [vmem:[%s15 + $0xeb8] sm:$0xff]
  %v7008 = vld [vmem:[%s15 + $0xec0] sm:$0xff]
  %v7009 = vld [vmem:[%s15 + $0xec8] sm:$0xff]
  %v7010 = vld [vmem:[%s15 + $0xed0] sm:$0xff]
  %v7011 = vld [vmem:[%s15 + $0xed8] sm:$0xff]
  %v7012 = vld [vmem:[%s15 + $0xee0] sm:$0xff]
  %v7013 = vld [vmem:[%s15 + $0xee8] sm:$0xff]
  %v7014 = vld [vmem:[%s15 + $0xef0] sm:$0xff]
  %v7015 = vld [vmem:[%s15 + $0xef8] sm:$0xff]
  %v7016 = vld [vmem:[%s15 + $0xf00] sm:$0xff]
  %v7017 = vld [vmem:[%s15 + $0xf08] sm:$0xff]
  %v7018 = vld [vmem:[%s15 + $0xf10] sm:$0xff]
  %v7019 = vld [vmem:[%s15 + $0xf18] sm:$0xff]
  %v7020 = vld [vmem:[%s15 + $0xf20] sm:$0xff]
  %v7021 = vld [vmem:[%s15 + $0xf28] sm:$0xff]
  %v7022 = vld [vmem:[%s15 + $0xf30] sm:$0xff]
  %v7023 = vld [vmem:[%s15 + $0xf38] sm:$0xff]
  %v7024 = vld [vmem:[%s15 + $0xf40] sm:$0xff]
  %v7025 = vld [vmem:[%s15 + $0xf48] sm:$0xff]
  %v7026 = vld [vmem:[%s15 + $0xf50] sm:$0xff]
  %v7027 = vld [vmem:[%s15 + $0xf58] sm:$0xff]
  %v7028 = vld [vmem:[%s15 + $0xf60] sm:$0xff]
  %v7029 = vld [vmem:[%s15 + $0xf68] sm:$0xff]
  %v7030 = vld [vmem:[%s15 + $0xf70] sm:$0xff]
  %v7031 = vld [vmem:[%s15 + $0xf78] sm:$0xff]
  %v7032 = vld [vmem:[%s15 + $0xf80] sm:$0xff]
  %v7033 = vld [vmem:[%s15 + $0xf88] sm:$0xff]
  %v7034 = vld [vmem:[%s15 + $0xf90] sm:$0xff]
  %v7035 = vld [vmem:[%s15 + $0xf98] sm:$0xff]
  %v7036 = vld [vmem:[%s15 + $0xfa0] sm:$0xff]
  %v7037 = vld [vmem:[%s15 + $0xfa8] sm:$0xff]
  %v7038 = vld [vmem:[%s15 + $0xfb0] sm:$0xff]
  %v7039 = vld [vmem:[%s15 + $0xfb8] sm:$0xff]
  %v7040 = vld [vmem:[%s15 + $0xfc0] sm:$0xff]
  %v7041 = vld [vmem:[%s15 + $0xfc8] sm:$0xff]
  %v7042 = vld [vmem:[%s15 + $0xfd0] sm:$0xff]
  %v7043 = vld [vmem:[%s15 + $0xfd8] sm:$0xff]
  %v7044 = vld [vmem:[%s15 + $0xfe0] sm:$0xff]
  %v7045 = vld [vmem:[%s15 + $0xfe8] sm:$0xff]
  %v7046 = vld [vmem:[%s15 + $0xff0] sm:$0xff]
  %v7047 = vld [vmem:[%s15 + $0xff8] sm:$0xff]
  %v7560 = vunpack.c.l.b16 %v6536
  %v7561 = vunpack.c.h.b16 %v6536
  %v7562 = vunpack.c.l.b16 %v6537
  %v7563 = vunpack.c.h.b16 %v6537
  %v7564 = vunpack.c.l.b16 %v6538
  %v7565 = vunpack.c.h.b16 %v6538
  %v7566 = vunpack.c.l.b16 %v6539
  %v7567 = vunpack.c.h.b16 %v6539
  %v7568 = vunpack.c.l.b16 %v6540
  %v7569 = vunpack.c.h.b16 %v6540
  %v7570 = vunpack.c.l.b16 %v6541
  %v7571 = vunpack.c.h.b16 %v6541
  %v7572 = vunpack.c.l.b16 %v6542
  %v7573 = vunpack.c.h.b16 %v6542
  %v7574 = vunpack.c.l.b16 %v6543
  %v7575 = vunpack.c.h.b16 %v6543
  %v7576 = vunpack.c.l.b16 %v6544
  %v7577 = vunpack.c.h.b16 %v6544
  %v7578 = vunpack.c.l.b16 %v6545
  %v7579 = vunpack.c.h.b16 %v6545
  %v7580 = vunpack.c.l.b16 %v6546
  %v7581 = vunpack.c.h.b16 %v6546
  %v7582 = vunpack.c.l.b16 %v6547
  %v7583 = vunpack.c.h.b16 %v6547
  %v7584 = vunpack.c.l.b16 %v6548
  %v7585 = vunpack.c.h.b16 %v6548
  %v7586 = vunpack.c.l.b16 %v6549
  %v7587 = vunpack.c.h.b16 %v6549
  %v7588 = vunpack.c.l.b16 %v6550
  %v7589 = vunpack.c.h.b16 %v6550
  %v7590 = vunpack.c.l.b16 %v6551
  %v7591 = vunpack.c.h.b16 %v6551
  %v7592 = vunpack.c.l.b16 %v6552
  %v7593 = vunpack.c.h.b16 %v6552
  %v7594 = vunpack.c.l.b16 %v6553
  %v7595 = vunpack.c.h.b16 %v6553
  %v7596 = vunpack.c.l.b16 %v6554
  %v7597 = vunpack.c.h.b16 %v6554
  %v7598 = vunpack.c.l.b16 %v6555
  %v7599 = vunpack.c.h.b16 %v6555
  %v7600 = vunpack.c.l.b16 %v6556
  %v7601 = vunpack.c.h.b16 %v6556
  %v7602 = vunpack.c.l.b16 %v6557
  %v7603 = vunpack.c.h.b16 %v6557
  %v7604 = vunpack.c.l.b16 %v6558
  %v7605 = vunpack.c.h.b16 %v6558
  %v7606 = vunpack.c.l.b16 %v6559
  %v7607 = vunpack.c.h.b16 %v6559
  %v7608 = vunpack.c.l.b16 %v6560
  %v7609 = vunpack.c.h.b16 %v6560
  %v7610 = vunpack.c.l.b16 %v6561
  %v7611 = vunpack.c.h.b16 %v6561
  %v7612 = vunpack.c.l.b16 %v6562
  %v7613 = vunpack.c.h.b16 %v6562
  %v7614 = vunpack.c.l.b16 %v6563
  %v7615 = vunpack.c.h.b16 %v6563
  %v7616 = vunpack.c.l.b16 %v6564
  %v7617 = vunpack.c.h.b16 %v6564
  %v7618 = vunpack.c.l.b16 %v6565
  %v7619 = vunpack.c.h.b16 %v6565
  %v7620 = vunpack.c.l.b16 %v6566
  %v7621 = vunpack.c.h.b16 %v6566
  %v7622 = vunpack.c.l.b16 %v6567
  %v7623 = vunpack.c.h.b16 %v6567
  %v7624 = vunpack.c.l.b16 %v6568
  %v7625 = vunpack.c.h.b16 %v6568
  %v7626 = vunpack.c.l.b16 %v6569
  %v7627 = vunpack.c.h.b16 %v6569
  %v7628 = vunpack.c.l.b16 %v6570
  %v7629 = vunpack.c.h.b16 %v6570
  %v7630 = vunpack.c.l.b16 %v6571
  %v7631 = vunpack.c.h.b16 %v6571
  %v7632 = vunpack.c.l.b16 %v6572
  %v7633 = vunpack.c.h.b16 %v6572
  %v7634 = vunpack.c.l.b16 %v6573
  %v7635 = vunpack.c.h.b16 %v6573
  %v7636 = vunpack.c.l.b16 %v6574
  %v7637 = vunpack.c.h.b16 %v6574
  %v7638 = vunpack.c.l.b16 %v6575
  %v7639 = vunpack.c.h.b16 %v6575
  %v7640 = vunpack.c.l.b16 %v6576
  %v7641 = vunpack.c.h.b16 %v6576
  %v7642 = vunpack.c.l.b16 %v6577
  %v7643 = vunpack.c.h.b16 %v6577
  %v7644 = vunpack.c.l.b16 %v6578
  %v7645 = vunpack.c.h.b16 %v6578
  %v7646 = vunpack.c.l.b16 %v6579
  %v7647 = vunpack.c.h.b16 %v6579
  %v7648 = vunpack.c.l.b16 %v6580
  %v7649 = vunpack.c.h.b16 %v6580
  %v7650 = vunpack.c.l.b16 %v6581
  %v7651 = vunpack.c.h.b16 %v6581
  %v7652 = vunpack.c.l.b16 %v6582
  %v7653 = vunpack.c.h.b16 %v6582
  %v7654 = vunpack.c.l.b16 %v6583
  %v7655 = vunpack.c.h.b16 %v6583
  %v7656 = vunpack.c.l.b16 %v6584
  %v7657 = vunpack.c.h.b16 %v6584
  %v7658 = vunpack.c.l.b16 %v6585
  %v7659 = vunpack.c.h.b16 %v6585
  %v7660 = vunpack.c.l.b16 %v6586
  %v7661 = vunpack.c.h.b16 %v6586
  %v7662 = vunpack.c.l.b16 %v6587
  %v7663 = vunpack.c.h.b16 %v6587
  %v7664 = vunpack.c.l.b16 %v6588
  %v7665 = vunpack.c.h.b16 %v6588
  %v7666 = vunpack.c.l.b16 %v6589
  %v7667 = vunpack.c.h.b16 %v6589
  %v7668 = vunpack.c.l.b16 %v6590
  %v7669 = vunpack.c.h.b16 %v6590
  %v7670 = vunpack.c.l.b16 %v6591
  %v7671 = vunpack.c.h.b16 %v6591
  %v7672 = vunpack.c.l.b16 %v6592
  %v7673 = vunpack.c.h.b16 %v6592
  %v7674 = vunpack.c.l.b16 %v6593
  %v7675 = vunpack.c.h.b16 %v6593
  %v7676 = vunpack.c.l.b16 %v6594
  %v7677 = vunpack.c.h.b16 %v6594
  %v7678 = vunpack.c.l.b16 %v6595
  %v7679 = vunpack.c.h.b16 %v6595
  %v7680 = vunpack.c.l.b16 %v6596
  %v7681 = vunpack.c.h.b16 %v6596
  %v7682 = vunpack.c.l.b16 %v6597
  %v7683 = vunpack.c.h.b16 %v6597
  %v7684 = vunpack.c.l.b16 %v6598
  %v7685 = vunpack.c.h.b16 %v6598
  %v7686 = vunpack.c.l.b16 %v6599
  %v7687 = vunpack.c.h.b16 %v6599
  %v7688 = vunpack.c.l.b16 %v6600
  %v7689 = vunpack.c.h.b16 %v6600
  %v7690 = vunpack.c.l.b16 %v6601
  %v7691 = vunpack.c.h.b16 %v6601
  %v7692 = vunpack.c.l.b16 %v6602
  %v7693 = vunpack.c.h.b16 %v6602
  %v7694 = vunpack.c.l.b16 %v6603
  %v7695 = vunpack.c.h.b16 %v6603
  %v7696 = vunpack.c.l.b16 %v6604
  %v7697 = vunpack.c.h.b16 %v6604
  %v7698 = vunpack.c.l.b16 %v6605
  %v7699 = vunpack.c.h.b16 %v6605
  %v7700 = vunpack.c.l.b16 %v6606
  %v7701 = vunpack.c.h.b16 %v6606
  %v7702 = vunpack.c.l.b16 %v6607
  %v7703 = vunpack.c.h.b16 %v6607
  %v7704 = vunpack.c.l.b16 %v6608
  %v7705 = vunpack.c.h.b16 %v6608
  %v7706 = vunpack.c.l.b16 %v6609
  %v7707 = vunpack.c.h.b16 %v6609
  %v7708 = vunpack.c.l.b16 %v6610
  %v7709 = vunpack.c.h.b16 %v6610
  %v7710 = vunpack.c.l.b16 %v6611
  %v7711 = vunpack.c.h.b16 %v6611
  %v7712 = vunpack.c.l.b16 %v6612
  %v7713 = vunpack.c.h.b16 %v6612
  %v7714 = vunpack.c.l.b16 %v6613
  %v7715 = vunpack.c.h.b16 %v6613
  %v7716 = vunpack.c.l.b16 %v6614
  %v7717 = vunpack.c.h.b16 %v6614
  %v7718 = vunpack.c.l.b16 %v6615
  %v7719 = vunpack.c.h.b16 %v6615
  %v7720 = vunpack.c.l.b16 %v6616
  %v7721 = vunpack.c.h.b16 %v6616
  %v7722 = vunpack.c.l.b16 %v6617
  %v7723 = vunpack.c.h.b16 %v6617
  %v7724 = vunpack.c.l.b16 %v6618
  %v7725 = vunpack.c.h.b16 %v6618
  %v7726 = vunpack.c.l.b16 %v6619
  %v7727 = vunpack.c.h.b16 %v6619
  %v7728 = vunpack.c.l.b16 %v6620
  %v7729 = vunpack.c.h.b16 %v6620
  %v7730 = vunpack.c.l.b16 %v6621
  %v7731 = vunpack.c.h.b16 %v6621
  %v7732 = vunpack.c.l.b16 %v6622
  %v7733 = vunpack.c.h.b16 %v6622
  %v7734 = vunpack.c.l.b16 %v6623
  %v7735 = vunpack.c.h.b16 %v6623
  %v7736 = vunpack.c.l.b16 %v6624
  %v7737 = vunpack.c.h.b16 %v6624
  %v7738 = vunpack.c.l.b16 %v6625
  %v7739 = vunpack.c.h.b16 %v6625
  %v7740 = vunpack.c.l.b16 %v6626
  %v7741 = vunpack.c.h.b16 %v6626
  %v7742 = vunpack.c.l.b16 %v6627
  %v7743 = vunpack.c.h.b16 %v6627
  %v7744 = vunpack.c.l.b16 %v6628
  %v7745 = vunpack.c.h.b16 %v6628
  %v7746 = vunpack.c.l.b16 %v6629
  %v7747 = vunpack.c.h.b16 %v6629
  %v7748 = vunpack.c.l.b16 %v6630
  %v7749 = vunpack.c.h.b16 %v6630
  %v7750 = vunpack.c.l.b16 %v6631
  %v7751 = vunpack.c.h.b16 %v6631
  %v7752 = vunpack.c.l.b16 %v6632
  %v7753 = vunpack.c.h.b16 %v6632
  %v7754 = vunpack.c.l.b16 %v6633
  %v7755 = vunpack.c.h.b16 %v6633
  %v7756 = vunpack.c.l.b16 %v6634
  %v7757 = vunpack.c.h.b16 %v6634
  %v7758 = vunpack.c.l.b16 %v6635
  %v7759 = vunpack.c.h.b16 %v6635
  %v7760 = vunpack.c.l.b16 %v6636
  %v7761 = vunpack.c.h.b16 %v6636
  %v7762 = vunpack.c.l.b16 %v6637
  %v7763 = vunpack.c.h.b16 %v6637
  %v7764 = vunpack.c.l.b16 %v6638
  %v7765 = vunpack.c.h.b16 %v6638
  %v7766 = vunpack.c.l.b16 %v6639
  %v7767 = vunpack.c.h.b16 %v6639
  %v7768 = vunpack.c.l.b16 %v6640
  %v7769 = vunpack.c.h.b16 %v6640
  %v7770 = vunpack.c.l.b16 %v6641
  %v7771 = vunpack.c.h.b16 %v6641
  %v7772 = vunpack.c.l.b16 %v6642
  %v7773 = vunpack.c.h.b16 %v6642
  %v7774 = vunpack.c.l.b16 %v6643
  %v7775 = vunpack.c.h.b16 %v6643
  %v7776 = vunpack.c.l.b16 %v6644
  %v7777 = vunpack.c.h.b16 %v6644
  %v7778 = vunpack.c.l.b16 %v6645
  %v7779 = vunpack.c.h.b16 %v6645
  %v7780 = vunpack.c.l.b16 %v6646
  %v7781 = vunpack.c.h.b16 %v6646
  %v7782 = vunpack.c.l.b16 %v6647
  %v7783 = vunpack.c.h.b16 %v6647
  %v7784 = vunpack.c.l.b16 %v6648
  %v7785 = vunpack.c.h.b16 %v6648
  %v7786 = vunpack.c.l.b16 %v6649
  %v7787 = vunpack.c.h.b16 %v6649
  %v7788 = vunpack.c.l.b16 %v6650
  %v7789 = vunpack.c.h.b16 %v6650
  %v7790 = vunpack.c.l.b16 %v6651
  %v7791 = vunpack.c.h.b16 %v6651
  %v7792 = vunpack.c.l.b16 %v6652
  %v7793 = vunpack.c.h.b16 %v6652
  %v7794 = vunpack.c.l.b16 %v6653
  %v7795 = vunpack.c.h.b16 %v6653
  %v7796 = vunpack.c.l.b16 %v6654
  %v7797 = vunpack.c.h.b16 %v6654
  %v7798 = vunpack.c.l.b16 %v6655
  %v7799 = vunpack.c.h.b16 %v6655
  %v7800 = vunpack.c.l.b16 %v6656
  %v7801 = vunpack.c.h.b16 %v6656
  %v7802 = vunpack.c.l.b16 %v6657
  %v7803 = vunpack.c.h.b16 %v6657
  %v7804 = vunpack.c.l.b16 %v6658
  %v7805 = vunpack.c.h.b16 %v6658
  %v7806 = vunpack.c.l.b16 %v6659
  %v7807 = vunpack.c.h.b16 %v6659
  %v7808 = vunpack.c.l.b16 %v6660
  %v7809 = vunpack.c.h.b16 %v6660
  %v7810 = vunpack.c.l.b16 %v6661
  %v7811 = vunpack.c.h.b16 %v6661
  %v7812 = vunpack.c.l.b16 %v6662
  %v7813 = vunpack.c.h.b16 %v6662
  %v7814 = vunpack.c.l.b16 %v6663
  %v7815 = vunpack.c.h.b16 %v6663
  %v7816 = vunpack.c.l.b16 %v6664
  %v7817 = vunpack.c.h.b16 %v6664
  %v7818 = vunpack.c.l.b16 %v6665
  %v7819 = vunpack.c.h.b16 %v6665
  %v7820 = vunpack.c.l.b16 %v6666
  %v7821 = vunpack.c.h.b16 %v6666
  %v7822 = vunpack.c.l.b16 %v6667
  %v7823 = vunpack.c.h.b16 %v6667
  %v7824 = vunpack.c.l.b16 %v6668
  %v7825 = vunpack.c.h.b16 %v6668
  %v7826 = vunpack.c.l.b16 %v6669
  %v7827 = vunpack.c.h.b16 %v6669
  %v7828 = vunpack.c.l.b16 %v6670
  %v7829 = vunpack.c.h.b16 %v6670
  %v7830 = vunpack.c.l.b16 %v6671
  %v7831 = vunpack.c.h.b16 %v6671
  %v7832 = vunpack.c.l.b16 %v6672
  %v7833 = vunpack.c.h.b16 %v6672
  %v7834 = vunpack.c.l.b16 %v6673
  %v7835 = vunpack.c.h.b16 %v6673
  %v7836 = vunpack.c.l.b16 %v6674
  %v7837 = vunpack.c.h.b16 %v6674
  %v7838 = vunpack.c.l.b16 %v6675
  %v7839 = vunpack.c.h.b16 %v6675
  %v7840 = vunpack.c.l.b16 %v6676
  %v7841 = vunpack.c.h.b16 %v6676
  %v7842 = vunpack.c.l.b16 %v6677
  %v7843 = vunpack.c.h.b16 %v6677
  %v7844 = vunpack.c.l.b16 %v6678
  %v7845 = vunpack.c.h.b16 %v6678
  %v7846 = vunpack.c.l.b16 %v6679
  %v7847 = vunpack.c.h.b16 %v6679
  %v7848 = vunpack.c.l.b16 %v6680
  %v7849 = vunpack.c.h.b16 %v6680
  %v7850 = vunpack.c.l.b16 %v6681
  %v7851 = vunpack.c.h.b16 %v6681
  %v7852 = vunpack.c.l.b16 %v6682
  %v7853 = vunpack.c.h.b16 %v6682
  %v7854 = vunpack.c.l.b16 %v6683
  %v7855 = vunpack.c.h.b16 %v6683
  %v7856 = vunpack.c.l.b16 %v6684
  %v7857 = vunpack.c.h.b16 %v6684
  %v7858 = vunpack.c.l.b16 %v6685
  %v7859 = vunpack.c.h.b16 %v6685
  %v7860 = vunpack.c.l.b16 %v6686
  %v7861 = vunpack.c.h.b16 %v6686
  %v7862 = vunpack.c.l.b16 %v6687
  %v7863 = vunpack.c.h.b16 %v6687
  %v7864 = vunpack.c.l.b16 %v6688
  %v7865 = vunpack.c.h.b16 %v6688
  %v7866 = vunpack.c.l.b16 %v6689
  %v7867 = vunpack.c.h.b16 %v6689
  %v7868 = vunpack.c.l.b16 %v6690
  %v7869 = vunpack.c.h.b16 %v6690
  %v7870 = vunpack.c.l.b16 %v6691
  %v7871 = vunpack.c.h.b16 %v6691
  %v7872 = vunpack.c.l.b16 %v6692
  %v7873 = vunpack.c.h.b16 %v6692
  %v7874 = vunpack.c.l.b16 %v6693
  %v7875 = vunpack.c.h.b16 %v6693
  %v7876 = vunpack.c.l.b16 %v6694
  %v7877 = vunpack.c.h.b16 %v6694
  %v7878 = vunpack.c.l.b16 %v6695
  %v7879 = vunpack.c.h.b16 %v6695
  %v7880 = vunpack.c.l.b16 %v6696
  %v7881 = vunpack.c.h.b16 %v6696
  %v7882 = vunpack.c.l.b16 %v6697
  %v7883 = vunpack.c.h.b16 %v6697
  %v7884 = vunpack.c.l.b16 %v6698
  %v7885 = vunpack.c.h.b16 %v6698
  %v7886 = vunpack.c.l.b16 %v6699
  %v7887 = vunpack.c.h.b16 %v6699
  %v7888 = vunpack.c.l.b16 %v6700
  %v7889 = vunpack.c.h.b16 %v6700
  %v7890 = vunpack.c.l.b16 %v6701
  %v7891 = vunpack.c.h.b16 %v6701
  %v7892 = vunpack.c.l.b16 %v6702
  %v7893 = vunpack.c.h.b16 %v6702
  %v7894 = vunpack.c.l.b16 %v6703
  %v7895 = vunpack.c.h.b16 %v6703
  %v7896 = vunpack.c.l.b16 %v6704
  %v7897 = vunpack.c.h.b16 %v6704
  %v7898 = vunpack.c.l.b16 %v6705
  %v7899 = vunpack.c.h.b16 %v6705
  %v7900 = vunpack.c.l.b16 %v6706
  %v7901 = vunpack.c.h.b16 %v6706
  %v7902 = vunpack.c.l.b16 %v6707
  %v7903 = vunpack.c.h.b16 %v6707
  %v7904 = vunpack.c.l.b16 %v6708
  %v7905 = vunpack.c.h.b16 %v6708
  %v7906 = vunpack.c.l.b16 %v6709
  %v7907 = vunpack.c.h.b16 %v6709
  %v7908 = vunpack.c.l.b16 %v6710
  %v7909 = vunpack.c.h.b16 %v6710
  %v7910 = vunpack.c.l.b16 %v6711
  %v7911 = vunpack.c.h.b16 %v6711
  %v7912 = vunpack.c.l.b16 %v6712
  %v7913 = vunpack.c.h.b16 %v6712
  %v7914 = vunpack.c.l.b16 %v6713
  %v7915 = vunpack.c.h.b16 %v6713
  %v7916 = vunpack.c.l.b16 %v6714
  %v7917 = vunpack.c.h.b16 %v6714
  %v7918 = vunpack.c.l.b16 %v6715
  %v7919 = vunpack.c.h.b16 %v6715
  %v7920 = vunpack.c.l.b16 %v6716
  %v7921 = vunpack.c.h.b16 %v6716
  %v7922 = vunpack.c.l.b16 %v6717
  %v7923 = vunpack.c.h.b16 %v6717
  %v7924 = vunpack.c.l.b16 %v6718
  %v7925 = vunpack.c.h.b16 %v6718
  %v7926 = vunpack.c.l.b16 %v6719
  %v7927 = vunpack.c.h.b16 %v6719
  %v7928 = vunpack.c.l.b16 %v6720
  %v7929 = vunpack.c.h.b16 %v6720
  %v7930 = vunpack.c.l.b16 %v6721
  %v7931 = vunpack.c.h.b16 %v6721
  %v7932 = vunpack.c.l.b16 %v6722
  %v7933 = vunpack.c.h.b16 %v6722
  %v7934 = vunpack.c.l.b16 %v6723
  %v7935 = vunpack.c.h.b16 %v6723
  %v7936 = vunpack.c.l.b16 %v6724
  %v7937 = vunpack.c.h.b16 %v6724
  %v7938 = vunpack.c.l.b16 %v6725
  %v7939 = vunpack.c.h.b16 %v6725
  %v7940 = vunpack.c.l.b16 %v6726
  %v7941 = vunpack.c.h.b16 %v6726
  %v7942 = vunpack.c.l.b16 %v6727
  %v7943 = vunpack.c.h.b16 %v6727
  %v7944 = vunpack.c.l.b16 %v6728
  %v7945 = vunpack.c.h.b16 %v6728
  %v7946 = vunpack.c.l.b16 %v6729
  %v7947 = vunpack.c.h.b16 %v6729
  %v7948 = vunpack.c.l.b16 %v6730
  %v7949 = vunpack.c.h.b16 %v6730
  %v7950 = vunpack.c.l.b16 %v6731
  %v7951 = vunpack.c.h.b16 %v6731
  %v7952 = vunpack.c.l.b16 %v6732
  %v7953 = vunpack.c.h.b16 %v6732
  %v7954 = vunpack.c.l.b16 %v6733
  %v7955 = vunpack.c.h.b16 %v6733
  %v7956 = vunpack.c.l.b16 %v6734
  %v7957 = vunpack.c.h.b16 %v6734
  %v7958 = vunpack.c.l.b16 %v6735
  %v7959 = vunpack.c.h.b16 %v6735
  %v7960 = vunpack.c.l.b16 %v6736
  %v7961 = vunpack.c.h.b16 %v6736
  %v7962 = vunpack.c.l.b16 %v6737
  %v7963 = vunpack.c.h.b16 %v6737
  %v7964 = vunpack.c.l.b16 %v6738
  %v7965 = vunpack.c.h.b16 %v6738
  %v7966 = vunpack.c.l.b16 %v6739
  %v7967 = vunpack.c.h.b16 %v6739
  %v7968 = vunpack.c.l.b16 %v6740
  %v7969 = vunpack.c.h.b16 %v6740
  %v7970 = vunpack.c.l.b16 %v6741
  %v7971 = vunpack.c.h.b16 %v6741
  %v7972 = vunpack.c.l.b16 %v6742
  %v7973 = vunpack.c.h.b16 %v6742
  %v7974 = vunpack.c.l.b16 %v6743
  %v7975 = vunpack.c.h.b16 %v6743
  %v7976 = vunpack.c.l.b16 %v6744
  %v7977 = vunpack.c.h.b16 %v6744
  %v7978 = vunpack.c.l.b16 %v6745
  %v7979 = vunpack.c.h.b16 %v6745
  %v7980 = vunpack.c.l.b16 %v6746
  %v7981 = vunpack.c.h.b16 %v6746
  %v7982 = vunpack.c.l.b16 %v6747
  %v7983 = vunpack.c.h.b16 %v6747
  %v7984 = vunpack.c.l.b16 %v6748
  %v7985 = vunpack.c.h.b16 %v6748
  %v7986 = vunpack.c.l.b16 %v6749
  %v7987 = vunpack.c.h.b16 %v6749
  %v7988 = vunpack.c.l.b16 %v6750
  %v7989 = vunpack.c.h.b16 %v6750
  %v7990 = vunpack.c.l.b16 %v6751
  %v7991 = vunpack.c.h.b16 %v6751
  %v7992 = vunpack.c.l.b16 %v6752
  %v7993 = vunpack.c.h.b16 %v6752
  %v7994 = vunpack.c.l.b16 %v6753
  %v7995 = vunpack.c.h.b16 %v6753
  %v7996 = vunpack.c.l.b16 %v6754
  %v7997 = vunpack.c.h.b16 %v6754
  %v7998 = vunpack.c.l.b16 %v6755
  %v7999 = vunpack.c.h.b16 %v6755
  %v8000 = vunpack.c.l.b16 %v6756
  %v8001 = vunpack.c.h.b16 %v6756
  %v8002 = vunpack.c.l.b16 %v6757
  %v8003 = vunpack.c.h.b16 %v6757
  %v8004 = vunpack.c.l.b16 %v6758
  %v8005 = vunpack.c.h.b16 %v6758
  %v8006 = vunpack.c.l.b16 %v6759
  %v8007 = vunpack.c.h.b16 %v6759
  %v8008 = vunpack.c.l.b16 %v6760
  %v8009 = vunpack.c.h.b16 %v6760
  %v8010 = vunpack.c.l.b16 %v6761
  %v8011 = vunpack.c.h.b16 %v6761
  %v8012 = vunpack.c.l.b16 %v6762
  %v8013 = vunpack.c.h.b16 %v6762
  %v8014 = vunpack.c.l.b16 %v6763
  %v8015 = vunpack.c.h.b16 %v6763
  %v8016 = vunpack.c.l.b16 %v6764
  %v8017 = vunpack.c.h.b16 %v6764
  %v8018 = vunpack.c.l.b16 %v6765
  %v8019 = vunpack.c.h.b16 %v6765
  %v8020 = vunpack.c.l.b16 %v6766
  %v8021 = vunpack.c.h.b16 %v6766
  %v8022 = vunpack.c.l.b16 %v6767
  %v8023 = vunpack.c.h.b16 %v6767
  %v8024 = vunpack.c.l.b16 %v6768
  %v8025 = vunpack.c.h.b16 %v6768
  %v8026 = vunpack.c.l.b16 %v6769
  %v8027 = vunpack.c.h.b16 %v6769
  %v8028 = vunpack.c.l.b16 %v6770
  %v8029 = vunpack.c.h.b16 %v6770
  %v8030 = vunpack.c.l.b16 %v6771
  %v8031 = vunpack.c.h.b16 %v6771
  %v8032 = vunpack.c.l.b16 %v6772
  %v8033 = vunpack.c.h.b16 %v6772
  %v8034 = vunpack.c.l.b16 %v6773
  %v8035 = vunpack.c.h.b16 %v6773
  %v8036 = vunpack.c.l.b16 %v6774
  %v8037 = vunpack.c.h.b16 %v6774
  %v8038 = vunpack.c.l.b16 %v6775
  %v8039 = vunpack.c.h.b16 %v6775
  %v8040 = vunpack.c.l.b16 %v6776
  %v8041 = vunpack.c.h.b16 %v6776
  %v8042 = vunpack.c.l.b16 %v6777
  %v8043 = vunpack.c.h.b16 %v6777
  %v8044 = vunpack.c.l.b16 %v6778
  %v8045 = vunpack.c.h.b16 %v6778
  %v8046 = vunpack.c.l.b16 %v6779
  %v8047 = vunpack.c.h.b16 %v6779
  %v8048 = vunpack.c.l.b16 %v6780
  %v8049 = vunpack.c.h.b16 %v6780
  %v8050 = vunpack.c.l.b16 %v6781
  %v8051 = vunpack.c.h.b16 %v6781
  %v8052 = vunpack.c.l.b16 %v6782
  %v8053 = vunpack.c.h.b16 %v6782
  %v8054 = vunpack.c.l.b16 %v6783
  %v8055 = vunpack.c.h.b16 %v6783
  %v8056 = vunpack.c.l.b16 %v6784
  %v8057 = vunpack.c.h.b16 %v6784
  %v8058 = vunpack.c.l.b16 %v6785
  %v8059 = vunpack.c.h.b16 %v6785
  %v8060 = vunpack.c.l.b16 %v6786
  %v8061 = vunpack.c.h.b16 %v6786
  %v8062 = vunpack.c.l.b16 %v6787
  %v8063 = vunpack.c.h.b16 %v6787
  %v8064 = vunpack.c.l.b16 %v6788
  %v8065 = vunpack.c.h.b16 %v6788
  %v8066 = vunpack.c.l.b16 %v6789
  %v8067 = vunpack.c.h.b16 %v6789
  %v8068 = vunpack.c.l.b16 %v6790
  %v8069 = vunpack.c.h.b16 %v6790
  %v8070 = vunpack.c.l.b16 %v6791
  %v8071 = vunpack.c.h.b16 %v6791
  %v8072 = vunpack.c.l.b16 %v6792
  %v8073 = vunpack.c.h.b16 %v6792
  %v8074 = vunpack.c.l.b16 %v6793
  %v8075 = vunpack.c.h.b16 %v6793
  %v8076 = vunpack.c.l.b16 %v6794
  %v8077 = vunpack.c.h.b16 %v6794
  %v8078 = vunpack.c.l.b16 %v6795
  %v8079 = vunpack.c.h.b16 %v6795
  %v8080 = vunpack.c.l.b16 %v6796
  %v8081 = vunpack.c.h.b16 %v6796
  %v8082 = vunpack.c.l.b16 %v6797
  %v8083 = vunpack.c.h.b16 %v6797
  %v8084 = vunpack.c.l.b16 %v6798
  %v8085 = vunpack.c.h.b16 %v6798
  %v8086 = vunpack.c.l.b16 %v6799
  %v8087 = vunpack.c.h.b16 %v6799
  %v8088 = vunpack.c.l.b16 %v6800
  %v8089 = vunpack.c.h.b16 %v6800
  %v8090 = vunpack.c.l.b16 %v6801
  %v8091 = vunpack.c.h.b16 %v6801
  %v8092 = vunpack.c.l.b16 %v6802
  %v8093 = vunpack.c.h.b16 %v6802
  %v8094 = vunpack.c.l.b16 %v6803
  %v8095 = vunpack.c.h.b16 %v6803
  %v8096 = vunpack.c.l.b16 %v6804
  %v8097 = vunpack.c.h.b16 %v6804
  %v8098 = vunpack.c.l.b16 %v6805
  %v8099 = vunpack.c.h.b16 %v6805
  %v8100 = vunpack.c.l.b16 %v6806
  %v8101 = vunpack.c.h.b16 %v6806
  %v8102 = vunpack.c.l.b16 %v6807
  %v8103 = vunpack.c.h.b16 %v6807
  %v8104 = vunpack.c.l.b16 %v6808
  %v8105 = vunpack.c.h.b16 %v6808
  %v8106 = vunpack.c.l.b16 %v6809
  %v8107 = vunpack.c.h.b16 %v6809
  %v8108 = vunpack.c.l.b16 %v6810
  %v8109 = vunpack.c.h.b16 %v6810
  %v8110 = vunpack.c.l.b16 %v6811
  %v8111 = vunpack.c.h.b16 %v6811
  %v8112 = vunpack.c.l.b16 %v6812
  %v8113 = vunpack.c.h.b16 %v6812
  %v8114 = vunpack.c.l.b16 %v6813
  %v8115 = vunpack.c.h.b16 %v6813
  %v8116 = vunpack.c.l.b16 %v6814
  %v8117 = vunpack.c.h.b16 %v6814
  %v8118 = vunpack.c.l.b16 %v6815
  %v8119 = vunpack.c.h.b16 %v6815
  %v8120 = vunpack.c.l.b16 %v6816
  %v8121 = vunpack.c.h.b16 %v6816
  %v8122 = vunpack.c.l.b16 %v6817
  %v8123 = vunpack.c.h.b16 %v6817
  %v8124 = vunpack.c.l.b16 %v6818
  %v8125 = vunpack.c.h.b16 %v6818
  %v8126 = vunpack.c.l.b16 %v6819
  %v8127 = vunpack.c.h.b16 %v6819
  %v8128 = vunpack.c.l.b16 %v6820
  %v8129 = vunpack.c.h.b16 %v6820
  %v8130 = vunpack.c.l.b16 %v6821
  %v8131 = vunpack.c.h.b16 %v6821
  %v8132 = vunpack.c.l.b16 %v6822
  %v8133 = vunpack.c.h.b16 %v6822
  %v8134 = vunpack.c.l.b16 %v6823
  %v8135 = vunpack.c.h.b16 %v6823
  %v8136 = vunpack.c.l.b16 %v6824
  %v8137 = vunpack.c.h.b16 %v6824
  %v8138 = vunpack.c.l.b16 %v6825
  %v8139 = vunpack.c.h.b16 %v6825
  %v8140 = vunpack.c.l.b16 %v6826
  %v8141 = vunpack.c.h.b16 %v6826
  %v8142 = vunpack.c.l.b16 %v6827
  %v8143 = vunpack.c.h.b16 %v6827
  %v8144 = vunpack.c.l.b16 %v6828
  %v8145 = vunpack.c.h.b16 %v6828
  %v8146 = vunpack.c.l.b16 %v6829
  %v8147 = vunpack.c.h.b16 %v6829
  %v8148 = vunpack.c.l.b16 %v6830
  %v8149 = vunpack.c.h.b16 %v6830
  %v8150 = vunpack.c.l.b16 %v6831
  %v8151 = vunpack.c.h.b16 %v6831
  %v8152 = vunpack.c.l.b16 %v6832
  %v8153 = vunpack.c.h.b16 %v6832
  %v8154 = vunpack.c.l.b16 %v6833
  %v8155 = vunpack.c.h.b16 %v6833
  %v8156 = vunpack.c.l.b16 %v6834
  %v8157 = vunpack.c.h.b16 %v6834
  %v8158 = vunpack.c.l.b16 %v6835
  %v8159 = vunpack.c.h.b16 %v6835
  %v8160 = vunpack.c.l.b16 %v6836
  %v8161 = vunpack.c.h.b16 %v6836
  %v8162 = vunpack.c.l.b16 %v6837
  %v8163 = vunpack.c.h.b16 %v6837
  %v8164 = vunpack.c.l.b16 %v6838
  %v8165 = vunpack.c.h.b16 %v6838
  %v8166 = vunpack.c.l.b16 %v6839
  %v8167 = vunpack.c.h.b16 %v6839
  %v8168 = vunpack.c.l.b16 %v6840
  %v8169 = vunpack.c.h.b16 %v6840
  %v8170 = vunpack.c.l.b16 %v6841
  %v8171 = vunpack.c.h.b16 %v6841
  %v8172 = vunpack.c.l.b16 %v6842
  %v8173 = vunpack.c.h.b16 %v6842
  %v8174 = vunpack.c.l.b16 %v6843
  %v8175 = vunpack.c.h.b16 %v6843
  %v8176 = vunpack.c.l.b16 %v6844
  %v8177 = vunpack.c.h.b16 %v6844
  %v8178 = vunpack.c.l.b16 %v6845
  %v8179 = vunpack.c.h.b16 %v6845
  %v8180 = vunpack.c.l.b16 %v6846
  %v8181 = vunpack.c.h.b16 %v6846
  %v8182 = vunpack.c.l.b16 %v6847
  %v8183 = vunpack.c.h.b16 %v6847
  %v8184 = vunpack.c.l.b16 %v6848
  %v8185 = vunpack.c.h.b16 %v6848
  %v8186 = vunpack.c.l.b16 %v6849
  %v8187 = vunpack.c.h.b16 %v6849
  %v8188 = vunpack.c.l.b16 %v6850
  %v8189 = vunpack.c.h.b16 %v6850
  %v8190 = vunpack.c.l.b16 %v6851
  %v8191 = vunpack.c.h.b16 %v6851
  %v8192 = vunpack.c.l.b16 %v6852
  %v8193 = vunpack.c.h.b16 %v6852
  %v8194 = vunpack.c.l.b16 %v6853
  %v8195 = vunpack.c.h.b16 %v6853
  %v8196 = vunpack.c.l.b16 %v6854
  %v8197 = vunpack.c.h.b16 %v6854
  %v8198 = vunpack.c.l.b16 %v6855
  %v8199 = vunpack.c.h.b16 %v6855
  %v8200 = vunpack.c.l.b16 %v6856
  %v8201 = vunpack.c.h.b16 %v6856
  %v8202 = vunpack.c.l.b16 %v6857
  %v8203 = vunpack.c.h.b16 %v6857
  %v8204 = vunpack.c.l.b16 %v6858
  %v8205 = vunpack.c.h.b16 %v6858
  %v8206 = vunpack.c.l.b16 %v6859
  %v8207 = vunpack.c.h.b16 %v6859
  %v8208 = vunpack.c.l.b16 %v6860
  %v8209 = vunpack.c.h.b16 %v6860
  %v8210 = vunpack.c.l.b16 %v6861
  %v8211 = vunpack.c.h.b16 %v6861
  %v8212 = vunpack.c.l.b16 %v6862
  %v8213 = vunpack.c.h.b16 %v6862
  %v8214 = vunpack.c.l.b16 %v6863
  %v8215 = vunpack.c.h.b16 %v6863
  %v8216 = vunpack.c.l.b16 %v6864
  %v8217 = vunpack.c.h.b16 %v6864
  %v8218 = vunpack.c.l.b16 %v6865
  %v8219 = vunpack.c.h.b16 %v6865
  %v8220 = vunpack.c.l.b16 %v6866
  %v8221 = vunpack.c.h.b16 %v6866
  %v8222 = vunpack.c.l.b16 %v6867
  %v8223 = vunpack.c.h.b16 %v6867
  %v8224 = vunpack.c.l.b16 %v6868
  %v8225 = vunpack.c.h.b16 %v6868
  %v8226 = vunpack.c.l.b16 %v6869
  %v8227 = vunpack.c.h.b16 %v6869
  %v8228 = vunpack.c.l.b16 %v6870
  %v8229 = vunpack.c.h.b16 %v6870
  %v8230 = vunpack.c.l.b16 %v6871
  %v8231 = vunpack.c.h.b16 %v6871
  %v8232 = vunpack.c.l.b16 %v6872
  %v8233 = vunpack.c.h.b16 %v6872
  %v8234 = vunpack.c.l.b16 %v6873
  %v8235 = vunpack.c.h.b16 %v6873
  %v8236 = vunpack.c.l.b16 %v6874
  %v8237 = vunpack.c.h.b16 %v6874
  %v8238 = vunpack.c.l.b16 %v6875
  %v8239 = vunpack.c.h.b16 %v6875
  %v8240 = vunpack.c.l.b16 %v6876
  %v8241 = vunpack.c.h.b16 %v6876
  %v8242 = vunpack.c.l.b16 %v6877
  %v8243 = vunpack.c.h.b16 %v6877
  %v8244 = vunpack.c.l.b16 %v6878
  %v8245 = vunpack.c.h.b16 %v6878
  %v8246 = vunpack.c.l.b16 %v6879
  %v8247 = vunpack.c.h.b16 %v6879
  %v8248 = vunpack.c.l.b16 %v6880
  %v8249 = vunpack.c.h.b16 %v6880
  %v8250 = vunpack.c.l.b16 %v6881
  %v8251 = vunpack.c.h.b16 %v6881
  %v8252 = vunpack.c.l.b16 %v6882
  %v8253 = vunpack.c.h.b16 %v6882
  %v8254 = vunpack.c.l.b16 %v6883
  %v8255 = vunpack.c.h.b16 %v6883
  %v8256 = vunpack.c.l.b16 %v6884
  %v8257 = vunpack.c.h.b16 %v6884
  %v8258 = vunpack.c.l.b16 %v6885
  %v8259 = vunpack.c.h.b16 %v6885
  %v8260 = vunpack.c.l.b16 %v6886
  %v8261 = vunpack.c.h.b16 %v6886
  %v8262 = vunpack.c.l.b16 %v6887
  %v8263 = vunpack.c.h.b16 %v6887
  %v8264 = vunpack.c.l.b16 %v6888
  %v8265 = vunpack.c.h.b16 %v6888
  %v8266 = vunpack.c.l.b16 %v6889
  %v8267 = vunpack.c.h.b16 %v6889
  %v8268 = vunpack.c.l.b16 %v6890
  %v8269 = vunpack.c.h.b16 %v6890
  %v8270 = vunpack.c.l.b16 %v6891
  %v8271 = vunpack.c.h.b16 %v6891
  %v8272 = vunpack.c.l.b16 %v6892
  %v8273 = vunpack.c.h.b16 %v6892
  %v8274 = vunpack.c.l.b16 %v6893
  %v8275 = vunpack.c.h.b16 %v6893
  %v8276 = vunpack.c.l.b16 %v6894
  %v8277 = vunpack.c.h.b16 %v6894
  %v8278 = vunpack.c.l.b16 %v6895
  %v8279 = vunpack.c.h.b16 %v6895
  %v8280 = vunpack.c.l.b16 %v6896
  %v8281 = vunpack.c.h.b16 %v6896
  %v8282 = vunpack.c.l.b16 %v6897
  %v8283 = vunpack.c.h.b16 %v6897
  %v8284 = vunpack.c.l.b16 %v6898
  %v8285 = vunpack.c.h.b16 %v6898
  %v8286 = vunpack.c.l.b16 %v6899
  %v8287 = vunpack.c.h.b16 %v6899
  %v8288 = vunpack.c.l.b16 %v6900
  %v8289 = vunpack.c.h.b16 %v6900
  %v8290 = vunpack.c.l.b16 %v6901
  %v8291 = vunpack.c.h.b16 %v6901
  %v8292 = vunpack.c.l.b16 %v6902
  %v8293 = vunpack.c.h.b16 %v6902
  %v8294 = vunpack.c.l.b16 %v6903
  %v8295 = vunpack.c.h.b16 %v6903
  %v8296 = vunpack.c.l.b16 %v6904
  %v8297 = vunpack.c.h.b16 %v6904
  %v8298 = vunpack.c.l.b16 %v6905
  %v8299 = vunpack.c.h.b16 %v6905
  %v8300 = vunpack.c.l.b16 %v6906
  %v8301 = vunpack.c.h.b16 %v6906
  %v8302 = vunpack.c.l.b16 %v6907
  %v8303 = vunpack.c.h.b16 %v6907
  %v8304 = vunpack.c.l.b16 %v6908
  %v8305 = vunpack.c.h.b16 %v6908
  %v8306 = vunpack.c.l.b16 %v6909
  %v8307 = vunpack.c.h.b16 %v6909
  %v8308 = vunpack.c.l.b16 %v6910
  %v8309 = vunpack.c.h.b16 %v6910
  %v8310 = vunpack.c.l.b16 %v6911
  %v8311 = vunpack.c.h.b16 %v6911
  %v8312 = vunpack.c.l.b16 %v6912
  %v8313 = vunpack.c.h.b16 %v6912
  %v8314 = vunpack.c.l.b16 %v6913
  %v8315 = vunpack.c.h.b16 %v6913
  %v8316 = vunpack.c.l.b16 %v6914
  %v8317 = vunpack.c.h.b16 %v6914
  %v8318 = vunpack.c.l.b16 %v6915
  %v8319 = vunpack.c.h.b16 %v6915
  %v8320 = vunpack.c.l.b16 %v6916
  %v8321 = vunpack.c.h.b16 %v6916
  %v8322 = vunpack.c.l.b16 %v6917
  %v8323 = vunpack.c.h.b16 %v6917
  %v8324 = vunpack.c.l.b16 %v6918
  %v8325 = vunpack.c.h.b16 %v6918
  %v8326 = vunpack.c.l.b16 %v6919
  %v8327 = vunpack.c.h.b16 %v6919
  %v8328 = vunpack.c.l.b16 %v6920
  %v8329 = vunpack.c.h.b16 %v6920
  %v8330 = vunpack.c.l.b16 %v6921
  %v8331 = vunpack.c.h.b16 %v6921
  %v8332 = vunpack.c.l.b16 %v6922
  %v8333 = vunpack.c.h.b16 %v6922
  %v8334 = vunpack.c.l.b16 %v6923
  %v8335 = vunpack.c.h.b16 %v6923
  %v8336 = vunpack.c.l.b16 %v6924
  %v8337 = vunpack.c.h.b16 %v6924
  %v8338 = vunpack.c.l.b16 %v6925
  %v8339 = vunpack.c.h.b16 %v6925
  %v8340 = vunpack.c.l.b16 %v6926
  %v8341 = vunpack.c.h.b16 %v6926
  %v8342 = vunpack.c.l.b16 %v6927
  %v8343 = vunpack.c.h.b16 %v6927
  %v8344 = vunpack.c.l.b16 %v6928
  %v8345 = vunpack.c.h.b16 %v6928
  %v8346 = vunpack.c.l.b16 %v6929
  %v8347 = vunpack.c.h.b16 %v6929
  %v8348 = vunpack.c.l.b16 %v6930
  %v8349 = vunpack.c.h.b16 %v6930
  %v8350 = vunpack.c.l.b16 %v6931
  %v8351 = vunpack.c.h.b16 %v6931
  %v8352 = vunpack.c.l.b16 %v6932
  %v8353 = vunpack.c.h.b16 %v6932
  %v8354 = vunpack.c.l.b16 %v6933
  %v8355 = vunpack.c.h.b16 %v6933
  %v8356 = vunpack.c.l.b16 %v6934
  %v8357 = vunpack.c.h.b16 %v6934
  %v8358 = vunpack.c.l.b16 %v6935
  %v8359 = vunpack.c.h.b16 %v6935
  %v8360 = vunpack.c.l.b16 %v6936
  %v8361 = vunpack.c.h.b16 %v6936
  %v8362 = vunpack.c.l.b16 %v6937
  %v8363 = vunpack.c.h.b16 %v6937
  %v8364 = vunpack.c.l.b16 %v6938
  %v8365 = vunpack.c.h.b16 %v6938
  %v8366 = vunpack.c.l.b16 %v6939
  %v8367 = vunpack.c.h.b16 %v6939
  %v8368 = vunpack.c.l.b16 %v6940
  %v8369 = vunpack.c.h.b16 %v6940
  %v8370 = vunpack.c.l.b16 %v6941
  %v8371 = vunpack.c.h.b16 %v6941
  %v8372 = vunpack.c.l.b16 %v6942
  %v8373 = vunpack.c.h.b16 %v6942
  %v8374 = vunpack.c.l.b16 %v6943
  %v8375 = vunpack.c.h.b16 %v6943
  %v8376 = vunpack.c.l.b16 %v6944
  %v8377 = vunpack.c.h.b16 %v6944
  %v8378 = vunpack.c.l.b16 %v6945
  %v8379 = vunpack.c.h.b16 %v6945
  %v8380 = vunpack.c.l.b16 %v6946
  %v8381 = vunpack.c.h.b16 %v6946
  %v8382 = vunpack.c.l.b16 %v6947
  %v8383 = vunpack.c.h.b16 %v6947
  %v8384 = vunpack.c.l.b16 %v6948
  %v8385 = vunpack.c.h.b16 %v6948
  %v8386 = vunpack.c.l.b16 %v6949
  %v8387 = vunpack.c.h.b16 %v6949
  %v8388 = vunpack.c.l.b16 %v6950
  %v8389 = vunpack.c.h.b16 %v6950
  %v8390 = vunpack.c.l.b16 %v6951
  %v8391 = vunpack.c.h.b16 %v6951
  %v8392 = vunpack.c.l.b16 %v6952
  %v8393 = vunpack.c.h.b16 %v6952
  %v8394 = vunpack.c.l.b16 %v6953
  %v8395 = vunpack.c.h.b16 %v6953
  %v8396 = vunpack.c.l.b16 %v6954
  %v8397 = vunpack.c.h.b16 %v6954
  %v8398 = vunpack.c.l.b16 %v6955
  %v8399 = vunpack.c.h.b16 %v6955
  %v8400 = vunpack.c.l.b16 %v6956
  %v8401 = vunpack.c.h.b16 %v6956
  %v8402 = vunpack.c.l.b16 %v6957
  %v8403 = vunpack.c.h.b16 %v6957
  %v8404 = vunpack.c.l.b16 %v6958
  %v8405 = vunpack.c.h.b16 %v6958
  %v8406 = vunpack.c.l.b16 %v6959
  %v8407 = vunpack.c.h.b16 %v6959
  %v8408 = vunpack.c.l.b16 %v6960
  %v8409 = vunpack.c.h.b16 %v6960
  %v8410 = vunpack.c.l.b16 %v6961
  %v8411 = vunpack.c.h.b16 %v6961
  %v8412 = vunpack.c.l.b16 %v6962
  %v8413 = vunpack.c.h.b16 %v6962
  %v8414 = vunpack.c.l.b16 %v6963
  %v8415 = vunpack.c.h.b16 %v6963
  %v8416 = vunpack.c.l.b16 %v6964
  %v8417 = vunpack.c.h.b16 %v6964
  %v8418 = vunpack.c.l.b16 %v6965
  %v8419 = vunpack.c.h.b16 %v6965
  %v8420 = vunpack.c.l.b16 %v6966
  %v8421 = vunpack.c.h.b16 %v6966
  %v8422 = vunpack.c.l.b16 %v6967
  %v8423 = vunpack.c.h.b16 %v6967
  %v8424 = vunpack.c.l.b16 %v6968
  %v8425 = vunpack.c.h.b16 %v6968
  %v8426 = vunpack.c.l.b16 %v6969
  %v8427 = vunpack.c.h.b16 %v6969
  %v8428 = vunpack.c.l.b16 %v6970
  %v8429 = vunpack.c.h.b16 %v6970
  %v8430 = vunpack.c.l.b16 %v6971
  %v8431 = vunpack.c.h.b16 %v6971
  %v8432 = vunpack.c.l.b16 %v6972
  %v8433 = vunpack.c.h.b16 %v6972
  %v8434 = vunpack.c.l.b16 %v6973
  %v8435 = vunpack.c.h.b16 %v6973
  %v8436 = vunpack.c.l.b16 %v6974
  %v8437 = vunpack.c.h.b16 %v6974
  %v8438 = vunpack.c.l.b16 %v6975
  %v8439 = vunpack.c.h.b16 %v6975
  %v8440 = vunpack.c.l.b16 %v6976
  %v8441 = vunpack.c.h.b16 %v6976
  %v8442 = vunpack.c.l.b16 %v6977
  %v8443 = vunpack.c.h.b16 %v6977
  %v8444 = vunpack.c.l.b16 %v6978
  %v8445 = vunpack.c.h.b16 %v6978
  %v8446 = vunpack.c.l.b16 %v6979
  %v8447 = vunpack.c.h.b16 %v6979
  %v8448 = vunpack.c.l.b16 %v6980
  %v8449 = vunpack.c.h.b16 %v6980
  %v8450 = vunpack.c.l.b16 %v6981
  %v8451 = vunpack.c.h.b16 %v6981
  %v8452 = vunpack.c.l.b16 %v6982
  %v8453 = vunpack.c.h.b16 %v6982
  %v8454 = vunpack.c.l.b16 %v6983
  %v8455 = vunpack.c.h.b16 %v6983
  %v8456 = vunpack.c.l.b16 %v6984
  %v8457 = vunpack.c.h.b16 %v6984
  %v8458 = vunpack.c.l.b16 %v6985
  %v8459 = vunpack.c.h.b16 %v6985
  %v8460 = vunpack.c.l.b16 %v6986
  %v8461 = vunpack.c.h.b16 %v6986
  %v8462 = vunpack.c.l.b16 %v6987
  %v8463 = vunpack.c.h.b16 %v6987
  %v8464 = vunpack.c.l.b16 %v6988
  %v8465 = vunpack.c.h.b16 %v6988
  %v8466 = vunpack.c.l.b16 %v6989
  %v8467 = vunpack.c.h.b16 %v6989
  %v8468 = vunpack.c.l.b16 %v6990
  %v8469 = vunpack.c.h.b16 %v6990
  %v8470 = vunpack.c.l.b16 %v6991
  %v8471 = vunpack.c.h.b16 %v6991
  %v8472 = vunpack.c.l.b16 %v6992
  %v8473 = vunpack.c.h.b16 %v6992
  %v8474 = vunpack.c.l.b16 %v6993
  %v8475 = vunpack.c.h.b16 %v6993
  %v8476 = vunpack.c.l.b16 %v6994
  %v8477 = vunpack.c.h.b16 %v6994
  %v8478 = vunpack.c.l.b16 %v6995
  %v8479 = vunpack.c.h.b16 %v6995
  %v8480 = vunpack.c.l.b16 %v6996
  %v8481 = vunpack.c.h.b16 %v6996
  %v8482 = vunpack.c.l.b16 %v6997
  %v8483 = vunpack.c.h.b16 %v6997
  %v8484 = vunpack.c.l.b16 %v6998
  %v8485 = vunpack.c.h.b16 %v6998
  %v8486 = vunpack.c.l.b16 %v6999
  %v8487 = vunpack.c.h.b16 %v6999
  %v8488 = vunpack.c.l.b16 %v7000
  %v8489 = vunpack.c.h.b16 %v7000
  %v8490 = vunpack.c.l.b16 %v7001
  %v8491 = vunpack.c.h.b16 %v7001
  %v8492 = vunpack.c.l.b16 %v7002
  %v8493 = vunpack.c.h.b16 %v7002
  %v8494 = vunpack.c.l.b16 %v7003
  %v8495 = vunpack.c.h.b16 %v7003
  %v8496 = vunpack.c.l.b16 %v7004
  %v8497 = vunpack.c.h.b16 %v7004
  %v8498 = vunpack.c.l.b16 %v7005
  %v8499 = vunpack.c.h.b16 %v7005
  %v8500 = vunpack.c.l.b16 %v7006
  %v8501 = vunpack.c.h.b16 %v7006
  %v8502 = vunpack.c.l.b16 %v7007
  %v8503 = vunpack.c.h.b16 %v7007
  %v8504 = vunpack.c.l.b16 %v7008
  %v8505 = vunpack.c.h.b16 %v7008
  %v8506 = vunpack.c.l.b16 %v7009
  %v8507 = vunpack.c.h.b16 %v7009
  %v8508 = vunpack.c.l.b16 %v7010
  %v8509 = vunpack.c.h.b16 %v7010
  %v8510 = vunpack.c.l.b16 %v7011
  %v8511 = vunpack.c.h.b16 %v7011
  %v8512 = vunpack.c.l.b16 %v7012
  %v8513 = vunpack.c.h.b16 %v7012
  %v8514 = vunpack.c.l.b16 %v7013
  %v8515 = vunpack.c.h.b16 %v7013
  %v8516 = vunpack.c.l.b16 %v7014
  %v8517 = vunpack.c.h.b16 %v7014
  %v8518 = vunpack.c.l.b16 %v7015
  %v8519 = vunpack.c.h.b16 %v7015
  %v8520 = vunpack.c.l.b16 %v7016
  %v8521 = vunpack.c.h.b16 %v7016
  %v8522 = vunpack.c.l.b16 %v7017
  %v8523 = vunpack.c.h.b16 %v7017
  %v8524 = vunpack.c.l.b16 %v7018
  %v8525 = vunpack.c.h.b16 %v7018
  %v8526 = vunpack.c.l.b16 %v7019
  %v8527 = vunpack.c.h.b16 %v7019
  %v8528 = vunpack.c.l.b16 %v7020
  %v8529 = vunpack.c.h.b16 %v7020
  %v8530 = vunpack.c.l.b16 %v7021
  %v8531 = vunpack.c.h.b16 %v7021
  %v8532 = vunpack.c.l.b16 %v7022
  %v8533 = vunpack.c.h.b16 %v7022
  %v8534 = vunpack.c.l.b16 %v7023
  %v8535 = vunpack.c.h.b16 %v7023
  %v8536 = vunpack.c.l.b16 %v7024
  %v8537 = vunpack.c.h.b16 %v7024
  %v8538 = vunpack.c.l.b16 %v7025
  %v8539 = vunpack.c.h.b16 %v7025
  %v8540 = vunpack.c.l.b16 %v7026
  %v8541 = vunpack.c.h.b16 %v7026
  %v8542 = vunpack.c.l.b16 %v7027
  %v8543 = vunpack.c.h.b16 %v7027
  %v8544 = vunpack.c.l.b16 %v7028
  %v8545 = vunpack.c.h.b16 %v7028
  %v8546 = vunpack.c.l.b16 %v7029
  %v8547 = vunpack.c.h.b16 %v7029
  %v8548 = vunpack.c.l.b16 %v7030
  %v8549 = vunpack.c.h.b16 %v7030
  %v8550 = vunpack.c.l.b16 %v7031
  %v8551 = vunpack.c.h.b16 %v7031
  %v8552 = vunpack.c.l.b16 %v7032
  %v8553 = vunpack.c.h.b16 %v7032
  %v8554 = vunpack.c.l.b16 %v7033
  %v8555 = vunpack.c.h.b16 %v7033
  %v8556 = vunpack.c.l.b16 %v7034
  %v8557 = vunpack.c.h.b16 %v7034
  %v8558 = vunpack.c.l.b16 %v7035
  %v8559 = vunpack.c.h.b16 %v7035
  %v8560 = vunpack.c.l.b16 %v7036
  %v8561 = vunpack.c.h.b16 %v7036
  %v8562 = vunpack.c.l.b16 %v7037
  %v8563 = vunpack.c.h.b16 %v7037
  %v8564 = vunpack.c.l.b16 %v7038
  %v8565 = vunpack.c.h.b16 %v7038
  %v8566 = vunpack.c.l.b16 %v7039
  %v8567 = vunpack.c.h.b16 %v7039
  %v8568 = vunpack.c.l.b16 %v7040
  %v8569 = vunpack.c.h.b16 %v7040
  %v8570 = vunpack.c.l.b16 %v7041
  %v8571 = vunpack.c.h.b16 %v7041
  %v8572 = vunpack.c.l.b16 %v7042
  %v8573 = vunpack.c.h.b16 %v7042
  %v8574 = vunpack.c.l.b16 %v7043
  %v8575 = vunpack.c.h.b16 %v7043
  %v8576 = vunpack.c.l.b16 %v7044
  %v8577 = vunpack.c.h.b16 %v7044
  %v8578 = vunpack.c.l.b16 %v7045
  %v8579 = vunpack.c.h.b16 %v7045
  %v8580 = vunpack.c.l.b16 %v7046
  %v8581 = vunpack.c.h.b16 %v7046
  %v8582 = vunpack.c.l.b16 %v7047
  %v8583 = vunpack.c.h.b16 %v7047
  %v8584 = vpack.c.b16 %v7568, %v7560
  %v8585 = vpack.c.b16 %v7569, %v7561
  %v8586 = vpack.c.b16 %v7570, %v7562
  %v8587 = vpack.c.b16 %v7571, %v7563
  %v8588 = vpack.c.b16 %v7572, %v7564
  %v8589 = vpack.c.b16 %v7573, %v7565
  %v8590 = vpack.c.b16 %v7574, %v7566
  %v8591 = vpack.c.b16 %v7575, %v7567
  %v8592 = vpack.c.b16 %v7584, %v7576
  %v8593 = vpack.c.b16 %v7585, %v7577
  %v8594 = vpack.c.b16 %v7586, %v7578
  %v8595 = vpack.c.b16 %v7587, %v7579
  %v8596 = vpack.c.b16 %v7588, %v7580
  %v8597 = vpack.c.b16 %v7589, %v7581
  %v8598 = vpack.c.b16 %v7590, %v7582
  %v8599 = vpack.c.b16 %v7591, %v7583
  %v8600 = vpack.c.b16 %v7600, %v7592
  %v8601 = vpack.c.b16 %v7601, %v7593
  %v8602 = vpack.c.b16 %v7602, %v7594
  %v8603 = vpack.c.b16 %v7603, %v7595
  %v8604 = vpack.c.b16 %v7604, %v7596
  %v8605 = vpack.c.b16 %v7605, %v7597
  %v8606 = vpack.c.b16 %v7606, %v7598
  %v8607 = vpack.c.b16 %v7607, %v7599
  %v8608 = vpack.c.b16 %v7616, %v7608
  %v8609 = vpack.c.b16 %v7617, %v7609
  %v8610 = vpack.c.b16 %v7618, %v7610
  %v8611 = vpack.c.b16 %v7619, %v7611
  %v8612 = vpack.c.b16 %v7620, %v7612
  %v8613 = vpack.c.b16 %v7621, %v7613
  %v8614 = vpack.c.b16 %v7622, %v7614
  %v8615 = vpack.c.b16 %v7623, %v7615
  %v8616 = vpack.c.b16 %v7632, %v7624
  %v8617 = vpack.c.b16 %v7633, %v7625
  %v8618 = vpack.c.b16 %v7634, %v7626
  %v8619 = vpack.c.b16 %v7635, %v7627
  %v8620 = vpack.c.b16 %v7636, %v7628
  %v8621 = vpack.c.b16 %v7637, %v7629
  %v8622 = vpack.c.b16 %v7638, %v7630
  %v8623 = vpack.c.b16 %v7639, %v7631
  %v8624 = vpack.c.b16 %v7648, %v7640
  %v8625 = vpack.c.b16 %v7649, %v7641
  %v8626 = vpack.c.b16 %v7650, %v7642
  %v8627 = vpack.c.b16 %v7651, %v7643
  %v8628 = vpack.c.b16 %v7652, %v7644
  %v8629 = vpack.c.b16 %v7653, %v7645
  %v8630 = vpack.c.b16 %v7654, %v7646
  %v8631 = vpack.c.b16 %v7655, %v7647
  %v8632 = vpack.c.b16 %v7664, %v7656
  %v8633 = vpack.c.b16 %v7665, %v7657
  %v8634 = vpack.c.b16 %v7666, %v7658
  %v8635 = vpack.c.b16 %v7667, %v7659
  %v8636 = vpack.c.b16 %v7668, %v7660
  %v8637 = vpack.c.b16 %v7669, %v7661
  %v8638 = vpack.c.b16 %v7670, %v7662
  %v8639 = vpack.c.b16 %v7671, %v7663
  %v8640 = vpack.c.b16 %v7680, %v7672
  %v8641 = vpack.c.b16 %v7681, %v7673
  %v8642 = vpack.c.b16 %v7682, %v7674
  %v8643 = vpack.c.b16 %v7683, %v7675
  %v8644 = vpack.c.b16 %v7684, %v7676
  %v8645 = vpack.c.b16 %v7685, %v7677
  %v8646 = vpack.c.b16 %v7686, %v7678
  %v8647 = vpack.c.b16 %v7687, %v7679
  %v8648 = vpack.c.b16 %v7696, %v7688
  %v8649 = vpack.c.b16 %v7697, %v7689
  %v8650 = vpack.c.b16 %v7698, %v7690
  %v8651 = vpack.c.b16 %v7699, %v7691
  %v8652 = vpack.c.b16 %v7700, %v7692
  %v8653 = vpack.c.b16 %v7701, %v7693
  %v8654 = vpack.c.b16 %v7702, %v7694
  %v8655 = vpack.c.b16 %v7703, %v7695
  %v8656 = vpack.c.b16 %v7712, %v7704
  %v8657 = vpack.c.b16 %v7713, %v7705
  %v8658 = vpack.c.b16 %v7714, %v7706
  %v8659 = vpack.c.b16 %v7715, %v7707
  %v8660 = vpack.c.b16 %v7716, %v7708
  %v8661 = vpack.c.b16 %v7717, %v7709
  %v8662 = vpack.c.b16 %v7718, %v7710
  %v8663 = vpack.c.b16 %v7719, %v7711
  %v8664 = vpack.c.b16 %v7728, %v7720
  %v8665 = vpack.c.b16 %v7729, %v7721
  %v8666 = vpack.c.b16 %v7730, %v7722
  %v8667 = vpack.c.b16 %v7731, %v7723
  %v8668 = vpack.c.b16 %v7732, %v7724
  %v8669 = vpack.c.b16 %v7733, %v7725
  %v8670 = vpack.c.b16 %v7734, %v7726
  %v8671 = vpack.c.b16 %v7735, %v7727
  %v8672 = vpack.c.b16 %v7744, %v7736
  %v8673 = vpack.c.b16 %v7745, %v7737
  %v8674 = vpack.c.b16 %v7746, %v7738
  %v8675 = vpack.c.b16 %v7747, %v7739
  %v8676 = vpack.c.b16 %v7748, %v7740
  %v8677 = vpack.c.b16 %v7749, %v7741
  %v8678 = vpack.c.b16 %v7750, %v7742
  %v8679 = vpack.c.b16 %v7751, %v7743
  %v8680 = vpack.c.b16 %v7760, %v7752
  %v8681 = vpack.c.b16 %v7761, %v7753
  %v8682 = vpack.c.b16 %v7762, %v7754
  %v8683 = vpack.c.b16 %v7763, %v7755
  %v8684 = vpack.c.b16 %v7764, %v7756
  %v8685 = vpack.c.b16 %v7765, %v7757
  %v8686 = vpack.c.b16 %v7766, %v7758
  %v8687 = vpack.c.b16 %v7767, %v7759
  %v8688 = vpack.c.b16 %v7776, %v7768
  %v8689 = vpack.c.b16 %v7777, %v7769
  %v8690 = vpack.c.b16 %v7778, %v7770
  %v8691 = vpack.c.b16 %v7779, %v7771
  %v8692 = vpack.c.b16 %v7780, %v7772
  %v8693 = vpack.c.b16 %v7781, %v7773
  %v8694 = vpack.c.b16 %v7782, %v7774
  %v8695 = vpack.c.b16 %v7783, %v7775
  %v8696 = vpack.c.b16 %v7792, %v7784
  %v8697 = vpack.c.b16 %v7793, %v7785
  %v8698 = vpack.c.b16 %v7794, %v7786
  %v8699 = vpack.c.b16 %v7795, %v7787
  %v8700 = vpack.c.b16 %v7796, %v7788
  %v8701 = vpack.c.b16 %v7797, %v7789
  %v8702 = vpack.c.b16 %v7798, %v7790
  %v8703 = vpack.c.b16 %v7799, %v7791
  %v8704 = vpack.c.b16 %v7808, %v7800
  %v8705 = vpack.c.b16 %v7809, %v7801
  %v8706 = vpack.c.b16 %v7810, %v7802
  %v8707 = vpack.c.b16 %v7811, %v7803
  %v8708 = vpack.c.b16 %v7812, %v7804
  %v8709 = vpack.c.b16 %v7813, %v7805
  %v8710 = vpack.c.b16 %v7814, %v7806
  %v8711 = vpack.c.b16 %v7815, %v7807
  %v8712 = vpack.c.b16 %v7824, %v7816
  %v8713 = vpack.c.b16 %v7825, %v7817
  %v8714 = vpack.c.b16 %v7826, %v7818
  %v8715 = vpack.c.b16 %v7827, %v7819
  %v8716 = vpack.c.b16 %v7828, %v7820
  %v8717 = vpack.c.b16 %v7829, %v7821
  %v8718 = vpack.c.b16 %v7830, %v7822
  %v8719 = vpack.c.b16 %v7831, %v7823
  %v8720 = vpack.c.b16 %v7840, %v7832
  %v8721 = vpack.c.b16 %v7841, %v7833
  %v8722 = vpack.c.b16 %v7842, %v7834
  %v8723 = vpack.c.b16 %v7843, %v7835
  %v8724 = vpack.c.b16 %v7844, %v7836
  %v8725 = vpack.c.b16 %v7845, %v7837
  %v8726 = vpack.c.b16 %v7846, %v7838
  %v8727 = vpack.c.b16 %v7847, %v7839
  %v8728 = vpack.c.b16 %v7856, %v7848
  %v8729 = vpack.c.b16 %v7857, %v7849
  %v8730 = vpack.c.b16 %v7858, %v7850
  %v8731 = vpack.c.b16 %v7859, %v7851
  %v8732 = vpack.c.b16 %v7860, %v7852
  %v8733 = vpack.c.b16 %v7861, %v7853
  %v8734 = vpack.c.b16 %v7862, %v7854
  %v8735 = vpack.c.b16 %v7863, %v7855
  %v8736 = vpack.c.b16 %v7872, %v7864
  %v8737 = vpack.c.b16 %v7873, %v7865
  %v8738 = vpack.c.b16 %v7874, %v7866
  %v8739 = vpack.c.b16 %v7875, %v7867
  %v8740 = vpack.c.b16 %v7876, %v7868
  %v8741 = vpack.c.b16 %v7877, %v7869
  %v8742 = vpack.c.b16 %v7878, %v7870
  %v8743 = vpack.c.b16 %v7879, %v7871
  %v8744 = vpack.c.b16 %v7888, %v7880
  %v8745 = vpack.c.b16 %v7889, %v7881
  %v8746 = vpack.c.b16 %v7890, %v7882
  %v8747 = vpack.c.b16 %v7891, %v7883
  %v8748 = vpack.c.b16 %v7892, %v7884
  %v8749 = vpack.c.b16 %v7893, %v7885
  %v8750 = vpack.c.b16 %v7894, %v7886
  %v8751 = vpack.c.b16 %v7895, %v7887
  %v8752 = vpack.c.b16 %v7904, %v7896
  %v8753 = vpack.c.b16 %v7905, %v7897
  %v8754 = vpack.c.b16 %v7906, %v7898
  %v8755 = vpack.c.b16 %v7907, %v7899
  %v8756 = vpack.c.b16 %v7908, %v7900
  %v8757 = vpack.c.b16 %v7909, %v7901
  %v8758 = vpack.c.b16 %v7910, %v7902
  %v8759 = vpack.c.b16 %v7911, %v7903
  %v8760 = vpack.c.b16 %v7920, %v7912
  %v8761 = vpack.c.b16 %v7921, %v7913
  %v8762 = vpack.c.b16 %v7922, %v7914
  %v8763 = vpack.c.b16 %v7923, %v7915
  %v8764 = vpack.c.b16 %v7924, %v7916
  %v8765 = vpack.c.b16 %v7925, %v7917
  %v8766 = vpack.c.b16 %v7926, %v7918
  %v8767 = vpack.c.b16 %v7927, %v7919
  %v8768 = vpack.c.b16 %v7936, %v7928
  %v8769 = vpack.c.b16 %v7937, %v7929
  %v8770 = vpack.c.b16 %v7938, %v7930
  %v8771 = vpack.c.b16 %v7939, %v7931
  %v8772 = vpack.c.b16 %v7940, %v7932
  %v8773 = vpack.c.b16 %v7941, %v7933
  %v8774 = vpack.c.b16 %v7942, %v7934
  %v8775 = vpack.c.b16 %v7943, %v7935
  %v8776 = vpack.c.b16 %v7952, %v7944
  %v8777 = vpack.c.b16 %v7953, %v7945
  %v8778 = vpack.c.b16 %v7954, %v7946
  %v8779 = vpack.c.b16 %v7955, %v7947
  %v8780 = vpack.c.b16 %v7956, %v7948
  %v8781 = vpack.c.b16 %v7957, %v7949
  %v8782 = vpack.c.b16 %v7958, %v7950
  %v8783 = vpack.c.b16 %v7959, %v7951
  %v8784 = vpack.c.b16 %v7968, %v7960
  %v8785 = vpack.c.b16 %v7969, %v7961
  %v8786 = vpack.c.b16 %v7970, %v7962
  %v8787 = vpack.c.b16 %v7971, %v7963
  %v8788 = vpack.c.b16 %v7972, %v7964
  %v8789 = vpack.c.b16 %v7973, %v7965
  %v8790 = vpack.c.b16 %v7974, %v7966
  %v8791 = vpack.c.b16 %v7975, %v7967
  %v8792 = vpack.c.b16 %v7984, %v7976
  %v8793 = vpack.c.b16 %v7985, %v7977
  %v8794 = vpack.c.b16 %v7986, %v7978
  %v8795 = vpack.c.b16 %v7987, %v7979
  %v8796 = vpack.c.b16 %v7988, %v7980
  %v8797 = vpack.c.b16 %v7989, %v7981
  %v8798 = vpack.c.b16 %v7990, %v7982
  %v8799 = vpack.c.b16 %v7991, %v7983
  %v8800 = vpack.c.b16 %v8000, %v7992
  %v8801 = vpack.c.b16 %v8001, %v7993
  %v8802 = vpack.c.b16 %v8002, %v7994
  %v8803 = vpack.c.b16 %v8003, %v7995
  %v8804 = vpack.c.b16 %v8004, %v7996
  %v8805 = vpack.c.b16 %v8005, %v7997
  %v8806 = vpack.c.b16 %v8006, %v7998
  %v8807 = vpack.c.b16 %v8007, %v7999
  %v8808 = vpack.c.b16 %v8016, %v8008
  %v8809 = vpack.c.b16 %v8017, %v8009
  %v8810 = vpack.c.b16 %v8018, %v8010
  %v8811 = vpack.c.b16 %v8019, %v8011
  %v8812 = vpack.c.b16 %v8020, %v8012
  %v8813 = vpack.c.b16 %v8021, %v8013
  %v8814 = vpack.c.b16 %v8022, %v8014
  %v8815 = vpack.c.b16 %v8023, %v8015
  %v8816 = vpack.c.b16 %v8032, %v8024
  %v8817 = vpack.c.b16 %v8033, %v8025
  %v8818 = vpack.c.b16 %v8034, %v8026
  %v8819 = vpack.c.b16 %v8035, %v8027
  %v8820 = vpack.c.b16 %v8036, %v8028
  %v8821 = vpack.c.b16 %v8037, %v8029
  %v8822 = vpack.c.b16 %v8038, %v8030
  %v8823 = vpack.c.b16 %v8039, %v8031
  %v8824 = vpack.c.b16 %v8048, %v8040
  %v8825 = vpack.c.b16 %v8049, %v8041
  %v8826 = vpack.c.b16 %v8050, %v8042
  %v8827 = vpack.c.b16 %v8051, %v8043
  %v8828 = vpack.c.b16 %v8052, %v8044
  %v8829 = vpack.c.b16 %v8053, %v8045
  %v8830 = vpack.c.b16 %v8054, %v8046
  %v8831 = vpack.c.b16 %v8055, %v8047
  %v8832 = vpack.c.b16 %v8064, %v8056
  %v8833 = vpack.c.b16 %v8065, %v8057
  %v8834 = vpack.c.b16 %v8066, %v8058
  %v8835 = vpack.c.b16 %v8067, %v8059
  %v8836 = vpack.c.b16 %v8068, %v8060
  %v8837 = vpack.c.b16 %v8069, %v8061
  %v8838 = vpack.c.b16 %v8070, %v8062
  %v8839 = vpack.c.b16 %v8071, %v8063
  %v8840 = vpack.c.b16 %v8080, %v8072
  %v8841 = vpack.c.b16 %v8081, %v8073
  %v8842 = vpack.c.b16 %v8082, %v8074
  %v8843 = vpack.c.b16 %v8083, %v8075
  %v8844 = vpack.c.b16 %v8084, %v8076
  %v8845 = vpack.c.b16 %v8085, %v8077
  %v8846 = vpack.c.b16 %v8086, %v8078
  %v8847 = vpack.c.b16 %v8087, %v8079
  %v8848 = vpack.c.b16 %v8096, %v8088
  %v8849 = vpack.c.b16 %v8097, %v8089
  %v8850 = vpack.c.b16 %v8098, %v8090
  %v8851 = vpack.c.b16 %v8099, %v8091
  %v8852 = vpack.c.b16 %v8100, %v8092
  %v8853 = vpack.c.b16 %v8101, %v8093
  %v8854 = vpack.c.b16 %v8102, %v8094
  %v8855 = vpack.c.b16 %v8103, %v8095
  %v8856 = vpack.c.b16 %v8112, %v8104
  %v8857 = vpack.c.b16 %v8113, %v8105
  %v8858 = vpack.c.b16 %v8114, %v8106
  %v8859 = vpack.c.b16 %v8115, %v8107
  %v8860 = vpack.c.b16 %v8116, %v8108
  %v8861 = vpack.c.b16 %v8117, %v8109
  %v8862 = vpack.c.b16 %v8118, %v8110
  %v8863 = vpack.c.b16 %v8119, %v8111
  %v8864 = vpack.c.b16 %v8128, %v8120
  %v8865 = vpack.c.b16 %v8129, %v8121
  %v8866 = vpack.c.b16 %v8130, %v8122
  %v8867 = vpack.c.b16 %v8131, %v8123
  %v8868 = vpack.c.b16 %v8132, %v8124
  %v8869 = vpack.c.b16 %v8133, %v8125
  %v8870 = vpack.c.b16 %v8134, %v8126
  %v8871 = vpack.c.b16 %v8135, %v8127
  %v8872 = vpack.c.b16 %v8144, %v8136
  %v8873 = vpack.c.b16 %v8145, %v8137
  %v8874 = vpack.c.b16 %v8146, %v8138
  %v8875 = vpack.c.b16 %v8147, %v8139
  %v8876 = vpack.c.b16 %v8148, %v8140
  %v8877 = vpack.c.b16 %v8149, %v8141
  %v8878 = vpack.c.b16 %v8150, %v8142
  %v8879 = vpack.c.b16 %v8151, %v8143
  %v8880 = vpack.c.b16 %v8160, %v8152
  %v8881 = vpack.c.b16 %v8161, %v8153
  %v8882 = vpack.c.b16 %v8162, %v8154
  %v8883 = vpack.c.b16 %v8163, %v8155
  %v8884 = vpack.c.b16 %v8164, %v8156
  %v8885 = vpack.c.b16 %v8165, %v8157
  %v8886 = vpack.c.b16 %v8166, %v8158
  %v8887 = vpack.c.b16 %v8167, %v8159
  %v8888 = vpack.c.b16 %v8176, %v8168
  %v8889 = vpack.c.b16 %v8177, %v8169
  %v8890 = vpack.c.b16 %v8178, %v8170
  %v8891 = vpack.c.b16 %v8179, %v8171
  %v8892 = vpack.c.b16 %v8180, %v8172
  %v8893 = vpack.c.b16 %v8181, %v8173
  %v8894 = vpack.c.b16 %v8182, %v8174
  %v8895 = vpack.c.b16 %v8183, %v8175
  %v8896 = vpack.c.b16 %v8192, %v8184
  %v8897 = vpack.c.b16 %v8193, %v8185
  %v8898 = vpack.c.b16 %v8194, %v8186
  %v8899 = vpack.c.b16 %v8195, %v8187
  %v8900 = vpack.c.b16 %v8196, %v8188
  %v8901 = vpack.c.b16 %v8197, %v8189
  %v8902 = vpack.c.b16 %v8198, %v8190
  %v8903 = vpack.c.b16 %v8199, %v8191
  %v8904 = vpack.c.b16 %v8208, %v8200
  %v8905 = vpack.c.b16 %v8209, %v8201
  %v8906 = vpack.c.b16 %v8210, %v8202
  %v8907 = vpack.c.b16 %v8211, %v8203
  %v8908 = vpack.c.b16 %v8212, %v8204
  %v8909 = vpack.c.b16 %v8213, %v8205
  %v8910 = vpack.c.b16 %v8214, %v8206
  %v8911 = vpack.c.b16 %v8215, %v8207
  %v8912 = vpack.c.b16 %v8224, %v8216
  %v8913 = vpack.c.b16 %v8225, %v8217
  %v8914 = vpack.c.b16 %v8226, %v8218
  %v8915 = vpack.c.b16 %v8227, %v8219
  %v8916 = vpack.c.b16 %v8228, %v8220
  %v8917 = vpack.c.b16 %v8229, %v8221
  %v8918 = vpack.c.b16 %v8230, %v8222
  %v8919 = vpack.c.b16 %v8231, %v8223
  %v8920 = vpack.c.b16 %v8240, %v8232
  %v8921 = vpack.c.b16 %v8241, %v8233
  %v8922 = vpack.c.b16 %v8242, %v8234
  %v8923 = vpack.c.b16 %v8243, %v8235
  %v8924 = vpack.c.b16 %v8244, %v8236
  %v8925 = vpack.c.b16 %v8245, %v8237
  %v8926 = vpack.c.b16 %v8246, %v8238
  %v8927 = vpack.c.b16 %v8247, %v8239
  %v8928 = vpack.c.b16 %v8256, %v8248
  %v8929 = vpack.c.b16 %v8257, %v8249
  %v8930 = vpack.c.b16 %v8258, %v8250
  %v8931 = vpack.c.b16 %v8259, %v8251
  %v8932 = vpack.c.b16 %v8260, %v8252
  %v8933 = vpack.c.b16 %v8261, %v8253
  %v8934 = vpack.c.b16 %v8262, %v8254
  %v8935 = vpack.c.b16 %v8263, %v8255
  %v8936 = vpack.c.b16 %v8272, %v8264
  %v8937 = vpack.c.b16 %v8273, %v8265
  %v8938 = vpack.c.b16 %v8274, %v8266
  %v8939 = vpack.c.b16 %v8275, %v8267
  %v8940 = vpack.c.b16 %v8276, %v8268
  %v8941 = vpack.c.b16 %v8277, %v8269
  %v8942 = vpack.c.b16 %v8278, %v8270
  %v8943 = vpack.c.b16 %v8279, %v8271
  %v8944 = vpack.c.b16 %v8288, %v8280
  %v8945 = vpack.c.b16 %v8289, %v8281
  %v8946 = vpack.c.b16 %v8290, %v8282
  %v8947 = vpack.c.b16 %v8291, %v8283
  %v8948 = vpack.c.b16 %v8292, %v8284
  %v8949 = vpack.c.b16 %v8293, %v8285
  %v8950 = vpack.c.b16 %v8294, %v8286
  %v8951 = vpack.c.b16 %v8295, %v8287
  %v8952 = vpack.c.b16 %v8304, %v8296
  %v8953 = vpack.c.b16 %v8305, %v8297
  %v8954 = vpack.c.b16 %v8306, %v8298
  %v8955 = vpack.c.b16 %v8307, %v8299
  %v8956 = vpack.c.b16 %v8308, %v8300
  %v8957 = vpack.c.b16 %v8309, %v8301
  %v8958 = vpack.c.b16 %v8310, %v8302
  %v8959 = vpack.c.b16 %v8311, %v8303
  %v8960 = vpack.c.b16 %v8320, %v8312
  %v8961 = vpack.c.b16 %v8321, %v8313
  %v8962 = vpack.c.b16 %v8322, %v8314
  %v8963 = vpack.c.b16 %v8323, %v8315
  %v8964 = vpack.c.b16 %v8324, %v8316
  %v8965 = vpack.c.b16 %v8325, %v8317
  %v8966 = vpack.c.b16 %v8326, %v8318
  %v8967 = vpack.c.b16 %v8327, %v8319
  %v8968 = vpack.c.b16 %v8336, %v8328
  %v8969 = vpack.c.b16 %v8337, %v8329
  %v8970 = vpack.c.b16 %v8338, %v8330
  %v8971 = vpack.c.b16 %v8339, %v8331
  %v8972 = vpack.c.b16 %v8340, %v8332
  %v8973 = vpack.c.b16 %v8341, %v8333
  %v8974 = vpack.c.b16 %v8342, %v8334
  %v8975 = vpack.c.b16 %v8343, %v8335
  %v8976 = vpack.c.b16 %v8352, %v8344
  %v8977 = vpack.c.b16 %v8353, %v8345
  %v8978 = vpack.c.b16 %v8354, %v8346
  %v8979 = vpack.c.b16 %v8355, %v8347
  %v8980 = vpack.c.b16 %v8356, %v8348
  %v8981 = vpack.c.b16 %v8357, %v8349
  %v8982 = vpack.c.b16 %v8358, %v8350
  %v8983 = vpack.c.b16 %v8359, %v8351
  %v8984 = vpack.c.b16 %v8368, %v8360
  %v8985 = vpack.c.b16 %v8369, %v8361
  %v8986 = vpack.c.b16 %v8370, %v8362
  %v8987 = vpack.c.b16 %v8371, %v8363
  %v8988 = vpack.c.b16 %v8372, %v8364
  %v8989 = vpack.c.b16 %v8373, %v8365
  %v8990 = vpack.c.b16 %v8374, %v8366
  %v8991 = vpack.c.b16 %v8375, %v8367
  %v8992 = vpack.c.b16 %v8384, %v8376
  %v8993 = vpack.c.b16 %v8385, %v8377
  %v8994 = vpack.c.b16 %v8386, %v8378
  %v8995 = vpack.c.b16 %v8387, %v8379
  %v8996 = vpack.c.b16 %v8388, %v8380
  %v8997 = vpack.c.b16 %v8389, %v8381
  %v8998 = vpack.c.b16 %v8390, %v8382
  %v8999 = vpack.c.b16 %v8391, %v8383
  %v9000 = vpack.c.b16 %v8400, %v8392
  %v9001 = vpack.c.b16 %v8401, %v8393
  %v9002 = vpack.c.b16 %v8402, %v8394
  %v9003 = vpack.c.b16 %v8403, %v8395
  %v9004 = vpack.c.b16 %v8404, %v8396
  %v9005 = vpack.c.b16 %v8405, %v8397
  %v9006 = vpack.c.b16 %v8406, %v8398
  %v9007 = vpack.c.b16 %v8407, %v8399
  %v9008 = vpack.c.b16 %v8416, %v8408
  %v9009 = vpack.c.b16 %v8417, %v8409
  %v9010 = vpack.c.b16 %v8418, %v8410
  %v9011 = vpack.c.b16 %v8419, %v8411
  %v9012 = vpack.c.b16 %v8420, %v8412
  %v9013 = vpack.c.b16 %v8421, %v8413
  %v9014 = vpack.c.b16 %v8422, %v8414
  %v9015 = vpack.c.b16 %v8423, %v8415
  %v9016 = vpack.c.b16 %v8432, %v8424
  %v9017 = vpack.c.b16 %v8433, %v8425
  %v9018 = vpack.c.b16 %v8434, %v8426
  %v9019 = vpack.c.b16 %v8435, %v8427
  %v9020 = vpack.c.b16 %v8436, %v8428
  %v9021 = vpack.c.b16 %v8437, %v8429
  %v9022 = vpack.c.b16 %v8438, %v8430
  %v9023 = vpack.c.b16 %v8439, %v8431
  %v9024 = vpack.c.b16 %v8448, %v8440
  %v9025 = vpack.c.b16 %v8449, %v8441
  %v9026 = vpack.c.b16 %v8450, %v8442
  %v9027 = vpack.c.b16 %v8451, %v8443
  %v9028 = vpack.c.b16 %v8452, %v8444
  %v9029 = vpack.c.b16 %v8453, %v8445
  %v9030 = vpack.c.b16 %v8454, %v8446
  %v9031 = vpack.c.b16 %v8455, %v8447
  %v9032 = vpack.c.b16 %v8464, %v8456
  %v9033 = vpack.c.b16 %v8465, %v8457
  %v9034 = vpack.c.b16 %v8466, %v8458
  %v9035 = vpack.c.b16 %v8467, %v8459
  %v9036 = vpack.c.b16 %v8468, %v8460
  %v9037 = vpack.c.b16 %v8469, %v8461
  %v9038 = vpack.c.b16 %v8470, %v8462
  %v9039 = vpack.c.b16 %v8471, %v8463
  %v9040 = vpack.c.b16 %v8480, %v8472
  %v9041 = vpack.c.b16 %v8481, %v8473
  %v9042 = vpack.c.b16 %v8482, %v8474
  %v9043 = vpack.c.b16 %v8483, %v8475
  %v9044 = vpack.c.b16 %v8484, %v8476
  %v9045 = vpack.c.b16 %v8485, %v8477
  %v9046 = vpack.c.b16 %v8486, %v8478
  %v9047 = vpack.c.b16 %v8487, %v8479
  %v9048 = vpack.c.b16 %v8496, %v8488
  %v9049 = vpack.c.b16 %v8497, %v8489
  %v9050 = vpack.c.b16 %v8498, %v8490
  %v9051 = vpack.c.b16 %v8499, %v8491
  %v9052 = vpack.c.b16 %v8500, %v8492
  %v9053 = vpack.c.b16 %v8501, %v8493
  %v9054 = vpack.c.b16 %v8502, %v8494
  %v9055 = vpack.c.b16 %v8503, %v8495
  %v9056 = vpack.c.b16 %v8512, %v8504
  %v9057 = vpack.c.b16 %v8513, %v8505
  %v9058 = vpack.c.b16 %v8514, %v8506
  %v9059 = vpack.c.b16 %v8515, %v8507
  %v9060 = vpack.c.b16 %v8516, %v8508
  %v9061 = vpack.c.b16 %v8517, %v8509
  %v9062 = vpack.c.b16 %v8518, %v8510
  %v9063 = vpack.c.b16 %v8519, %v8511
  %v9064 = vpack.c.b16 %v8528, %v8520
  %v9065 = vpack.c.b16 %v8529, %v8521
  %v9066 = vpack.c.b16 %v8530, %v8522
  %v9067 = vpack.c.b16 %v8531, %v8523
  %v9068 = vpack.c.b16 %v8532, %v8524
  %v9069 = vpack.c.b16 %v8533, %v8525
  %v9070 = vpack.c.b16 %v8534, %v8526
  %v9071 = vpack.c.b16 %v8535, %v8527
  %v9072 = vpack.c.b16 %v8544, %v8536
  %v9073 = vpack.c.b16 %v8545, %v8537
  %v9074 = vpack.c.b16 %v8546, %v8538
  %v9075 = vpack.c.b16 %v8547, %v8539
  %v9076 = vpack.c.b16 %v8548, %v8540
  %v9077 = vpack.c.b16 %v8549, %v8541
  %v9078 = vpack.c.b16 %v8550, %v8542
  %v9079 = vpack.c.b16 %v8551, %v8543
  %v9080 = vpack.c.b16 %v8560, %v8552
  %v9081 = vpack.c.b16 %v8561, %v8553
  %v9082 = vpack.c.b16 %v8562, %v8554
  %v9083 = vpack.c.b16 %v8563, %v8555
  %v9084 = vpack.c.b16 %v8564, %v8556
  %v9085 = vpack.c.b16 %v8565, %v8557
  %v9086 = vpack.c.b16 %v8566, %v8558
  %v9087 = vpack.c.b16 %v8567, %v8559
  %v9088 = vpack.c.b16 %v8576, %v8568
  %v9089 = vpack.c.b16 %v8577, %v8569
  %v9090 = vpack.c.b16 %v8578, %v8570
  %v9091 = vpack.c.b16 %v8579, %v8571
  %v9092 = vpack.c.b16 %v8580, %v8572
  %v9093 = vpack.c.b16 %v8581, %v8573
  %v9094 = vpack.c.b16 %v8582, %v8574
  %v9095 = vpack.c.b16 %v8583, %v8575
  %9608 = vmatprep.subr.bf16.mxu0 %v8585
  %9609 = vmatpush1.bf16.msra.mxu0 %v8584
  %9610 = vmatprep.subr.bf16.mxu0 %v8593
  %9611 = vmatpush1.bf16.msra.mxu0 %v8592
  %9612 = vmatprep.subr.bf16.mxu0 %v8601
  %9613 = vmatpush1.bf16.msra.mxu0 %v8600
  %9614 = vmatprep.subr.bf16.mxu0 %v8609
  %9615 = vmatpush1.bf16.msra.mxu0 %v8608
  %9616 = vmatprep.subr.bf16.mxu0 %v8617
  %9617 = vmatpush1.bf16.msra.mxu0 %v8616
  %9618 = vmatprep.subr.bf16.mxu0 %v8625
  %9619 = vmatpush1.bf16.msra.mxu0 %v8624
  %9620 = vmatprep.subr.bf16.mxu0 %v8633
  %9621 = vmatpush1.bf16.msra.mxu0 %v8632
  %9622 = vmatprep.subr.bf16.mxu0 %v8641
  %9623 = vmatpush1.bf16.msra.mxu0 %v8640
  %9624 = vmatprep.subr.bf16.mxu0 %v8649
  %9625 = vmatpush1.bf16.msra.mxu0 %v8648
  %9626 = vmatprep.subr.bf16.mxu0 %v8657
  %9627 = vmatpush1.bf16.msra.mxu0 %v8656
  %9628 = vmatprep.subr.bf16.mxu0 %v8665
  %9629 = vmatpush1.bf16.msra.mxu0 %v8664
  %9630 = vmatprep.subr.bf16.mxu0 %v8673
  %9631 = vmatpush1.bf16.msra.mxu0 %v8672
  %9632 = vmatprep.subr.bf16.mxu0 %v8681
  %9633 = vmatpush1.bf16.msra.mxu0 %v8680
  %9634 = vmatprep.subr.bf16.mxu0 %v8689
  %9635 = vmatpush1.bf16.msra.mxu0 %v8688
  %9636 = vmatprep.subr.bf16.mxu0 %v8697
  %9637 = vmatpush1.bf16.msra.mxu0 %v8696
  %9638 = vmatprep.subr.bf16.mxu0 %v8705
  %9639 = vmatpush1.bf16.msra.mxu0 %v8704
  %9640 = vmatprep.mubr.bf16.mxu0 %v6529
  %9641 = vmatmul.mubr.bf16.gmra.mrb[0].mxu0 %v6528
  %v9642 = vpop.f32.mrb[0].mxu0
  %v9643 = vadd.f32 0.0, %v9642
  %v9644 = vpop.f32.mrb[0].mxu0
  %v9645 = vadd.f32 0.0, %v9644
  %v9646 = vpop.f32.mrb[0].mxu0
  %v9647 = vpop.f32.mrb[0].mxu0
  %9648 = vdwg.mxu0
  %9649 = vmatprep.subr.bf16.mxu0 %v8713
  %9650 = vmatpush1.bf16.msra.mxu0 %v8712
  %9651 = vmatprep.subr.bf16.mxu0 %v8721
  %9652 = vmatpush1.bf16.msra.mxu0 %v8720
  %9653 = vmatprep.subr.bf16.mxu0 %v8729
  %9654 = vmatpush1.bf16.msra.mxu0 %v8728
  %9655 = vmatprep.subr.bf16.mxu0 %v8737
  %9656 = vmatpush1.bf16.msra.mxu0 %v8736
  %9657 = vmatprep.subr.bf16.mxu0 %v8745
  %9658 = vmatpush1.bf16.msra.mxu0 %v8744
  %9659 = vmatprep.subr.bf16.mxu0 %v8753
  %9660 = vmatpush1.bf16.msra.mxu0 %v8752
  %9661 = vmatprep.subr.bf16.mxu0 %v8761
  %9662 = vmatpush1.bf16.msra.mxu0 %v8760
  %9663 = vmatprep.subr.bf16.mxu0 %v8769
  %9664 = vmatpush1.bf16.msra.mxu0 %v8768
  %9665 = vmatprep.subr.bf16.mxu0 %v8777
  %9666 = vmatpush1.bf16.msra.mxu0 %v8776
  %9667 = vmatprep.subr.bf16.mxu0 %v8785
  %9668 = vmatpush1.bf16.msra.mxu0 %v8784
  %9669 = vmatprep.subr.bf16.mxu0 %v8793
  %9670 = vmatpush1.bf16.msra.mxu0 %v8792
  %9671 = vmatprep.subr.bf16.mxu0 %v8801
  %9672 = vmatpush1.bf16.msra.mxu0 %v8800
  %9673 = vmatprep.subr.bf16.mxu0 %v8809
  %9674 = vmatpush1.bf16.msra.mxu0 %v8808
  %9675 = vmatprep.subr.bf16.mxu0 %v8817
  %9676 = vmatpush1.bf16.msra.mxu0 %v8816
  %9677 = vmatprep.subr.bf16.mxu0 %v8825
  %9678 = vmatpush1.bf16.msra.mxu0 %v8824
  %9679 = vmatprep.subr.bf16.mxu0 %v8833
  %9680 = vmatpush1.bf16.msra.mxu0 %v8832
  %9681 = vmatprep.mubr.bf16.mxu0 %v6531
  %9682 = vmatmul.mubr.bf16.gmra.mrb[0].mxu0 %v6530
  %v9683 = vpop.f32.mrb[0].mxu0
  %v9684 = vadd.f32 %v9643, %v9683
  %v9685 = vpop.f32.mrb[0].mxu0
  %v9686 = vadd.f32 %v9645, %v9685
  %v9687 = vpop.f32.mrb[0].mxu0
  %v9688 = vpop.f32.mrb[0].mxu0
  %9689 = vdwg.mxu0
  %9690 = vmatprep.subr.bf16.mxu0 %v8841
  %9691 = vmatpush1.bf16.msra.mxu0 %v8840
  %9692 = vmatprep.subr.bf16.mxu0 %v8849
  %9693 = vmatpush1.bf16.msra.mxu0 %v8848
  %9694 = vmatprep.subr.bf16.mxu0 %v8857
  %9695 = vmatpush1.bf16.msra.mxu0 %v8856
  %9696 = vmatprep.subr.bf16.mxu0 %v8865
  %9697 = vmatpush1.bf16.msra.mxu0 %v8864
  %9698 = vmatprep.subr.bf16.mxu0 %v8873
  %9699 = vmatpush1.bf16.msra.mxu0 %v8872
  %9700 = vmatprep.subr.bf16.mxu0 %v8881
  %9701 = vmatpush1.bf16.msra.mxu0 %v8880
  %9702 = vmatprep.subr.bf16.mxu0 %v8889
  %9703 = vmatpush1.bf16.msra.mxu0 %v8888
  %9704 = vmatprep.subr.bf16.mxu0 %v8897
  %9705 = vmatpush1.bf16.msra.mxu0 %v8896
  %9706 = vmatprep.subr.bf16.mxu0 %v8905
  %9707 = vmatpush1.bf16.msra.mxu0 %v8904
  %9708 = vmatprep.subr.bf16.mxu0 %v8913
  %9709 = vmatpush1.bf16.msra.mxu0 %v8912
  %9710 = vmatprep.subr.bf16.mxu0 %v8921
  %9711 = vmatpush1.bf16.msra.mxu0 %v8920
  %9712 = vmatprep.subr.bf16.mxu0 %v8929
  %9713 = vmatpush1.bf16.msra.mxu0 %v8928
  %9714 = vmatprep.subr.bf16.mxu0 %v8937
  %9715 = vmatpush1.bf16.msra.mxu0 %v8936
  %9716 = vmatprep.subr.bf16.mxu0 %v8945
  %9717 = vmatpush1.bf16.msra.mxu0 %v8944
  %9718 = vmatprep.subr.bf16.mxu0 %v8953
  %9719 = vmatpush1.bf16.msra.mxu0 %v8952
  %9720 = vmatprep.subr.bf16.mxu0 %v8961
  %9721 = vmatpush1.bf16.msra.mxu0 %v8960
  %9722 = vmatprep.mubr.bf16.mxu0 %v6533
  %9723 = vmatmul.mubr.bf16.gmra.mrb[0].mxu0 %v6532
  %v9724 = vpop.f32.mrb[0].mxu0
  %v9725 = vadd.f32 %v9684, %v9724
  %v9726 = vpop.f32.mrb[0].mxu0
  %v9727 = vadd.f32 %v9686, %v9726
  %v9728 = vpop.f32.mrb[0].mxu0
  %v9729 = vpop.f32.mrb[0].mxu0
  %9730 = vdwg.mxu0
  %9731 = vmatprep.subr.bf16.mxu0 %v8969
  %9732 = vmatpush1.bf16.msra.mxu0 %v8968
  %9733 = vmatprep.subr.bf16.mxu0 %v8977
  %9734 = vmatpush1.bf16.msra.mxu0 %v8976
  %9735 = vmatprep.subr.bf16.mxu0 %v8985
  %9736 = vmatpush1.bf16.msra.mxu0 %v8984
  %9737 = vmatprep.subr.bf16.mxu0 %v8993
  %9738 = vmatpush1.bf16.msra.mxu0 %v8992
  %9739 = vmatprep.subr.bf16.mxu0 %v9001
  %9740 = vmatpush1.bf16.msra.mxu0 %v9000
  %9741 = vmatprep.subr.bf16.mxu0 %v9009
  %9742 = vmatpush1.bf16.msra.mxu0 %v9008
  %9743 = vmatprep.subr.bf16.mxu0 %v9017
  %9744 = vmatpush1.bf16.msra.mxu0 %v9016
  %9745 = vmatprep.subr.bf16.mxu0 %v9025
  %9746 = vmatpush1.bf16.msra.mxu0 %v9024
  %9747 = vmatprep.subr.bf16.mxu0 %v9033
  %9748 = vmatpush1.bf16.msra.mxu0 %v9032
  %9749 = vmatprep.subr.bf16.mxu0 %v9041
  %9750 = vmatpush1.bf16.msra.mxu0 %v9040
  %9751 = vmatprep.subr.bf16.mxu0 %v9049
  %9752 = vmatpush1.bf16.msra.mxu0 %v9048
  %9753 = vmatprep.subr.bf16.mxu0 %v9057
  %9754 = vmatpush1.bf16.msra.mxu0 %v9056
  %9755 = vmatprep.subr.bf16.mxu0 %v9065
  %9756 = vmatpush1.bf16.msra.mxu0 %v9064
  %9757 = vmatprep.subr.bf16.mxu0 %v9073
  %9758 = vmatpush1.bf16.msra.mxu0 %v9072
  %9759 = vmatprep.subr.bf16.mxu0 %v9081
  %9760 = vmatpush1.bf16.msra.mxu0 %v9080
  %9761 = vmatprep.subr.bf16.mxu0 %v9089
  %9762 = vmatpush1.bf16.msra.mxu0 %v9088
  %9763 = vmatprep.mubr.bf16.mxu0 %v6535
  %9764 = vmatmul.mubr.bf16.gmra.mrb[0].mxu0 %v6534
  %v9765 = vpop.f32.mrb[0].mxu0
  %v9766 = vadd.f32 %v9725, %v9765
  %v9767 = vpop.f32.mrb[0].mxu0
  %v9768 = vadd.f32 %v9727, %v9767
  %v9769 = vpop.f32.mrb[0].mxu0
  %v9770 = vpop.f32.mrb[0].mxu0
  %9771 = vdwg.mxu0
  %9772 = vmatprep.subr.bf16.mxu0 %v8587
  %9773 = vmatpush1.bf16.msra.mxu0 %v8586
  %9774 = vmatprep.subr.bf16.mxu0 %v8595
  %9775 = vmatpush1.bf16.msra.mxu0 %v8594
  %9776 = vmatprep.subr.bf16.mxu0 %v8603
  %9777 = vmatpush1.bf16.msra.mxu0 %v8602
  %9778 = vmatprep.subr.bf16.mxu0 %v8611
  %9779 = vmatpush1.bf16.msra.mxu0 %v8610
  %9780 = vmatprep.subr.bf16.mxu0 %v8619
  %9781 = vmatpush1.bf16.msra.mxu0 %v8618
  %9782 = vmatprep.subr.bf16.mxu0 %v8627
  %9783 = vmatpush1.bf16.msra.mxu0 %v8626
  %9784 = vmatprep.subr.bf16.mxu0 %v8635
  %9785 = vmatpush1.bf16.msra.mxu0 %v8634
  %9786 = vmatprep.subr.bf16.mxu0 %v8643
  %9787 = vmatpush1.bf16.msra.mxu0 %v8642
  %9788 = vmatprep.subr.bf16.mxu0 %v8651
  %9789 = vmatpush1.bf16.msra.mxu0 %v8650
  %9790 = vmatprep.subr.bf16.mxu0 %v8659
  %9791 = vmatpush1.bf16.msra.mxu0 %v8658
  %9792 = vmatprep.subr.bf16.mxu0 %v8667
  %9793 = vmatpush1.bf16.msra.mxu0 %v8666
  %9794 = vmatprep.subr.bf16.mxu0 %v8675
  %9795 = vmatpush1.bf16.msra.mxu0 %v8674
  %9796 = vmatprep.subr.bf16.mxu0 %v8683
  %9797 = vmatpush1.bf16.msra.mxu0 %v8682
  %9798 = vmatprep.subr.bf16.mxu0 %v8691
  %9799 = vmatpush1.bf16.msra.mxu0 %v8690
  %9800 = vmatprep.subr.bf16.mxu0 %v8699
  %9801 = vmatpush1.bf16.msra.mxu0 %v8698
  %9802 = vmatprep.subr.bf16.mxu0 %v8707
  %9803 = vmatpush1.bf16.msra.mxu0 %v8706
  %9804 = vmatprep.mubr.bf16.mxu0 %v6529
  %9805 = vmatmul.mubr.bf16.gmra.mrb[0].mxu0 %v6528
  %v9806 = vpop.f32.mrb[0].mxu0
  %v9807 = vadd.f32 0.0, %v9806
  %v9808 = vpop.f32.mrb[0].mxu0
  %v9809 = vadd.f32 0.0, %v9808
  %v9810 = vpop.f32.mrb[0].mxu0
  %v9811 = vpop.f32.mrb[0].mxu0
  %9812 = vdwg.mxu0
  %9813 = vmatprep.subr.bf16.mxu0 %v8715
  %9814 = vmatpush1.bf16.msra.mxu0 %v8714
  %9815 = vmatprep.subr.bf16.mxu0 %v8723
  %9816 = vmatpush1.bf16.msra.mxu0 %v8722
  %9817 = vmatprep.subr.bf16.mxu0 %v8731
  %9818 = vmatpush1.bf16.msra.mxu0 %v8730
  %9819 = vmatprep.subr.bf16.mxu0 %v8739
  %9820 = vmatpush1.bf16.msra.mxu0 %v8738
  %9821 = vmatprep.subr.bf16.mxu0 %v8747
  %9822 = vmatpush1.bf16.msra.mxu0 %v8746
  %9823 = vmatprep.subr.bf16.mxu0 %v8755
  %9824 = vmatpush1.bf16.msra.mxu0 %v8754
  %9825 = vmatprep.subr.bf16.mxu0 %v8763
  %9826 = vmatpush1.bf16.msra.mxu0 %v8762
  %9827 = vmatprep.subr.bf16.mxu0 %v8771
  %9828 = vmatpush1.bf16.msra.mxu0 %v8770
  %9829 = vmatprep.subr.bf16.mxu0 %v8779
  %9830 = vmatpush1.bf16.msra.mxu0 %v8778
  %9831 = vmatprep.subr.bf16.mxu0 %v8787
  %9832 = vmatpush1.bf16.msra.mxu0 %v8786
  %9833 = vmatprep.subr.bf16.mxu0 %v8795
  %9834 = vmatpush1.bf16.msra.mxu0 %v8794
  %9835 = vmatprep.subr.bf16.mxu0 %v8803
  %9836 = vmatpush1.bf16.msra.mxu0 %v8802
  %9837 = vmatprep.subr.bf16.mxu0 %v8811
  %9838 = vmatpush1.bf16.msra.mxu0 %v8810
  %9839 = vmatprep.subr.bf16.mxu0 %v8819
  %9840 = vmatpush1.bf16.msra.mxu0 %v8818
  %9841 = vmatprep.subr.bf16.mxu0 %v8827
  %9842 = vmatpush1.bf16.msra.mxu0 %v8826
  %9843 = vmatprep.subr.bf16.mxu0 %v8835
  %9844 = vmatpush1.bf16.msra.mxu0 %v8834
  %9845 = vmatprep.mubr.bf16.mxu0 %v6531
  %9846 = vmatmul.mubr.bf16.gmra.mrb[0].mxu0 %v6530
  %v9847 = vpop.f32.mrb[0].mxu0
  %v9848 = vadd.f32 %v9807, %v9847
  %v9849 = vpop.f32.mrb[0].mxu0
  %v9850 = vadd.f32 %v9809, %v9849
  %v9851 = vpop.f32.mrb[0].mxu0
  %v9852 = vpop.f32.mrb[0].mxu0
  %9853 = vdwg.mxu0
  %9854 = vmatprep.subr.bf16.mxu0 %v8843
  %9855 = vmatpush1.bf16.msra.mxu0 %v8842
  %9856 = vmatprep.subr.bf16.mxu0 %v8851
  %9857 = vmatpush1.bf16.msra.mxu0 %v8850
  %9858 = vmatprep.subr.bf16.mxu0 %v8859
  %9859 = vmatpush1.bf16.msra.mxu0 %v8858
  %9860 = vmatprep.subr.bf16.mxu0 %v8867
  %9861 = vmatpush1.bf16.msra.mxu0 %v8866
  %9862 = vmatprep.subr.bf16.mxu0 %v8875
  %9863 = vmatpush1.bf16.msra.mxu0 %v8874
  %9864 = vmatprep.subr.bf16.mxu0 %v8883
  %9865 = vmatpush1.bf16.msra.mxu0 %v8882
  %9866 = vmatprep.subr.bf16.mxu0 %v8891
  %9867 = vmatpush1.bf16.msra.mxu0 %v8890
  %9868 = vmatprep.subr.bf16.mxu0 %v8899
  %9869 = vmatpush1.bf16.msra.mxu0 %v8898
  %9870 = vmatprep.subr.bf16.mxu0 %v8907
  %9871 = vmatpush1.bf16.msra.mxu0 %v8906
  %9872 = vmatprep.subr.bf16.mxu0 %v8915
  %9873 = vmatpush1.bf16.msra.mxu0 %v8914
  %9874 = vmatprep.subr.bf16.mxu0 %v8923
  %9875 = vmatpush1.bf16.msra.mxu0 %v8922
  %9876 = vmatprep.subr.bf16.mxu0 %v8931
  %9877 = vmatpush1.bf16.msra.mxu0 %v8930
  %9878 = vmatprep.subr.bf16.mxu0 %v8939
  %9879 = vmatpush1.bf16.msra.mxu0 %v8938
  %9880 = vmatprep.subr.bf16.mxu0 %v8947
  %9881 = vmatpush1.bf16.msra.mxu0 %v8946
  %9882 = vmatprep.subr.bf16.mxu0 %v8955
  %9883 = vmatpush1.bf16.msra.mxu0 %v8954
  %9884 = vmatprep.subr.bf16.mxu0 %v8963
  %9885 = vmatpush1.bf16.msra.mxu0 %v8962
  %9886 = vmatprep.mubr.bf16.mxu0 %v6533
  %9887 = vmatmul.mubr.bf16.gmra.mrb[0].mxu0 %v6532
  %v9888 = vpop.f32.mrb[0].mxu0
  %v9889 = vadd.f32 %v9848, %v9888
  %v9890 = vpop.f32.mrb[0].mxu0
  %v9891 = vadd.f32 %v9850, %v9890
  %v9892 = vpop.f32.mrb[0].mxu0
  %v9893 = vpop.f32.mrb[0].mxu0
  %9894 = vdwg.mxu0
  %9895 = vmatprep.subr.bf16.mxu0 %v8971
  %9896 = vmatpush1.bf16.msra.mxu0 %v8970
  %9897 = vmatprep.subr.bf16.mxu0 %v8979
  %9898 = vmatpush1.bf16.msra.mxu0 %v8978
  %9899 = vmatprep.subr.bf16.mxu0 %v8987
  %9900 = vmatpush1.bf16.msra.mxu0 %v8986
  %9901 = vmatprep.subr.bf16.mxu0 %v8995
  %9902 = vmatpush1.bf16.msra.mxu0 %v8994
  %9903 = vmatprep.subr.bf16.mxu0 %v9003
  %9904 = vmatpush1.bf16.msra.mxu0 %v9002
  %9905 = vmatprep.subr.bf16.mxu0 %v9011
  %9906 = vmatpush1.bf16.msra.mxu0 %v9010
  %9907 = vmatprep.subr.bf16.mxu0 %v9019
  %9908 = vmatpush1.bf16.msra.mxu0 %v9018
  %9909 = vmatprep.subr.bf16.mxu0 %v9027
  %9910 = vmatpush1.bf16.msra.mxu0 %v9026
  %9911 = vmatprep.subr.bf16.mxu0 %v9035
  %9912 = vmatpush1.bf16.msra.mxu0 %v9034
  %9913 = vmatprep.subr.bf16.mxu0 %v9043
  %9914 = vmatpush1.bf16.msra.mxu0 %v9042
  %9915 = vmatprep.subr.bf16.mxu0 %v9051
  %9916 = vmatpush1.bf16.msra.mxu0 %v9050
  %9917 = vmatprep.subr.bf16.mxu0 %v9059
  %9918 = vmatpush1.bf16.msra.mxu0 %v9058
  %9919 = vmatprep.subr.bf16.mxu0 %v9067
  %9920 = vmatpush1.bf16.msra.mxu0 %v9066
  %9921 = vmatprep.subr.bf16.mxu0 %v9075
  %9922 = vmatpush1.bf16.msra.mxu0 %v9074
  %9923 = vmatprep.subr.bf16.mxu0 %v9083
  %9924 = vmatpush1.bf16.msra.mxu0 %v9082
  %9925 = vmatprep.subr.bf16.mxu0 %v9091
  %9926 = vmatpush1.bf16.msra.mxu0 %v9090
  %9927 = vmatprep.mubr.bf16.mxu0 %v6535
  %9928 = vmatmul.mubr.bf16.gmra.mrb[0].mxu0 %v6534
  %v9929 = vpop.f32.mrb[0].mxu0
  %v9930 = vadd.f32 %v9889, %v9929
  %v9931 = vpop.f32.mrb[0].mxu0
  %v9932 = vadd.f32 %v9891, %v9931
  %v9933 = vpop.f32.mrb[0].mxu0
  %v9934 = vpop.f32.mrb[0].mxu0
  %9935 = vdwg.mxu0
  %9936 = vmatprep.subr.bf16.mxu0 %v8589
  %9937 = vmatpush1.bf16.msra.mxu0 %v8588
  %9938 = vmatprep.subr.bf16.mxu0 %v8597
  %9939 = vmatpush1.bf16.msra.mxu0 %v8596
  %9940 = vmatprep.subr.bf16.mxu0 %v8605
  %9941 = vmatpush1.bf16.msra.mxu0 %v8604
  %9942 = vmatprep.subr.bf16.mxu0 %v8613
  %9943 = vmatpush1.bf16.msra.mxu0 %v8612
  %9944 = vmatprep.subr.bf16.mxu0 %v8621
  %9945 = vmatpush1.bf16.msra.mxu0 %v8620
  %9946 = vmatprep.subr.bf16.mxu0 %v8629
  %9947 = vmatpush1.bf16.msra.mxu0 %v8628
  %9948 = vmatprep.subr.bf16.mxu0 %v8637
  %9949 = vmatpush1.bf16.msra.mxu0 %v8636
  %9950 = vmatprep.subr.bf16.mxu0 %v8645
  %9951 = vmatpush1.bf16.msra.mxu0 %v8644
  %9952 = vmatprep.subr.bf16.mxu0 %v8653
  %9953 = vmatpush1.bf16.msra.mxu0 %v8652
  %9954 = vmatprep.subr.bf16.mxu0 %v8661
  %9955 = vmatpush1.bf16.msra.mxu0 %v8660
  %9956 = vmatprep.subr.bf16.mxu0 %v8669
  %9957 = vmatpush1.bf16.msra.mxu0 %v8668
  %9958 = vmatprep.subr.bf16.mxu0 %v8677
  %9959 = vmatpush1.bf16.msra.mxu0 %v8676
  %9960 = vmatprep.subr.bf16.mxu0 %v8685
  %9961 = vmatpush1.bf16.msra.mxu0 %v8684
  %9962 = vmatprep.subr.bf16.mxu0 %v8693
  %9963 = vmatpush1.bf16.msra.mxu0 %v8692
  %9964 = vmatprep.subr.bf16.mxu0 %v8701
  %9965 = vmatpush1.bf16.msra.mxu0 %v8700
  %9966 = vmatprep.subr.bf16.mxu0 %v8709
  %9967 = vmatpush1.bf16.msra.mxu0 %v8708
  %9968 = vmatprep.mubr.bf16.mxu0 %v6529
  %9969 = vmatmul.mubr.bf16.gmra.mrb[0].mxu0 %v6528
  %v9970 = vpop.f32.mrb[0].mxu0
  %v9971 = vadd.f32 0.0, %v9970
  %v9972 = vpop.f32.mrb[0].mxu0
  %v9973 = vadd.f32 0.0, %v9972
  %v9974 = vpop.f32.mrb[0].mxu0
  %v9975 = vpop.f32.mrb[0].mxu0
  %9976 = vdwg.mxu0
  %9977 = vmatprep.subr.bf16.mxu0 %v8717
  %9978 = vmatpush1.bf16.msra.mxu0 %v8716
  %9979 = vmatprep.subr.bf16.mxu0 %v8725
  %9980 = vmatpush1.bf16.msra.mxu0 %v8724
  %9981 = vmatprep.subr.bf16.mxu0 %v8733
  %9982 = vmatpush1.bf16.msra.mxu0 %v8732
  %9983 = vmatprep.subr.bf16.mxu0 %v8741
  %9984 = vmatpush1.bf16.msra.mxu0 %v8740
  %9985 = vmatprep.subr.bf16.mxu0 %v8749
  %9986 = vmatpush1.bf16.msra.mxu0 %v8748
  %9987 = vmatprep.subr.bf16.mxu0 %v8757
  %9988 = vmatpush1.bf16.msra.mxu0 %v8756
  %9989 = vmatprep.subr.bf16.mxu0 %v8765
  %9990 = vmatpush1.bf16.msra.mxu0 %v8764
  %9991 = vmatprep.subr.bf16.mxu0 %v8773
  %9992 = vmatpush1.bf16.msra.mxu0 %v8772
  %9993 = vmatprep.subr.bf16.mxu0 %v8781
  %9994 = vmatpush1.bf16.msra.mxu0 %v8780
  %9995 = vmatprep.subr.bf16.mxu0 %v8789
  %9996 = vmatpush1.bf16.msra.mxu0 %v8788
  %9997 = vmatprep.subr.bf16.mxu0 %v8797
  %9998 = vmatpush1.bf16.msra.mxu0 %v8796
  %9999 = vmatprep.subr.bf16.mxu0 %v8805
  %10000 = vmatpush1.bf16.msra.mxu0 %v8804
  %10001 = vmatprep.subr.bf16.mxu0 %v8813
  %10002 = vmatpush1.bf16.msra.mxu0 %v8812
  %10003 = vmatprep.subr.bf16.mxu0 %v8821
  %10004 = vmatpush1.bf16.msra.mxu0 %v8820
  %10005 = vmatprep.subr.bf16.mxu0 %v8829
  %10006 = vmatpush1.bf16.msra.mxu0 %v8828
  %10007 = vmatprep.subr.bf16.mxu0 %v8837
  %10008 = vmatpush1.bf16.msra.mxu0 %v8836
  %10009 = vmatprep.mubr.bf16.mxu0 %v6531
  %10010 = vmatmul.mubr.bf16.gmra.mrb[0].mxu0 %v6530
  %v10011 = vpop.f32.mrb[0].mxu0
  %v10012 = vadd.f32 %v9971, %v10011
  %v10013 = vpop.f32.mrb[0].mxu0
  %v10014 = vadd.f32 %v9973, %v10013
  %v10015 = vpop.f32.mrb[0].mxu0
  %v10016 = vpop.f32.mrb[0].mxu0
  %10017 = vdwg.mxu0
  %10018 = vmatprep.subr.bf16.mxu0 %v8845
  %10019 = vmatpush1.bf16.msra.mxu0 %v8844
  %10020 = vmatprep.subr.bf16.mxu0 %v8853
  %10021 = vmatpush1.bf16.msra.mxu0 %v8852
  %10022 = vmatprep.subr.bf16.mxu0 %v8861
  %10023 = vmatpush1.bf16.msra.mxu0 %v8860
  %10024 = vmatprep.subr.bf16.mxu0 %v8869
  %10025 = vmatpush1.bf16.msra.mxu0 %v8868
  %10026 = vmatprep.subr.bf16.mxu0 %v8877
  %10027 = vmatpush1.bf16.msra.mxu0 %v8876
  %10028 = vmatprep.subr.bf16.mxu0 %v8885
  %10029 = vmatpush1.bf16.msra.mxu0 %v8884
  %10030 = vmatprep.subr.bf16.mxu0 %v8893
  %10031 = vmatpush1.bf16.msra.mxu0 %v8892
  %10032 = vmatprep.subr.bf16.mxu0 %v8901
  %10033 = vmatpush1.bf16.msra.mxu0 %v8900
  %10034 = vmatprep.subr.bf16.mxu0 %v8909
  %10035 = vmatpush1.bf16.msra.mxu0 %v8908
  %10036 = vmatprep.subr.bf16.mxu0 %v8917
  %10037 = vmatpush1.bf16.msra.mxu0 %v8916
  %10038 = vmatprep.subr.bf16.mxu0 %v8925
  %10039 = vmatpush1.bf16.msra.mxu0 %v8924
  %10040 = vmatprep.subr.bf16.mxu0 %v8933
  %10041 = vmatpush1.bf16.msra.mxu0 %v8932
  %10042 = vmatprep.subr.bf16.mxu0 %v8941
  %10043 = vmatpush1.bf16.msra.mxu0 %v8940
  %10044 = vmatprep.subr.bf16.mxu0 %v8949
  %10045 = vmatpush1.bf16.msra.mxu0 %v8948
  %10046 = vmatprep.subr.bf16.mxu0 %v8957
  %10047 = vmatpush1.bf16.msra.mxu0 %v8956
  %10048 = vmatprep.subr.bf16.mxu0 %v8965
  %10049 = vmatpush1.bf16.msra.mxu0 %v8964
  %10050 = vmatprep.mubr.bf16.mxu0 %v6533
  %10051 = vmatmul.mubr.bf16.gmra.mrb[0].mxu0 %v6532
  %v10052 = vpop.f32.mrb[0].mxu0
  %v10053 = vadd.f32 %v10012, %v10052
  %v10054 = vpop.f32.mrb[0].mxu0
  %v10055 = vadd.f32 %v10014, %v10054
  %v10056 = vpop.f32.mrb[0].mxu0
  %v10057 = vpop.f32.mrb[0].mxu0
  %10058 = vdwg.mxu0
  %10059 = vmatprep.subr.bf16.mxu0 %v8973
  %10060 = vmatpush1.bf16.msra.mxu0 %v8972
  %10061 = vmatprep.subr.bf16.mxu0 %v8981
  %10062 = vmatpush1.bf16.msra.mxu0 %v8980
  %10063 = vmatprep.subr.bf16.mxu0 %v8989
  %10064 = vmatpush1.bf16.msra.mxu0 %v8988
  %10065 = vmatprep.subr.bf16.mxu0 %v8997
  %10066 = vmatpush1.bf16.msra.mxu0 %v8996
  %10067 = vmatprep.subr.bf16.mxu0 %v9005
  %10068 = vmatpush1.bf16.msra.mxu0 %v9004
  %10069 = vmatprep.subr.bf16.mxu0 %v9013
  %10070 = vmatpush1.bf16.msra.mxu0 %v9012
  %10071 = vmatprep.subr.bf16.mxu0 %v9021
  %10072 = vmatpush1.bf16.msra.mxu0 %v9020
  %10073 = vmatprep.subr.bf16.mxu0 %v9029
  %10074 = vmatpush1.bf16.msra.mxu0 %v9028
  %10075 = vmatprep.subr.bf16.mxu0 %v9037
  %10076 = vmatpush1.bf16.msra.mxu0 %v9036
  %10077 = vmatprep.subr.bf16.mxu0 %v9045
  %10078 = vmatpush1.bf16.msra.mxu0 %v9044
  %10079 = vmatprep.subr.bf16.mxu0 %v9053
  %10080 = vmatpush1.bf16.msra.mxu0 %v9052
  %10081 = vmatprep.subr.bf16.mxu0 %v9061
  %10082 = vmatpush1.bf16.msra.mxu0 %v9060
  %10083 = vmatprep.subr.bf16.mxu0 %v9069
  %10084 = vmatpush1.bf16.msra.mxu0 %v9068
  %10085 = vmatprep.subr.bf16.mxu0 %v9077
  %10086 = vmatpush1.bf16.msra.mxu0 %v9076
  %10087 = vmatprep.subr.bf16.mxu0 %v9085
  %10088 = vmatpush1.bf16.msra.mxu0 %v9084
  %10089 = vmatprep.subr.bf16.mxu0 %v9093
  %10090 = vmatpush1.bf16.msra.mxu0 %v9092
  %10091 = vmatprep.mubr.bf16.mxu0 %v6535
  %10092 = vmatmul.mubr.bf16.gmra.mrb[0].mxu0 %v6534
  %v10093 = vpop.f32.mrb[0].mxu0
  %v10094 = vadd.f32 %v10053, %v10093
  %v10095 = vpop.f32.mrb[0].mxu0
  %v10096 = vadd.f32 %v10055, %v10095
  %v10097 = vpop.f32.mrb[0].mxu0
  %v10098 = vpop.f32.mrb[0].mxu0
  %10099 = vdwg.mxu0
  %10100 = vmatprep.subr.bf16.mxu0 %v8591
  %10101 = vmatpush1.bf16.msra.mxu0 %v8590
  %10102 = vmatprep.subr.bf16.mxu0 %v8599
  %10103 = vmatpush1.bf16.msra.mxu0 %v8598
  %10104 = vmatprep.subr.bf16.mxu0 %v8607
  %10105 = vmatpush1.bf16.msra.mxu0 %v8606
  %10106 = vmatprep.subr.bf16.mxu0 %v8615
  %10107 = vmatpush1.bf16.msra.mxu0 %v8614
  %10108 = vmatprep.subr.bf16.mxu0 %v8623
  %10109 = vmatpush1.bf16.msra.mxu0 %v8622
  %10110 = vmatprep.subr.bf16.mxu0 %v8631
  %10111 = vmatpush1.bf16.msra.mxu0 %v8630
  %10112 = vmatprep.subr.bf16.mxu0 %v8639
  %10113 = vmatpush1.bf16.msra.mxu0 %v8638
  %10114 = vmatprep.subr.bf16.mxu0 %v8647
  %10115 = vmatpush1.bf16.msra.mxu0 %v8646
  %10116 = vmatprep.subr.bf16.mxu0 %v8655
  %10117 = vmatpush1.bf16.msra.mxu0 %v8654
  %10118 = vmatprep.subr.bf16.mxu0 %v8663
  %10119 = vmatpush1.bf16.msra.mxu0 %v8662
  %10120 = vmatprep.subr.bf16.mxu0 %v8671
  %10121 = vmatpush1.bf16.msra.mxu0 %v8670
  %10122 = vmatprep.subr.bf16.mxu0 %v8679
  %10123 = vmatpush1.bf16.msra.mxu0 %v8678
  %10124 = vmatprep.subr.bf16.mxu0 %v8687
  %10125 = vmatpush1.bf16.msra.mxu0 %v8686
  %10126 = vmatprep.subr.bf16.mxu0 %v8695
  %10127 = vmatpush1.bf16.msra.mxu0 %v8694
  %10128 = vmatprep.subr.bf16.mxu0 %v8703
  %10129 = vmatpush1.bf16.msra.mxu0 %v8702
  %10130 = vmatprep.subr.bf16.mxu0 %v8711
  %10131 = vmatpush1.bf16.msra.mxu0 %v8710
  %10132 = vmatprep.mubr.bf16.mxu0 %v6529
  %10133 = vmatmul.mubr.bf16.gmra.mrb[0].mxu0 %v6528
  %v10134 = vpop.f32.mrb[0].mxu0
  %v10135 = vadd.f32 0.0, %v10134
  %v10136 = vpop.f32.mrb[0].mxu0
  %v10137 = vadd.f32 0.0, %v10136
  %v10138 = vpop.f32.mrb[0].mxu0
  %v10139 = vpop.f32.mrb[0].mxu0
  %10140 = vdwg.mxu0
  %10141 = vmatprep.subr.bf16.mxu0 %v8719
  %10142 = vmatpush1.bf16.msra.mxu0 %v8718
  %10143 = vmatprep.subr.bf16.mxu0 %v8727
  %10144 = vmatpush1.bf16.msra.mxu0 %v8726
  %10145 = vmatprep.subr.bf16.mxu0 %v8735
  %10146 = vmatpush1.bf16.msra.mxu0 %v8734
  %10147 = vmatprep.subr.bf16.mxu0 %v8743
  %10148 = vmatpush1.bf16.msra.mxu0 %v8742
  %10149 = vmatprep.subr.bf16.mxu0 %v8751
  %10150 = vmatpush1.bf16.msra.mxu0 %v8750
  %10151 = vmatprep.subr.bf16.mxu0 %v8759
  %10152 = vmatpush1.bf16.msra.mxu0 %v8758
  %10153 = vmatprep.subr.bf16.mxu0 %v8767
  %10154 = vmatpush1.bf16.msra.mxu0 %v8766
  %10155 = vmatprep.subr.bf16.mxu0 %v8775
  %10156 = vmatpush1.bf16.msra.mxu0 %v8774
  %10157 = vmatprep.subr.bf16.mxu0 %v8783
  %10158 = vmatpush1.bf16.msra.mxu0 %v8782
  %10159 = vmatprep.subr.bf16.mxu0 %v8791
  %10160 = vmatpush1.bf16.msra.mxu0 %v8790
  %10161 = vmatprep.subr.bf16.mxu0 %v8799
  %10162 = vmatpush1.bf16.msra.mxu0 %v8798
  %10163 = vmatprep.subr.bf16.mxu0 %v8807
  %10164 = vmatpush1.bf16.msra.mxu0 %v8806
  %10165 = vmatprep.subr.bf16.mxu0 %v8815
  %10166 = vmatpush1.bf16.msra.mxu0 %v8814
  %10167 = vmatprep.subr.bf16.mxu0 %v8823
  %10168 = vmatpush1.bf16.msra.mxu0 %v8822
  %10169 = vmatprep.subr.bf16.mxu0 %v8831
  %10170 = vmatpush1.bf16.msra.mxu0 %v8830
  %10171 = vmatprep.subr.bf16.mxu0 %v8839
  %10172 = vmatpush1.bf16.msra.mxu0 %v8838
  %10173 = vmatprep.mubr.bf16.mxu0 %v6531
  %10174 = vmatmul.mubr.bf16.gmra.mrb[0].mxu0 %v6530
  %v10175 = vpop.f32.mrb[0].mxu0
  %v10176 = vadd.f32 %v10135, %v10175
  %v10177 = vpop.f32.mrb[0].mxu0
  %v10178 = vadd.f32 %v10137, %v10177
  %v10179 = vpop.f32.mrb[0].mxu0
  %v10180 = vpop.f32.mrb[0].mxu0
  %10181 = vdwg.mxu0
  %10182 = vmatprep.subr.bf16.mxu0 %v8847
  %10183 = vmatpush1.bf16.msra.mxu0 %v8846
  %10184 = vmatprep.subr.bf16.mxu0 %v8855
  %10185 = vmatpush1.bf16.msra.mxu0 %v8854
  %10186 = vmatprep.subr.bf16.mxu0 %v8863
  %10187 = vmatpush1.bf16.msra.mxu0 %v8862
  %10188 = vmatprep.subr.bf16.mxu0 %v8871
  %10189 = vmatpush1.bf16.msra.mxu0 %v8870
  %10190 = vmatprep.subr.bf16.mxu0 %v8879
  %10191 = vmatpush1.bf16.msra.mxu0 %v8878
  %10192 = vmatprep.subr.bf16.mxu0 %v8887
  %10193 = vmatpush1.bf16.msra.mxu0 %v8886
  %10194 = vmatprep.subr.bf16.mxu0 %v8895
  %10195 = vmatpush1.bf16.msra.mxu0 %v8894
  %10196 = vmatprep.subr.bf16.mxu0 %v8903
  %10197 = vmatpush1.bf16.msra.mxu0 %v8902
  %10198 = vmatprep.subr.bf16.mxu0 %v8911
  %10199 = vmatpush1.bf16.msra.mxu0 %v8910
  %10200 = vmatprep.subr.bf16.mxu0 %v8919
  %10201 = vmatpush1.bf16.msra.mxu0 %v8918
  %10202 = vmatprep.subr.bf16.mxu0 %v8927
  %10203 = vmatpush1.bf16.msra.mxu0 %v8926
  %10204 = vmatprep.subr.bf16.mxu0 %v8935
  %10205 = vmatpush1.bf16.msra.mxu0 %v8934
  %10206 = vmatprep.subr.bf16.mxu0 %v8943
  %10207 = vmatpush1.bf16.msra.mxu0 %v8942
  %10208 = vmatprep.subr.bf16.mxu0 %v8951
  %10209 = vmatpush1.bf16.msra.mxu0 %v8950
  %10210 = vmatprep.subr.bf16.mxu0 %v8959
  %10211 = vmatpush1.bf16.msra.mxu0 %v8958
  %10212 = vmatprep.subr.bf16.mxu0 %v8967
  %10213 = vmatpush1.bf16.msra.mxu0 %v8966
  %10214 = vmatprep.mubr.bf16.mxu0 %v6533
  %10215 = vmatmul.mubr.bf16.gmra.mrb[0].mxu0 %v6532
  %v10216 = vpop.f32.mrb[0].mxu0
  %v10217 = vadd.f32 %v10176, %v10216
  %v10218 = vpop.f32.mrb[0].mxu0
  %v10219 = vadd.f32 %v10178, %v10218
  %v10220 = vpop.f32.mrb[0].mxu0
  %v10221 = vpop.f32.mrb[0].mxu0
  %10222 = vdwg.mxu0
  %10223 = vmatprep.subr.bf16.mxu0 %v8975
  %10224 = vmatpush1.bf16.msra.mxu0 %v8974
  %10225 = vmatprep.subr.bf16.mxu0 %v8983
  %10226 = vmatpush1.bf16.msra.mxu0 %v8982
  %10227 = vmatprep.subr.bf16.mxu0 %v8991
  %10228 = vmatpush1.bf16.msra.mxu0 %v8990
  %10229 = vmatprep.subr.bf16.mxu0 %v8999
  %10230 = vmatpush1.bf16.msra.mxu0 %v8998
  %10231 = vmatprep.subr.bf16.mxu0 %v9007
  %10232 = vmatpush1.bf16.msra.mxu0 %v9006
  %10233 = vmatprep.subr.bf16.mxu0 %v9015
  %10234 = vmatpush1.bf16.msra.mxu0 %v9014
  %10235 = vmatprep.subr.bf16.mxu0 %v9023
  %10236 = vmatpush1.bf16.msra.mxu0 %v9022
  %10237 = vmatprep.subr.bf16.mxu0 %v9031
  %10238 = vmatpush1.bf16.msra.mxu0 %v9030
  %10239 = vmatprep.subr.bf16.mxu0 %v9039
  %10240 = vmatpush1.bf16.msra.mxu0 %v9038
  %10241 = vmatprep.subr.bf16.mxu0 %v9047
  %10242 = vmatpush1.bf16.msra.mxu0 %v9046
  %10243 = vmatprep.subr.bf16.mxu0 %v9055
  %10244 = vmatpush1.bf16.msra.mxu0 %v9054
  %10245 = vmatprep.subr.bf16.mxu0 %v9063
  %10246 = vmatpush1.bf16.msra.mxu0 %v9062
  %10247 = vmatprep.subr.bf16.mxu0 %v9071
  %10248 = vmatpush1.bf16.msra.mxu0 %v9070
  %10249 = vmatprep.subr.bf16.mxu0 %v9079
  %10250 = vmatpush1.bf16.msra.mxu0 %v9078
  %10251 = vmatprep.subr.bf16.mxu0 %v9087
  %10252 = vmatpush1.bf16.msra.mxu0 %v9086
  %10253 = vmatprep.subr.bf16.mxu0 %v9095
  %10254 = vmatpush1.bf16.msra.mxu0 %v9094
  %10255 = vmatprep.mubr.bf16.mxu0 %v6535
  %10256 = vmatmul.mubr.bf16.gmra.mrb[0].mxu0 %v6534
  %v10257 = vpop.f32.mrb[0].mxu0
  %v10258 = vadd.f32 %v10217, %v10257
  %v10259 = vpop.f32.mrb[0].mxu0
  %v10260 = vadd.f32 %v10219, %v10259
  %v10261 = vpop.f32.mrb[0].mxu0
  %v10262 = vpop.f32.mrb[0].mxu0
  %10263 = vdwg.mxu0
  %v10264 = vld [vmem:[%s16] sm:$0xff]
  %v10265 = vld [vmem:[%s17] sm:$0xff]
  %v10266 = vsel %vm6358, %v9766, 0.0
  %v10267 = vsel %vm6358, %v9768, 0.0
  %v10268 = vadd.f32 %v10266, %v10267
  %v10269 = vsel %vm6358, %v9930, 0.0
  %v10270 = vadd.f32 %v10268, %v10269
  %v10271 = vsel %vm6358, %v9932, 0.0
  %v10272 = vadd.f32 %v10270, %v10271
  %v10273 = vsel %vm6358, %v10094, 0.0
  %v10274 = vadd.f32 %v10272, %v10273
  %v10275 = vsel %vm6358, %v10096, 0.0
  %v10276 = vadd.f32 %v10274, %v10275
  %v10277 = vsel %vm6358, %v10258, 0.0
  %v10278 = vadd.f32 %v10276, %v10277
  %v10279 = vsel %vm6358, %v10260, 0.0
  %v10280 = vadd.f32 %v10278, %v10279
  %10281 = vadd.xlane.f32.xlu0 %v10280
  %v10282 = vpop.xlane.xlu0 %10281
  %v10283 = vmul.f32 %v10282, %v6376
  %v10284 = vsub.f32 %v9766, %v10283
  %v10285 = vsub.f32 %v9768, %v10283
  %v10286 = vsub.f32 %v9930, %v10283
  %v10287 = vsub.f32 %v9932, %v10283
  %v10288 = vsub.f32 %v10094, %v10283
  %v10289 = vsub.f32 %v10096, %v10283
  %v10290 = vsub.f32 %v10258, %v10283
  %v10291 = vsub.f32 %v10260, %v10283
  %v10292 = vmul.f32 %v10284, %v10284
  %v10293 = vmul.f32 %v10285, %v10285
  %v10294 = vmul.f32 %v10286, %v10286
  %v10295 = vmul.f32 %v10287, %v10287
  %v10296 = vmul.f32 %v10288, %v10288
  %v10297 = vmul.f32 %v10289, %v10289
  %v10298 = vmul.f32 %v10290, %v10290
  %v10299 = vmul.f32 %v10291, %v10291
  %v10300 = vsel %vm6358, %v10292, 0.0
  %v10301 = vsel %vm6358, %v10293, 0.0
  %v10302 = vadd.f32 %v10300, %v10301
  %v10303 = vsel %vm6358, %v10294, 0.0
  %v10304 = vadd.f32 %v10302, %v10303
  %v10305 = vsel %vm6358, %v10295, 0.0
  %v10306 = vadd.f32 %v10304, %v10305
  %v10307 = vsel %vm6358, %v10296, 0.0
  %v10308 = vadd.f32 %v10306, %v10307
  %v10309 = vsel %vm6358, %v10297, 0.0
  %v10310 = vadd.f32 %v10308, %v10309
  %v10311 = vsel %vm6358, %v10298, 0.0
  %v10312 = vadd.f32 %v10310, %v10311
  %v10313 = vsel %vm6358, %v10299, 0.0
  %v10314 = vadd.f32 %v10312, %v10313
  %10315 = vadd.xlane.f32.xlu0 %v10314
  %v10316 = vpop.xlane.xlu0 %10315
  %v10317 = vmul.f32 %v10316, %v6376
  %v10318 = vadd.f32 %v10317, 1e-05
  %v10319 = vrsqrt.pop %v10318
  %v10320 = vmul.f32 %v10284, %v10319
  %v10321 = vmul.f32 %v10285, %v10319
  %v10322 = vmul.f32 %v10286, %v10319
  %v10323 = vmul.f32 %v10287, %v10319
  %v10324 = vmul.f32 %v10288, %v10319
  %v10325 = vmul.f32 %v10289, %v10319
  %v10326 = vmul.f32 %v10290, %v10319
  %v10327 = vmul.f32 %v10291, %v10319
  %v10329 = vlaneseq
  %v10330 = vshrl.u32 %v10329, 7
  %v10331 = vsub.s32 0, %v10330
  %v10332 = vrot.slane %v10264, %v10331
  %v10333 = vlaneseq
  %v10334 = vshrl.u32 %v10333, 7
  %v10335 = vsub.s32 1, %v10334
  %v10336 = vrot.slane %v10264, %v10335
  %v10337 = vlaneseq
  %v10338 = vshrl.u32 %v10337, 7
  %v10339 = vsub.s32 2, %v10338
  %v10340 = vrot.slane %v10264, %v10339
  %v10341 = vlaneseq
  %v10342 = vshrl.u32 %v10341, 7
  %v10343 = vsub.s32 3, %v10342
  %v10344 = vrot.slane %v10264, %v10343
  %v10345 = vlaneseq
  %v10346 = vshrl.u32 %v10345, 7
  %v10347 = vsub.s32 4, %v10346
  %v10348 = vrot.slane %v10264, %v10347
  %v10349 = vlaneseq
  %v10350 = vshrl.u32 %v10349, 7
  %v10351 = vsub.s32 5, %v10350
  %v10352 = vrot.slane %v10264, %v10351
  %v10353 = vlaneseq
  %v10354 = vshrl.u32 %v10353, 7
  %v10355 = vsub.s32 6, %v10354
  %v10356 = vrot.slane %v10264, %v10355
  %v10357 = vlaneseq
  %v10358 = vshrl.u32 %v10357, 7
  %v10359 = vsub.s32 7, %v10358
  %v10360 = vrot.slane %v10264, %v10359
  %v10369 = vmul.f32 %v10320, %v10332
  %v10370 = vmul.f32 %v10321, %v10336
  %v10371 = vmul.f32 %v10322, %v10340
  %v10372 = vmul.f32 %v10323, %v10344
  %v10373 = vmul.f32 %v10324, %v10348
  %v10374 = vmul.f32 %v10325, %v10352
  %v10375 = vmul.f32 %v10326, %v10356
  %v10376 = vmul.f32 %v10327, %v10360
  %v10378 = vlaneseq
  %v10379 = vshrl.u32 %v10378, 7
  %v10380 = vsub.s32 0, %v10379
  %v10381 = vrot.slane %v10265, %v10380
  %v10382 = vlaneseq
  %v10383 = vshrl.u32 %v10382, 7
  %v10384 = vsub.s32 1, %v10383
  %v10385 = vrot.slane %v10265, %v10384
  %v10386 = vlaneseq
  %v10387 = vshrl.u32 %v10386, 7
  %v10388 = vsub.s32 2, %v10387
  %v10389 = vrot.slane %v10265, %v10388
  %v10390 = vlaneseq
  %v10391 = vshrl.u32 %v10390, 7
  %v10392 = vsub.s32 3, %v10391
  %v10393 = vrot.slane %v10265, %v10392
  %v10394 = vlaneseq
  %v10395 = vshrl.u32 %v10394, 7
  %v10396 = vsub.s32 4, %v10395
  %v10397 = vrot.slane %v10265, %v10396
  %v10398 = vlaneseq
  %v10399 = vshrl.u32 %v10398, 7
  %v10400 = vsub.s32 5, %v10399
  %v10401 = vrot.slane %v10265, %v10400
  %v10402 = vlaneseq
  %v10403 = vshrl.u32 %v10402, 7
  %v10404 = vsub.s32 6, %v10403
  %v10405 = vrot.slane %v10265, %v10404
  %v10406 = vlaneseq
  %v10407 = vshrl.u32 %v10406, 7
  %v10408 = vsub.s32 7, %v10407
  %v10409 = vrot.slane %v10265, %v10408
  %v10418 = vadd.f32 %v10369, %v10381
  %v10419 = vadd.f32 %v10370, %v10385
  %v10420 = vadd.f32 %v10371, %v10389
  %v10421 = vadd.f32 %v10372, %v10393
  %v10422 = vadd.f32 %v10373, %v10397
  %v10423 = vadd.f32 %v10374, %v10401
  %v10424 = vadd.f32 %v10375, %v10405
  %v10425 = vadd.f32 %v10376, %v10409
  %v10426 = vmax.f32 %v10418, 0.0
  %v10427 = vmax.f32 %v10419, 0.0
  %v10428 = vmax.f32 %v10420, 0.0
  %v10429 = vmax.f32 %v10421, 0.0
  %v10430 = vmax.f32 %v10422, 0.0
  %v10431 = vmax.f32 %v10423, 0.0
  %v10432 = vmax.f32 %v10424, 0.0
  %v10433 = vmax.f32 %v10425, 0.0
  %v10434 = vpack.c.bf16 %v10426, %v10426
  %v10435 = vpack.c.bf16 %v10427, %v10427
  %v10436 = vpack.c.bf16 %v10428, %v10428
  %v10437 = vpack.c.bf16 %v10429, %v10429
  %v10438 = vpack.c.bf16 %v10430, %v10430
  %v10439 = vpack.c.bf16 %v10431, %v10431
  %v10440 = vpack.c.bf16 %v10432, %v10432
  %v10441 = vpack.c.bf16 %v10433, %v10433
  %v10442 = vld [vmem:[%s18] sm:$0xf]
  %v10443 = vld [vmem:[%s18 + $0x4] sm:$0xf]
  %v10444 = vld [vmem:[%s18 + $0x8] sm:$0xf]
  %v10445 = vld [vmem:[%s18 + $0xc] sm:$0xf]
  %v10446 = vld [vmem:[%s18 + $0x10] sm:$0xf]
  %v10447 = vld [vmem:[%s18 + $0x14] sm:$0xf]
  %v10448 = vld [vmem:[%s18 + $0x18] sm:$0xf]
  %v10449 = vld [vmem:[%s18 + $0x1c] sm:$0xf]
  %v10450 = vld [vmem:[%s18 + $0x20] sm:$0xf]
  %v10451 = vld [vmem:[%s18 + $0x24] sm:$0xf]
  %v10452 = vld [vmem:[%s18 + $0x28] sm:$0xf]
  %v10453 = vld [vmem:[%s18 + $0x2c] sm:$0xf]
  %v10454 = vld [vmem:[%s18 + $0x30] sm:$0xf]
  %v10455 = vld [vmem:[%s18 + $0x34] sm:$0xf]
  %v10456 = vld [vmem:[%s18 + $0x38] sm:$0xf]
  %v10457 = vld [vmem:[%s18 + $0x3c] sm:$0xf]
  %v10458 = vld [vmem:[%s18 + $0x40] sm:$0xf]
  %v10459 = vld [vmem:[%s18 + $0x44] sm:$0xf]
  %v10460 = vld [vmem:[%s18 + $0x48] sm:$0xf]
  %v10461 = vld [vmem:[%s18 + $0x4c] sm:$0xf]
  %v10462 = vld [vmem:[%s18 + $0x50] sm:$0xf]
  %v10463 = vld [vmem:[%s18 + $0x54] sm:$0xf]
  %v10464 = vld [vmem:[%s18 + $0x58] sm:$0xf]
  %v10465 = vld [vmem:[%s18 + $0x5c] sm:$0xf]
  %v10466 = vld [vmem:[%s18 + $0x60] sm:$0xf]
  %v10467 = vld [vmem:[%s18 + $0x64] sm:$0xf]
  %v10468 = vld [vmem:[%s18 + $0x68] sm:$0xf]
  %v10469 = vld [vmem:[%s18 + $0x6c] sm:$0xf]
  %v10470 = vld [vmem:[%s18 + $0x70] sm:$0xf]
  %v10471 = vld [vmem:[%s18 + $0x74] sm:$0xf]
  %v10472 = vld [vmem:[%s18 + $0x78] sm:$0xf]
  %v10473 = vld [vmem:[%s18 + $0x7c] sm:$0xf]
  %v10474 = vld [vmem:[%s18 + $0x80] sm:$0xf]
  %v10475 = vld [vmem:[%s18 + $0x84] sm:$0xf]
  %v10476 = vld [vmem:[%s18 + $0x88] sm:$0xf]
  %v10477 = vld [vmem:[%s18 + $0x8c] sm:$0xf]
  %v10478 = vld [vmem:[%s18 + $0x90] sm:$0xf]
  %v10479 = vld [vmem:[%s18 + $0x94] sm:$0xf]
  %v10480 = vld [vmem:[%s18 + $0x98] sm:$0xf]
  %v10481 = vld [vmem:[%s18 + $0x9c] sm:$0xf]
  %v10482 = vld [vmem:[%s18 + $0xa0] sm:$0xf]
  %v10483 = vld [vmem:[%s18 + $0xa4] sm:$0xf]
  %v10484 = vld [vmem:[%s18 + $0xa8] sm:$0xf]
  %v10485 = vld [vmem:[%s18 + $0xac] sm:$0xf]
  %v10486 = vld [vmem:[%s18 + $0xb0] sm:$0xf]
  %v10487 = vld [vmem:[%s18 + $0xb4] sm:$0xf]
  %v10488 = vld [vmem:[%s18 + $0xb8] sm:$0xf]
  %v10489 = vld [vmem:[%s18 + $0xbc] sm:$0xf]
  %v10490 = vld [vmem:[%s18 + $0xc0] sm:$0xf]
  %v10491 = vld [vmem:[%s18 + $0xc4] sm:$0xf]
  %v10492 = vld [vmem:[%s18 + $0xc8] sm:$0xf]
  %v10493 = vld [vmem:[%s18 + $0xcc] sm:$0xf]
  %v10494 = vld [vmem:[%s18 + $0xd0] sm:$0xf]
  %v10495 = vld [vmem:[%s18 + $0xd4] sm:$0xf]
  %v10496 = vld [vmem:[%s18 + $0xd8] sm:$0xf]
  %v10497 = vld [vmem:[%s18 + $0xdc] sm:$0xf]
  %v10498 = vld [vmem:[%s18 + $0xe0] sm:$0xf]
  %v10499 = vld [vmem:[%s18 + $0xe4] sm:$0xf]
  %v10500 = vld [vmem:[%s18 + $0xe8] sm:$0xf]
  %v10501 = vld [vmem:[%s18 + $0xec] sm:$0xf]
  %v10502 = vld [vmem:[%s18 + $0xf0] sm:$0xf]
  %v10503 = vld [vmem:[%s18 + $0xf4] sm:$0xf]
  %v10504 = vld [vmem:[%s18 + $0xf8] sm:$0xf]
  %v10505 = vld [vmem:[%s18 + $0xfc] sm:$0xf]
  %v10506 = vld [vmem:[%s18 + $0x100] sm:$0xf]
  %v10507 = vld [vmem:[%s18 + $0x104] sm:$0xf]
  %v10508 = vld [vmem:[%s18 + $0x108] sm:$0xf]
  %v10509 = vld [vmem:[%s18 + $0x10c] sm:$0xf]
  %v10510 = vld [vmem:[%s18 + $0x110] sm:$0xf]
  %v10511 = vld [vmem:[%s18 + $0x114] sm:$0xf]
  %v10512 = vld [vmem:[%s18 + $0x118] sm:$0xf]
  %v10513 = vld [vmem:[%s18 + $0x11c] sm:$0xf]
  %v10514 = vld [vmem:[%s18 + $0x120] sm:$0xf]
  %v10515 = vld [vmem:[%s18 + $0x124] sm:$0xf]
  %v10516 = vld [vmem:[%s18 + $0x128] sm:$0xf]
  %v10517 = vld [vmem:[%s18 + $0x12c] sm:$0xf]
  %v10518 = vld [vmem:[%s18 + $0x130] sm:$0xf]
  %v10519 = vld [vmem:[%s18 + $0x134] sm:$0xf]
  %v10520 = vld [vmem:[%s18 + $0x138] sm:$0xf]
  %v10521 = vld [vmem:[%s18 + $0x13c] sm:$0xf]
  %v10522 = vld [vmem:[%s18 + $0x140] sm:$0xf]
  %v10523 = vld [vmem:[%s18 + $0x144] sm:$0xf]
  %v10524 = vld [vmem:[%s18 + $0x148] sm:$0xf]
  %v10525 = vld [vmem:[%s18 + $0x14c] sm:$0xf]
  %v10526 = vld [vmem:[%s18 + $0x150] sm:$0xf]
  %v10527 = vld [vmem:[%s18 + $0x154] sm:$0xf]
  %v10528 = vld [vmem:[%s18 + $0x158] sm:$0xf]
  %v10529 = vld [vmem:[%s18 + $0x15c] sm:$0xf]
  %v10530 = vld [vmem:[%s18 + $0x160] sm:$0xf]
  %v10531 = vld [vmem:[%s18 + $0x164] sm:$0xf]
  %v10532 = vld [vmem:[%s18 + $0x168] sm:$0xf]
  %v10533 = vld [vmem:[%s18 + $0x16c] sm:$0xf]
  %v10534 = vld [vmem:[%s18 + $0x170] sm:$0xf]
  %v10535 = vld [vmem:[%s18 + $0x174] sm:$0xf]
  %v10536 = vld [vmem:[%s18 + $0x178] sm:$0xf]
  %v10537 = vld [vmem:[%s18 + $0x17c] sm:$0xf]
  %v10538 = vld [vmem:[%s18 + $0x180] sm:$0xf]
  %v10539 = vld [vmem:[%s18 + $0x184] sm:$0xf]
  %v10540 = vld [vmem:[%s18 + $0x188] sm:$0xf]
  %v10541 = vld [vmem:[%s18 + $0x18c] sm:$0xf]
  %v10542 = vld [vmem:[%s18 + $0x190] sm:$0xf]
  %v10543 = vld [vmem:[%s18 + $0x194] sm:$0xf]
  %v10544 = vld [vmem:[%s18 + $0x198] sm:$0xf]
  %v10545 = vld [vmem:[%s18 + $0x19c] sm:$0xf]
  %v10546 = vld [vmem:[%s18 + $0x1a0] sm:$0xf]
  %v10547 = vld [vmem:[%s18 + $0x1a4] sm:$0xf]
  %v10548 = vld [vmem:[%s18 + $0x1a8] sm:$0xf]
  %v10549 = vld [vmem:[%s18 + $0x1ac] sm:$0xf]
  %v10550 = vld [vmem:[%s18 + $0x1b0] sm:$0xf]
  %v10551 = vld [vmem:[%s18 + $0x1b4] sm:$0xf]
  %v10552 = vld [vmem:[%s18 + $0x1b8] sm:$0xf]
  %v10553 = vld [vmem:[%s18 + $0x1bc] sm:$0xf]
  %v10554 = vld [vmem:[%s18 + $0x1c0] sm:$0xf]
  %v10555 = vld [vmem:[%s18 + $0x1c4] sm:$0xf]
  %v10556 = vld [vmem:[%s18 + $0x1c8] sm:$0xf]
  %v10557 = vld [vmem:[%s18 + $0x1cc] sm:$0xf]
  %v10558 = vld [vmem:[%s18 + $0x1d0] sm:$0xf]
  %v10559 = vld [vmem:[%s18 + $0x1d4] sm:$0xf]
  %v10560 = vld [vmem:[%s18 + $0x1d8] sm:$0xf]
  %v10561 = vld [vmem:[%s18 + $0x1dc] sm:$0xf]
  %v10562 = vld [vmem:[%s18 + $0x1e0] sm:$0xf]
  %v10563 = vld [vmem:[%s18 + $0x1e4] sm:$0xf]
  %v10564 = vld [vmem:[%s18 + $0x1e8] sm:$0xf]
  %v10565 = vld [vmem:[%s18 + $0x1ec] sm:$0xf]
  %v10566 = vld [vmem:[%s18 + $0x1f0] sm:$0xf]
  %v10567 = vld [vmem:[%s18 + $0x1f4] sm:$0xf]
  %v10568 = vld [vmem:[%s18 + $0x1f8] sm:$0xf]
  %v10569 = vld [vmem:[%s18 + $0x1fc] sm:$0xf]
  %v10570 = vld [vmem:[%s19] sm:$0x1]
  %v10572 = vlaneseq
  %v10573 = vshrl.u32 %v10572, 7
  %v10574 = vsub.s32 0, %v10573
  %v10575 = vrot.slane %v10570, %v10574
  %v10705 = vunpack.c.l.b16 %v10442
  %v10706 = vunpack.c.l.b16 %v10443
  %v10707 = vunpack.c.l.b16 %v10444
  %v10708 = vunpack.c.l.b16 %v10445
  %v10709 = vunpack.c.l.b16 %v10446
  %v10710 = vunpack.c.l.b16 %v10447
  %v10711 = vunpack.c.l.b16 %v10448
  %v10712 = vunpack.c.l.b16 %v10449
  %v10713 = vunpack.c.l.b16 %v10450
  %v10714 = vunpack.c.l.b16 %v10451
  %v10715 = vunpack.c.l.b16 %v10452
  %v10716 = vunpack.c.l.b16 %v10453
  %v10717 = vunpack.c.l.b16 %v10454
  %v10718 = vunpack.c.l.b16 %v10455
  %v10719 = vunpack.c.l.b16 %v10456
  %v10720 = vunpack.c.l.b16 %v10457
  %v10721 = vunpack.c.l.b16 %v10458
  %v10722 = vunpack.c.l.b16 %v10459
  %v10723 = vunpack.c.l.b16 %v10460
  %v10724 = vunpack.c.l.b16 %v10461
  %v10725 = vunpack.c.l.b16 %v10462
  %v10726 = vunpack.c.l.b16 %v10463
  %v10727 = vunpack.c.l.b16 %v10464
  %v10728 = vunpack.c.l.b16 %v10465
  %v10729 = vunpack.c.l.b16 %v10466
  %v10730 = vunpack.c.l.b16 %v10467
  %v10731 = vunpack.c.l.b16 %v10468
  %v10732 = vunpack.c.l.b16 %v10469
  %v10733 = vunpack.c.l.b16 %v10470
  %v10734 = vunpack.c.l.b16 %v10471
  %v10735 = vunpack.c.l.b16 %v10472
  %v10736 = vunpack.c.l.b16 %v10473
  %v10737 = vunpack.c.l.b16 %v10474
  %v10738 = vunpack.c.l.b16 %v10475
  %v10739 = vunpack.c.l.b16 %v10476
  %v10740 = vunpack.c.l.b16 %v10477
  %v10741 = vunpack.c.l.b16 %v10478
  %v10742 = vunpack.c.l.b16 %v10479
  %v10743 = vunpack.c.l.b16 %v10480
  %v10744 = vunpack.c.l.b16 %v10481
  %v10745 = vunpack.c.l.b16 %v10482
  %v10746 = vunpack.c.l.b16 %v10483
  %v10747 = vunpack.c.l.b16 %v10484
  %v10748 = vunpack.c.l.b16 %v10485
  %v10749 = vunpack.c.l.b16 %v10486
  %v10750 = vunpack.c.l.b16 %v10487
  %v10751 = vunpack.c.l.b16 %v10488
  %v10752 = vunpack.c.l.b16 %v10489
  %v10753 = vunpack.c.l.b16 %v10490
  %v10754 = vunpack.c.l.b16 %v10491
  %v10755 = vunpack.c.l.b16 %v10492
  %v10756 = vunpack.c.l.b16 %v10493
  %v10757 = vunpack.c.l.b16 %v10494
  %v10758 = vunpack.c.l.b16 %v10495
  %v10759 = vunpack.c.l.b16 %v10496
  %v10760 = vunpack.c.l.b16 %v10497
  %v10761 = vunpack.c.l.b16 %v10498
  %v10762 = vunpack.c.l.b16 %v10499
  %v10763 = vunpack.c.l.b16 %v10500
  %v10764 = vunpack.c.l.b16 %v10501
  %v10765 = vunpack.c.l.b16 %v10502
  %v10766 = vunpack.c.l.b16 %v10503
  %v10767 = vunpack.c.l.b16 %v10504
  %v10768 = vunpack.c.l.b16 %v10505
  %v10769 = vunpack.c.l.b16 %v10506
  %v10770 = vunpack.c.l.b16 %v10507
  %v10771 = vunpack.c.l.b16 %v10508
  %v10772 = vunpack.c.l.b16 %v10509
  %v10773 = vunpack.c.l.b16 %v10510
  %v10774 = vunpack.c.l.b16 %v10511
  %v10775 = vunpack.c.l.b16 %v10512
  %v10776 = vunpack.c.l.b16 %v10513
  %v10777 = vunpack.c.l.b16 %v10514
  %v10778 = vunpack.c.l.b16 %v10515
  %v10779 = vunpack.c.l.b16 %v10516
  %v10780 = vunpack.c.l.b16 %v10517
  %v10781 = vunpack.c.l.b16 %v10518
  %v10782 = vunpack.c.l.b16 %v10519
  %v10783 = vunpack.c.l.b16 %v10520
  %v10784 = vunpack.c.l.b16 %v10521
  %v10785 = vunpack.c.l.b16 %v10522
  %v10786 = vunpack.c.l.b16 %v10523
  %v10787 = vunpack.c.l.b16 %v10524
  %v10788 = vunpack.c.l.b16 %v10525
  %v10789 = vunpack.c.l.b16 %v10526
  %v10790 = vunpack.c.l.b16 %v10527
  %v10791 = vunpack.c.l.b16 %v10528
  %v10792 = vunpack.c.l.b16 %v10529
  %v10793 = vunpack.c.l.b16 %v10530
  %v10794 = vunpack.c.l.b16 %v10531
  %v10795 = vunpack.c.l.b16 %v10532
  %v10796 = vunpack.c.l.b16 %v10533
  %v10797 = vunpack.c.l.b16 %v10534
  %v10798 = vunpack.c.l.b16 %v10535
  %v10799 = vunpack.c.l.b16 %v10536
  %v10800 = vunpack.c.l.b16 %v10537
  %v10801 = vunpack.c.l.b16 %v10538
  %v10802 = vunpack.c.l.b16 %v10539
  %v10803 = vunpack.c.l.b16 %v10540
  %v10804 = vunpack.c.l.b16 %v10541
  %v10805 = vunpack.c.l.b16 %v10542
  %v10806 = vunpack.c.l.b16 %v10543
  %v10807 = vunpack.c.l.b16 %v10544
  %v10808 = vunpack.c.l.b16 %v10545
  %v10809 = vunpack.c.l.b16 %v10546
  %v10810 = vunpack.c.l.b16 %v10547
  %v10811 = vunpack.c.l.b16 %v10548
  %v10812 = vunpack.c.l.b16 %v10549
  %v10813 = vunpack.c.l.b16 %v10550
  %v10814 = vunpack.c.l.b16 %v10551
  %v10815 = vunpack.c.l.b16 %v10552
  %v10816 = vunpack.c.l.b16 %v10553
  %v10817 = vunpack.c.l.b16 %v10554
  %v10818 = vunpack.c.l.b16 %v10555
  %v10819 = vunpack.c.l.b16 %v10556
  %v10820 = vunpack.c.l.b16 %v10557
  %v10821 = vunpack.c.l.b16 %v10558
  %v10822 = vunpack.c.l.b16 %v10559
  %v10823 = vunpack.c.l.b16 %v10560
  %v10824 = vunpack.c.l.b16 %v10561
  %v10825 = vunpack.c.l.b16 %v10562
  %v10826 = vunpack.c.l.b16 %v10563
  %v10827 = vunpack.c.l.b16 %v10564
  %v10828 = vunpack.c.l.b16 %v10565
  %v10829 = vunpack.c.l.b16 %v10566
  %v10830 = vunpack.c.l.b16 %v10567
  %v10831 = vunpack.c.l.b16 %v10568
  %v10832 = vunpack.c.l.b16 %v10569
  %v10833 = vpack.c.b16 %v10706, %v10705
  %v10834 = vpack.c.b16 %v10708, %v10707
  %v10835 = vpack.c.b16 %v10710, %v10709
  %v10836 = vpack.c.b16 %v10712, %v10711
  %v10837 = vpack.c.b16 %v10714, %v10713
  %v10838 = vpack.c.b16 %v10716, %v10715
  %v10839 = vpack.c.b16 %v10718, %v10717
  %v10840 = vpack.c.b16 %v10720, %v10719
  %v10841 = vpack.c.b16 %v10722, %v10721
  %v10842 = vpack.c.b16 %v10724, %v10723
  %v10843 = vpack.c.b16 %v10726, %v10725
  %v10844 = vpack.c.b16 %v10728, %v10727
  %v10845 = vpack.c.b16 %v10730, %v10729
  %v10846 = vpack.c.b16 %v10732, %v10731
  %v10847 = vpack.c.b16 %v10734, %v10733
  %v10848 = vpack.c.b16 %v10736, %v10735
  %v10849 = vpack.c.b16 %v10738, %v10737
  %v10850 = vpack.c.b16 %v10740, %v10739
  %v10851 = vpack.c.b16 %v10742, %v10741
  %v10852 = vpack.c.b16 %v10744, %v10743
  %v10853 = vpack.c.b16 %v10746, %v10745
  %v10854 = vpack.c.b16 %v10748, %v10747
  %v10855 = vpack.c.b16 %v10750, %v10749
  %v10856 = vpack.c.b16 %v10752, %v10751
  %v10857 = vpack.c.b16 %v10754, %v10753
  %v10858 = vpack.c.b16 %v10756, %v10755
  %v10859 = vpack.c.b16 %v10758, %v10757
  %v10860 = vpack.c.b16 %v10760, %v10759
  %v10861 = vpack.c.b16 %v10762, %v10761
  %v10862 = vpack.c.b16 %v10764, %v10763
  %v10863 = vpack.c.b16 %v10766, %v10765
  %v10864 = vpack.c.b16 %v10768, %v10767
  %v10865 = vpack.c.b16 %v10770, %v10769
  %v10866 = vpack.c.b16 %v10772, %v10771
  %v10867 = vpack.c.b16 %v10774, %v10773
  %v10868 = vpack.c.b16 %v10776, %v10775
  %v10869 = vpack.c.b16 %v10778, %v10777
  %v10870 = vpack.c.b16 %v10780, %v10779
  %v10871 = vpack.c.b16 %v10782, %v10781
  %v10872 = vpack.c.b16 %v10784, %v10783
  %v10873 = vpack.c.b16 %v10786, %v10785
  %v10874 = vpack.c.b16 %v10788, %v10787
  %v10875 = vpack.c.b16 %v10790, %v10789
  %v10876 = vpack.c.b16 %v10792, %v10791
  %v10877 = vpack.c.b16 %v10794, %v10793
  %v10878 = vpack.c.b16 %v10796, %v10795
  %v10879 = vpack.c.b16 %v10798, %v10797
  %v10880 = vpack.c.b16 %v10800, %v10799
  %v10881 = vpack.c.b16 %v10802, %v10801
  %v10882 = vpack.c.b16 %v10804, %v10803
  %v10883 = vpack.c.b16 %v10806, %v10805
  %v10884 = vpack.c.b16 %v10808, %v10807
  %v10885 = vpack.c.b16 %v10810, %v10809
  %v10886 = vpack.c.b16 %v10812, %v10811
  %v10887 = vpack.c.b16 %v10814, %v10813
  %v10888 = vpack.c.b16 %v10816, %v10815
  %v10889 = vpack.c.b16 %v10818, %v10817
  %v10890 = vpack.c.b16 %v10820, %v10819
  %v10891 = vpack.c.b16 %v10822, %v10821
  %v10892 = vpack.c.b16 %v10824, %v10823
  %v10893 = vpack.c.b16 %v10826, %v10825
  %v10894 = vpack.c.b16 %v10828, %v10827
  %v10895 = vpack.c.b16 %v10830, %v10829
  %v10896 = vpack.c.b16 %v10832, %v10831
  %10961 = vmatprep.subr.bf16.mxu0 0
  %10962 = vmatpush1.bf16.msra.mxu0 %v10833
  %10963 = vmatprep.subr.bf16.mxu0 0
  %10964 = vmatpush1.bf16.msra.mxu0 %v10834
  %10965 = vmatprep.subr.bf16.mxu0 0
  %10966 = vmatpush1.bf16.msra.mxu0 %v10835
  %10967 = vmatprep.subr.bf16.mxu0 0
  %10968 = vmatpush1.bf16.msra.mxu0 %v10836
  %10969 = vmatprep.subr.bf16.mxu0 0
  %10970 = vmatpush1.bf16.msra.mxu0 %v10837
  %10971 = vmatprep.subr.bf16.mxu0 0
  %10972 = vmatpush1.bf16.msra.mxu0 %v10838
  %10973 = vmatprep.subr.bf16.mxu0 0
  %10974 = vmatpush1.bf16.msra.mxu0 %v10839
  %10975 = vmatprep.subr.bf16.mxu0 0
  %10976 = vmatpush1.bf16.msra.mxu0 %v10840
  %10977 = vmatprep.subr.bf16.mxu0 0
  %10978 = vmatpush1.bf16.msra.mxu0 %v10841
  %10979 = vmatprep.subr.bf16.mxu0 0
  %10980 = vmatpush1.bf16.msra.mxu0 %v10842
  %10981 = vmatprep.subr.bf16.mxu0 0
  %10982 = vmatpush1.bf16.msra.mxu0 %v10843
  %10983 = vmatprep.subr.bf16.mxu0 0
  %10984 = vmatpush1.bf16.msra.mxu0 %v10844
  %10985 = vmatprep.subr.bf16.mxu0 0
  %10986 = vmatpush1.bf16.msra.mxu0 %v10845
  %10987 = vmatprep.subr.bf16.mxu0 0
  %10988 = vmatpush1.bf16.msra.mxu0 %v10846
  %10989 = vmatprep.subr.bf16.mxu0 0
  %10990 = vmatpush1.bf16.msra.mxu0 %v10847
  %10991 = vmatprep.subr.bf16.mxu0 0
  %10992 = vmatpush1.bf16.msra.mxu0 %v10848
  %10993 = vmatprep.mubr.bf16.mxu0 %v10435
  %10994 = vmatmul.mubr.bf16.gmra.mrb[0].mxu0 %v10434
  %v10995 = vpop.f32.mrb[0].mxu0
  %v10996 = vadd.f32 %v10575, %v10995
  %v10997 = vpop.f32.mrb[0].mxu0
  %v10998 = vpop.f32.mrb[0].mxu0
  %v10999 = vpop.f32.mrb[0].mxu0
  %11000 = vdwg.mxu0
  %11001 = vmatprep.subr.bf16.mxu0 0
  %11002 = vmatpush1.bf16.msra.mxu0 %v10849
  %11003 = vmatprep.subr.bf16.mxu0 0
  %11004 = vmatpush1.bf16.msra.mxu0 %v10850
  %11005 = vmatprep.subr.bf16.mxu0 0
  %11006 = vmatpush1.bf16.msra.mxu0 %v10851
  %11007 = vmatprep.subr.bf16.mxu0 0
  %11008 = vmatpush1.bf16.msra.mxu0 %v10852
  %11009 = vmatprep.subr.bf16.mxu0 0
  %11010 = vmatpush1.bf16.msra.mxu0 %v10853
  %11011 = vmatprep.subr.bf16.mxu0 0
  %11012 = vmatpush1.bf16.msra.mxu0 %v10854
  %11013 = vmatprep.subr.bf16.mxu0 0
  %11014 = vmatpush1.bf16.msra.mxu0 %v10855
  %11015 = vmatprep.subr.bf16.mxu0 0
  %11016 = vmatpush1.bf16.msra.mxu0 %v10856
  %11017 = vmatprep.subr.bf16.mxu0 0
  %11018 = vmatpush1.bf16.msra.mxu0 %v10857
  %11019 = vmatprep.subr.bf16.mxu0 0
  %11020 = vmatpush1.bf16.msra.mxu0 %v10858
  %11021 = vmatprep.subr.bf16.mxu0 0
  %11022 = vmatpush1.bf16.msra.mxu0 %v10859
  %11023 = vmatprep.subr.bf16.mxu0 0
  %11024 = vmatpush1.bf16.msra.mxu0 %v10860
  %11025 = vmatprep.subr.bf16.mxu0 0
  %11026 = vmatpush1.bf16.msra.mxu0 %v10861
  %11027 = vmatprep.subr.bf16.mxu0 0
  %11028 = vmatpush1.bf16.msra.mxu0 %v10862
  %11029 = vmatprep.subr.bf16.mxu0 0
  %11030 = vmatpush1.bf16.msra.mxu0 %v10863
  %11031 = vmatprep.subr.bf16.mxu0 0
  %11032 = vmatpush1.bf16.msra.mxu0 %v10864
  %11033 = vmatprep.mubr.bf16.mxu0 %v10437
  %11034 = vmatmul.mubr.bf16.gmra.mrb[0].mxu0 %v10436
  %v11035 = vpop.f32.mrb[0].mxu0
  %v11036 = vadd.f32 %v10996, %v11035
  %v11037 = vpop.f32.mrb[0].mxu0
  %v11038 = vpop.f32.mrb[0].mxu0
  %v11039 = vpop.f32.mrb[0].mxu0
  %11040 = vdwg.mxu0
  %11041 = vmatprep.subr.bf16.mxu0 0
  %11042 = vmatpush1.bf16.msra.mxu0 %v10865
  %11043 = vmatprep.subr.bf16.mxu0 0
  %11044 = vmatpush1.bf16.msra.mxu0 %v10866
  %11045 = vmatprep.subr.bf16.mxu0 0
  %11046 = vmatpush1.bf16.msra.mxu0 %v10867
  %11047 = vmatprep.subr.bf16.mxu0 0
  %11048 = vmatpush1.bf16.msra.mxu0 %v10868
  %11049 = vmatprep.subr.bf16.mxu0 0
  %11050 = vmatpush1.bf16.msra.mxu0 %v10869
  %11051 = vmatprep.subr.bf16.mxu0 0
  %11052 = vmatpush1.bf16.msra.mxu0 %v10870
  %11053 = vmatprep.subr.bf16.mxu0 0
  %11054 = vmatpush1.bf16.msra.mxu0 %v10871
  %11055 = vmatprep.subr.bf16.mxu0 0
  %11056 = vmatpush1.bf16.msra.mxu0 %v10872
  %11057 = vmatprep.subr.bf16.mxu0 0
  %11058 = vmatpush1.bf16.msra.mxu0 %v10873
  %11059 = vmatprep.subr.bf16.mxu0 0
  %11060 = vmatpush1.bf16.msra.mxu0 %v10874
  %11061 = vmatprep.subr.bf16.mxu0 0
  %11062 = vmatpush1.bf16.msra.mxu0 %v10875
  %11063 = vmatprep.subr.bf16.mxu0 0
  %11064 = vmatpush1.bf16.msra.mxu0 %v10876
  %11065 = vmatprep.subr.bf16.mxu0 0
  %11066 = vmatpush1.bf16.msra.mxu0 %v10877
  %11067 = vmatprep.subr.bf16.mxu0 0
  %11068 = vmatpush1.bf16.msra.mxu0 %v10878
  %11069 = vmatprep.subr.bf16.mxu0 0
  %11070 = vmatpush1.bf16.msra.mxu0 %v10879
  %11071 = vmatprep.subr.bf16.mxu0 0
  %11072 = vmatpush1.bf16.msra.mxu0 %v10880
  %11073 = vmatprep.mubr.bf16.mxu0 %v10439
  %11074 = vmatmul.mubr.bf16.gmra.mrb[0].mxu0 %v10438
  %v11075 = vpop.f32.mrb[0].mxu0
  %v11076 = vadd.f32 %v11036, %v11075
  %v11077 = vpop.f32.mrb[0].mxu0
  %v11078 = vpop.f32.mrb[0].mxu0
  %v11079 = vpop.f32.mrb[0].mxu0
  %11080 = vdwg.mxu0
  %11081 = vmatprep.subr.bf16.mxu0 0
  %11082 = vmatpush1.bf16.msra.mxu0 %v10881
  %11083 = vmatprep.subr.bf16.mxu0 0
  %11084 = vmatpush1.bf16.msra.mxu0 %v10882
  %11085 = vmatprep.subr.bf16.mxu0 0
  %11086 = vmatpush1.bf16.msra.mxu0 %v10883
  %11087 = vmatprep.subr.bf16.mxu0 0
  %11088 = vmatpush1.bf16.msra.mxu0 %v10884
  %11089 = vmatprep.subr.bf16.mxu0 0
  %11090 = vmatpush1.bf16.msra.mxu0 %v10885
  %11091 = vmatprep.subr.bf16.mxu0 0
  %11092 = vmatpush1.bf16.msra.mxu0 %v10886
  %11093 = vmatprep.subr.bf16.mxu0 0
  %11094 = vmatpush1.bf16.msra.mxu0 %v10887
  %11095 = vmatprep.subr.bf16.mxu0 0
  %11096 = vmatpush1.bf16.msra.mxu0 %v10888
  %11097 = vmatprep.subr.bf16.mxu0 0
  %11098 = vmatpush1.bf16.msra.mxu0 %v10889
  %11099 = vmatprep.subr.bf16.mxu0 0
  %11100 = vmatpush1.bf16.msra.mxu0 %v10890
  %11101 = vmatprep.subr.bf16.mxu0 0
  %11102 = vmatpush1.bf16.msra.mxu0 %v10891
  %11103 = vmatprep.subr.bf16.mxu0 0
  %11104 = vmatpush1.bf16.msra.mxu0 %v10892
  %11105 = vmatprep.subr.bf16.mxu0 0
  %11106 = vmatpush1.bf16.msra.mxu0 %v10893
  %11107 = vmatprep.subr.bf16.mxu0 0
  %11108 = vmatpush1.bf16.msra.mxu0 %v10894
  %11109 = vmatprep.subr.bf16.mxu0 0
  %11110 = vmatpush1.bf16.msra.mxu0 %v10895
  %11111 = vmatprep.subr.bf16.mxu0 0
  %11112 = vmatpush1.bf16.msra.mxu0 %v10896
  %11113 = vmatprep.mubr.bf16.mxu0 %v10441
  %11114 = vmatmul.mubr.bf16.gmra.mrb[0].mxu0 %v10440
  %v11115 = vpop.f32.mrb[0].mxu0
  %v11116 = vadd.f32 %v11076, %v11115
  %v11117 = vpop.f32.mrb[0].mxu0
  %v11118 = vpop.f32.mrb[0].mxu0
  %v11119 = vpop.f32.mrb[0].mxu0
  %11120 = vdwg.mxu0
  %v11121 = vmul.f32 %v11116, %v11116
  %vm11122 = vcmask 25600
  %v11123 = vsel %vm11122, %v11121, 0.0
  %11124 = vadd.xlane.f32.xlu0 %v11123
  %v11125 = vpop.xlane.xlu0 %11124
  %v11126 = vrsqrt.pop %v11125
  %v11127 = vmul.f32 %v11125, %v11126
  %vm11128 = vcmp.eq.f32.partialorder %v11125, inf
  %v11129 = vsel %vm11128, %v11125, %v11127
  %vm11130 = vcmp.eq.f32.partialorder %v11125, 0.0
  %v11131 = vand.u32 %v11125, 2147483648
  %v11132 = vsel %vm11130, %v11131, %v11129
  %v11133 = vmax.f32 %v11132, 1e-12
  %v11134 = vrcp.pop %v11133
  %v11135 = vmul.f32 %v11116, %v11134
  %11136 = vst.msk [vmem:[%s20] sm:$0x3] %vm11122, %v11135
  %vm11137 = vcmask 58400
  %11138 = vst.msk [vmem:[%s20] sm:$0x3] %vm11137, %v11116
  // Predicated region
  $region82: #{deepv2_forward.1} parent=0 // pred_check
    _
  $region83: #{deepv2_forward.1} parent=0 // pred_check_branch
    %11140 = sbr.rel (0) target = $region85
  $region84: #{deepv2_forward.1} parent=0 // pred_region
    _
  $region85: #{deepv2_forward.1} parent=0 // pred_fallthru
    _
  // Predicated region
  $region86: #{deepv2_forward.1} parent=0 // pred_check
    _
  $region87: #{deepv2_forward.1} parent=0 // pred_check_branch
    %11142 = sbr.rel (0) target = $region89
  $region88: #{deepv2_forward.1} parent=0 // pred_region
    _
  $region89: #{deepv2_forward.1} parent=0 // pred_fallthru
    _

</llo_original>
